<compile_context>
chip_gen: v6e
topology: v6e:2x2x1
jax: 0.10.0
libtpu: 0.0.40
codegen_flags: <defaults>
</compile_context>

<pallas_src>
from functools import partial

import jax
import jax.numpy as jnp
from jax.experimental import pallas as pl
from jax.experimental.pallas import tpu as pltpu


def _round_up(v, m):
    return ((v + m - 1) // m) * m


def _graphcnn_kernel(x_ref, adj_ref, w_ref, b_ref, mask_ref,
                     node_ref, graph_ref, h_ref, hw_ref, pool_ref,
                     *, num_graphs_pad):
    l = pl.program_id(0)            # 0 = transform prologue, 1..L = GCN layers
    i = pl.program_id(1)            # node row-tile index
    n_steps = pl.num_programs(0)    # L + 1
    n_tiles = pl.num_programs(1)
    last = n_steps - 1
    tm = x_ref.shape[0]
    n_pad = h_ref.shape[0]
    neg = jnp.float32(-3.0e38)

    row0 = pl.multiple_of(i * tm, 128)
    # Parity double buffer for the staged H@W product: step l aggregates from
    # slot (l % 2) and writes the next layer's transform into slot (1 - l % 2).
    cur = l % 2
    read_off = pl.multiple_of(cur * n_pad, 128)
    write_off = pl.multiple_of((1 - cur) * n_pad + i * tm, 128)

    # ---- Prologue (l == 0): stream x tiles and stage HW_0 = X @ W_0 (MXU). ----
    # (The residual stream H does not need x: layer 1 overwrites it with relu(y).)
    @pl.when(l == 0)
    def _():
        hw0 = jnp.dot(x_ref[...], w_ref[...], preferred_element_type=jnp.float32)
        hw_ref[pl.ds(write_off, tm), :] = hw0.astype(jnp.bfloat16)

    # ---- GCN layer steps (l >= 1; GCN layer index is l - 1). ----
    @pl.when(l > 0)
    def _():
        # Neighborhood aggregation: y = A_hat[tile, :] @ (H W_{l-1}) + b_{l-1}.
        hw_cur = hw_ref[pl.ds(read_off, n_pad), :]
        y = jnp.dot(adj_ref[...], hw_cur,
                    preferred_element_type=jnp.float32) + b_ref[...]
        relu_y = jnp.maximum(y, 0.0)

        # Layer 0: h = relu(y); layers 1, 2: h = h + relu(y) (residual stream).
        # (drop1 = Dropout(0.2) is identity at inference; the layer-2 grad-hook
        #  bookkeeping has no forward effect.)
        @pl.when(l == 1)
        def _():
            h_ref[pl.ds(row0, tm), :] = relu_y

        @pl.when(l > 1)
        def _():
            h_ref[pl.ds(row0, tm), :] = h_ref[pl.ds(row0, tm), :] + relu_y

        h_new = h_ref[pl.ds(row0, tm), :]

        # Fused next-layer feature transform for this tile (overlaps with the
        # adjacency DMA / aggregation of the following tiles).
        @pl.when(l < last)
        def _():
            hw_nxt = jnp.dot(h_new.astype(jnp.bfloat16), w_ref[...],
                             preferred_element_type=jnp.float32)
            hw_ref[pl.ds(write_off, tm), :] = hw_nxt.astype(jnp.bfloat16)

        # Final layer: write node features once; accumulate global max pooling
        # per tile (gmp).  Padded node rows only ever hold relu(bias) garbage;
        # padded adjacency columns are zero and the mask excludes them, so they
        # never leak into real nodes or pooled features.
        @pl.when(l == last)
        def _():
            node_ref[...] = h_new

            @pl.when(i == 0)
            def _():
                pool_ref[...] = jnp.full_like(pool_ref, neg)

            mask_t = mask_ref[...]                       # (G_pad, tm) f32
            rows = []
            for g in range(num_graphs_pad):              # small & static
                m = mask_t[g, :][:, None]                # (tm, 1)
                rows.append(jnp.max(jnp.where(m > 0.0, h_new, neg),
                                    axis=0, keepdims=True))
            pool_ref[...] = jnp.maximum(pool_ref[...],
                                        jnp.concatenate(rows, axis=0))

            @pl.when(i == n_tiles - 1)
            def _():
                graph_ref[...] = pool_ref[...]


def graphcnn_forward(x, adj, params, batch_mask):
    n, in_dim = x.shape
    num_graphs = batch_mask.shape[0]
    w_list = params[0::2]
    b_list = params[1::2]
    num_layers = len(w_list)

    dims = {in_dim} | {w.shape[0] for w in w_list} | {w.shape[1] for w in w_list}
    assert len(dims) == 1, "stacked-weight fast path assumes equal layer dims (module default: all 512)"
    c = in_dim

    # Lane/sublane-dense padding.
    n_pad = max(128, _round_up(n, 128))
    g_pad = max(8, _round_up(num_graphs, 8))

    # Device VMEM budget (v5e/v6e: 128 MiB, v7x: 64 MiB per core).
    try:
        vmem_cap = int(pltpu.get_tpu_info().vmem_capacity_bytes)
    except Exception:
        vmem_cap = 64 << 20
    budget = (vmem_cap * 3) // 4          # leave headroom for Mosaic internals

    def vmem_need(tm_):
        return (2 * tm_ * n_pad * 2       # adj row tile, double buffered (bf16)
                + 2 * tm_ * c * 2         # x tile, double buffered (bf16)
                + 2 * c * c * 2           # weight block, double buffered (bf16)
                + 2 * 8 * c * 4           # bias block (sublane-padded), double buffered
                + 2 * g_pad * tm_ * 4     # mask block, double buffered (f32)
                + 2 * tm_ * c * 4         # node output block, double buffered (f32)
                + 2 * g_pad * c * 4       # graph output block, double buffered (f32)
                + n_pad * c * 4           # H residual scratch (f32)
                + 2 * n_pad * c * 2       # H@W parity double buffer (bf16)
                + g_pad * c * 4)          # pooling accumulator (f32)

    # Pick the largest row tile that fits; tm == n_pad keeps the adjacency
    # resident in VMEM (DMA'd once total instead of once per layer).
    tm = 128
    for cand in sorted({t for t in (n_pad, 1024, 512, 256, 128)
                        if t <= n_pad and n_pad % t == 0}, reverse=True):
        if vmem_need(cand) * 13 // 10 <= budget:
            tm = cand
            break

    need = vmem_need(tm)
    vmem_limit = max(int(need * 13 // 10) + (2 << 20), 32 << 20)
    vmem_limit = min(vmem_limit, budget)
    vmem_limit = max(vmem_limit, min(need + (1 << 20), budget))

    # Padded, bf16 matmul operands (padded adj rows/cols and x rows are zero, so
    # GCN propagation over real nodes is unaffected; padded nodes never enter the
    # pooling mask, and padded graphs are sliced off below).
    x_p = jnp.zeros((n_pad, c), jnp.bfloat16).at[:n, :].set(x.astype(jnp.bfloat16))
    adj_p = jnp.zeros((n_pad, n_pad), jnp.bfloat16).at[:n, :n].set(adj.astype(jnp.bfloat16))
    mask_p = jnp.zeros((g_pad, n_pad), jnp.float32).at[:num_graphs, :n].set(
        batch_mask.astype(jnp.float32))
    w_stack = jnp.stack([w.astype(jnp.bfloat16) for w in w_list])                # (L, C, C)
    b_stack = jnp.stack([b.reshape(1, c).astype(jnp.float32) for b in b_list])   # (L, 1, C)

    n_tiles = n_pad // tm
    n_steps = num_layers + 1          # prologue + L GCN layers
    last = n_steps - 1

    # Index maps (collapse to a constant block when an operand is unused on a
    # grid step, so Pallas skips the DMA / writeback).
    def x_map(l, i):
        return (jnp.where(l == 0, i, 0), 0)

    def adj_map(l, i):
        return (jnp.where(l == 0, 0, i), 0)

    def w_map(l, i):
        return (jnp.minimum(l, num_layers - 1), 0, 0)

    def b_map(l, i):
        return (jnp.maximum(l - 1, 0), 0, 0)

    def mask_map(l, i):
        return (0, jnp.where(l == last, i, 0))

    def node_map(l, i):
        return (jnp.where(l == last, i, 0), 0)

    def graph_map(l, i):
        return (0, 0)

    # Cost estimate: real-node flops; adjacency streamed once per layer (or once
    # total when resident, but keep the conservative per-layer count); node
    # output written exactly once.
    adj_passes = 1 if tm == n_pad else num_layers
    flops = 2 * n * c * c * num_layers + 2 * n * n * c * num_layers
    bytes_accessed = (n_pad * c * 2
                      + adj_passes * n_pad * n_pad * 2
                      + w_stack.size * 2 + b_stack.size * 4
                      + g_pad * n_pad * 4
                      + n_pad * c * 4
                      + g_pad * c * 4)
    cost = pl.CostEstimate(flops=int(flops), transcendentals=0,
                           bytes_accessed=int(bytes_accessed))

    kernel = partial(_graphcnn_kernel, num_graphs_pad=g_pad)

    node_p, graph_p = pl.pallas_call(
        kernel,
        out_shape=(jax.ShapeDtypeStruct((n_pad, c), jnp.float32),
                   jax.ShapeDtypeStruct((g_pad, c), jnp.float32)),
        grid_spec=pltpu.PrefetchScalarGridSpec(
            num_scalar_prefetch=0,
            grid=(n_steps, n_tiles),
            in_specs=[
                pl.BlockSpec((tm, c), x_map),          # x row tile (prologue only)
                pl.BlockSpec((tm, n_pad), adj_map),    # A_hat row tile (streamed)
                pl.BlockSpec((None, c, c), w_map),     # W_l for the fused transform
                pl.BlockSpec((None, 1, c), b_map),     # b_{l-1}
                pl.BlockSpec((g_pad, tm), mask_map),   # pooling mask tile (last layer)
            ],
            out_specs=(
                pl.BlockSpec((tm, c), node_map),       # n_level_feat (final layer only)
                pl.BlockSpec((g_pad, c), graph_map),   # g_level_feat
            ),
            scratch_shapes=[
                pltpu.VMEM((n_pad, c), jnp.float32),        # residual stream H (f32)
                pltpu.VMEM((2 * n_pad, c), jnp.bfloat16),   # H@W parity double buffer
                pltpu.VMEM((g_pad, c), jnp.float32),        # pooling accumulator
            ],
        ),
        compiler_params=pltpu.CompilerParams(
            dimension_semantics=("arbitrary", "arbitrary"),
            vmem_limit_bytes=int(vmem_limit),
        ),
        cost_estimate=cost,
    )(x_p, adj_p, w_stack, b_stack, mask_p)

    return node_p[:n, :], graph_p[:num_graphs, :]


def graphcnn_reference(x, adj, params, batch_mask):
    """Pure-JAX f32 reference of the module's forward (gmp pooling branch)."""
    w0, b0, w1, b1, w2, b2 = params

    def gcn(h, w, b):
        return adj @ (h @ w) + b

    h = jax.nn.relu(gcn(x, w0, b0))
    h = h + jax.nn.relu(gcn(h, w1, b1))
    h = h + jax.nn.relu(gcn(h, w2, b2))
    neg = jnp.float32(-3.0e38)
    pooled = jnp.stack([
        jnp.max(jnp.where(batch_mask[b][:, None] > 0, h, neg), axis=0)
        for b in range(batch_mask.shape[0])
    ])
    return h, pooled


def build_normalized_adjacency(edge_index, num_nodes):
    """D^-1/2 (A + I) D^-1/2 — matches torch_geometric GCNConv default norm
    (add_self_loops=True, normalize=True) for symmetric edge sets."""
    src = edge_index[0]
    dst = edge_index[1]
    a = jnp.zeros((num_nodes, num_nodes), jnp.float32).at[dst, src].add(1.0)
    a = a + jnp.eye(num_nodes, dtype=jnp.float32)
    deg = jnp.sum(a, axis=1)
    d_inv_sqrt = 1.0 / jnp.sqrt(deg)
    return a * d_inv_sqrt[:, None] * d_inv_sqrt[None, :]


def init_params(key, dims):
    """Glorot-uniform weights + zero bias per GCNConv layer (deterministic)."""
    params = []
    keys = jax.random.split(key, len(dims) - 1)
    for i in range(len(dims) - 1):
        fan_in, fan_out = dims[i], dims[i + 1]
        limit = (6.0 / (fan_in + fan_out)) ** 0.5
        w = jax.random.uniform(keys[i], (fan_in, fan_out), jnp.float32, -limit, limit)
        b = jnp.zeros((1, fan_out), jnp.float32)
        params += [w, b]
    return params


if __name__ == "__main__":
    key = jax.random.PRNGKey(0)
    k_x, k_w = jax.random.split(key)

    # Small graph, feature dims follow the module defaults (512 -> 512x3).
    num_nodes = 16
    in_dim = 512
    channel_dims = [512, 512, 512]
    num_graphs = 2

    # Node features (post-dropout input x of the module; dropout is inference identity).
    x = jax.random.normal(k_x, (num_nodes, in_dim), jnp.float32)

    # Undirected ring graph: edge_index shape (2, 2*num_nodes).
    src = jnp.arange(num_nodes, dtype=jnp.int32)
    dst = (src + 1) % num_nodes
    edge_index = jnp.stack([jnp.concatenate([src, dst]),
                            jnp.concatenate([dst, src])])
    adj = build_normalized_adjacency(edge_index, num_nodes)

    # data.batch: first half of nodes -> graph 0, second half -> graph 1.
    batch = jnp.concatenate([jnp.zeros(num_nodes // 2, jnp.int32),
                             jnp.ones(num_nodes - num_nodes // 2, jnp.int32)])
    batch_mask = (jnp.arange(num_graphs, dtype=jnp.int32)[:, None]
                  == batch[None, :]).astype(jnp.float32)

    params = init_params(k_w, [in_dim] + channel_dims)

    # TODO(synk): the 'MTP' branch (GraphMultisetTransformer attention pooling) has
    # no clean Pallas equivalent; the gmp fallback branch is implemented instead.
    node_feat, graph_feat = graphcnn_forward(x, adj, params, batch_mask)
    jax.block_until_ready((node_feat, graph_feat))

    node_exp, graph_exp = graphcnn_reference(x, adj, params, batch_mask)

    assert node_feat.shape == (num_nodes, channel_dims[-1])
    assert graph_feat.shape == (num_graphs, channel_dims[-1])
    assert bool(jnp.all(jnp.isfinite(node_feat)))
    # bf16 MXU operands vs f32 reference -> generous tolerance.
    assert bool(jnp.allclose(node_feat, node_exp, rtol=5e-2, atol=1.5e-1)), (
        "node_feat max abs err %f" % float(jnp.max(jnp.abs(node_feat - node_exp))))
    assert bool(jnp.allclose(graph_feat, graph_exp, rtol=5e-2, atol=1.5e-1)), (
        "graph_feat max abs err %f" % float(jnp.max(jnp.abs(graph_feat - graph_exp))))
    print("KERNEL_OK")
</pallas_src>

<mosaic_0001>
module attributes {stable_mosaic.version = 11 : i64} {
  func.func @_graphcnn_kernel(%arg0: i32, %arg1: i32, %arg2: memref<128x512xbf16, #tpu.memory_space<vmem>>, %arg3: memref<128x128xbf16, #tpu.memory_space<vmem>>, %arg4: memref<1x512x512xbf16, #tpu.memory_space<vmem>>, %arg5: memref<1x1x512xf32, #tpu.memory_space<vmem>>, %arg6: memref<8x128xf32, #tpu.memory_space<vmem>>, %arg7: memref<128x512xf32, #tpu.memory_space<vmem>>, %arg8: memref<8x512xf32, #tpu.memory_space<vmem>>, %arg9: memref<128x512xf32, #tpu.memory_space<vmem>>, %arg10: memref<256x512xbf16, #tpu.memory_space<vmem>>, %arg11: memref<8x512xf32, #tpu.memory_space<vmem>>) attributes {dimension_semantics = [#tpu.dimension_semantics<arbitrary>, #tpu.dimension_semantics<arbitrary>], iteration_bounds = array<i64: 4, 1>, scalar_prefetch = 0 : i64, scratch_operands = 3 : i64, tpu.core_type = #tpu.core_type<tc>, window_params = [{transform_indices = @transform_0, window_bounds = array<i64: 128, 512>}, {transform_indices = @transform_1, window_bounds = array<i64: 128, 128>}, {transform_indices = @transform_2, window_bounds = array<i64: 1, 512, 512>}, {transform_indices = @transform_3, window_bounds = array<i64: 1, 1, 512>}, {transform_indices = @transform_4, window_bounds = array<i64: 8, 128>}, {transform_indices = @transform_5, window_bounds = array<i64: 128, 512>}, {pipeline_mode = #tpu.pipeline_mode<synchronous>, transform_indices = @transform_6, window_bounds = array<i64: 8, 512>}]} {
    %c128_i32 = arith.constant 128 : i32
    %0 = arith.muli %arg1, %c128_i32 : i32
    %1 = tpu.assume_multiple %0, 128 : i32
    %c2_i32 = arith.constant 2 : i32
    %c0_i32 = arith.constant 0 : i32
    %2 = arith.cmpi eq, %c2_i32, %c0_i32 : i32
    %c1_i32 = arith.constant 1 : i32
    %3 = arith.select %2, %c1_i32, %c2_i32 : i32
    %4 = arith.remsi %arg0, %3 : i32
    %c0_i32_0 = arith.constant 0 : i32
    %5 = arith.cmpi ne, %4, %c0_i32_0 : i32
    %c0_i32_1 = arith.constant 0 : i32
    %6 = arith.cmpi slt, %4, %c0_i32_1 : i32
    %c0_i32_2 = arith.constant 0 : i32
    %7 = arith.cmpi slt, %3, %c0_i32_2 : i32
    %8 = arith.xori %6, %7 : i1
    %9 = arith.andi %8, %5 : i1
    %10 = arith.addi %4, %3 : i32
    %11 = arith.select %9, %10, %4 : i32
    %c128_i32_3 = arith.constant 128 : i32
    %12 = arith.muli %11, %c128_i32_3 : i32
    %13 = tpu.assume_multiple %12, 128 : i32
    %c1_i32_4 = arith.constant 1 : i32
    %14 = arith.subi %c1_i32_4, %11 : i32
    %c128_i32_5 = arith.constant 128 : i32
    %15 = arith.muli %14, %c128_i32_5 : i32
    %c128_i32_6 = arith.constant 128 : i32
    %16 = arith.muli %arg1, %c128_i32_6 : i32
    %17 = arith.addi %15, %16 : i32
    %18 = tpu.assume_multiple %17, 128 : i32
    %c0_i32_7 = arith.constant 0 : i32
    %19 = arith.cmpi eq, %arg0, %c0_i32_7 : i32
    %20 = arith.extui %19 : i1 to i32
    %c0_i32_8 = arith.constant 0 : i32
    %21 = arith.cmpi ne, %20, %c0_i32_8 : i32
    scf.if %21 {
      %c0 = arith.constant 0 : index
      %c0_11 = arith.constant 0 : index
      %25 = vector.load %arg2[%c0, %c0_11] : memref<128x512xbf16, #tpu.memory_space<vmem>>, vector<128x512xbf16>
      %c0_12 = arith.constant 0 : index
      %c0_13 = arith.constant 0 : index
      %c0_14 = arith.constant 0 : index
      %26 = vector.load %arg4[%c0_12, %c0_13, %c0_14] : memref<1x512x512xbf16, #tpu.memory_space<vmem>>, vector<1x512x512xbf16>
      %27 = vector.shape_cast %26 : vector<1x512x512xbf16> to vector<512x512xbf16>
      %cst_15 = arith.constant dense<0.000000e+00> : vector<128x512xf32>
      %28 = tpu.matmul %25, %27, %cst_15 {dimension_numbers = #tpu.dot_dimension_numbers<[1], [0], [0], [1], [0, 0, 1, 1], [], []>} : vector<128x512xbf16>, vector<512x512xbf16>, vector<128x512xf32> -> vector<128x512xf32>
      %29 = arith.truncf %28 : vector<128x512xf32> to vector<128x512xbf16>
      %30 = arith.index_cast %18 : i32 to index
      %c0_16 = arith.constant 0 : index
      %31 = vector.load %arg10[%30, %c0_16] : memref<256x512xbf16, #tpu.memory_space<vmem>>, vector<128x512xbf16>
      tpu.vector_store %arg10[%30, %c0_16], %29 {strides = array<i32>} : memref<256x512xbf16, #tpu.memory_space<vmem>>, vector<128x512xbf16>,
    } else {
    }
    %c0_i32_9 = arith.constant 0 : i32
    %22 = arith.cmpi sgt, %arg0, %c0_i32_9 : i32
    %23 = arith.extui %22 : i1 to i32
    %cst = arith.constant -3.000000e+38 : f32
    %c0_i32_10 = arith.constant 0 : i32
    %24 = arith.cmpi ne, %23, %c0_i32_10 : i32
    scf.if %24 {
      %25 = arith.index_cast %13 : i32 to index
      %c0 = arith.constant 0 : index
      %26 = vector.load %arg10[%25, %c0] : memref<256x512xbf16, #tpu.memory_space<vmem>>, vector<128x512xbf16>
      %c0_11 = arith.constant 0 : index
      %c0_12 = arith.constant 0 : index
      %27 = vector.load %arg3[%c0_11, %c0_12] : memref<128x128xbf16, #tpu.memory_space<vmem>>, vector<128x128xbf16>
      %cst_13 = arith.constant dense<0.000000e+00> : vector<128x512xf32>
      %28 = tpu.matmul %27, %26, %cst_13 {dimension_numbers = #tpu.dot_dimension_numbers<[1], [0], [0], [1], [0, 0, 1, 1], [], []>} : vector<128x128xbf16>, vector<128x512xbf16>, vector<128x512xf32> -> vector<128x512xf32>
      %c0_14 = arith.constant 0 : index
      %c0_15 = arith.constant 0 : index
      %c0_16 = arith.constant 0 : index
      %29 = vector.load %arg5[%c0_14, %c0_15, %c0_16] : memref<1x1x512xf32, #tpu.memory_space<vmem>>, vector<1x1x512xf32>
      %30 = vector.shape_cast %29 : vector<1x1x512xf32> to vector<1x512xf32>
      %31 = vector.broadcast %30 : vector<1x512xf32> to vector<128x512xf32>
      %32 = arith.addf %28, %31 : vector<128x512xf32>
      %cst_17 = arith.constant 0.000000e+00 : f32
      %33 = vector.broadcast %cst_17 : f32 to vector<128x512xf32>
      %34 = arith.maximumf %32, %33 : vector<128x512xf32>
      %c1_i32_18 = arith.constant 1 : i32
      %35 = arith.cmpi eq, %arg0, %c1_i32_18 : i32
      %36 = arith.extui %35 : i1 to i32
      %c0_i32_19 = arith.constant 0 : i32
      %37 = arith.cmpi ne, %36, %c0_i32_19 : i32
      scf.if %37 {
        %49 = arith.index_cast %1 : i32 to index
        %c0_26 = arith.constant 0 : index
        %50 = vector.load %arg9[%49, %c0_26] : memref<128x512xf32, #tpu.memory_space<vmem>>, vector<128x512xf32>
        tpu.vector_store %arg9[%49, %c0_26], %34 {strides = array<i32>} : memref<128x512xf32, #tpu.memory_space<vmem>>, vector<128x512xf32>,
      } else {
      }
      %c1_i32_20 = arith.constant 1 : i32
      %38 = arith.cmpi sgt, %arg0, %c1_i32_20 : i32
      %39 = arith.extui %38 : i1 to i32
      %c0_i32_21 = arith.constant 0 : i32
      %40 = arith.cmpi ne, %39, %c0_i32_21 : i32
      scf.if %40 {
        %49 = arith.index_cast %1 : i32 to index
        %c0_26 = arith.constant 0 : index
        %50 = vector.load %arg9[%49, %c0_26] : memref<128x512xf32, #tpu.memory_space<vmem>>, vector<128x512xf32>
        %51 = arith.addf %50, %34 : vector<128x512xf32>
        %52 = arith.index_cast %1 : i32 to index
        %c0_27 = arith.constant 0 : index
        %53 = vector.load %arg9[%52, %c0_27] : memref<128x512xf32, #tpu.memory_space<vmem>>, vector<128x512xf32>
        tpu.vector_store %arg9[%52, %c0_27], %51 {strides = array<i32>} : memref<128x512xf32, #tpu.memory_space<vmem>>, vector<128x512xf32>,
      } else {
      }
      %41 = arith.index_cast %1 : i32 to index
      %c0_22 = arith.constant 0 : index
      %42 = vector.load %arg9[%41, %c0_22] : memref<128x512xf32, #tpu.memory_space<vmem>>, vector<128x512xf32>
      %c3_i32 = arith.constant 3 : i32
      %43 = arith.cmpi slt, %arg0, %c3_i32 : i32
      %44 = arith.extui %43 : i1 to i32
      %c0_i32_23 = arith.constant 0 : i32
      %45 = arith.cmpi ne, %44, %c0_i32_23 : i32
      scf.if %45 {
        %49 = arith.truncf %42 : vector<128x512xf32> to vector<128x512xbf16>
        %c0_26 = arith.constant 0 : index
        %c0_27 = arith.constant 0 : index
        %c0_28 = arith.constant 0 : index
        %50 = vector.load %arg4[%c0_26, %c0_27, %c0_28] : memref<1x512x512xbf16, #tpu.memory_space<vmem>>, vector<1x512x512xbf16>
        %51 = vector.shape_cast %50 : vector<1x512x512xbf16> to vector<512x512xbf16>
        %cst_29 = arith.constant dense<0.000000e+00> : vector<128x512xf32>
        %52 = tpu.matmul %49, %51, %cst_29 {dimension_numbers = #tpu.dot_dimension_numbers<[1], [0], [0], [1], [0, 0, 1, 1], [], []>} : vector<128x512xbf16>, vector<512x512xbf16>, vector<128x512xf32> -> vector<128x512xf32>
        %53 = arith.truncf %52 : vector<128x512xf32> to vector<128x512xbf16>
        %54 = arith.index_cast %18 : i32 to index
        %c0_30 = arith.constant 0 : index
        %55 = vector.load %arg10[%54, %c0_30] : memref<256x512xbf16, #tpu.memory_space<vmem>>, vector<128x512xbf16>
        tpu.vector_store %arg10[%54, %c0_30], %53 {strides = array<i32>} : memref<256x512xbf16, #tpu.memory_space<vmem>>, vector<128x512xbf16>,
      } else {
      }
      %c3_i32_24 = arith.constant 3 : i32
      %46 = arith.cmpi eq, %arg0, %c3_i32_24 : i32
      %47 = arith.extui %46 : i1 to i32
      %c0_i32_25 = arith.constant 0 : i32
      %48 = arith.cmpi ne, %47, %c0_i32_25 : i32
      scf.if %48 {
        %c0_26 = arith.constant 0 : index
        %c0_27 = arith.constant 0 : index
        %49 = vector.load %arg7[%c0_26, %c0_27] : memref<128x512xf32, #tpu.memory_space<vmem>>, vector<128x512xf32>
        tpu.vector_store %arg7[%c0_26, %c0_27], %42 {strides = array<i32>} : memref<128x512xf32, #tpu.memory_space<vmem>>, vector<128x512xf32>,
        %c0_i32_28 = arith.constant 0 : i32
        %50 = arith.cmpi eq, %arg1, %c0_i32_28 : i32
        %51 = arith.extui %50 : i1 to i32
        %c0_i32_29 = arith.constant 0 : i32
        %52 = arith.cmpi ne, %51, %c0_i32_29 : i32
        scf.if %52 {
          %149 = vector.broadcast %cst : f32 to vector<8x512xf32>
          %c0_54 = arith.constant 0 : index
          %c0_55 = arith.constant 0 : index
          %150 = vector.load %arg11[%c0_54, %c0_55] : memref<8x512xf32, #tpu.memory_space<vmem>>, vector<8x512xf32>
          tpu.vector_store %arg11[%c0_54, %c0_55], %149 {strides = array<i32>} : memref<8x512xf32, #tpu.memory_space<vmem>>, vector<8x512xf32>,
        } else {
        }
        %c0_30 = arith.constant 0 : index
        %c0_31 = arith.constant 0 : index
        %53 = vector.load %arg6[%c0_30, %c0_31] : memref<8x128xf32, #tpu.memory_space<vmem>>, vector<8x128xf32>
        %54 = vector.extract_strided_slice %53 {offsets = [0, 0], sizes = [1, 128], strides = [1, 1]} : vector<8x128xf32> to vector<1x128xf32>
        %55 = vector.shape_cast %54 : vector<1x128xf32> to vector<128xf32>
        %56 = vector.shape_cast %55 : vector<128xf32> to vector<128x1xf32>
        %cst_32 = arith.constant 0.000000e+00 : f32
        %57 = vector.broadcast %cst_32 : f32 to vector<128x1xf32>
        %58 = arith.cmpf ogt, %56, %57 : vector<128x1xf32>
        %59 = vector.shape_cast %58 : vector<128x1xi1> to vector<128x1xi1>
        %60 = vector.broadcast %59 : vector<128x1xi1> to vector<128x512xi1>
        %61 = vector.broadcast %cst : f32 to vector<128x512xf32>
        %62 = arith.select %60, %42, %61 : vector<128x512xi1>, vector<128x512xf32>
        %cst_33 = arith.constant dense<0xFF800000> : vector<512xf32>
        %63 = vector.multi_reduction <maximumf>, %62, %cst_33 [0] : vector<128x512xf32> to vector<512xf32>
        %64 = vector.shape_cast %63 : vector<512xf32> to vector<1x512xf32>
        %65 = vector.extract_strided_slice %53 {offsets = [1, 0], sizes = [1, 128], strides = [1, 1]} : vector<8x128xf32> to vector<1x128xf32>
        %66 = vector.shape_cast %65 : vector<1x128xf32> to vector<128xf32>
        %67 = vector.shape_cast %66 : vector<128xf32> to vector<128x1xf32>
        %cst_34 = arith.constant 0.000000e+00 : f32
        %68 = vector.broadcast %cst_34 : f32 to vector<128x1xf32>
        %69 = arith.cmpf ogt, %67, %68 : vector<128x1xf32>
        %70 = vector.shape_cast %69 : vector<128x1xi1> to vector<128x1xi1>
        %71 = vector.broadcast %70 : vector<128x1xi1> to vector<128x512xi1>
        %72 = vector.broadcast %cst : f32 to vector<128x512xf32>
        %73 = arith.select %71, %42, %72 : vector<128x512xi1>, vector<128x512xf32>
        %cst_35 = arith.constant dense<0xFF800000> : vector<512xf32>
        %74 = vector.multi_reduction <maximumf>, %73, %cst_35 [0] : vector<128x512xf32> to vector<512xf32>
        %75 = vector.shape_cast %74 : vector<512xf32> to vector<1x512xf32>
        %76 = vector.extract_strided_slice %53 {offsets = [2, 0], sizes = [1, 128], strides = [1, 1]} : vector<8x128xf32> to vector<1x128xf32>
        %77 = vector.shape_cast %76 : vector<1x128xf32> to vector<128xf32>
        %78 = vector.shape_cast %77 : vector<128xf32> to vector<128x1xf32>
        %cst_36 = arith.constant 0.000000e+00 : f32
        %79 = vector.broadcast %cst_36 : f32 to vector<128x1xf32>
        %80 = arith.cmpf ogt, %78, %79 : vector<128x1xf32>
        %81 = vector.shape_cast %80 : vector<128x1xi1> to vector<128x1xi1>
        %82 = vector.broadcast %81 : vector<128x1xi1> to vector<128x512xi1>
        %83 = vector.broadcast %cst : f32 to vector<128x512xf32>
        %84 = arith.select %82, %42, %83 : vector<128x512xi1>, vector<128x512xf32>
        %cst_37 = arith.constant dense<0xFF800000> : vector<512xf32>
        %85 = vector.multi_reduction <maximumf>, %84, %cst_37 [0] : vector<128x512xf32> to vector<512xf32>
        %86 = vector.shape_cast %85 : vector<512xf32> to vector<1x512xf32>
        %87 = vector.extract_strided_slice %53 {offsets = [3, 0], sizes = [1, 128], strides = [1, 1]} : vector<8x128xf32> to vector<1x128xf32>
        %88 = vector.shape_cast %87 : vector<1x128xf32> to vector<128xf32>
        %89 = vector.shape_cast %88 : vector<128xf32> to vector<128x1xf32>
        %cst_38 = arith.constant 0.000000e+00 : f32
        %90 = vector.broadcast %cst_38 : f32 to vector<128x1xf32>
        %91 = arith.cmpf ogt, %89, %90 : vector<128x1xf32>
        %92 = vector.shape_cast %91 : vector<128x1xi1> to vector<128x1xi1>
        %93 = vector.broadcast %92 : vector<128x1xi1> to vector<128x512xi1>
        %94 = vector.broadcast %cst : f32 to vector<128x512xf32>
        %95 = arith.select %93, %42, %94 : vector<128x512xi1>, vector<128x512xf32>
        %cst_39 = arith.constant dense<0xFF800000> : vector<512xf32>
        %96 = vector.multi_reduction <maximumf>, %95, %cst_39 [0] : vector<128x512xf32> to vector<512xf32>
        %97 = vector.shape_cast %96 : vector<512xf32> to vector<1x512xf32>
        %98 = vector.extract_strided_slice %53 {offsets = [4, 0], sizes = [1, 128], strides = [1, 1]} : vector<8x128xf32> to vector<1x128xf32>
        %99 = vector.shape_cast %98 : vector<1x128xf32> to vector<128xf32>
        %100 = vector.shape_cast %99 : vector<128xf32> to vector<128x1xf32>
        %cst_40 = arith.constant 0.000000e+00 : f32
        %101 = vector.broadcast %cst_40 : f32 to vector<128x1xf32>
        %102 = arith.cmpf ogt, %100, %101 : vector<128x1xf32>
        %103 = vector.shape_cast %102 : vector<128x1xi1> to vector<128x1xi1>
        %104 = vector.broadcast %103 : vector<128x1xi1> to vector<128x512xi1>
        %105 = vector.broadcast %cst : f32 to vector<128x512xf32>
        %106 = arith.select %104, %42, %105 : vector<128x512xi1>, vector<128x512xf32>
        %cst_41 = arith.constant dense<0xFF800000> : vector<512xf32>
        %107 = vector.multi_reduction <maximumf>, %106, %cst_41 [0] : vector<128x512xf32> to vector<512xf32>
        %108 = vector.shape_cast %107 : vector<512xf32> to vector<1x512xf32>
        %109 = vector.extract_strided_slice %53 {offsets = [5, 0], sizes = [1, 128], strides = [1, 1]} : vector<8x128xf32> to vector<1x128xf32>
        %110 = vector.shape_cast %109 : vector<1x128xf32> to vector<128xf32>
        %111 = vector.shape_cast %110 : vector<128xf32> to vector<128x1xf32>
        %cst_42 = arith.constant 0.000000e+00 : f32
        %112 = vector.broadcast %cst_42 : f32 to vector<128x1xf32>
        %113 = arith.cmpf ogt, %111, %112 : vector<128x1xf32>
        %114 = vector.shape_cast %113 : vector<128x1xi1> to vector<128x1xi1>
        %115 = vector.broadcast %114 : vector<128x1xi1> to vector<128x512xi1>
        %116 = vector.broadcast %cst : f32 to vector<128x512xf32>
        %117 = arith.select %115, %42, %116 : vector<128x512xi1>, vector<128x512xf32>
        %cst_43 = arith.constant dense<0xFF800000> : vector<512xf32>
        %118 = vector.multi_reduction <maximumf>, %117, %cst_43 [0] : vector<128x512xf32> to vector<512xf32>
        %119 = vector.shape_cast %118 : vector<512xf32> to vector<1x512xf32>
        %120 = vector.extract_strided_slice %53 {offsets = [6, 0], sizes = [1, 128], strides = [1, 1]} : vector<8x128xf32> to vector<1x128xf32>
        %121 = vector.shape_cast %120 : vector<1x128xf32> to vector<128xf32>
        %122 = vector.shape_cast %121 : vector<128xf32> to vector<128x1xf32>
        %cst_44 = arith.constant 0.000000e+00 : f32
        %123 = vector.broadcast %cst_44 : f32 to vector<128x1xf32>
        %124 = arith.cmpf ogt, %122, %123 : vector<128x1xf32>
        %125 = vector.shape_cast %124 : vector<128x1xi1> to vector<128x1xi1>
        %126 = vector.broadcast %125 : vector<128x1xi1> to vector<128x512xi1>
        %127 = vector.broadcast %cst : f32 to vector<128x512xf32>
        %128 = arith.select %126, %42, %127 : vector<128x512xi1>, vector<128x512xf32>
        %cst_45 = arith.constant dense<0xFF800000> : vector<512xf32>
        %129 = vector.multi_reduction <maximumf>, %128, %cst_45 [0] : vector<128x512xf32> to vector<512xf32>
        %130 = vector.shape_cast %129 : vector<512xf32> to vector<1x512xf32>
        %131 = vector.extract_strided_slice %53 {offsets = [7, 0], sizes = [1, 128], strides = [1, 1]} : vector<8x128xf32> to vector<1x128xf32>
        %132 = vector.shape_cast %131 : vector<1x128xf32> to vector<128xf32>
        %133 = vector.shape_cast %132 : vector<128xf32> to vector<128x1xf32>
        %cst_46 = arith.constant 0.000000e+00 : f32
        %134 = vector.broadcast %cst_46 : f32 to vector<128x1xf32>
        %135 = arith.cmpf ogt, %133, %134 : vector<128x1xf32>
        %136 = vector.shape_cast %135 : vector<128x1xi1> to vector<128x1xi1>
        %137 = vector.broadcast %136 : vector<128x1xi1> to vector<128x512xi1>
        %138 = vector.broadcast %cst : f32 to vector<128x512xf32>
        %139 = arith.select %137, %42, %138 : vector<128x512xi1>, vector<128x512xf32>
        %cst_47 = arith.constant dense<0xFF800000> : vector<512xf32>
        %140 = vector.multi_reduction <maximumf>, %139, %cst_47 [0] : vector<128x512xf32> to vector<512xf32>
        %141 = vector.shape_cast %140 : vector<512xf32> to vector<1x512xf32>
        %c0_48 = arith.constant 0 : index
        %c0_49 = arith.constant 0 : index
        %142 = vector.load %arg11[%c0_48, %c0_49] : memref<8x512xf32, #tpu.memory_space<vmem>>, vector<8x512xf32>
        %143 = tpu.concatenate %64, %75, %86, %97, %108, %119, %130, %141 in 0 : vector<1x512xf32>, vector<1x512xf32>, vector<1x512xf32>, vector<1x512xf32>, vector<1x512xf32>, vector<1x512xf32>, vector<1x512xf32>, vector<1x512xf32> -> vector<8x512xf32>
        %144 = arith.maximumf %142, %143 : vector<8x512xf32>
        %c0_50 = arith.constant 0 : index
        %c0_51 = arith.constant 0 : index
        %145 = vector.load %arg11[%c0_50, %c0_51] : memref<8x512xf32, #tpu.memory_space<vmem>>, vector<8x512xf32>
        tpu.vector_store %arg11[%c0_50, %c0_51], %144 {strides = array<i32>} : memref<8x512xf32, #tpu.memory_space<vmem>>, vector<8x512xf32>,
        %c0_i32_52 = arith.constant 0 : i32
        %146 = arith.cmpi eq, %arg1, %c0_i32_52 : i32
        %147 = arith.extui %146 : i1 to i32
        %c0_i32_53 = arith.constant 0 : i32
        %148 = arith.cmpi ne, %147, %c0_i32_53 : i32
        scf.if %148 {
          %c0_54 = arith.constant 0 : index
          %c0_55 = arith.constant 0 : index
          %149 = vector.load %arg11[%c0_54, %c0_55] : memref<8x512xf32, #tpu.memory_space<vmem>>, vector<8x512xf32>
          %c0_56 = arith.constant 0 : index
          %c0_57 = arith.constant 0 : index
          %150 = vector.load %arg8[%c0_56, %c0_57] : memref<8x512xf32, #tpu.memory_space<vmem>>, vector<8x512xf32>
          tpu.vector_store %arg8[%c0_56, %c0_57], %149 {strides = array<i32>} : memref<8x512xf32, #tpu.memory_space<vmem>>, vector<8x512xf32>,
        } else {
        }
      } else {
      }
    } else {
    }
    return
  }
  func.func @transform_0(%arg0: i32, %arg1: i32) -> (i32, i32) {
    %c0_i32 = arith.constant 0 : i32
    %0 = arith.cmpi eq, %arg0, %c0_i32 : i32
    %c0_i32_0 = arith.constant 0 : i32
    %1 = arith.select %0, %arg1, %c0_i32_0 : i32
    %c0_i32_1 = arith.constant 0 : i32
    %c0_i32_2 = arith.constant 0 : i32
    return %1, %c0_i32_1 : i32, i32
  }
  func.func @transform_1(%arg0: i32, %arg1: i32) -> (i32, i32) {
    %c0_i32 = arith.constant 0 : i32
    %0 = arith.cmpi eq, %arg0, %c0_i32 : i32
    %c0_i32_0 = arith.constant 0 : i32
    %1 = arith.select %0, %c0_i32_0, %arg1 : i32
    %c0_i32_1 = arith.constant 0 : i32
    %c0_i32_2 = arith.constant 0 : i32
    return %1, %c0_i32_1 : i32, i32
  }
  func.func @transform_2(%arg0: i32, %arg1: i32) -> (i32, i32, i32) {
    %c2_i32 = arith.constant 2 : i32
    %0 = arith.minsi %arg0, %c2_i32 : i32
    %c0_i32 = arith.constant 0 : i32
    %c0_i32_0 = arith.constant 0 : i32
    %c0_i32_1 = arith.constant 0 : i32
    return %0, %c0_i32, %c0_i32_0 : i32, i32, i32
  }
  func.func @transform_3(%arg0: i32, %arg1: i32) -> (i32, i32, i32) {
    %c1_i32 = arith.constant 1 : i32
    %0 = arith.subi %arg0, %c1_i32 : i32
    %c0_i32 = arith.constant 0 : i32
    %1 = arith.maxsi %0, %c0_i32 : i32
    %c0_i32_0 = arith.constant 0 : i32
    %c0_i32_1 = arith.constant 0 : i32
    %c0_i32_2 = arith.constant 0 : i32
    return %1, %c0_i32_0, %c0_i32_1 : i32, i32, i32
  }
  func.func @transform_4(%arg0: i32, %arg1: i32) -> (i32, i32) {
    %c3_i32 = arith.constant 3 : i32
    %0 = arith.cmpi eq, %arg0, %c3_i32 : i32
    %c0_i32 = arith.constant 0 : i32
    %1 = arith.select %0, %arg1, %c0_i32 : i32
    %c0_i32_0 = arith.constant 0 : i32
    %c0_i32_1 = arith.constant 0 : i32
    return %c0_i32_0, %1 : i32, i32
  }
  func.func @transform_5(%arg0: i32, %arg1: i32) -> (i32, i32) {
    %c3_i32 = arith.constant 3 : i32
    %0 = arith.cmpi eq, %arg0, %c3_i32 : i32
    %c0_i32 = arith.constant 0 : i32
    %1 = arith.select %0, %arg1, %c0_i32 : i32
    %c0_i32_0 = arith.constant 0 : i32
    %c0_i32_1 = arith.constant 0 : i32
    return %1, %c0_i32_0 : i32, i32
  }
  func.func @transform_6(%arg0: i32, %arg1: i32) -> (i32, i32) {
    %c0_i32 = arith.constant 0 : i32
    %c0_i32_0 = arith.constant 0 : i32
    %c0_i32_1 = arith.constant 0 : i32
    return %c0_i32, %c0_i32_0 : i32, i32
  }
}

</mosaic_0001>

<llo_original>
// kernel: tpu_custom_call.1
$region0: #{tpu_custom_call.1}
  #allocation0 [shape = 'u32[]', space=smem, size = 0x4, offset = 0x4, fixed_abs, tag = 'smem constant byte address 0x4 - core index']
  #allocation1 [shape = 'u32[144,128]{1,0:T(1,128)}', space=vmem, size = 0x12000, scoped, tag = 'internal scratch']
  #allocation2 [shape = 'f32[128,512]{1,0:T(8,128)}', space=vmem, size = 0x40000, scoped, tag = 'scratch operand']
  #allocation3 [shape = 'bf16[256,512]{1,0:T(8,128)(2,1)}', space=vmem, size = 0x40000, scoped, tag = 'scratch operand']
  #allocation4 [shape = 'f32[8,512]{1,0:T(8,128)}', space=vmem, size = 0x4000, scoped, tag = 'scratch operand']
  %s0 = inlined_call_operand.hbm [shape: bf16[128,512], index: 0, kind: input, shape index: {}]
  %s1 = inlined_call_operand.hbm [shape: bf16[128,128], index: 1, kind: input, shape index: {}]
  %s2 = inlined_call_operand.hbm [shape: bf16[3,512,512], index: 2, kind: input, shape index: {}]
  %s3 = inlined_call_operand.hbm [shape: f32[3,1,512], index: 3, kind: input, shape index: {}]
  %s4 = inlined_call_operand.hbm [shape: f32[8,128], index: 4, kind: input, shape index: {}]
  %s5 = inlined_call_operand.hbm [shape: f32[128,512], index: 5, kind: output, shape index: {0}]
  %s6 = inlined_call_operand.hbm [shape: f32[8,512], index: 6, kind: output, shape index: {1}]
  %7 = xla_tuple %s5, %s6
  %s8 = sld [smem:[#allocation0]]
  $region113: #{tpu_custom_call.1} parent=0
    _
  %s10 = ssub.s32 1, %s8
  %s11 = scalar_select 0, %s10, %s8
  $region1: #{tpu_custom_call.1} parent=0
    #allocation5 [shape = 'u8[262144]{0}', space=vmem, size = 0x40000, scoped, tag = 'input window, operand 0']
    #allocation6 [shape = 's32[2]{0}', space=sflag, size = 0x8, scoped, tag = 'scoped memory for tpu_custom_call.1']
    #allocation7 [shape = 's32[2]{0}', space=sflag, size = 0x8, scoped, tag = 'scoped memory for tpu_custom_call.1']
    #allocation8 [shape = 'u8[65536]{0}', space=vmem, size = 0x10000, scoped, tag = 'input window, operand 1']
    #allocation9 [shape = 's32[2]{0}', space=sflag, size = 0x8, scoped, tag = 'scoped memory for tpu_custom_call.1']
    #allocation10 [shape = 'u8[1048576]{0}', space=vmem, size = 0x100000, scoped, tag = 'input window, operand 2']
    #allocation11 [shape = 'u8[4096]{0}', space=vmem, size = 0x1000, scoped, tag = 'input window, operand 3']
    #allocation12 [shape = 's32[2]{0}', space=sflag, size = 0x8, scoped, tag = 'scoped memory for tpu_custom_call.1']
    #allocation13 [shape = 'u8[8192]{0}', space=vmem, size = 0x2000, scoped, tag = 'input window, operand 4']
    #allocation14 [shape = 'u8[524288]{0}', space=vmem, size = 0x80000, scoped, tag = 'output window, operand 0']
    #allocation15 [shape = 'u8[16384]{0}', space=vmem, size = 0x4000, scoped, tag = 'output window, operand 1, single buffered']
    #allocation16 [shape = 's32[1]{0}', space=sflag, size = 0x4, scoped, tag = 'scoped memory for tpu_custom_call.1']
    %12 = vsyncpa [#allocation6], 0
    %s13 = scalar_lea.sflag [#allocation6], 1
    %14 = vsyncpa %s13, 0
    %15 = vsyncpa [#allocation9], 0
    %s16 = scalar_lea.sflag [#allocation9], 1
    %17 = vsyncpa %s16, 0
    %18 = vsyncpa [#allocation12], 0
    %s19 = scalar_lea.sflag [#allocation12], 1
    %20 = vsyncpa %s19, 0
    %21 = vsyncpa [#allocation7], 0
    %s22 = scalar_lea.sflag [#allocation7], 1
    %23 = vsyncpa %s22, 0
    %24 = vsyncpa [#allocation16], 0
    loop: start=0, step=1, limit=6
    $region2: #{tpu_custom_call.1} parent=1 // loop_pre_header
      _
    $region3: #{tpu_custom_call.1} parent=1 // loop_header
      %s26 = sphi 0, %s30
      %p27 = scmp.ge.s32.totalorder %s26, 6
      %s33 = sphi 0, %s45
      %s34 = sphi 0, %s41
      %s35 = sphi 0, %s33
      %s36 = sphi 0, %s34
      %s37 = sphi 0, %s35
      %s38 = sphi 0, %s36
      %s52 = sphi 0, %s54
      %s55 = sphi 0, %s52
      %s56 = sphi 0, %s55
      %s72 = sphi 0, %s56
      %s82 = sphi 0, %s84
      %s85 = sphi 0, %s82
      %s86 = sphi 0, %s85
      %s102 = sphi 0, %s86
      %s112 = sphi 0, %s114
      %s115 = sphi 0, %s112
      %s116 = sphi 0, %s115
      %s132 = sphi 0, %s116
      %s144 = sphi 0, %s146
      %s147 = sphi 0, %s144
      %s148 = sphi 0, %s147
      %s164 = sphi 0, %s148
      %s174 = sphi 0, %s176
      %s177 = sphi 0, %s174
      %s178 = sphi 0, %s177
      %s194 = sphi 0, %s178
      %s204 = sphi 0, %s206
      %s207 = sphi 0, %s204
      %s208 = sphi 0, %s207
      %s224 = sphi 0, %s208
      %s228 = sphi 0, %s228
      %s230 = sphi 0, %s228
      %s231 = sphi 0, %s230
      %s245 = sphi 0, %s231
    $region4: #{tpu_custom_call.1} parent=1 // loop_header_branch
      %29 = sbr.rel (%p27) target = $region8
    $region5: #{tpu_custom_call.1} parent=1 // loop_body
      %s31 = ssub.s32 %s26, 1
      %s32 = ssub.s32 %s26, 2
      %s39 = sadd.s32 1, %s34
      %p40 = scmp.ge.s32.totalorder %s39, 1
      %s41 = scalar_select %p40, 0, %s39
      %s42 = sadd.s32 1, %s33
      %s43 = scalar_select %p40, %s42, %s33
      %p44 = scmp.ge.s32.totalorder %s43, 4
      %s45 = scalar_select %p44, 0, %s43
      %p46 = scmp.eq.s32.totalorder %s33, 0
      %s47 = scalar_select %p46, %s34, 0
      %p48 = scmp.eq.s32.totalorder %s45, 0
      %s49 = scalar_select %p48, %s41, 0
      %s50 = ssub.s32 %s47, %s49
      %p51 = scmp.eq.s32.totalorder %s50, 0
      %s53 = sadd.s32 %s52, 1
      %s54 = scalar_select %p51, %s52, %s53
      %p57 = pneg %p51
      %p58 = scmp.eq.s32.totalorder %s26, 3
      %p59 = por %p57, %p58
      %p60 = scmp.ne.s32.totalorder %s52, %s55
      %p61 = scmp.eq.s32.totalorder %s26, 0
      %p62 = por %p60, %p61
      %p63 = scmp.ne.s32.totalorder %s52, %s55
      %p64 = scmp.eq.s32.totalorder %s31, 3
      %p65 = por %p63, %p64
      %p66 = scmp.ne.s32.totalorder %s55, %s56
      %p67 = scmp.eq.s32.totalorder %s31, 0
      %p68 = por %p66, %p67
      %p69 = scmp.ne.s32.totalorder %s55, %s56
      %p70 = scmp.eq.s32.totalorder %s32, 3
      %p71 = por %p69, %p70
      %p73 = scmp.ne.s32.totalorder %s56, %s72
      %p74 = scmp.eq.s32.totalorder %s32, 0
      %p75 = por %p73, %p74
      %p76 = scmp.eq.s32.totalorder %s33, 0
      %s77 = scalar_select %p76, 0, %s34
      %p78 = scmp.eq.s32.totalorder %s45, 0
      %s79 = scalar_select %p78, 0, %s41
      %s80 = ssub.s32 %s77, %s79
      %p81 = scmp.eq.s32.totalorder %s80, 0
      %s83 = sadd.s32 %s82, 1
      %s84 = scalar_select %p81, %s82, %s83
      %p87 = pneg %p81
      %p88 = scmp.eq.s32.totalorder %s26, 3
      %p89 = por %p87, %p88
      %p90 = scmp.ne.s32.totalorder %s82, %s85
      %p91 = scmp.eq.s32.totalorder %s26, 0
      %p92 = por %p90, %p91
      %p93 = scmp.ne.s32.totalorder %s82, %s85
      %p94 = scmp.eq.s32.totalorder %s31, 3
      %p95 = por %p93, %p94
      %p96 = scmp.ne.s32.totalorder %s85, %s86
      %p97 = scmp.eq.s32.totalorder %s31, 0
      %p98 = por %p96, %p97
      %p99 = scmp.ne.s32.totalorder %s85, %s86
      %p100 = scmp.eq.s32.totalorder %s32, 3
      %p101 = por %p99, %p100
      %p103 = scmp.ne.s32.totalorder %s86, %s102
      %p104 = scmp.eq.s32.totalorder %s32, 0
      %p105 = por %p103, %p104
      %p106 = scmp.lt.s32.totalorder %s33, 2
      %s107 = scalar_select %p106, %s33, 2
      %p108 = scmp.lt.s32.totalorder %s45, 2
      %s109 = scalar_select %p108, %s45, 2
      %s110 = ssub.s32 %s107, %s109
      %p111 = scmp.eq.s32.totalorder %s110, 0
      %s113 = sadd.s32 %s112, 1
      %s114 = scalar_select %p111, %s112, %s113
      %p117 = pneg %p111
      %p118 = scmp.eq.s32.totalorder %s26, 3
      %p119 = por %p117, %p118
      %p120 = scmp.ne.s32.totalorder %s112, %s115
      %p121 = scmp.eq.s32.totalorder %s26, 0
      %p122 = por %p120, %p121
      %p123 = scmp.ne.s32.totalorder %s112, %s115
      %p124 = scmp.eq.s32.totalorder %s31, 3
      %p125 = por %p123, %p124
      %p126 = scmp.ne.s32.totalorder %s115, %s116
      %p127 = scmp.eq.s32.totalorder %s31, 0
      %p128 = por %p126, %p127
      %p129 = scmp.ne.s32.totalorder %s115, %s116
      %p130 = scmp.eq.s32.totalorder %s32, 3
      %p131 = por %p129, %p130
      %p133 = scmp.ne.s32.totalorder %s116, %s132
      %p134 = scmp.eq.s32.totalorder %s32, 0
      %p135 = por %p133, %p134
      %s136 = ssub.s32 %s33, 1
      %p137 = scmp.gt.s32.totalorder %s136, 0
      %s138 = scalar_select %p137, %s136, 0
      %s139 = ssub.s32 %s45, 1
      %p140 = scmp.gt.s32.totalorder %s139, 0
      %s141 = scalar_select %p140, %s139, 0
      %s142 = ssub.s32 %s138, %s141
      %p143 = scmp.eq.s32.totalorder %s142, 0
      %s145 = sadd.s32 %s144, 1
      %s146 = scalar_select %p143, %s144, %s145
      %p149 = pneg %p143
      %p150 = scmp.eq.s32.totalorder %s26, 3
      %p151 = por %p149, %p150
      %p152 = scmp.ne.s32.totalorder %s144, %s147
      %p153 = scmp.eq.s32.totalorder %s26, 0
      %p154 = por %p152, %p153
      %p155 = scmp.ne.s32.totalorder %s144, %s147
      %p156 = scmp.eq.s32.totalorder %s31, 3
      %p157 = por %p155, %p156
      %p158 = scmp.ne.s32.totalorder %s147, %s148
      %p159 = scmp.eq.s32.totalorder %s31, 0
      %p160 = por %p158, %p159
      %p161 = scmp.ne.s32.totalorder %s147, %s148
      %p162 = scmp.eq.s32.totalorder %s32, 3
      %p163 = por %p161, %p162
      %p165 = scmp.ne.s32.totalorder %s148, %s164
      %p166 = scmp.eq.s32.totalorder %s32, 0
      %p167 = por %p165, %p166
      %p168 = scmp.eq.s32.totalorder %s33, 3
      %s169 = scalar_select %p168, %s34, 0
      %p170 = scmp.eq.s32.totalorder %s45, 3
      %s171 = scalar_select %p170, %s41, 0
      %s172 = ssub.s32 %s169, %s171
      %p173 = scmp.eq.s32.totalorder %s172, 0
      %s175 = sadd.s32 %s174, 1
      %s176 = scalar_select %p173, %s174, %s175
      %p179 = pneg %p173
      %p180 = scmp.eq.s32.totalorder %s26, 3
      %p181 = por %p179, %p180
      %p182 = scmp.ne.s32.totalorder %s174, %s177
      %p183 = scmp.eq.s32.totalorder %s26, 0
      %p184 = por %p182, %p183
      %p185 = scmp.ne.s32.totalorder %s174, %s177
      %p186 = scmp.eq.s32.totalorder %s31, 3
      %p187 = por %p185, %p186
      %p188 = scmp.ne.s32.totalorder %s177, %s178
      %p189 = scmp.eq.s32.totalorder %s31, 0
      %p190 = por %p188, %p189
      %p191 = scmp.ne.s32.totalorder %s177, %s178
      %p192 = scmp.eq.s32.totalorder %s32, 3
      %p193 = por %p191, %p192
      %p195 = scmp.ne.s32.totalorder %s178, %s194
      %p196 = scmp.eq.s32.totalorder %s32, 0
      %p197 = por %p195, %p196
      %p198 = scmp.eq.s32.totalorder %s33, 3
      %s199 = scalar_select %p198, %s34, 0
      %p200 = scmp.eq.s32.totalorder %s45, 3
      %s201 = scalar_select %p200, %s41, 0
      %s202 = ssub.s32 %s199, %s201
      %p203 = scmp.eq.s32.totalorder %s202, 0
      %s205 = sadd.s32 %s204, 1
      %s206 = scalar_select %p203, %s204, %s205
      %p209 = pneg %p203
      %p210 = scmp.eq.s32.totalorder %s26, 3
      %p211 = por %p209, %p210
      %p212 = scmp.ne.s32.totalorder %s204, %s207
      %p213 = scmp.eq.s32.totalorder %s26, 0
      %p214 = por %p212, %p213
      %p215 = scmp.ne.s32.totalorder %s204, %s207
      %p216 = scmp.eq.s32.totalorder %s31, 3
      %p217 = por %p215, %p216
      %p218 = scmp.ne.s32.totalorder %s207, %s208
      %p219 = scmp.eq.s32.totalorder %s31, 0
      %p220 = por %p218, %p219
      %p221 = scmp.ne.s32.totalorder %s207, %s208
      %p222 = scmp.eq.s32.totalorder %s32, 3
      %p223 = por %p221, %p222
      %p225 = scmp.ne.s32.totalorder %s208, %s224
      %p226 = scmp.eq.s32.totalorder %s32, 0
      %p227 = por %p225, %p226
      %s229 = sadd.s32 %s228, 1
      %p232 = scmp.eq.s32.totalorder %s26, 3
      %p233 = scmp.ne.s32.totalorder %s228, %s230
      %p234 = scmp.eq.s32.totalorder %s26, 0
      %p235 = por %p233, %p234
      %p236 = scmp.ne.s32.totalorder %s228, %s230
      %p237 = scmp.eq.s32.totalorder %s31, 3
      %p238 = por %p236, %p237
      %p239 = scmp.ne.s32.totalorder %s230, %s231
      %p240 = scmp.eq.s32.totalorder %s31, 0
      %p241 = por %p239, %p240
      %p242 = scmp.ne.s32.totalorder %s230, %s231
      %p243 = scmp.eq.s32.totalorder %s32, 3
      %p244 = por %p242, %p243
      %p246 = scmp.ne.s32.totalorder %s231, %s245
      %p247 = scmp.eq.s32.totalorder %s32, 0
      %p248 = por %p246, %p247
      %p249 = scmp.le.s32.totalorder 1, %s26
      %p250 = scmp.lt.s32.totalorder %s26, 5
      %p251 = pnand %p249, %p250
      %p252 = pneg %p251
      // Predicated region
      $region9: #{tpu_custom_call.1} parent=5 // pred_check
        _
      $region10: #{tpu_custom_call.1} parent=5 // pred_check_branch
        %254 = sbr.rel (%p251) target = $region12
      $region11: #{tpu_custom_call.1} parent=5 // pred_region
        %s255 = ssub.s32 %s26, 1
      $region12: #{tpu_custom_call.1} parent=5 // pred_fallthru
        _
      %p256 = scmp.lt.s32.totalorder %s26, 4
      // Predicated region
      $region13: #{tpu_custom_call.1} parent=5 // pred_check
        %p257 = pneg %p256
      $region14: #{tpu_custom_call.1} parent=5 // pred_check_branch
        %259 = sbr.rel (%p257) target = $region16
      $region15: #{tpu_custom_call.1} parent=5 // pred_region
        // Predicated region
        $region17: #{tpu_custom_call.1} parent=15 // pred_check
          %p260 = pneg %p62
        $region18: #{tpu_custom_call.1} parent=15 // pred_check_branch
          %262 = sbr.rel (%p260) target = $region20
        $region19: #{tpu_custom_call.1} parent=15 // pred_region
          %s263 = sand.u32 %s52, 1
          %s264 = scalar_lea.sflag [#allocation6], %s263
          %s265 = sand.u32 %s52, 1
          %s266 = smul.addr %s265, 256
          %s267 = scalar_lea.vmem [#allocation5], %s266
          %p268 = scmp.eq.s32.totalorder %s33, 0
          %s269 = scalar_select %p268, %s34, 0
          %s270 = smul.u32 16, %s269
          %s272 = ssub.s32 4096, 4096
          %273 = vsyncadd %s264, %s272
          %s274 = smul.addr %s270, 4
          %s275 = smul.addr %s274, 64
          %s276 = scalar_lea.hbm %s0, %s275
          %s277 = sshll.u32 %s267, 4
          %s278 = int_to_ptr.vmem [resolvable:$true] %s277
          %283 = dma.hbm_to_vmem [thread:$0]  %s276, 4096, %s278, %s264, 256, 256, 16
        $region20: #{tpu_custom_call.1} parent=15 // pred_fallthru
          _
        // Predicated region
        $region21: #{tpu_custom_call.1} parent=15 // pred_check
          %p284 = pneg %p92
        $region22: #{tpu_custom_call.1} parent=15 // pred_check_branch
          %286 = sbr.rel (%p284) target = $region24
        $region23: #{tpu_custom_call.1} parent=15 // pred_region
          %s287 = sand.u32 %s26, 1
          %s288 = scalar_lea.sflag [#allocation9], %s287
          %s289 = sand.u32 %s82, 1
          %s290 = smul.addr %s289, 64
          %s291 = scalar_lea.vmem [#allocation8], %s290
          %p292 = scmp.eq.s32.totalorder %s33, 0
          %s293 = scalar_select %p292, 0, %s34
          %s294 = smul.u32 16, %s293
          %s296 = ssub.s32 1024, 1024
          %297 = vsyncadd %s288, %s296
          %s298 = smul.addr %s294, 64
          %s299 = scalar_lea.hbm %s1, %s298
          %s300 = sshll.u32 %s291, 4
          %s301 = int_to_ptr.vmem [resolvable:$true] %s300
          %306 = dma.hbm_to_vmem [thread:$0]  %s299, 1024, %s301, %s288, 64, 64, 4
        $region24: #{tpu_custom_call.1} parent=15 // pred_fallthru
          _
        // Predicated region
        $region25: #{tpu_custom_call.1} parent=15 // pred_check
          %p307 = pneg %p122
        $region26: #{tpu_custom_call.1} parent=15 // pred_check_branch
          %309 = sbr.rel (%p307) target = $region28
        $region27: #{tpu_custom_call.1} parent=15 // pred_region
          %s310 = sand.u32 %s26, 1
          %s311 = scalar_lea.sflag [#allocation9], %s310
          %s312 = sand.u32 %s112, 1
          %s313 = smul.addr %s312, 1024
          %s314 = scalar_lea.vmem [#allocation10], %s313
          %p315 = scmp.lt.s32.totalorder %s33, 2
          %s316 = scalar_select %p315, %s33, 2
          %s318 = ssub.s32 16384, 16384
          %319 = vsyncadd %s311, %s318
          %s320 = smul.addr %s316, 256
          %s321 = smul.addr %s320, 64
          %s322 = scalar_lea.hbm %s2, %s321
          %s323 = sshll.u32 %s314, 4
          %s324 = int_to_ptr.vmem [resolvable:$true] %s323
          %329 = dma.hbm_to_vmem [thread:$0]  %s322, 16384, %s324, %s311, 256, 256, 16
        $region28: #{tpu_custom_call.1} parent=15 // pred_fallthru
          _
        // Predicated region
        $region29: #{tpu_custom_call.1} parent=15 // pred_check
          %p330 = pneg %p154
        $region30: #{tpu_custom_call.1} parent=15 // pred_check_branch
          %332 = sbr.rel (%p330) target = $region32
        $region31: #{tpu_custom_call.1} parent=15 // pred_region
          %s333 = sand.u32 %s26, 1
          %s334 = scalar_lea.sflag [#allocation12], %s333
          %s335 = sand.u32 %s144, 1
          %s336 = smul.addr %s335, 4
          %s337 = scalar_lea.vmem [#allocation11], %s336
          %s338 = ssub.s32 %s33, 1
          %p339 = scmp.gt.s32.totalorder %s338, 0
          %s340 = scalar_select %p339, %s338, 0
          %s342 = ssub.s32 64, 64
          %343 = vsyncadd %s334, %s342
          %s344 = smul.addr %s340, 4
          %s345 = smul.addr %s344, 16
          %s346 = scalar_lea.hbm %s3, %s345
          %s348 = sshll.u32 %s337, 4
          %s349 = int_to_ptr.vmem [resolvable:$true] %s348
          %351 = dma.hbm_to_vmem [thread:$0]  %s346, 64, %s349, %s334
        $region32: #{tpu_custom_call.1} parent=15 // pred_fallthru
          _
        // Predicated region
        $region33: #{tpu_custom_call.1} parent=15 // pred_check
          %p352 = pneg %p184
        $region34: #{tpu_custom_call.1} parent=15 // pred_check_branch
          %354 = sbr.rel (%p352) target = $region36
        $region35: #{tpu_custom_call.1} parent=15 // pred_region
          %s355 = sand.u32 %s26, 1
          %s356 = scalar_lea.sflag [#allocation12], %s355
          %s357 = sand.u32 %s174, 1
          %s358 = smul.addr %s357, 8
          %s359 = scalar_lea.vmem [#allocation13], %s358
          %p360 = scmp.eq.s32.totalorder %s33, 3
          %s361 = scalar_select %p360, %s34, 0
          %s363 = ssub.s32 128, 128
          %364 = vsyncadd %s356, %s363
          %s365 = smul.addr %s361, 128
          %s366 = scalar_lea.hbm %s4, %s365
          %s368 = sshll.u32 %s359, 4
          %s369 = int_to_ptr.vmem [resolvable:$true] %s368
          %371 = dma.hbm_to_vmem [thread:$0]  %s366, 128, %s369, %s356
        $region36: #{tpu_custom_call.1} parent=15 // pred_fallthru
          _
      $region16: #{tpu_custom_call.1} parent=5 // pred_fallthru
        _
      %p372 = scmp.le.s32.totalorder 1, %s26
      %p373 = scmp.lt.s32.totalorder %s26, 5
      %p374 = pnand %p372, %p373
      %p375 = pneg %p374
      // Predicated region
      $region37: #{tpu_custom_call.1} parent=5 // pred_check
        _
      $region38: #{tpu_custom_call.1} parent=5 // pred_check_branch
        %377 = sbr.rel (%p374) target = $region40
      $region39: #{tpu_custom_call.1} parent=5 // pred_region
        %s378 = ssub.s32 %s26, 1
        %s379 = sand.u32 %s55, 1
        %s380 = scalar_lea.sflag [#allocation6], %s379
        %s381 = sand.u32 %s55, 1
        %s382 = smul.addr %s381, 256
        %s383 = scalar_lea.vmem [#allocation5], %s382
        // Predicated region
        $region41: #{tpu_custom_call.1} parent=39 // pred_check
          %p384 = pneg %p68
        $region42: #{tpu_custom_call.1} parent=39 // pred_check_branch
          %386 = sbr.rel (%p384) target = $region44
        $region43: #{tpu_custom_call.1} parent=39 // pred_region
          %387 = dma.done %s380, 4096
        $region44: #{tpu_custom_call.1} parent=39 // pred_fallthru
          _
        %s388 = sand.u32 %s31, 1
        %s389 = scalar_lea.sflag [#allocation9], %s388
        %s390 = sand.u32 %s85, 1
        %s391 = smul.addr %s390, 64
        %s392 = scalar_lea.vmem [#allocation8], %s391
        // Predicated region
        $region45: #{tpu_custom_call.1} parent=39 // pred_check
          %p393 = pneg %p98
        $region46: #{tpu_custom_call.1} parent=39 // pred_check_branch
          %395 = sbr.rel (%p393) target = $region48
        $region47: #{tpu_custom_call.1} parent=39 // pred_region
          %396 = dma.done %s389, 1024
        $region48: #{tpu_custom_call.1} parent=39 // pred_fallthru
          _
        %s397 = sand.u32 %s31, 1
        %s398 = scalar_lea.sflag [#allocation9], %s397
        %s399 = sand.u32 %s115, 1
        %s400 = smul.addr %s399, 1024
        %s401 = scalar_lea.vmem [#allocation10], %s400
        // Predicated region
        $region49: #{tpu_custom_call.1} parent=39 // pred_check
          %p402 = pneg %p128
        $region50: #{tpu_custom_call.1} parent=39 // pred_check_branch
          %404 = sbr.rel (%p402) target = $region52
        $region51: #{tpu_custom_call.1} parent=39 // pred_region
          %405 = dma.done %s398, 16384
        $region52: #{tpu_custom_call.1} parent=39 // pred_fallthru
          _
        %s406 = sand.u32 %s31, 1
        %s407 = scalar_lea.sflag [#allocation12], %s406
        %s408 = sand.u32 %s147, 1
        %s409 = smul.addr %s408, 4
        %s410 = scalar_lea.vmem [#allocation11], %s409
        // Predicated region
        $region53: #{tpu_custom_call.1} parent=39 // pred_check
          %p411 = pneg %p160
        $region54: #{tpu_custom_call.1} parent=39 // pred_check_branch
          %413 = sbr.rel (%p411) target = $region56
        $region55: #{tpu_custom_call.1} parent=39 // pred_region
          %414 = dma.done %s407, 64
        $region56: #{tpu_custom_call.1} parent=39 // pred_fallthru
          _
        %s415 = sand.u32 %s31, 1
        %s416 = scalar_lea.sflag [#allocation12], %s415
        %s417 = sand.u32 %s177, 1
        %s418 = smul.addr %s417, 8
        %s419 = scalar_lea.vmem [#allocation13], %s418
        // Predicated region
        $region57: #{tpu_custom_call.1} parent=39 // pred_check
          %p420 = pneg %p190
        $region58: #{tpu_custom_call.1} parent=39 // pred_check_branch
          %422 = sbr.rel (%p420) target = $region60
        $region59: #{tpu_custom_call.1} parent=39 // pred_region
          %423 = dma.done %s416, 128
        $region60: #{tpu_custom_call.1} parent=39 // pred_fallthru
          _
        %s424 = sand.u32 %s55, 1
        %s425 = scalar_lea.sflag [#allocation6], %s424
        %s426 = sand.u32 %s55, 1
        %s427 = smul.addr %s426, 256
        %s428 = scalar_lea.vmem [#allocation5], %s427
        %p429 = pneg %p68
        %p430 = pneg %p65
        %s431 = sand.u32 %s31, 1
        %s432 = scalar_lea.sflag [#allocation9], %s431
        %s433 = sand.u32 %s85, 1
        %s434 = smul.addr %s433, 64
        %s435 = scalar_lea.vmem [#allocation8], %s434
        %p436 = pneg %p98
        %p437 = pneg %p95
        %s438 = sand.u32 %s31, 1
        %s439 = scalar_lea.sflag [#allocation9], %s438
        %s440 = sand.u32 %s115, 1
        %s441 = smul.addr %s440, 1024
        %s442 = scalar_lea.vmem [#allocation10], %s441
        %p443 = pneg %p128
        %p444 = pneg %p125
        %s445 = sand.u32 %s31, 1
        %s446 = scalar_lea.sflag [#allocation12], %s445
        %s447 = sand.u32 %s147, 1
        %s448 = smul.addr %s447, 4
        %s449 = scalar_lea.vmem [#allocation11], %s448
        %p450 = pneg %p160
        %p451 = pneg %p157
        %s452 = sand.u32 %s31, 1
        %s453 = scalar_lea.sflag [#allocation12], %s452
        %s454 = sand.u32 %s177, 1
        %s455 = smul.addr %s454, 8
        %s456 = scalar_lea.vmem [#allocation13], %s455
        %p457 = pneg %p190
        %p458 = pneg %p187
        %p459 = pneg %p220
        %p460 = pneg %p217
        %s461 = sand.u32 %s207, 1
        %s462 = scalar_lea.sflag [#allocation7], %s461
        %s463 = sand.u32 %s207, 1
        %s464 = smul.addr %s463, 512
        %s465 = scalar_lea.vmem [#allocation14], %s464
        %p466 = pneg %p241
        %p467 = pneg %p238
        %p468 = scmp.eq.s32.totalorder %s35, 0
        %s469 = scalar_select %p468, %s36, 0
        %s470 = smul.u32 16, %s469
        %p471 = scmp.eq.s32.totalorder %s35, 0
        %s472 = scalar_select %p471, 0, %s36
        %s473 = smul.u32 16, %s472
        %p474 = scmp.lt.s32.totalorder %s35, 2
        %s475 = scalar_select %p474, %s35, 2
        %s476 = ssub.s32 %s35, 1
        %p477 = scmp.gt.s32.totalorder %s476, 0
        %s478 = scalar_select %p477, %s476, 0
        %p479 = scmp.eq.s32.totalorder %s35, 3
        %s480 = scalar_select %p479, %s36, 0
        %p481 = scmp.eq.s32.totalorder %s35, 3
        %s482 = scalar_select %p481, %s36, 0
        %s483 = smul.u32 16, %s482
        %s485 = smul.u32 %s36, 128
        %p486 = scmp.lt.s32.totalorder %s35, 0
        %s487 = ssub.s32 0, %s35
        %s488 = scalar_select %p486, %s487, %s35
        %s489 = sand.u32 %s488, 1
        %s490 = ssub.s32 0, %s489
        %s491 = scalar_select %p486, %s490, %s489
        %p492 = scmp.ne.s32.totalorder %s491, 0
        %p493 = scmp.lt.s32.totalorder %s491, 0
        %p494 = pnand %p493, %p492
        %p495 = pneg %p494
        %s496 = sadd.s32 %s491, 2
        %s497 = scalar_select %p495, %s496, %s491
        %s498 = smul.u32 %s497, 128
        %s499 = ssub.s32 1, %s497
        %s500 = smul.u32 %s499, 128
        %s501 = sadd.s32 %s500, %s485
        %p502 = scmp.eq.s32.totalorder %s35, 0
        // Predicated region
        $region61: #{tpu_custom_call.1} parent=39 // pred_check
          %p503 = pneg %p502
        $region62: #{tpu_custom_call.1} parent=39 // pred_check_branch
          %505 = sbr.rel (%p503) target = $region64
        $region63: #{tpu_custom_call.1} parent=39 // pred_region
          %v506 = vld [vmem:[%s383] sm:$0xff]
          %v507 = vld [vmem:[%s383 + $0x8] sm:$0xff]
          %v508 = vld [vmem:[%s383 + $0x10] sm:$0xff]
          %v509 = vld [vmem:[%s383 + $0x18] sm:$0xff]
          %v510 = vld [vmem:[%s383 + $0x20] sm:$0xff]
          %v511 = vld [vmem:[%s383 + $0x28] sm:$0xff]
          %v512 = vld [vmem:[%s383 + $0x30] sm:$0xff]
          %v513 = vld [vmem:[%s383 + $0x38] sm:$0xff]
          %v514 = vld [vmem:[%s383 + $0x40] sm:$0xff]
          %v515 = vld [vmem:[%s383 + $0x48] sm:$0xff]
          %v516 = vld [vmem:[%s383 + $0x50] sm:$0xff]
          %v517 = vld [vmem:[%s383 + $0x58] sm:$0xff]
          %v518 = vld [vmem:[%s383 + $0x60] sm:$0xff]
          %v519 = vld [vmem:[%s383 + $0x68] sm:$0xff]
          %v520 = vld [vmem:[%s383 + $0x70] sm:$0xff]
          %v521 = vld [vmem:[%s383 + $0x78] sm:$0xff]
          %v522 = vld [vmem:[%s383 + $0x80] sm:$0xff]
          %v523 = vld [vmem:[%s383 + $0x88] sm:$0xff]
          %v524 = vld [vmem:[%s383 + $0x90] sm:$0xff]
          %v525 = vld [vmem:[%s383 + $0x98] sm:$0xff]
          %v526 = vld [vmem:[%s383 + $0xa0] sm:$0xff]
          %v527 = vld [vmem:[%s383 + $0xa8] sm:$0xff]
          %v528 = vld [vmem:[%s383 + $0xb0] sm:$0xff]
          %v529 = vld [vmem:[%s383 + $0xb8] sm:$0xff]
          %v530 = vld [vmem:[%s383 + $0xc0] sm:$0xff]
          %v531 = vld [vmem:[%s383 + $0xc8] sm:$0xff]
          %v532 = vld [vmem:[%s383 + $0xd0] sm:$0xff]
          %v533 = vld [vmem:[%s383 + $0xd8] sm:$0xff]
          %v534 = vld [vmem:[%s383 + $0xe0] sm:$0xff]
          %v535 = vld [vmem:[%s383 + $0xe8] sm:$0xff]
          %v536 = vld [vmem:[%s383 + $0xf0] sm:$0xff]
          %v537 = vld [vmem:[%s383 + $0xf8] sm:$0xff]
          %v538 = vld [vmem:[%s401] sm:$0xff]
          %v539 = vld [vmem:[%s401 + $0x8] sm:$0xff]
          %v540 = vld [vmem:[%s401 + $0x10] sm:$0xff]
          %v541 = vld [vmem:[%s401 + $0x18] sm:$0xff]
          %v542 = vld [vmem:[%s401 + $0x20] sm:$0xff]
          %v543 = vld [vmem:[%s401 + $0x28] sm:$0xff]
          %v544 = vld [vmem:[%s401 + $0x30] sm:$0xff]
          %v545 = vld [vmem:[%s401 + $0x38] sm:$0xff]
          %v546 = vld [vmem:[%s401 + $0x40] sm:$0xff]
          %v547 = vld [vmem:[%s401 + $0x48] sm:$0xff]
          %v548 = vld [vmem:[%s401 + $0x50] sm:$0xff]
          %v549 = vld [vmem:[%s401 + $0x58] sm:$0xff]
          %v550 = vld [vmem:[%s401 + $0x60] sm:$0xff]
          %v551 = vld [vmem:[%s401 + $0x68] sm:$0xff]
          %v552 = vld [vmem:[%s401 + $0x70] sm:$0xff]
          %v553 = vld [vmem:[%s401 + $0x78] sm:$0xff]
          %v554 = vld [vmem:[%s401 + $0x80] sm:$0xff]
          %v555 = vld [vmem:[%s401 + $0x88] sm:$0xff]
          %v556 = vld [vmem:[%s401 + $0x90] sm:$0xff]
          %v557 = vld [vmem:[%s401 + $0x98] sm:$0xff]
          %v558 = vld [vmem:[%s401 + $0xa0] sm:$0xff]
          %v559 = vld [vmem:[%s401 + $0xa8] sm:$0xff]
          %v560 = vld [vmem:[%s401 + $0xb0] sm:$0xff]
          %v561 = vld [vmem:[%s401 + $0xb8] sm:$0xff]
          %v562 = vld [vmem:[%s401 + $0xc0] sm:$0xff]
          %v563 = vld [vmem:[%s401 + $0xc8] sm:$0xff]
          %v564 = vld [vmem:[%s401 + $0xd0] sm:$0xff]
          %v565 = vld [vmem:[%s401 + $0xd8] sm:$0xff]
          %v566 = vld [vmem:[%s401 + $0xe0] sm:$0xff]
          %v567 = vld [vmem:[%s401 + $0xe8] sm:$0xff]
          %v568 = vld [vmem:[%s401 + $0xf0] sm:$0xff]
          %v569 = vld [vmem:[%s401 + $0xf8] sm:$0xff]
          %v570 = vld [vmem:[%s401 + $0x100] sm:$0xff]
          %v571 = vld [vmem:[%s401 + $0x108] sm:$0xff]
          %v572 = vld [vmem:[%s401 + $0x110] sm:$0xff]
          %v573 = vld [vmem:[%s401 + $0x118] sm:$0xff]
          %v574 = vld [vmem:[%s401 + $0x120] sm:$0xff]
          %v575 = vld [vmem:[%s401 + $0x128] sm:$0xff]
          %v576 = vld [vmem:[%s401 + $0x130] sm:$0xff]
          %v577 = vld [vmem:[%s401 + $0x138] sm:$0xff]
          %v578 = vld [vmem:[%s401 + $0x140] sm:$0xff]
          %v579 = vld [vmem:[%s401 + $0x148] sm:$0xff]
          %v580 = vld [vmem:[%s401 + $0x150] sm:$0xff]
          %v581 = vld [vmem:[%s401 + $0x158] sm:$0xff]
          %v582 = vld [vmem:[%s401 + $0x160] sm:$0xff]
          %v583 = vld [vmem:[%s401 + $0x168] sm:$0xff]
          %v584 = vld [vmem:[%s401 + $0x170] sm:$0xff]
          %v585 = vld [vmem:[%s401 + $0x178] sm:$0xff]
          %v586 = vld [vmem:[%s401 + $0x180] sm:$0xff]
          %v587 = vld [vmem:[%s401 + $0x188] sm:$0xff]
          %v588 = vld [vmem:[%s401 + $0x190] sm:$0xff]
          %v589 = vld [vmem:[%s401 + $0x198] sm:$0xff]
          %v590 = vld [vmem:[%s401 + $0x1a0] sm:$0xff]
          %v591 = vld [vmem:[%s401 + $0x1a8] sm:$0xff]
          %v592 = vld [vmem:[%s401 + $0x1b0] sm:$0xff]
          %v593 = vld [vmem:[%s401 + $0x1b8] sm:$0xff]
          %v594 = vld [vmem:[%s401 + $0x1c0] sm:$0xff]
          %v595 = vld [vmem:[%s401 + $0x1c8] sm:$0xff]
          %v596 = vld [vmem:[%s401 + $0x1d0] sm:$0xff]
          %v597 = vld [vmem:[%s401 + $0x1d8] sm:$0xff]
          %v598 = vld [vmem:[%s401 + $0x1e0] sm:$0xff]
          %v599 = vld [vmem:[%s401 + $0x1e8] sm:$0xff]
          %v600 = vld [vmem:[%s401 + $0x1f0] sm:$0xff]
          %v601 = vld [vmem:[%s401 + $0x1f8] sm:$0xff]
          %v602 = vld [vmem:[%s401 + $0x200] sm:$0xff]
          %v603 = vld [vmem:[%s401 + $0x208] sm:$0xff]
          %v604 = vld [vmem:[%s401 + $0x210] sm:$0xff]
          %v605 = vld [vmem:[%s401 + $0x218] sm:$0xff]
          %v606 = vld [vmem:[%s401 + $0x220] sm:$0xff]
          %v607 = vld [vmem:[%s401 + $0x228] sm:$0xff]
          %v608 = vld [vmem:[%s401 + $0x230] sm:$0xff]
          %v609 = vld [vmem:[%s401 + $0x238] sm:$0xff]
          %v610 = vld [vmem:[%s401 + $0x240] sm:$0xff]
          %v611 = vld [vmem:[%s401 + $0x248] sm:$0xff]
          %v612 = vld [vmem:[%s401 + $0x250] sm:$0xff]
          %v613 = vld [vmem:[%s401 + $0x258] sm:$0xff]
          %v614 = vld [vmem:[%s401 + $0x260] sm:$0xff]
          %v615 = vld [vmem:[%s401 + $0x268] sm:$0xff]
          %v616 = vld [vmem:[%s401 + $0x270] sm:$0xff]
          %v617 = vld [vmem:[%s401 + $0x278] sm:$0xff]
          %v618 = vld [vmem:[%s401 + $0x280] sm:$0xff]
          %v619 = vld [vmem:[%s401 + $0x288] sm:$0xff]
          %v620 = vld [vmem:[%s401 + $0x290] sm:$0xff]
          %v621 = vld [vmem:[%s401 + $0x298] sm:$0xff]
          %v622 = vld [vmem:[%s401 + $0x2a0] sm:$0xff]
          %v623 = vld [vmem:[%s401 + $0x2a8] sm:$0xff]
          %v624 = vld [vmem:[%s401 + $0x2b0] sm:$0xff]
          %v625 = vld [vmem:[%s401 + $0x2b8] sm:$0xff]
          %v626 = vld [vmem:[%s401 + $0x2c0] sm:$0xff]
          %v627 = vld [vmem:[%s401 + $0x2c8] sm:$0xff]
          %v628 = vld [vmem:[%s401 + $0x2d0] sm:$0xff]
          %v629 = vld [vmem:[%s401 + $0x2d8] sm:$0xff]
          %v630 = vld [vmem:[%s401 + $0x2e0] sm:$0xff]
          %v631 = vld [vmem:[%s401 + $0x2e8] sm:$0xff]
          %v632 = vld [vmem:[%s401 + $0x2f0] sm:$0xff]
          %v633 = vld [vmem:[%s401 + $0x2f8] sm:$0xff]
          %v634 = vld [vmem:[%s401 + $0x300] sm:$0xff]
          %v635 = vld [vmem:[%s401 + $0x308] sm:$0xff]
          %v636 = vld [vmem:[%s401 + $0x310] sm:$0xff]
          %v637 = vld [vmem:[%s401 + $0x318] sm:$0xff]
          %v638 = vld [vmem:[%s401 + $0x320] sm:$0xff]
          %v639 = vld [vmem:[%s401 + $0x328] sm:$0xff]
          %v640 = vld [vmem:[%s401 + $0x330] sm:$0xff]
          %v641 = vld [vmem:[%s401 + $0x338] sm:$0xff]
          %v642 = vld [vmem:[%s401 + $0x340] sm:$0xff]
          %v643 = vld [vmem:[%s401 + $0x348] sm:$0xff]
          %v644 = vld [vmem:[%s401 + $0x350] sm:$0xff]
          %v645 = vld [vmem:[%s401 + $0x358] sm:$0xff]
          %v646 = vld [vmem:[%s401 + $0x360] sm:$0xff]
          %v647 = vld [vmem:[%s401 + $0x368] sm:$0xff]
          %v648 = vld [vmem:[%s401 + $0x370] sm:$0xff]
          %v649 = vld [vmem:[%s401 + $0x378] sm:$0xff]
          %v650 = vld [vmem:[%s401 + $0x380] sm:$0xff]
          %v651 = vld [vmem:[%s401 + $0x388] sm:$0xff]
          %v652 = vld [vmem:[%s401 + $0x390] sm:$0xff]
          %v653 = vld [vmem:[%s401 + $0x398] sm:$0xff]
          %v654 = vld [vmem:[%s401 + $0x3a0] sm:$0xff]
          %v655 = vld [vmem:[%s401 + $0x3a8] sm:$0xff]
          %v656 = vld [vmem:[%s401 + $0x3b0] sm:$0xff]
          %v657 = vld [vmem:[%s401 + $0x3b8] sm:$0xff]
          %v658 = vld [vmem:[%s401 + $0x3c0] sm:$0xff]
          %v659 = vld [vmem:[%s401 + $0x3c8] sm:$0xff]
          %v660 = vld [vmem:[%s401 + $0x3d0] sm:$0xff]
          %v661 = vld [vmem:[%s401 + $0x3d8] sm:$0xff]
          %v662 = vld [vmem:[%s401 + $0x3e0] sm:$0xff]
          %v663 = vld [vmem:[%s401 + $0x3e8] sm:$0xff]
          %v664 = vld [vmem:[%s401 + $0x3f0] sm:$0xff]
          %v665 = vld [vmem:[%s401 + $0x3f8] sm:$0xff]
          %v698 = vunpack.c.l.b16 %v506
          %v699 = vunpack.c.h.b16 %v506
          %v700 = vunpack.c.l.b16 %v507
          %v701 = vunpack.c.h.b16 %v507
          %v702 = vunpack.c.l.b16 %v508
          %v703 = vunpack.c.h.b16 %v508
          %v704 = vunpack.c.l.b16 %v509
          %v705 = vunpack.c.h.b16 %v509
          %v706 = vunpack.c.l.b16 %v510
          %v707 = vunpack.c.h.b16 %v510
          %v708 = vunpack.c.l.b16 %v511
          %v709 = vunpack.c.h.b16 %v511
          %v710 = vunpack.c.l.b16 %v512
          %v711 = vunpack.c.h.b16 %v512
          %v712 = vunpack.c.l.b16 %v513
          %v713 = vunpack.c.h.b16 %v513
          %v714 = vunpack.c.l.b16 %v514
          %v715 = vunpack.c.h.b16 %v514
          %v716 = vunpack.c.l.b16 %v515
          %v717 = vunpack.c.h.b16 %v515
          %v718 = vunpack.c.l.b16 %v516
          %v719 = vunpack.c.h.b16 %v516
          %v720 = vunpack.c.l.b16 %v517
          %v721 = vunpack.c.h.b16 %v517
          %v722 = vunpack.c.l.b16 %v518
          %v723 = vunpack.c.h.b16 %v518
          %v724 = vunpack.c.l.b16 %v519
          %v725 = vunpack.c.h.b16 %v519
          %v726 = vunpack.c.l.b16 %v520
          %v727 = vunpack.c.h.b16 %v520
          %v728 = vunpack.c.l.b16 %v521
          %v729 = vunpack.c.h.b16 %v521
          %v730 = vunpack.c.l.b16 %v522
          %v731 = vunpack.c.h.b16 %v522
          %v732 = vunpack.c.l.b16 %v523
          %v733 = vunpack.c.h.b16 %v523
          %v734 = vunpack.c.l.b16 %v524
          %v735 = vunpack.c.h.b16 %v524
          %v736 = vunpack.c.l.b16 %v525
          %v737 = vunpack.c.h.b16 %v525
          %v738 = vunpack.c.l.b16 %v526
          %v739 = vunpack.c.h.b16 %v526
          %v740 = vunpack.c.l.b16 %v527
          %v741 = vunpack.c.h.b16 %v527
          %v742 = vunpack.c.l.b16 %v528
          %v743 = vunpack.c.h.b16 %v528
          %v744 = vunpack.c.l.b16 %v529
          %v745 = vunpack.c.h.b16 %v529
          %v746 = vunpack.c.l.b16 %v530
          %v747 = vunpack.c.h.b16 %v530
          %v748 = vunpack.c.l.b16 %v531
          %v749 = vunpack.c.h.b16 %v531
          %v750 = vunpack.c.l.b16 %v532
          %v751 = vunpack.c.h.b16 %v532
          %v752 = vunpack.c.l.b16 %v533
          %v753 = vunpack.c.h.b16 %v533
          %v754 = vunpack.c.l.b16 %v534
          %v755 = vunpack.c.h.b16 %v534
          %v756 = vunpack.c.l.b16 %v535
          %v757 = vunpack.c.h.b16 %v535
          %v758 = vunpack.c.l.b16 %v536
          %v759 = vunpack.c.h.b16 %v536
          %v760 = vunpack.c.l.b16 %v537
          %v761 = vunpack.c.h.b16 %v537
          %v762 = vpack.c.b16 %v702, %v698
          %v763 = vpack.c.b16 %v703, %v699
          %v764 = vpack.c.b16 %v704, %v700
          %v765 = vpack.c.b16 %v705, %v701
          %v766 = vpack.c.b16 %v710, %v706
          %v767 = vpack.c.b16 %v711, %v707
          %v768 = vpack.c.b16 %v712, %v708
          %v769 = vpack.c.b16 %v713, %v709
          %v770 = vpack.c.b16 %v718, %v714
          %v771 = vpack.c.b16 %v719, %v715
          %v772 = vpack.c.b16 %v720, %v716
          %v773 = vpack.c.b16 %v721, %v717
          %v774 = vpack.c.b16 %v726, %v722
          %v775 = vpack.c.b16 %v727, %v723
          %v776 = vpack.c.b16 %v728, %v724
          %v777 = vpack.c.b16 %v729, %v725
          %v778 = vpack.c.b16 %v734, %v730
          %v779 = vpack.c.b16 %v735, %v731
          %v780 = vpack.c.b16 %v736, %v732
          %v781 = vpack.c.b16 %v737, %v733
          %v782 = vpack.c.b16 %v742, %v738
          %v783 = vpack.c.b16 %v743, %v739
          %v784 = vpack.c.b16 %v744, %v740
          %v785 = vpack.c.b16 %v745, %v741
          %v786 = vpack.c.b16 %v750, %v746
          %v787 = vpack.c.b16 %v751, %v747
          %v788 = vpack.c.b16 %v752, %v748
          %v789 = vpack.c.b16 %v753, %v749
          %v790 = vpack.c.b16 %v758, %v754
          %v791 = vpack.c.b16 %v759, %v755
          %v792 = vpack.c.b16 %v760, %v756
          %v793 = vpack.c.b16 %v761, %v757
          %v954 = vunpack.c.l.b16 %v538
          %v955 = vunpack.c.h.b16 %v538
          %v956 = vunpack.c.l.b16 %v539
          %v957 = vunpack.c.h.b16 %v539
          %v958 = vunpack.c.l.b16 %v540
          %v959 = vunpack.c.h.b16 %v540
          %v960 = vunpack.c.l.b16 %v541
          %v961 = vunpack.c.h.b16 %v541
          %v962 = vunpack.c.l.b16 %v542
          %v963 = vunpack.c.h.b16 %v542
          %v964 = vunpack.c.l.b16 %v543
          %v965 = vunpack.c.h.b16 %v543
          %v966 = vunpack.c.l.b16 %v544
          %v967 = vunpack.c.h.b16 %v544
          %v968 = vunpack.c.l.b16 %v545
          %v969 = vunpack.c.h.b16 %v545
          %v970 = vunpack.c.l.b16 %v546
          %v971 = vunpack.c.h.b16 %v546
          %v972 = vunpack.c.l.b16 %v547
          %v973 = vunpack.c.h.b16 %v547
          %v974 = vunpack.c.l.b16 %v548
          %v975 = vunpack.c.h.b16 %v548
          %v976 = vunpack.c.l.b16 %v549
          %v977 = vunpack.c.h.b16 %v549
          %v978 = vunpack.c.l.b16 %v550
          %v979 = vunpack.c.h.b16 %v550
          %v980 = vunpack.c.l.b16 %v551
          %v981 = vunpack.c.h.b16 %v551
          %v982 = vunpack.c.l.b16 %v552
          %v983 = vunpack.c.h.b16 %v552
          %v984 = vunpack.c.l.b16 %v553
          %v985 = vunpack.c.h.b16 %v553
          %v986 = vunpack.c.l.b16 %v554
          %v987 = vunpack.c.h.b16 %v554
          %v988 = vunpack.c.l.b16 %v555
          %v989 = vunpack.c.h.b16 %v555
          %v990 = vunpack.c.l.b16 %v556
          %v991 = vunpack.c.h.b16 %v556
          %v992 = vunpack.c.l.b16 %v557
          %v993 = vunpack.c.h.b16 %v557
          %v994 = vunpack.c.l.b16 %v558
          %v995 = vunpack.c.h.b16 %v558
          %v996 = vunpack.c.l.b16 %v559
          %v997 = vunpack.c.h.b16 %v559
          %v998 = vunpack.c.l.b16 %v560
          %v999 = vunpack.c.h.b16 %v560
          %v1000 = vunpack.c.l.b16 %v561
          %v1001 = vunpack.c.h.b16 %v561
          %v1002 = vunpack.c.l.b16 %v562
          %v1003 = vunpack.c.h.b16 %v562
          %v1004 = vunpack.c.l.b16 %v563
          %v1005 = vunpack.c.h.b16 %v563
          %v1006 = vunpack.c.l.b16 %v564
          %v1007 = vunpack.c.h.b16 %v564
          %v1008 = vunpack.c.l.b16 %v565
          %v1009 = vunpack.c.h.b16 %v565
          %v1010 = vunpack.c.l.b16 %v566
          %v1011 = vunpack.c.h.b16 %v566
          %v1012 = vunpack.c.l.b16 %v567
          %v1013 = vunpack.c.h.b16 %v567
          %v1014 = vunpack.c.l.b16 %v568
          %v1015 = vunpack.c.h.b16 %v568
          %v1016 = vunpack.c.l.b16 %v569
          %v1017 = vunpack.c.h.b16 %v569
          %v1018 = vunpack.c.l.b16 %v570
          %v1019 = vunpack.c.h.b16 %v570
          %v1020 = vunpack.c.l.b16 %v571
          %v1021 = vunpack.c.h.b16 %v571
          %v1022 = vunpack.c.l.b16 %v572
          %v1023 = vunpack.c.h.b16 %v572
          %v1024 = vunpack.c.l.b16 %v573
          %v1025 = vunpack.c.h.b16 %v573
          %v1026 = vunpack.c.l.b16 %v574
          %v1027 = vunpack.c.h.b16 %v574
          %v1028 = vunpack.c.l.b16 %v575
          %v1029 = vunpack.c.h.b16 %v575
          %v1030 = vunpack.c.l.b16 %v576
          %v1031 = vunpack.c.h.b16 %v576
          %v1032 = vunpack.c.l.b16 %v577
          %v1033 = vunpack.c.h.b16 %v577
          %v1034 = vunpack.c.l.b16 %v578
          %v1035 = vunpack.c.h.b16 %v578
          %v1036 = vunpack.c.l.b16 %v579
          %v1037 = vunpack.c.h.b16 %v579
          %v1038 = vunpack.c.l.b16 %v580
          %v1039 = vunpack.c.h.b16 %v580
          %v1040 = vunpack.c.l.b16 %v581
          %v1041 = vunpack.c.h.b16 %v581
          %v1042 = vunpack.c.l.b16 %v582
          %v1043 = vunpack.c.h.b16 %v582
          %v1044 = vunpack.c.l.b16 %v583
          %v1045 = vunpack.c.h.b16 %v583
          %v1046 = vunpack.c.l.b16 %v584
          %v1047 = vunpack.c.h.b16 %v584
          %v1048 = vunpack.c.l.b16 %v585
          %v1049 = vunpack.c.h.b16 %v585
          %v1050 = vunpack.c.l.b16 %v586
          %v1051 = vunpack.c.h.b16 %v586
          %v1052 = vunpack.c.l.b16 %v587
          %v1053 = vunpack.c.h.b16 %v587
          %v1054 = vunpack.c.l.b16 %v588
          %v1055 = vunpack.c.h.b16 %v588
          %v1056 = vunpack.c.l.b16 %v589
          %v1057 = vunpack.c.h.b16 %v589
          %v1058 = vunpack.c.l.b16 %v590
          %v1059 = vunpack.c.h.b16 %v590
          %v1060 = vunpack.c.l.b16 %v591
          %v1061 = vunpack.c.h.b16 %v591
          %v1062 = vunpack.c.l.b16 %v592
          %v1063 = vunpack.c.h.b16 %v592
          %v1064 = vunpack.c.l.b16 %v593
          %v1065 = vunpack.c.h.b16 %v593
          %v1066 = vunpack.c.l.b16 %v594
          %v1067 = vunpack.c.h.b16 %v594
          %v1068 = vunpack.c.l.b16 %v595
          %v1069 = vunpack.c.h.b16 %v595
          %v1070 = vunpack.c.l.b16 %v596
          %v1071 = vunpack.c.h.b16 %v596
          %v1072 = vunpack.c.l.b16 %v597
          %v1073 = vunpack.c.h.b16 %v597
          %v1074 = vunpack.c.l.b16 %v598
          %v1075 = vunpack.c.h.b16 %v598
          %v1076 = vunpack.c.l.b16 %v599
          %v1077 = vunpack.c.h.b16 %v599
          %v1078 = vunpack.c.l.b16 %v600
          %v1079 = vunpack.c.h.b16 %v600
          %v1080 = vunpack.c.l.b16 %v601
          %v1081 = vunpack.c.h.b16 %v601
          %v1082 = vunpack.c.l.b16 %v602
          %v1083 = vunpack.c.h.b16 %v602
          %v1084 = vunpack.c.l.b16 %v603
          %v1085 = vunpack.c.h.b16 %v603
          %v1086 = vunpack.c.l.b16 %v604
          %v1087 = vunpack.c.h.b16 %v604
          %v1088 = vunpack.c.l.b16 %v605
          %v1089 = vunpack.c.h.b16 %v605
          %v1090 = vunpack.c.l.b16 %v606
          %v1091 = vunpack.c.h.b16 %v606
          %v1092 = vunpack.c.l.b16 %v607
          %v1093 = vunpack.c.h.b16 %v607
          %v1094 = vunpack.c.l.b16 %v608
          %v1095 = vunpack.c.h.b16 %v608
          %v1096 = vunpack.c.l.b16 %v609
          %v1097 = vunpack.c.h.b16 %v609
          %v1098 = vunpack.c.l.b16 %v610
          %v1099 = vunpack.c.h.b16 %v610
          %v1100 = vunpack.c.l.b16 %v611
          %v1101 = vunpack.c.h.b16 %v611
          %v1102 = vunpack.c.l.b16 %v612
          %v1103 = vunpack.c.h.b16 %v612
          %v1104 = vunpack.c.l.b16 %v613
          %v1105 = vunpack.c.h.b16 %v613
          %v1106 = vunpack.c.l.b16 %v614
          %v1107 = vunpack.c.h.b16 %v614
          %v1108 = vunpack.c.l.b16 %v615
          %v1109 = vunpack.c.h.b16 %v615
          %v1110 = vunpack.c.l.b16 %v616
          %v1111 = vunpack.c.h.b16 %v616
          %v1112 = vunpack.c.l.b16 %v617
          %v1113 = vunpack.c.h.b16 %v617
          %v1114 = vunpack.c.l.b16 %v618
          %v1115 = vunpack.c.h.b16 %v618
          %v1116 = vunpack.c.l.b16 %v619
          %v1117 = vunpack.c.h.b16 %v619
          %v1118 = vunpack.c.l.b16 %v620
          %v1119 = vunpack.c.h.b16 %v620
          %v1120 = vunpack.c.l.b16 %v621
          %v1121 = vunpack.c.h.b16 %v621
          %v1122 = vunpack.c.l.b16 %v622
          %v1123 = vunpack.c.h.b16 %v622
          %v1124 = vunpack.c.l.b16 %v623
          %v1125 = vunpack.c.h.b16 %v623
          %v1126 = vunpack.c.l.b16 %v624
          %v1127 = vunpack.c.h.b16 %v624
          %v1128 = vunpack.c.l.b16 %v625
          %v1129 = vunpack.c.h.b16 %v625
          %v1130 = vunpack.c.l.b16 %v626
          %v1131 = vunpack.c.h.b16 %v626
          %v1132 = vunpack.c.l.b16 %v627
          %v1133 = vunpack.c.h.b16 %v627
          %v1134 = vunpack.c.l.b16 %v628
          %v1135 = vunpack.c.h.b16 %v628
          %v1136 = vunpack.c.l.b16 %v629
          %v1137 = vunpack.c.h.b16 %v629
          %v1138 = vunpack.c.l.b16 %v630
          %v1139 = vunpack.c.h.b16 %v630
          %v1140 = vunpack.c.l.b16 %v631
          %v1141 = vunpack.c.h.b16 %v631
          %v1142 = vunpack.c.l.b16 %v632
          %v1143 = vunpack.c.h.b16 %v632
          %v1144 = vunpack.c.l.b16 %v633
          %v1145 = vunpack.c.h.b16 %v633
          %v1146 = vunpack.c.l.b16 %v634
          %v1147 = vunpack.c.h.b16 %v634
          %v1148 = vunpack.c.l.b16 %v635
          %v1149 = vunpack.c.h.b16 %v635
          %v1150 = vunpack.c.l.b16 %v636
          %v1151 = vunpack.c.h.b16 %v636
          %v1152 = vunpack.c.l.b16 %v637
          %v1153 = vunpack.c.h.b16 %v637
          %v1154 = vunpack.c.l.b16 %v638
          %v1155 = vunpack.c.h.b16 %v638
          %v1156 = vunpack.c.l.b16 %v639
          %v1157 = vunpack.c.h.b16 %v639
          %v1158 = vunpack.c.l.b16 %v640
          %v1159 = vunpack.c.h.b16 %v640
          %v1160 = vunpack.c.l.b16 %v641
          %v1161 = vunpack.c.h.b16 %v641
          %v1162 = vunpack.c.l.b16 %v642
          %v1163 = vunpack.c.h.b16 %v642
          %v1164 = vunpack.c.l.b16 %v643
          %v1165 = vunpack.c.h.b16 %v643
          %v1166 = vunpack.c.l.b16 %v644
          %v1167 = vunpack.c.h.b16 %v644
          %v1168 = vunpack.c.l.b16 %v645
          %v1169 = vunpack.c.h.b16 %v645
          %v1170 = vunpack.c.l.b16 %v646
          %v1171 = vunpack.c.h.b16 %v646
          %v1172 = vunpack.c.l.b16 %v647
          %v1173 = vunpack.c.h.b16 %v647
          %v1174 = vunpack.c.l.b16 %v648
          %v1175 = vunpack.c.h.b16 %v648
          %v1176 = vunpack.c.l.b16 %v649
          %v1177 = vunpack.c.h.b16 %v649
          %v1178 = vunpack.c.l.b16 %v650
          %v1179 = vunpack.c.h.b16 %v650
          %v1180 = vunpack.c.l.b16 %v651
          %v1181 = vunpack.c.h.b16 %v651
          %v1182 = vunpack.c.l.b16 %v652
          %v1183 = vunpack.c.h.b16 %v652
          %v1184 = vunpack.c.l.b16 %v653
          %v1185 = vunpack.c.h.b16 %v653
          %v1186 = vunpack.c.l.b16 %v654
          %v1187 = vunpack.c.h.b16 %v654
          %v1188 = vunpack.c.l.b16 %v655
          %v1189 = vunpack.c.h.b16 %v655
          %v1190 = vunpack.c.l.b16 %v656
          %v1191 = vunpack.c.h.b16 %v656
          %v1192 = vunpack.c.l.b16 %v657
          %v1193 = vunpack.c.h.b16 %v657
          %v1194 = vunpack.c.l.b16 %v658
          %v1195 = vunpack.c.h.b16 %v658
          %v1196 = vunpack.c.l.b16 %v659
          %v1197 = vunpack.c.h.b16 %v659
          %v1198 = vunpack.c.l.b16 %v660
          %v1199 = vunpack.c.h.b16 %v660
          %v1200 = vunpack.c.l.b16 %v661
          %v1201 = vunpack.c.h.b16 %v661
          %v1202 = vunpack.c.l.b16 %v662
          %v1203 = vunpack.c.h.b16 %v662
          %v1204 = vunpack.c.l.b16 %v663
          %v1205 = vunpack.c.h.b16 %v663
          %v1206 = vunpack.c.l.b16 %v664
          %v1207 = vunpack.c.h.b16 %v664
          %v1208 = vunpack.c.l.b16 %v665
          %v1209 = vunpack.c.h.b16 %v665
          %v1210 = vpack.c.b16 %v958, %v954
          %v1211 = vpack.c.b16 %v959, %v955
          %v1212 = vpack.c.b16 %v960, %v956
          %v1213 = vpack.c.b16 %v961, %v957
          %v1214 = vpack.c.b16 %v966, %v962
          %v1215 = vpack.c.b16 %v967, %v963
          %v1216 = vpack.c.b16 %v968, %v964
          %v1217 = vpack.c.b16 %v969, %v965
          %v1218 = vpack.c.b16 %v974, %v970
          %v1219 = vpack.c.b16 %v975, %v971
          %v1220 = vpack.c.b16 %v976, %v972
          %v1221 = vpack.c.b16 %v977, %v973
          %v1222 = vpack.c.b16 %v982, %v978
          %v1223 = vpack.c.b16 %v983, %v979
          %v1224 = vpack.c.b16 %v984, %v980
          %v1225 = vpack.c.b16 %v985, %v981
          %v1226 = vpack.c.b16 %v990, %v986
          %v1227 = vpack.c.b16 %v991, %v987
          %v1228 = vpack.c.b16 %v992, %v988
          %v1229 = vpack.c.b16 %v993, %v989
          %v1230 = vpack.c.b16 %v998, %v994
          %v1231 = vpack.c.b16 %v999, %v995
          %v1232 = vpack.c.b16 %v1000, %v996
          %v1233 = vpack.c.b16 %v1001, %v997
          %v1234 = vpack.c.b16 %v1006, %v1002
          %v1235 = vpack.c.b16 %v1007, %v1003
          %v1236 = vpack.c.b16 %v1008, %v1004
          %v1237 = vpack.c.b16 %v1009, %v1005
          %v1238 = vpack.c.b16 %v1014, %v1010
          %v1239 = vpack.c.b16 %v1015, %v1011
          %v1240 = vpack.c.b16 %v1016, %v1012
          %v1241 = vpack.c.b16 %v1017, %v1013
          %v1242 = vpack.c.b16 %v1022, %v1018
          %v1243 = vpack.c.b16 %v1023, %v1019
          %v1244 = vpack.c.b16 %v1024, %v1020
          %v1245 = vpack.c.b16 %v1025, %v1021
          %v1246 = vpack.c.b16 %v1030, %v1026
          %v1247 = vpack.c.b16 %v1031, %v1027
          %v1248 = vpack.c.b16 %v1032, %v1028
          %v1249 = vpack.c.b16 %v1033, %v1029
          %v1250 = vpack.c.b16 %v1038, %v1034
          %v1251 = vpack.c.b16 %v1039, %v1035
          %v1252 = vpack.c.b16 %v1040, %v1036
          %v1253 = vpack.c.b16 %v1041, %v1037
          %v1254 = vpack.c.b16 %v1046, %v1042
          %v1255 = vpack.c.b16 %v1047, %v1043
          %v1256 = vpack.c.b16 %v1048, %v1044
          %v1257 = vpack.c.b16 %v1049, %v1045
          %v1258 = vpack.c.b16 %v1054, %v1050
          %v1259 = vpack.c.b16 %v1055, %v1051
          %v1260 = vpack.c.b16 %v1056, %v1052
          %v1261 = vpack.c.b16 %v1057, %v1053
          %v1262 = vpack.c.b16 %v1062, %v1058
          %v1263 = vpack.c.b16 %v1063, %v1059
          %v1264 = vpack.c.b16 %v1064, %v1060
          %v1265 = vpack.c.b16 %v1065, %v1061
          %v1266 = vpack.c.b16 %v1070, %v1066
          %v1267 = vpack.c.b16 %v1071, %v1067
          %v1268 = vpack.c.b16 %v1072, %v1068
          %v1269 = vpack.c.b16 %v1073, %v1069
          %v1270 = vpack.c.b16 %v1078, %v1074
          %v1271 = vpack.c.b16 %v1079, %v1075
          %v1272 = vpack.c.b16 %v1080, %v1076
          %v1273 = vpack.c.b16 %v1081, %v1077
          %v1274 = vpack.c.b16 %v1086, %v1082
          %v1275 = vpack.c.b16 %v1087, %v1083
          %v1276 = vpack.c.b16 %v1088, %v1084
          %v1277 = vpack.c.b16 %v1089, %v1085
          %v1278 = vpack.c.b16 %v1094, %v1090
          %v1279 = vpack.c.b16 %v1095, %v1091
          %v1280 = vpack.c.b16 %v1096, %v1092
          %v1281 = vpack.c.b16 %v1097, %v1093
          %v1282 = vpack.c.b16 %v1102, %v1098
          %v1283 = vpack.c.b16 %v1103, %v1099
          %v1284 = vpack.c.b16 %v1104, %v1100
          %v1285 = vpack.c.b16 %v1105, %v1101
          %v1286 = vpack.c.b16 %v1110, %v1106
          %v1287 = vpack.c.b16 %v1111, %v1107
          %v1288 = vpack.c.b16 %v1112, %v1108
          %v1289 = vpack.c.b16 %v1113, %v1109
          %v1290 = vpack.c.b16 %v1118, %v1114
          %v1291 = vpack.c.b16 %v1119, %v1115
          %v1292 = vpack.c.b16 %v1120, %v1116
          %v1293 = vpack.c.b16 %v1121, %v1117
          %v1294 = vpack.c.b16 %v1126, %v1122
          %v1295 = vpack.c.b16 %v1127, %v1123
          %v1296 = vpack.c.b16 %v1128, %v1124
          %v1297 = vpack.c.b16 %v1129, %v1125
          %v1298 = vpack.c.b16 %v1134, %v1130
          %v1299 = vpack.c.b16 %v1135, %v1131
          %v1300 = vpack.c.b16 %v1136, %v1132
          %v1301 = vpack.c.b16 %v1137, %v1133
          %v1302 = vpack.c.b16 %v1142, %v1138
          %v1303 = vpack.c.b16 %v1143, %v1139
          %v1304 = vpack.c.b16 %v1144, %v1140
          %v1305 = vpack.c.b16 %v1145, %v1141
          %v1306 = vpack.c.b16 %v1150, %v1146
          %v1307 = vpack.c.b16 %v1151, %v1147
          %v1308 = vpack.c.b16 %v1152, %v1148
          %v1309 = vpack.c.b16 %v1153, %v1149
          %v1310 = vpack.c.b16 %v1158, %v1154
          %v1311 = vpack.c.b16 %v1159, %v1155
          %v1312 = vpack.c.b16 %v1160, %v1156
          %v1313 = vpack.c.b16 %v1161, %v1157
          %v1314 = vpack.c.b16 %v1166, %v1162
          %v1315 = vpack.c.b16 %v1167, %v1163
          %v1316 = vpack.c.b16 %v1168, %v1164
          %v1317 = vpack.c.b16 %v1169, %v1165
          %v1318 = vpack.c.b16 %v1174, %v1170
          %v1319 = vpack.c.b16 %v1175, %v1171
          %v1320 = vpack.c.b16 %v1176, %v1172
          %v1321 = vpack.c.b16 %v1177, %v1173
          %v1322 = vpack.c.b16 %v1182, %v1178
          %v1323 = vpack.c.b16 %v1183, %v1179
          %v1324 = vpack.c.b16 %v1184, %v1180
          %v1325 = vpack.c.b16 %v1185, %v1181
          %v1326 = vpack.c.b16 %v1190, %v1186
          %v1327 = vpack.c.b16 %v1191, %v1187
          %v1328 = vpack.c.b16 %v1192, %v1188
          %v1329 = vpack.c.b16 %v1193, %v1189
          %v1330 = vpack.c.b16 %v1198, %v1194
          %v1331 = vpack.c.b16 %v1199, %v1195
          %v1332 = vpack.c.b16 %v1200, %v1196
          %v1333 = vpack.c.b16 %v1201, %v1197
          %v1334 = vpack.c.b16 %v1206, %v1202
          %v1335 = vpack.c.b16 %v1207, %v1203
          %v1336 = vpack.c.b16 %v1208, %v1204
          %v1337 = vpack.c.b16 %v1209, %v1205
          %1466 = vmatprep.subr.bf16.mxu0 %v1239
          %1467 = vmatpush1.bf16.msra.mxu0 %v1238
          %1468 = vmatprep.subr.bf16.mxu0 %v1235
          %1469 = vmatpush1.bf16.msra.mxu0 %v1234
          %1470 = vmatprep.subr.bf16.mxu0 %v1231
          %1471 = vmatpush1.bf16.msra.mxu0 %v1230
          %1472 = vmatprep.subr.bf16.mxu0 %v1227
          %1473 = vmatpush1.bf16.msra.mxu0 %v1226
          %1474 = vmatprep.subr.bf16.mxu0 %v1223
          %1475 = vmatpush1.bf16.msra.mxu0 %v1222
          %1476 = vmatprep.subr.bf16.mxu0 %v1219
          %1477 = vmatpush1.bf16.msra.mxu0 %v1218
          %1478 = vmatprep.subr.bf16.mxu0 %v1215
          %1479 = vmatpush1.bf16.msra.mxu0 %v1214
          %1480 = vmatprep.subr.bf16.mxu0 %v1211
          %1481 = vmatpush1.bf16.msra.mxu0 %v1210
          %1482 = vmatprep.subr.bf16.mxu0 %v1271
          %1483 = vmatpush2.bf16.msra.mxu0 %v1270
          %1484 = vmatprep.subr.bf16.mxu0 %v1267
          %1485 = vmatpush2.bf16.msra.mxu0 %v1266
          %1486 = vmatprep.subr.bf16.mxu0 %v1263
          %1487 = vmatpush2.bf16.msra.mxu0 %v1262
          %1488 = vmatprep.subr.bf16.mxu0 %v1259
          %1489 = vmatpush2.bf16.msra.mxu0 %v1258
          %1490 = vmatprep.subr.bf16.mxu0 %v1255
          %1491 = vmatpush2.bf16.msra.mxu0 %v1254
          %1492 = vmatprep.subr.bf16.mxu0 %v1251
          %1493 = vmatpush2.bf16.msra.mxu0 %v1250
          %1494 = vmatprep.subr.bf16.mxu0 %v1247
          %1495 = vmatpush2.bf16.msra.mxu0 %v1246
          %1496 = vmatprep.subr.bf16.mxu0 %v1243
          %1497 = vmatpush2.bf16.msra.mxu0 %v1242
          %1498 = vmatprep.mubr.bf16.mxu0 %v763
          %1499 = vmatmul.mubr.bf16.gmra.mxu0 %v762
          %v1500 = vpop.f32.mrf.mxu0
          %v1501 = vadd.f32 0.0, %v1500
          %v1502 = vpop.f32.mrf.mxu0
          %v1503 = vadd.f32 0.0, %v1502
          %v1504 = vpop.f32.mrf.mxu0
          %v1505 = vadd.f32 0.0, %v1504
          %v1506 = vpop.f32.mrf.mxu0
          %v1507 = vadd.f32 0.0, %v1506
          %1508 = vmatprep.mubr.bf16.mxu0 %v767
          %1509 = vmatmul.mubr.bf16.gmra.mxu0 %v766
          %v1510 = vpop.f32.mrf.mxu0
          %v1511 = vadd.f32 0.0, %v1510
          %v1512 = vpop.f32.mrf.mxu0
          %v1513 = vadd.f32 0.0, %v1512
          %v1514 = vpop.f32.mrf.mxu0
          %v1515 = vadd.f32 0.0, %v1514
          %v1516 = vpop.f32.mrf.mxu0
          %v1517 = vadd.f32 0.0, %v1516
          %1518 = vmatprep.mubr.bf16.mxu0 %v771
          %1519 = vmatmul.mubr.bf16.gmra.mxu0 %v770
          %v1520 = vpop.f32.mrf.mxu0
          %v1521 = vadd.f32 0.0, %v1520
          %v1522 = vpop.f32.mrf.mxu0
          %v1523 = vadd.f32 0.0, %v1522
          %v1524 = vpop.f32.mrf.mxu0
          %v1525 = vadd.f32 0.0, %v1524
          %v1526 = vpop.f32.mrf.mxu0
          %v1527 = vadd.f32 0.0, %v1526
          %1528 = vmatprep.mubr.bf16.mxu0 %v775
          %1529 = vmatmul.mubr.bf16.gmra.mxu0 %v774
          %v1530 = vpop.f32.mrf.mxu0
          %v1531 = vadd.f32 0.0, %v1530
          %v1532 = vpop.f32.mrf.mxu0
          %v1533 = vadd.f32 0.0, %v1532
          %v1534 = vpop.f32.mrf.mxu0
          %v1535 = vadd.f32 0.0, %v1534
          %v1536 = vpop.f32.mrf.mxu0
          %v1537 = vadd.f32 0.0, %v1536
          %1538 = vmatprep.mubr.bf16.mxu0 %v779
          %1539 = vmatmul.mubr.bf16.gmra.mxu0 %v778
          %v1540 = vpop.f32.mrf.mxu0
          %v1541 = vadd.f32 0.0, %v1540
          %v1542 = vpop.f32.mrf.mxu0
          %v1543 = vadd.f32 0.0, %v1542
          %v1544 = vpop.f32.mrf.mxu0
          %v1545 = vadd.f32 0.0, %v1544
          %v1546 = vpop.f32.mrf.mxu0
          %v1547 = vadd.f32 0.0, %v1546
          %1548 = vmatprep.mubr.bf16.mxu0 %v783
          %1549 = vmatmul.mubr.bf16.gmra.mxu0 %v782
          %v1550 = vpop.f32.mrf.mxu0
          %v1551 = vadd.f32 0.0, %v1550
          %v1552 = vpop.f32.mrf.mxu0
          %v1553 = vadd.f32 0.0, %v1552
          %v1554 = vpop.f32.mrf.mxu0
          %v1555 = vadd.f32 0.0, %v1554
          %v1556 = vpop.f32.mrf.mxu0
          %v1557 = vadd.f32 0.0, %v1556
          %1558 = vmatprep.mubr.bf16.mxu0 %v787
          %1559 = vmatmul.mubr.bf16.gmra.mxu0 %v786
          %v1560 = vpop.f32.mrf.mxu0
          %v1561 = vadd.f32 0.0, %v1560
          %v1562 = vpop.f32.mrf.mxu0
          %v1563 = vadd.f32 0.0, %v1562
          %v1564 = vpop.f32.mrf.mxu0
          %v1565 = vadd.f32 0.0, %v1564
          %v1566 = vpop.f32.mrf.mxu0
          %v1567 = vadd.f32 0.0, %v1566
          %1568 = vmatprep.mubr.bf16.mxu0 %v791
          %1569 = vmatmul.mubr.bf16.gmra.mxu0 %v790
          %v1570 = vpop.f32.mrf.mxu0
          %v1571 = vadd.f32 0.0, %v1570
          %v1572 = vpop.f32.mrf.mxu0
          %v1573 = vadd.f32 0.0, %v1572
          %v1574 = vpop.f32.mrf.mxu0
          %v1575 = vadd.f32 0.0, %v1574
          %v1576 = vpop.f32.mrf.mxu0
          %v1577 = vadd.f32 0.0, %v1576
          %1578 = vdwg.mxu0
          %1579 = vmatprep.subr.bf16.mxu0 %v1303
          %1580 = vmatpush1.bf16.msra.mxu0 %v1302
          %1581 = vmatprep.subr.bf16.mxu0 %v1299
          %1582 = vmatpush1.bf16.msra.mxu0 %v1298
          %1583 = vmatprep.subr.bf16.mxu0 %v1295
          %1584 = vmatpush1.bf16.msra.mxu0 %v1294
          %1585 = vmatprep.subr.bf16.mxu0 %v1291
          %1586 = vmatpush1.bf16.msra.mxu0 %v1290
          %1587 = vmatprep.subr.bf16.mxu0 %v1287
          %1588 = vmatpush1.bf16.msra.mxu0 %v1286
          %1589 = vmatprep.subr.bf16.mxu0 %v1283
          %1590 = vmatpush1.bf16.msra.mxu0 %v1282
          %1591 = vmatprep.subr.bf16.mxu0 %v1279
          %1592 = vmatpush1.bf16.msra.mxu0 %v1278
          %1593 = vmatprep.subr.bf16.mxu0 %v1275
          %1594 = vmatpush1.bf16.msra.mxu0 %v1274
          %1595 = vmatprep.subr.bf16.mxu0 %v1335
          %1596 = vmatpush2.bf16.msra.mxu0 %v1334
          %1597 = vmatprep.subr.bf16.mxu0 %v1331
          %1598 = vmatpush2.bf16.msra.mxu0 %v1330
          %1599 = vmatprep.subr.bf16.mxu0 %v1327
          %1600 = vmatpush2.bf16.msra.mxu0 %v1326
          %1601 = vmatprep.subr.bf16.mxu0 %v1323
          %1602 = vmatpush2.bf16.msra.mxu0 %v1322
          %1603 = vmatprep.subr.bf16.mxu0 %v1319
          %1604 = vmatpush2.bf16.msra.mxu0 %v1318
          %1605 = vmatprep.subr.bf16.mxu0 %v1315
          %1606 = vmatpush2.bf16.msra.mxu0 %v1314
          %1607 = vmatprep.subr.bf16.mxu0 %v1311
          %1608 = vmatpush2.bf16.msra.mxu0 %v1310
          %1609 = vmatprep.subr.bf16.mxu0 %v1307
          %1610 = vmatpush2.bf16.msra.mxu0 %v1306
          %1611 = vmatprep.mubr.bf16.mxu0 %v765
          %1612 = vmatmul.mubr.bf16.gmra.mxu0 %v764
          %v1613 = vpop.f32.mrf.mxu0
          %v1614 = vadd.f32 %v1501, %v1613
          %v1615 = vpop.f32.mrf.mxu0
          %v1616 = vadd.f32 %v1503, %v1615
          %v1617 = vpop.f32.mrf.mxu0
          %v1618 = vadd.f32 %v1505, %v1617
          %v1619 = vpop.f32.mrf.mxu0
          %v1620 = vadd.f32 %v1507, %v1619
          %1621 = vmatprep.mubr.bf16.mxu0 %v769
          %1622 = vmatmul.mubr.bf16.gmra.mxu0 %v768
          %v1623 = vpop.f32.mrf.mxu0
          %v1624 = vadd.f32 %v1511, %v1623
          %v1625 = vpop.f32.mrf.mxu0
          %v1626 = vadd.f32 %v1513, %v1625
          %v1627 = vpop.f32.mrf.mxu0
          %v1628 = vadd.f32 %v1515, %v1627
          %v1629 = vpop.f32.mrf.mxu0
          %v1630 = vadd.f32 %v1517, %v1629
          %1631 = vmatprep.mubr.bf16.mxu0 %v773
          %1632 = vmatmul.mubr.bf16.gmra.mxu0 %v772
          %v1633 = vpop.f32.mrf.mxu0
          %v1634 = vadd.f32 %v1521, %v1633
          %v1635 = vpop.f32.mrf.mxu0
          %v1636 = vadd.f32 %v1523, %v1635
          %v1637 = vpop.f32.mrf.mxu0
          %v1638 = vadd.f32 %v1525, %v1637
          %v1639 = vpop.f32.mrf.mxu0
          %v1640 = vadd.f32 %v1527, %v1639
          %1641 = vmatprep.mubr.bf16.mxu0 %v777
          %1642 = vmatmul.mubr.bf16.gmra.mxu0 %v776
          %v1643 = vpop.f32.mrf.mxu0
          %v1644 = vadd.f32 %v1531, %v1643
          %v1645 = vpop.f32.mrf.mxu0
          %v1646 = vadd.f32 %v1533, %v1645
          %v1647 = vpop.f32.mrf.mxu0
          %v1648 = vadd.f32 %v1535, %v1647
          %v1649 = vpop.f32.mrf.mxu0
          %v1650 = vadd.f32 %v1537, %v1649
          %1651 = vmatprep.mubr.bf16.mxu0 %v781
          %1652 = vmatmul.mubr.bf16.gmra.mxu0 %v780
          %v1653 = vpop.f32.mrf.mxu0
          %v1654 = vadd.f32 %v1541, %v1653
          %v1655 = vpop.f32.mrf.mxu0
          %v1656 = vadd.f32 %v1543, %v1655
          %v1657 = vpop.f32.mrf.mxu0
          %v1658 = vadd.f32 %v1545, %v1657
          %v1659 = vpop.f32.mrf.mxu0
          %v1660 = vadd.f32 %v1547, %v1659
          %1661 = vmatprep.mubr.bf16.mxu0 %v785
          %1662 = vmatmul.mubr.bf16.gmra.mxu0 %v784
          %v1663 = vpop.f32.mrf.mxu0
          %v1664 = vadd.f32 %v1551, %v1663
          %v1665 = vpop.f32.mrf.mxu0
          %v1666 = vadd.f32 %v1553, %v1665
          %v1667 = vpop.f32.mrf.mxu0
          %v1668 = vadd.f32 %v1555, %v1667
          %v1669 = vpop.f32.mrf.mxu0
          %v1670 = vadd.f32 %v1557, %v1669
          %1671 = vmatprep.mubr.bf16.mxu0 %v789
          %1672 = vmatmul.mubr.bf16.gmra.mxu0 %v788
          %v1673 = vpop.f32.mrf.mxu0
          %v1674 = vadd.f32 %v1561, %v1673
          %v1675 = vpop.f32.mrf.mxu0
          %v1676 = vadd.f32 %v1563, %v1675
          %v1677 = vpop.f32.mrf.mxu0
          %v1678 = vadd.f32 %v1565, %v1677
          %v1679 = vpop.f32.mrf.mxu0
          %v1680 = vadd.f32 %v1567, %v1679
          %1681 = vmatprep.mubr.bf16.mxu0 %v793
          %1682 = vmatmul.mubr.bf16.gmra.mxu0 %v792
          %v1683 = vpop.f32.mrf.mxu0
          %v1684 = vadd.f32 %v1571, %v1683
          %v1685 = vpop.f32.mrf.mxu0
          %v1686 = vadd.f32 %v1573, %v1685
          %v1687 = vpop.f32.mrf.mxu0
          %v1688 = vadd.f32 %v1575, %v1687
          %v1689 = vpop.f32.mrf.mxu0
          %v1690 = vadd.f32 %v1577, %v1689
          %1691 = vdwg.mxu0
          %1692 = vmatprep.subr.bf16.mxu0 %v1241
          %1693 = vmatpush1.bf16.msra.mxu0 %v1240
          %1694 = vmatprep.subr.bf16.mxu0 %v1237
          %1695 = vmatpush1.bf16.msra.mxu0 %v1236
          %1696 = vmatprep.subr.bf16.mxu0 %v1233
          %1697 = vmatpush1.bf16.msra.mxu0 %v1232
          %1698 = vmatprep.subr.bf16.mxu0 %v1229
          %1699 = vmatpush1.bf16.msra.mxu0 %v1228
          %1700 = vmatprep.subr.bf16.mxu0 %v1225
          %1701 = vmatpush1.bf16.msra.mxu0 %v1224
          %1702 = vmatprep.subr.bf16.mxu0 %v1221
          %1703 = vmatpush1.bf16.msra.mxu0 %v1220
          %1704 = vmatprep.subr.bf16.mxu0 %v1217
          %1705 = vmatpush1.bf16.msra.mxu0 %v1216
          %1706 = vmatprep.subr.bf16.mxu0 %v1213
          %1707 = vmatpush1.bf16.msra.mxu0 %v1212
          %1708 = vmatprep.subr.bf16.mxu0 %v1273
          %1709 = vmatpush2.bf16.msra.mxu0 %v1272
          %1710 = vmatprep.subr.bf16.mxu0 %v1269
          %1711 = vmatpush2.bf16.msra.mxu0 %v1268
          %1712 = vmatprep.subr.bf16.mxu0 %v1265
          %1713 = vmatpush2.bf16.msra.mxu0 %v1264
          %1714 = vmatprep.subr.bf16.mxu0 %v1261
          %1715 = vmatpush2.bf16.msra.mxu0 %v1260
          %1716 = vmatprep.subr.bf16.mxu0 %v1257
          %1717 = vmatpush2.bf16.msra.mxu0 %v1256
          %1718 = vmatprep.subr.bf16.mxu0 %v1253
          %1719 = vmatpush2.bf16.msra.mxu0 %v1252
          %1720 = vmatprep.subr.bf16.mxu0 %v1249
          %1721 = vmatpush2.bf16.msra.mxu0 %v1248
          %1722 = vmatprep.subr.bf16.mxu0 %v1245
          %1723 = vmatpush2.bf16.msra.mxu0 %v1244
          %1724 = vmatprep.mubr.bf16.mxu0 %v763
          %1725 = vmatmul.mubr.bf16.gmra.mxu0 %v762
          %v1726 = vpop.f32.mrf.mxu0
          %v1727 = vadd.f32 0.0, %v1726
          %v1728 = vpop.f32.mrf.mxu0
          %v1729 = vadd.f32 0.0, %v1728
          %v1730 = vpop.f32.mrf.mxu0
          %v1731 = vadd.f32 0.0, %v1730
          %v1732 = vpop.f32.mrf.mxu0
          %v1733 = vadd.f32 0.0, %v1732
          %1734 = vmatprep.mubr.bf16.mxu0 %v767
          %1735 = vmatmul.mubr.bf16.gmra.mxu0 %v766
          %v1736 = vpop.f32.mrf.mxu0
          %v1737 = vadd.f32 0.0, %v1736
          %v1738 = vpop.f32.mrf.mxu0
          %v1739 = vadd.f32 0.0, %v1738
          %v1740 = vpop.f32.mrf.mxu0
          %v1741 = vadd.f32 0.0, %v1740
          %v1742 = vpop.f32.mrf.mxu0
          %v1743 = vadd.f32 0.0, %v1742
          %1744 = vmatprep.mubr.bf16.mxu0 %v771
          %1745 = vmatmul.mubr.bf16.gmra.mxu0 %v770
          %v1746 = vpop.f32.mrf.mxu0
          %v1747 = vadd.f32 0.0, %v1746
          %v1748 = vpop.f32.mrf.mxu0
          %v1749 = vadd.f32 0.0, %v1748
          %v1750 = vpop.f32.mrf.mxu0
          %v1751 = vadd.f32 0.0, %v1750
          %v1752 = vpop.f32.mrf.mxu0
          %v1753 = vadd.f32 0.0, %v1752
          %1754 = vmatprep.mubr.bf16.mxu0 %v775
          %1755 = vmatmul.mubr.bf16.gmra.mxu0 %v774
          %v1756 = vpop.f32.mrf.mxu0
          %v1757 = vadd.f32 0.0, %v1756
          %v1758 = vpop.f32.mrf.mxu0
          %v1759 = vadd.f32 0.0, %v1758
          %v1760 = vpop.f32.mrf.mxu0
          %v1761 = vadd.f32 0.0, %v1760
          %v1762 = vpop.f32.mrf.mxu0
          %v1763 = vadd.f32 0.0, %v1762
          %1764 = vmatprep.mubr.bf16.mxu0 %v779
          %1765 = vmatmul.mubr.bf16.gmra.mxu0 %v778
          %v1766 = vpop.f32.mrf.mxu0
          %v1767 = vadd.f32 0.0, %v1766
          %v1768 = vpop.f32.mrf.mxu0
          %v1769 = vadd.f32 0.0, %v1768
          %v1770 = vpop.f32.mrf.mxu0
          %v1771 = vadd.f32 0.0, %v1770
          %v1772 = vpop.f32.mrf.mxu0
          %v1773 = vadd.f32 0.0, %v1772
          %1774 = vmatprep.mubr.bf16.mxu0 %v783
          %1775 = vmatmul.mubr.bf16.gmra.mxu0 %v782
          %v1776 = vpop.f32.mrf.mxu0
          %v1777 = vadd.f32 0.0, %v1776
          %v1778 = vpop.f32.mrf.mxu0
          %v1779 = vadd.f32 0.0, %v1778
          %v1780 = vpop.f32.mrf.mxu0
          %v1781 = vadd.f32 0.0, %v1780
          %v1782 = vpop.f32.mrf.mxu0
          %v1783 = vadd.f32 0.0, %v1782
          %1784 = vmatprep.mubr.bf16.mxu0 %v787
          %1785 = vmatmul.mubr.bf16.gmra.mxu0 %v786
          %v1786 = vpop.f32.mrf.mxu0
          %v1787 = vadd.f32 0.0, %v1786
          %v1788 = vpop.f32.mrf.mxu0
          %v1789 = vadd.f32 0.0, %v1788
          %v1790 = vpop.f32.mrf.mxu0
          %v1791 = vadd.f32 0.0, %v1790
          %v1792 = vpop.f32.mrf.mxu0
          %v1793 = vadd.f32 0.0, %v1792
          %1794 = vmatprep.mubr.bf16.mxu0 %v791
          %1795 = vmatmul.mubr.bf16.gmra.mxu0 %v790
          %v1796 = vpop.f32.mrf.mxu0
          %v1797 = vadd.f32 0.0, %v1796
          %v1798 = vpop.f32.mrf.mxu0
          %v1799 = vadd.f32 0.0, %v1798
          %v1800 = vpop.f32.mrf.mxu0
          %v1801 = vadd.f32 0.0, %v1800
          %v1802 = vpop.f32.mrf.mxu0
          %v1803 = vadd.f32 0.0, %v1802
          %1804 = vdwg.mxu0
          %1805 = vmatprep.subr.bf16.mxu0 %v1305
          %1806 = vmatpush1.bf16.msra.mxu0 %v1304
          %1807 = vmatprep.subr.bf16.mxu0 %v1301
          %1808 = vmatpush1.bf16.msra.mxu0 %v1300
          %1809 = vmatprep.subr.bf16.mxu0 %v1297
          %1810 = vmatpush1.bf16.msra.mxu0 %v1296
          %1811 = vmatprep.subr.bf16.mxu0 %v1293
          %1812 = vmatpush1.bf16.msra.mxu0 %v1292
          %1813 = vmatprep.subr.bf16.mxu0 %v1289
          %1814 = vmatpush1.bf16.msra.mxu0 %v1288
          %1815 = vmatprep.subr.bf16.mxu0 %v1285
          %1816 = vmatpush1.bf16.msra.mxu0 %v1284
          %1817 = vmatprep.subr.bf16.mxu0 %v1281
          %1818 = vmatpush1.bf16.msra.mxu0 %v1280
          %1819 = vmatprep.subr.bf16.mxu0 %v1277
          %1820 = vmatpush1.bf16.msra.mxu0 %v1276
          %1821 = vmatprep.subr.bf16.mxu0 %v1337
          %1822 = vmatpush2.bf16.msra.mxu0 %v1336
          %1823 = vmatprep.subr.bf16.mxu0 %v1333
          %1824 = vmatpush2.bf16.msra.mxu0 %v1332
          %1825 = vmatprep.subr.bf16.mxu0 %v1329
          %1826 = vmatpush2.bf16.msra.mxu0 %v1328
          %1827 = vmatprep.subr.bf16.mxu0 %v1325
          %1828 = vmatpush2.bf16.msra.mxu0 %v1324
          %1829 = vmatprep.subr.bf16.mxu0 %v1321
          %1830 = vmatpush2.bf16.msra.mxu0 %v1320
          %1831 = vmatprep.subr.bf16.mxu0 %v1317
          %1832 = vmatpush2.bf16.msra.mxu0 %v1316
          %1833 = vmatprep.subr.bf16.mxu0 %v1313
          %1834 = vmatpush2.bf16.msra.mxu0 %v1312
          %1835 = vmatprep.subr.bf16.mxu0 %v1309
          %1836 = vmatpush2.bf16.msra.mxu0 %v1308
          %1837 = vmatprep.mubr.bf16.mxu0 %v765
          %1838 = vmatmul.mubr.bf16.gmra.mxu0 %v764
          %v1839 = vpop.f32.mrf.mxu0
          %v1840 = vadd.f32 %v1727, %v1839
          %v1841 = vpop.f32.mrf.mxu0
          %v1842 = vadd.f32 %v1729, %v1841
          %v1843 = vpop.f32.mrf.mxu0
          %v1844 = vadd.f32 %v1731, %v1843
          %v1845 = vpop.f32.mrf.mxu0
          %v1846 = vadd.f32 %v1733, %v1845
          %1847 = vmatprep.mubr.bf16.mxu0 %v769
          %1848 = vmatmul.mubr.bf16.gmra.mxu0 %v768
          %v1849 = vpop.f32.mrf.mxu0
          %v1850 = vadd.f32 %v1737, %v1849
          %v1851 = vpop.f32.mrf.mxu0
          %v1852 = vadd.f32 %v1739, %v1851
          %v1853 = vpop.f32.mrf.mxu0
          %v1854 = vadd.f32 %v1741, %v1853
          %v1855 = vpop.f32.mrf.mxu0
          %v1856 = vadd.f32 %v1743, %v1855
          %1857 = vmatprep.mubr.bf16.mxu0 %v773
          %1858 = vmatmul.mubr.bf16.gmra.mxu0 %v772
          %v1859 = vpop.f32.mrf.mxu0
          %v1860 = vadd.f32 %v1747, %v1859
          %v1861 = vpop.f32.mrf.mxu0
          %v1862 = vadd.f32 %v1749, %v1861
          %v1863 = vpop.f32.mrf.mxu0
          %v1864 = vadd.f32 %v1751, %v1863
          %v1865 = vpop.f32.mrf.mxu0
          %v1866 = vadd.f32 %v1753, %v1865
          %1867 = vmatprep.mubr.bf16.mxu0 %v777
          %1868 = vmatmul.mubr.bf16.gmra.mxu0 %v776
          %v1869 = vpop.f32.mrf.mxu0
          %v1870 = vadd.f32 %v1757, %v1869
          %v1871 = vpop.f32.mrf.mxu0
          %v1872 = vadd.f32 %v1759, %v1871
          %v1873 = vpop.f32.mrf.mxu0
          %v1874 = vadd.f32 %v1761, %v1873
          %v1875 = vpop.f32.mrf.mxu0
          %v1876 = vadd.f32 %v1763, %v1875
          %1877 = vmatprep.mubr.bf16.mxu0 %v781
          %1878 = vmatmul.mubr.bf16.gmra.mxu0 %v780
          %v1879 = vpop.f32.mrf.mxu0
          %v1880 = vadd.f32 %v1767, %v1879
          %v1881 = vpop.f32.mrf.mxu0
          %v1882 = vadd.f32 %v1769, %v1881
          %v1883 = vpop.f32.mrf.mxu0
          %v1884 = vadd.f32 %v1771, %v1883
          %v1885 = vpop.f32.mrf.mxu0
          %v1886 = vadd.f32 %v1773, %v1885
          %1887 = vmatprep.mubr.bf16.mxu0 %v785
          %1888 = vmatmul.mubr.bf16.gmra.mxu0 %v784
          %v1889 = vpop.f32.mrf.mxu0
          %v1890 = vadd.f32 %v1777, %v1889
          %v1891 = vpop.f32.mrf.mxu0
          %v1892 = vadd.f32 %v1779, %v1891
          %v1893 = vpop.f32.mrf.mxu0
          %v1894 = vadd.f32 %v1781, %v1893
          %v1895 = vpop.f32.mrf.mxu0
          %v1896 = vadd.f32 %v1783, %v1895
          %1897 = vmatprep.mubr.bf16.mxu0 %v789
          %1898 = vmatmul.mubr.bf16.gmra.mxu0 %v788
          %v1899 = vpop.f32.mrf.mxu0
          %v1900 = vadd.f32 %v1787, %v1899
          %v1901 = vpop.f32.mrf.mxu0
          %v1902 = vadd.f32 %v1789, %v1901
          %v1903 = vpop.f32.mrf.mxu0
          %v1904 = vadd.f32 %v1791, %v1903
          %v1905 = vpop.f32.mrf.mxu0
          %v1906 = vadd.f32 %v1793, %v1905
          %1907 = vmatprep.mubr.bf16.mxu0 %v793
          %1908 = vmatmul.mubr.bf16.gmra.mxu0 %v792
          %v1909 = vpop.f32.mrf.mxu0
          %v1910 = vadd.f32 %v1797, %v1909
          %v1911 = vpop.f32.mrf.mxu0
          %v1912 = vadd.f32 %v1799, %v1911
          %v1913 = vpop.f32.mrf.mxu0
          %v1914 = vadd.f32 %v1801, %v1913
          %v1915 = vpop.f32.mrf.mxu0
          %v1916 = vadd.f32 %v1803, %v1915
          %1917 = vdwg.mxu0
          %v1918 = vpack.c.bf16 %v1618, %v1614
          %v1919 = vpack.c.bf16 %v1620, %v1616
          %v1920 = vpack.c.bf16 %v1844, %v1840
          %v1921 = vpack.c.bf16 %v1846, %v1842
          %v1922 = vpack.c.bf16 %v1628, %v1624
          %v1923 = vpack.c.bf16 %v1630, %v1626
          %v1924 = vpack.c.bf16 %v1854, %v1850
          %v1925 = vpack.c.bf16 %v1856, %v1852
          %v1926 = vpack.c.bf16 %v1638, %v1634
          %v1927 = vpack.c.bf16 %v1640, %v1636
          %v1928 = vpack.c.bf16 %v1864, %v1860
          %v1929 = vpack.c.bf16 %v1866, %v1862
          %v1930 = vpack.c.bf16 %v1648, %v1644
          %v1931 = vpack.c.bf16 %v1650, %v1646
          %v1932 = vpack.c.bf16 %v1874, %v1870
          %v1933 = vpack.c.bf16 %v1876, %v1872
          %v1934 = vpack.c.bf16 %v1658, %v1654
          %v1935 = vpack.c.bf16 %v1660, %v1656
          %v1936 = vpack.c.bf16 %v1884, %v1880
          %v1937 = vpack.c.bf16 %v1886, %v1882
          %v1938 = vpack.c.bf16 %v1668, %v1664
          %v1939 = vpack.c.bf16 %v1670, %v1666
          %v1940 = vpack.c.bf16 %v1894, %v1890
          %v1941 = vpack.c.bf16 %v1896, %v1892
          %v1942 = vpack.c.bf16 %v1678, %v1674
          %v1943 = vpack.c.bf16 %v1680, %v1676
          %v1944 = vpack.c.bf16 %v1904, %v1900
          %v1945 = vpack.c.bf16 %v1906, %v1902
          %v1946 = vpack.c.bf16 %v1688, %v1684
          %v1947 = vpack.c.bf16 %v1690, %v1686
          %v1948 = vpack.c.bf16 %v1914, %v1910
          %v1949 = vpack.c.bf16 %v1916, %v1912
          %v1982 = vunpack.c.l.b16 %v1918
          %v1983 = vunpack.c.l.b16 %v1919
          %v1984 = vunpack.c.l.b16 %v1920
          %v1985 = vunpack.c.l.b16 %v1921
          %v1986 = vunpack.c.h.b16 %v1918
          %v1987 = vunpack.c.h.b16 %v1919
          %v1988 = vunpack.c.h.b16 %v1920
          %v1989 = vunpack.c.h.b16 %v1921
          %v1990 = vunpack.c.l.b16 %v1922
          %v1991 = vunpack.c.l.b16 %v1923
          %v1992 = vunpack.c.l.b16 %v1924
          %v1993 = vunpack.c.l.b16 %v1925
          %v1994 = vunpack.c.h.b16 %v1922
          %v1995 = vunpack.c.h.b16 %v1923
          %v1996 = vunpack.c.h.b16 %v1924
          %v1997 = vunpack.c.h.b16 %v1925
          %v1998 = vunpack.c.l.b16 %v1926
          %v1999 = vunpack.c.l.b16 %v1927
          %v2000 = vunpack.c.l.b16 %v1928
          %v2001 = vunpack.c.l.b16 %v1929
          %v2002 = vunpack.c.h.b16 %v1926
          %v2003 = vunpack.c.h.b16 %v1927
          %v2004 = vunpack.c.h.b16 %v1928
          %v2005 = vunpack.c.h.b16 %v1929
          %v2006 = vunpack.c.l.b16 %v1930
          %v2007 = vunpack.c.l.b16 %v1931
          %v2008 = vunpack.c.l.b16 %v1932
          %v2009 = vunpack.c.l.b16 %v1933
          %v2010 = vunpack.c.h.b16 %v1930
          %v2011 = vunpack.c.h.b16 %v1931
          %v2012 = vunpack.c.h.b16 %v1932
          %v2013 = vunpack.c.h.b16 %v1933
          %v2014 = vunpack.c.l.b16 %v1934
          %v2015 = vunpack.c.l.b16 %v1935
          %v2016 = vunpack.c.l.b16 %v1936
          %v2017 = vunpack.c.l.b16 %v1937
          %v2018 = vunpack.c.h.b16 %v1934
          %v2019 = vunpack.c.h.b16 %v1935
          %v2020 = vunpack.c.h.b16 %v1936
          %v2021 = vunpack.c.h.b16 %v1937
          %v2022 = vunpack.c.l.b16 %v1938
          %v2023 = vunpack.c.l.b16 %v1939
          %v2024 = vunpack.c.l.b16 %v1940
          %v2025 = vunpack.c.l.b16 %v1941
          %v2026 = vunpack.c.h.b16 %v1938
          %v2027 = vunpack.c.h.b16 %v1939
          %v2028 = vunpack.c.h.b16 %v1940
          %v2029 = vunpack.c.h.b16 %v1941
          %v2030 = vunpack.c.l.b16 %v1942
          %v2031 = vunpack.c.l.b16 %v1943
          %v2032 = vunpack.c.l.b16 %v1944
          %v2033 = vunpack.c.l.b16 %v1945
          %v2034 = vunpack.c.h.b16 %v1942
          %v2035 = vunpack.c.h.b16 %v1943
          %v2036 = vunpack.c.h.b16 %v1944
          %v2037 = vunpack.c.h.b16 %v1945
          %v2038 = vunpack.c.l.b16 %v1946
          %v2039 = vunpack.c.l.b16 %v1947
          %v2040 = vunpack.c.l.b16 %v1948
          %v2041 = vunpack.c.l.b16 %v1949
          %v2042 = vunpack.c.h.b16 %v1946
          %v2043 = vunpack.c.h.b16 %v1947
          %v2044 = vunpack.c.h.b16 %v1948
          %v2045 = vunpack.c.h.b16 %v1949
          %v2046 = vpack.c.b16 %v1983, %v1982
          %v2047 = vpack.c.b16 %v1985, %v1984
          %v2048 = vpack.c.b16 %v1987, %v1986
          %v2049 = vpack.c.b16 %v1989, %v1988
          %v2050 = vpack.c.b16 %v1991, %v1990
          %v2051 = vpack.c.b16 %v1993, %v1992
          %v2052 = vpack.c.b16 %v1995, %v1994
          %v2053 = vpack.c.b16 %v1997, %v1996
          %v2054 = vpack.c.b16 %v1999, %v1998
          %v2055 = vpack.c.b16 %v2001, %v2000
          %v2056 = vpack.c.b16 %v2003, %v2002
          %v2057 = vpack.c.b16 %v2005, %v2004
          %v2058 = vpack.c.b16 %v2007, %v2006
          %v2059 = vpack.c.b16 %v2009, %v2008
          %v2060 = vpack.c.b16 %v2011, %v2010
          %v2061 = vpack.c.b16 %v2013, %v2012
          %v2062 = vpack.c.b16 %v2015, %v2014
          %v2063 = vpack.c.b16 %v2017, %v2016
          %v2064 = vpack.c.b16 %v2019, %v2018
          %v2065 = vpack.c.b16 %v2021, %v2020
          %v2066 = vpack.c.b16 %v2023, %v2022
          %v2067 = vpack.c.b16 %v2025, %v2024
          %v2068 = vpack.c.b16 %v2027, %v2026
          %v2069 = vpack.c.b16 %v2029, %v2028
          %v2070 = vpack.c.b16 %v2031, %v2030
          %v2071 = vpack.c.b16 %v2033, %v2032
          %v2072 = vpack.c.b16 %v2035, %v2034
          %v2073 = vpack.c.b16 %v2037, %v2036
          %v2074 = vpack.c.b16 %v2039, %v2038
          %v2075 = vpack.c.b16 %v2041, %v2040
          %v2076 = vpack.c.b16 %v2043, %v2042
          %v2077 = vpack.c.b16 %v2045, %v2044
          %s2110 = sshra.s32 %s501, 3
          %s2111 = sand.u32 %s501, 7
          %s2112 = smul.u32 %s2110, 4
          %s2113 = smul.addr %s2112, 4
          %s2114 = scalar_lea.vmem [#allocation3], %s2113
          %2115 = vst [vmem:[%s2114] sm:$0xff] %v2046
          %2116 = vst [vmem:[%s2114 + $0x8] sm:$0xff] %v2047
          %2117 = vst [vmem:[%s2114 + $0x10] sm:$0xff] %v2048
          %2118 = vst [vmem:[%s2114 + $0x18] sm:$0xff] %v2049
          %2119 = vst [vmem:[%s2114 + $0x20] sm:$0xff] %v2050
          %2120 = vst [vmem:[%s2114 + $0x28] sm:$0xff] %v2051
          %2121 = vst [vmem:[%s2114 + $0x30] sm:$0xff] %v2052
          %2122 = vst [vmem:[%s2114 + $0x38] sm:$0xff] %v2053
          %2123 = vst [vmem:[%s2114 + $0x40] sm:$0xff] %v2054
          %2124 = vst [vmem:[%s2114 + $0x48] sm:$0xff] %v2055
          %2125 = vst [vmem:[%s2114 + $0x50] sm:$0xff] %v2056
          %2126 = vst [vmem:[%s2114 + $0x58] sm:$0xff] %v2057
          %2127 = vst [vmem:[%s2114 + $0x60] sm:$0xff] %v2058
          %2128 = vst [vmem:[%s2114 + $0x68] sm:$0xff] %v2059
          %2129 = vst [vmem:[%s2114 + $0x70] sm:$0xff] %v2060
          %2130 = vst [vmem:[%s2114 + $0x78] sm:$0xff] %v2061
          %2131 = vst [vmem:[%s2114 + $0x80] sm:$0xff] %v2062
          %2132 = vst [vmem:[%s2114 + $0x88] sm:$0xff] %v2063
          %2133 = vst [vmem:[%s2114 + $0x90] sm:$0xff] %v2064
          %2134 = vst [vmem:[%s2114 + $0x98] sm:$0xff] %v2065
          %2135 = vst [vmem:[%s2114 + $0xa0] sm:$0xff] %v2066
          %2136 = vst [vmem:[%s2114 + $0xa8] sm:$0xff] %v2067
          %2137 = vst [vmem:[%s2114 + $0xb0] sm:$0xff] %v2068
          %2138 = vst [vmem:[%s2114 + $0xb8] sm:$0xff] %v2069
          %2139 = vst [vmem:[%s2114 + $0xc0] sm:$0xff] %v2070
          %2140 = vst [vmem:[%s2114 + $0xc8] sm:$0xff] %v2071
          %2141 = vst [vmem:[%s2114 + $0xd0] sm:$0xff] %v2072
          %2142 = vst [vmem:[%s2114 + $0xd8] sm:$0xff] %v2073
          %2143 = vst [vmem:[%s2114 + $0xe0] sm:$0xff] %v2074
          %2144 = vst [vmem:[%s2114 + $0xe8] sm:$0xff] %v2075
          %2145 = vst [vmem:[%s2114 + $0xf0] sm:$0xff] %v2076
          %2146 = vst [vmem:[%s2114 + $0xf8] sm:$0xff] %v2077
        $region64: #{tpu_custom_call.1} parent=39 // pred_fallthru
          _
        %p2147 = scmp.gt.s32.totalorder %s35, 0
        // Predicated region
        $region65: #{tpu_custom_call.1} parent=39 // pred_check
          %p2148 = pneg %p2147
        $region66: #{tpu_custom_call.1} parent=39 // pred_check_branch
          %2150 = sbr.rel (%p2148) target = $region68
        $region67: #{tpu_custom_call.1} parent=39 // pred_region
          %s2151 = sshra.s32 %s498, 3
          %s2152 = sand.u32 %s498, 7
          %s2153 = smul.u32 %s2151, 4
          %s2154 = smul.addr %s2153, 4
          %s2155 = scalar_lea.vmem [#allocation3], %s2154
          %v2156 = vld [vmem:[%s2155] sm:$0xff]
          %v2157 = vld [vmem:[%s2155 + $0x8] sm:$0xff]
          %v2158 = vld [vmem:[%s2155 + $0x10] sm:$0xff]
          %v2159 = vld [vmem:[%s2155 + $0x18] sm:$0xff]
          %v2160 = vld [vmem:[%s2155 + $0x20] sm:$0xff]
          %v2161 = vld [vmem:[%s2155 + $0x28] sm:$0xff]
          %v2162 = vld [vmem:[%s2155 + $0x30] sm:$0xff]
          %v2163 = vld [vmem:[%s2155 + $0x38] sm:$0xff]
          %v2164 = vld [vmem:[%s2155 + $0x40] sm:$0xff]
          %v2165 = vld [vmem:[%s2155 + $0x48] sm:$0xff]
          %v2166 = vld [vmem:[%s2155 + $0x50] sm:$0xff]
          %v2167 = vld [vmem:[%s2155 + $0x58] sm:$0xff]
          %v2168 = vld [vmem:[%s2155 + $0x60] sm:$0xff]
          %v2169 = vld [vmem:[%s2155 + $0x68] sm:$0xff]
          %v2170 = vld [vmem:[%s2155 + $0x70] sm:$0xff]
          %v2171 = vld [vmem:[%s2155 + $0x78] sm:$0xff]
          %v2172 = vld [vmem:[%s2155 + $0x80] sm:$0xff]
          %v2173 = vld [vmem:[%s2155 + $0x88] sm:$0xff]
          %v2174 = vld [vmem:[%s2155 + $0x90] sm:$0xff]
          %v2175 = vld [vmem:[%s2155 + $0x98] sm:$0xff]
          %v2176 = vld [vmem:[%s2155 + $0xa0] sm:$0xff]
          %v2177 = vld [vmem:[%s2155 + $0xa8] sm:$0xff]
          %v2178 = vld [vmem:[%s2155 + $0xb0] sm:$0xff]
          %v2179 = vld [vmem:[%s2155 + $0xb8] sm:$0xff]
          %v2180 = vld [vmem:[%s2155 + $0xc0] sm:$0xff]
          %v2181 = vld [vmem:[%s2155 + $0xc8] sm:$0xff]
          %v2182 = vld [vmem:[%s2155 + $0xd0] sm:$0xff]
          %v2183 = vld [vmem:[%s2155 + $0xd8] sm:$0xff]
          %v2184 = vld [vmem:[%s2155 + $0xe0] sm:$0xff]
          %v2185 = vld [vmem:[%s2155 + $0xe8] sm:$0xff]
          %v2186 = vld [vmem:[%s2155 + $0xf0] sm:$0xff]
          %v2187 = vld [vmem:[%s2155 + $0xf8] sm:$0xff]
          %v2188 = vld [vmem:[%s392] sm:$0xf]
          %v2189 = vld [vmem:[%s392 + $0x4] sm:$0xf]
          %v2190 = vld [vmem:[%s392 + $0x8] sm:$0xf]
          %v2191 = vld [vmem:[%s392 + $0xc] sm:$0xf]
          %v2192 = vld [vmem:[%s392 + $0x10] sm:$0xf]
          %v2193 = vld [vmem:[%s392 + $0x14] sm:$0xf]
          %v2194 = vld [vmem:[%s392 + $0x18] sm:$0xf]
          %v2195 = vld [vmem:[%s392 + $0x1c] sm:$0xf]
          %v2196 = vld [vmem:[%s392 + $0x20] sm:$0xf]
          %v2197 = vld [vmem:[%s392 + $0x24] sm:$0xf]
          %v2198 = vld [vmem:[%s392 + $0x28] sm:$0xf]
          %v2199 = vld [vmem:[%s392 + $0x2c] sm:$0xf]
          %v2200 = vld [vmem:[%s392 + $0x30] sm:$0xf]
          %v2201 = vld [vmem:[%s392 + $0x34] sm:$0xf]
          %v2202 = vld [vmem:[%s392 + $0x38] sm:$0xf]
          %v2203 = vld [vmem:[%s392 + $0x3c] sm:$0xf]
          %v2204 = vld [vmem:[%s410] sm:$0xf]
          %v2206 = vlaneseq
          %v2207 = vshrl.u32 %v2206, 7
          %v2208 = vsub.s32 0, %v2207
          %v2209 = vrot.slane %v2204, %v2208
          %v2210 = vlaneseq
          %v2211 = vshrl.u32 %v2210, 7
          %v2212 = vsub.s32 1, %v2211
          %v2213 = vrot.slane %v2204, %v2212
          %v2214 = vlaneseq
          %v2215 = vshrl.u32 %v2214, 7
          %v2216 = vsub.s32 2, %v2215
          %v2217 = vrot.slane %v2204, %v2216
          %v2218 = vlaneseq
          %v2219 = vshrl.u32 %v2218, 7
          %v2220 = vsub.s32 3, %v2219
          %v2221 = vrot.slane %v2204, %v2220
          %v2242 = vunpack.c.l.b16 %v2188
          %v2243 = vunpack.c.l.b16 %v2189
          %v2244 = vunpack.c.l.b16 %v2190
          %v2245 = vunpack.c.l.b16 %v2191
          %v2246 = vunpack.c.l.b16 %v2192
          %v2247 = vunpack.c.l.b16 %v2193
          %v2248 = vunpack.c.l.b16 %v2194
          %v2249 = vunpack.c.l.b16 %v2195
          %v2250 = vunpack.c.l.b16 %v2196
          %v2251 = vunpack.c.l.b16 %v2197
          %v2252 = vunpack.c.l.b16 %v2198
          %v2253 = vunpack.c.l.b16 %v2199
          %v2254 = vunpack.c.l.b16 %v2200
          %v2255 = vunpack.c.l.b16 %v2201
          %v2256 = vunpack.c.l.b16 %v2202
          %v2257 = vunpack.c.l.b16 %v2203
          %v2258 = vpack.c.b16 %v2243, %v2242
          %v2259 = vpack.c.b16 %v2245, %v2244
          %v2260 = vpack.c.b16 %v2247, %v2246
          %v2261 = vpack.c.b16 %v2249, %v2248
          %v2262 = vpack.c.b16 %v2251, %v2250
          %v2263 = vpack.c.b16 %v2253, %v2252
          %v2264 = vpack.c.b16 %v2255, %v2254
          %v2265 = vpack.c.b16 %v2257, %v2256
          %v2306 = vunpack.c.l.b16 %v2156
          %v2307 = vunpack.c.h.b16 %v2156
          %v2308 = vunpack.c.l.b16 %v2157
          %v2309 = vunpack.c.h.b16 %v2157
          %v2310 = vunpack.c.l.b16 %v2158
          %v2311 = vunpack.c.h.b16 %v2158
          %v2312 = vunpack.c.l.b16 %v2159
          %v2313 = vunpack.c.h.b16 %v2159
          %v2314 = vunpack.c.l.b16 %v2160
          %v2315 = vunpack.c.h.b16 %v2160
          %v2316 = vunpack.c.l.b16 %v2161
          %v2317 = vunpack.c.h.b16 %v2161
          %v2318 = vunpack.c.l.b16 %v2162
          %v2319 = vunpack.c.h.b16 %v2162
          %v2320 = vunpack.c.l.b16 %v2163
          %v2321 = vunpack.c.h.b16 %v2163
          %v2322 = vunpack.c.l.b16 %v2164
          %v2323 = vunpack.c.h.b16 %v2164
          %v2324 = vunpack.c.l.b16 %v2165
          %v2325 = vunpack.c.h.b16 %v2165
          %v2326 = vunpack.c.l.b16 %v2166
          %v2327 = vunpack.c.h.b16 %v2166
          %v2328 = vunpack.c.l.b16 %v2167
          %v2329 = vunpack.c.h.b16 %v2167
          %v2330 = vunpack.c.l.b16 %v2168
          %v2331 = vunpack.c.h.b16 %v2168
          %v2332 = vunpack.c.l.b16 %v2169
          %v2333 = vunpack.c.h.b16 %v2169
          %v2334 = vunpack.c.l.b16 %v2170
          %v2335 = vunpack.c.h.b16 %v2170
          %v2336 = vunpack.c.l.b16 %v2171
          %v2337 = vunpack.c.h.b16 %v2171
          %v2338 = vunpack.c.l.b16 %v2172
          %v2339 = vunpack.c.h.b16 %v2172
          %v2340 = vunpack.c.l.b16 %v2173
          %v2341 = vunpack.c.h.b16 %v2173
          %v2342 = vunpack.c.l.b16 %v2174
          %v2343 = vunpack.c.h.b16 %v2174
          %v2344 = vunpack.c.l.b16 %v2175
          %v2345 = vunpack.c.h.b16 %v2175
          %v2346 = vunpack.c.l.b16 %v2176
          %v2347 = vunpack.c.h.b16 %v2176
          %v2348 = vunpack.c.l.b16 %v2177
          %v2349 = vunpack.c.h.b16 %v2177
          %v2350 = vunpack.c.l.b16 %v2178
          %v2351 = vunpack.c.h.b16 %v2178
          %v2352 = vunpack.c.l.b16 %v2179
          %v2353 = vunpack.c.h.b16 %v2179
          %v2354 = vunpack.c.l.b16 %v2180
          %v2355 = vunpack.c.h.b16 %v2180
          %v2356 = vunpack.c.l.b16 %v2181
          %v2357 = vunpack.c.h.b16 %v2181
          %v2358 = vunpack.c.l.b16 %v2182
          %v2359 = vunpack.c.h.b16 %v2182
          %v2360 = vunpack.c.l.b16 %v2183
          %v2361 = vunpack.c.h.b16 %v2183
          %v2362 = vunpack.c.l.b16 %v2184
          %v2363 = vunpack.c.h.b16 %v2184
          %v2364 = vunpack.c.l.b16 %v2185
          %v2365 = vunpack.c.h.b16 %v2185
          %v2366 = vunpack.c.l.b16 %v2186
          %v2367 = vunpack.c.h.b16 %v2186
          %v2368 = vunpack.c.l.b16 %v2187
          %v2369 = vunpack.c.h.b16 %v2187
          %v2370 = vpack.c.b16 %v2310, %v2306
          %v2371 = vpack.c.b16 %v2311, %v2307
          %v2372 = vpack.c.b16 %v2312, %v2308
          %v2373 = vpack.c.b16 %v2313, %v2309
          %v2374 = vpack.c.b16 %v2318, %v2314
          %v2375 = vpack.c.b16 %v2319, %v2315
          %v2376 = vpack.c.b16 %v2320, %v2316
          %v2377 = vpack.c.b16 %v2321, %v2317
          %v2378 = vpack.c.b16 %v2326, %v2322
          %v2379 = vpack.c.b16 %v2327, %v2323
          %v2380 = vpack.c.b16 %v2328, %v2324
          %v2381 = vpack.c.b16 %v2329, %v2325
          %v2382 = vpack.c.b16 %v2334, %v2330
          %v2383 = vpack.c.b16 %v2335, %v2331
          %v2384 = vpack.c.b16 %v2336, %v2332
          %v2385 = vpack.c.b16 %v2337, %v2333
          %v2386 = vpack.c.b16 %v2342, %v2338
          %v2387 = vpack.c.b16 %v2343, %v2339
          %v2388 = vpack.c.b16 %v2344, %v2340
          %v2389 = vpack.c.b16 %v2345, %v2341
          %v2390 = vpack.c.b16 %v2350, %v2346
          %v2391 = vpack.c.b16 %v2351, %v2347
          %v2392 = vpack.c.b16 %v2352, %v2348
          %v2393 = vpack.c.b16 %v2353, %v2349
          %v2394 = vpack.c.b16 %v2358, %v2354
          %v2395 = vpack.c.b16 %v2359, %v2355
          %v2396 = vpack.c.b16 %v2360, %v2356
          %v2397 = vpack.c.b16 %v2361, %v2357
          %v2398 = vpack.c.b16 %v2366, %v2362
          %v2399 = vpack.c.b16 %v2367, %v2363
          %v2400 = vpack.c.b16 %v2368, %v2364
          %v2401 = vpack.c.b16 %v2369, %v2365
          %2434 = vmatprep.subr.bf16.mxu0 %v2399
          %2435 = vmatpush1.bf16.msra.mxu0 %v2398
          %2436 = vmatprep.subr.bf16.mxu0 %v2395
          %2437 = vmatpush1.bf16.msra.mxu0 %v2394
          %2438 = vmatprep.subr.bf16.mxu0 %v2391
          %2439 = vmatpush1.bf16.msra.mxu0 %v2390
          %2440 = vmatprep.subr.bf16.mxu0 %v2387
          %2441 = vmatpush1.bf16.msra.mxu0 %v2386
          %2442 = vmatprep.subr.bf16.mxu0 %v2383
          %2443 = vmatpush1.bf16.msra.mxu0 %v2382
          %2444 = vmatprep.subr.bf16.mxu0 %v2379
          %2445 = vmatpush1.bf16.msra.mxu0 %v2378
          %2446 = vmatprep.subr.bf16.mxu0 %v2375
          %2447 = vmatpush1.bf16.msra.mxu0 %v2374
          %2448 = vmatprep.subr.bf16.mxu0 %v2371
          %2449 = vmatpush1.bf16.msra.mxu0 %v2370
          %2450 = vmatprep.subr.bf16.mxu0 0
          %2451 = vmatpush2.bf16.msra.mxu0 0
          %2452 = vmatprep.subr.bf16.mxu0 0
          %2453 = vmatpush2.bf16.msra.mxu0 0
          %2454 = vmatprep.subr.bf16.mxu0 0
          %2455 = vmatpush2.bf16.msra.mxu0 0
          %2456 = vmatprep.subr.bf16.mxu0 0
          %2457 = vmatpush2.bf16.msra.mxu0 0
          %2458 = vmatprep.subr.bf16.mxu0 0
          %2459 = vmatpush2.bf16.msra.mxu0 0
          %2460 = vmatprep.subr.bf16.mxu0 0
          %2461 = vmatpush2.bf16.msra.mxu0 0
          %2462 = vmatprep.subr.bf16.mxu0 0
          %2463 = vmatpush2.bf16.msra.mxu0 0
          %2464 = vmatprep.subr.bf16.mxu0 0
          %2465 = vmatpush2.bf16.msra.mxu0 0
          %2466 = vmatprep.mubr.bf16.mxu0 0
          %2467 = vmatmul.mubr.bf16.gmra.mxu0 %v2258
          %v2468 = vpop.f32.mrf.mxu0
          %v2469 = vadd.f32 %v2209, %v2468
          %v2470 = vpop.f32.mrf.mxu0
          %v2471 = vadd.f32 %v2213, %v2470
          %v2472 = vpop.f32.mrf.mxu0
          %v2473 = vadd.f32 %v2209, %v2472
          %v2474 = vpop.f32.mrf.mxu0
          %v2475 = vadd.f32 %v2213, %v2474
          %2476 = vmatprep.mubr.bf16.mxu0 0
          %2477 = vmatmul.mubr.bf16.gmra.mxu0 %v2259
          %v2478 = vpop.f32.mrf.mxu0
          %v2479 = vadd.f32 %v2209, %v2478
          %v2480 = vpop.f32.mrf.mxu0
          %v2481 = vadd.f32 %v2213, %v2480
          %v2482 = vpop.f32.mrf.mxu0
          %v2483 = vadd.f32 %v2209, %v2482
          %v2484 = vpop.f32.mrf.mxu0
          %v2485 = vadd.f32 %v2213, %v2484
          %2486 = vmatprep.mubr.bf16.mxu0 0
          %2487 = vmatmul.mubr.bf16.gmra.mxu0 %v2260
          %v2488 = vpop.f32.mrf.mxu0
          %v2489 = vadd.f32 %v2209, %v2488
          %v2490 = vpop.f32.mrf.mxu0
          %v2491 = vadd.f32 %v2213, %v2490
          %v2492 = vpop.f32.mrf.mxu0
          %v2493 = vadd.f32 %v2209, %v2492
          %v2494 = vpop.f32.mrf.mxu0
          %v2495 = vadd.f32 %v2213, %v2494
          %2496 = vmatprep.mubr.bf16.mxu0 0
          %2497 = vmatmul.mubr.bf16.gmra.mxu0 %v2261
          %v2498 = vpop.f32.mrf.mxu0
          %v2499 = vadd.f32 %v2209, %v2498
          %v2500 = vpop.f32.mrf.mxu0
          %v2501 = vadd.f32 %v2213, %v2500
          %v2502 = vpop.f32.mrf.mxu0
          %v2503 = vadd.f32 %v2209, %v2502
          %v2504 = vpop.f32.mrf.mxu0
          %v2505 = vadd.f32 %v2213, %v2504
          %2506 = vmatprep.mubr.bf16.mxu0 0
          %2507 = vmatmul.mubr.bf16.gmra.mxu0 %v2262
          %v2508 = vpop.f32.mrf.mxu0
          %v2509 = vadd.f32 %v2209, %v2508
          %v2510 = vpop.f32.mrf.mxu0
          %v2511 = vadd.f32 %v2213, %v2510
          %v2512 = vpop.f32.mrf.mxu0
          %v2513 = vadd.f32 %v2209, %v2512
          %v2514 = vpop.f32.mrf.mxu0
          %v2515 = vadd.f32 %v2213, %v2514
          %2516 = vmatprep.mubr.bf16.mxu0 0
          %2517 = vmatmul.mubr.bf16.gmra.mxu0 %v2263
          %v2518 = vpop.f32.mrf.mxu0
          %v2519 = vadd.f32 %v2209, %v2518
          %v2520 = vpop.f32.mrf.mxu0
          %v2521 = vadd.f32 %v2213, %v2520
          %v2522 = vpop.f32.mrf.mxu0
          %v2523 = vadd.f32 %v2209, %v2522
          %v2524 = vpop.f32.mrf.mxu0
          %v2525 = vadd.f32 %v2213, %v2524
          %2526 = vmatprep.mubr.bf16.mxu0 0
          %2527 = vmatmul.mubr.bf16.gmra.mxu0 %v2264
          %v2528 = vpop.f32.mrf.mxu0
          %v2529 = vadd.f32 %v2209, %v2528
          %v2530 = vpop.f32.mrf.mxu0
          %v2531 = vadd.f32 %v2213, %v2530
          %v2532 = vpop.f32.mrf.mxu0
          %v2533 = vadd.f32 %v2209, %v2532
          %v2534 = vpop.f32.mrf.mxu0
          %v2535 = vadd.f32 %v2213, %v2534
          %2536 = vmatprep.mubr.bf16.mxu0 0
          %2537 = vmatmul.mubr.bf16.gmra.mxu0 %v2265
          %v2538 = vpop.f32.mrf.mxu0
          %v2539 = vadd.f32 %v2209, %v2538
          %v2540 = vpop.f32.mrf.mxu0
          %v2541 = vadd.f32 %v2213, %v2540
          %v2542 = vpop.f32.mrf.mxu0
          %v2543 = vadd.f32 %v2209, %v2542
          %v2544 = vpop.f32.mrf.mxu0
          %v2545 = vadd.f32 %v2213, %v2544
          %2546 = vdwg.mxu0
          %2547 = vmatprep.subr.bf16.mxu0 %v2401
          %2548 = vmatpush1.bf16.msra.mxu0 %v2400
          %2549 = vmatprep.subr.bf16.mxu0 %v2397
          %2550 = vmatpush1.bf16.msra.mxu0 %v2396
          %2551 = vmatprep.subr.bf16.mxu0 %v2393
          %2552 = vmatpush1.bf16.msra.mxu0 %v2392
          %2553 = vmatprep.subr.bf16.mxu0 %v2389
          %2554 = vmatpush1.bf16.msra.mxu0 %v2388
          %2555 = vmatprep.subr.bf16.mxu0 %v2385
          %2556 = vmatpush1.bf16.msra.mxu0 %v2384
          %2557 = vmatprep.subr.bf16.mxu0 %v2381
          %2558 = vmatpush1.bf16.msra.mxu0 %v2380
          %2559 = vmatprep.subr.bf16.mxu0 %v2377
          %2560 = vmatpush1.bf16.msra.mxu0 %v2376
          %2561 = vmatprep.subr.bf16.mxu0 %v2373
          %2562 = vmatpush1.bf16.msra.mxu0 %v2372
          %2563 = vmatprep.subr.bf16.mxu0 0
          %2564 = vmatpush2.bf16.msra.mxu0 0
          %2565 = vmatprep.subr.bf16.mxu0 0
          %2566 = vmatpush2.bf16.msra.mxu0 0
          %2567 = vmatprep.subr.bf16.mxu0 0
          %2568 = vmatpush2.bf16.msra.mxu0 0
          %2569 = vmatprep.subr.bf16.mxu0 0
          %2570 = vmatpush2.bf16.msra.mxu0 0
          %2571 = vmatprep.subr.bf16.mxu0 0
          %2572 = vmatpush2.bf16.msra.mxu0 0
          %2573 = vmatprep.subr.bf16.mxu0 0
          %2574 = vmatpush2.bf16.msra.mxu0 0
          %2575 = vmatprep.subr.bf16.mxu0 0
          %2576 = vmatpush2.bf16.msra.mxu0 0
          %2577 = vmatprep.subr.bf16.mxu0 0
          %2578 = vmatpush2.bf16.msra.mxu0 0
          %2579 = vmatprep.mubr.bf16.mxu0 0
          %2580 = vmatmul.mubr.bf16.gmra.mxu0 %v2258
          %v2581 = vpop.f32.mrf.mxu0
          %v2582 = vadd.f32 %v2217, %v2581
          %v2583 = vpop.f32.mrf.mxu0
          %v2584 = vadd.f32 %v2221, %v2583
          %v2585 = vpop.f32.mrf.mxu0
          %v2586 = vadd.f32 %v2217, %v2585
          %v2587 = vpop.f32.mrf.mxu0
          %v2588 = vadd.f32 %v2221, %v2587
          %2589 = vmatprep.mubr.bf16.mxu0 0
          %2590 = vmatmul.mubr.bf16.gmra.mxu0 %v2259
          %v2591 = vpop.f32.mrf.mxu0
          %v2592 = vadd.f32 %v2217, %v2591
          %v2593 = vpop.f32.mrf.mxu0
          %v2594 = vadd.f32 %v2221, %v2593
          %v2595 = vpop.f32.mrf.mxu0
          %v2596 = vadd.f32 %v2217, %v2595
          %v2597 = vpop.f32.mrf.mxu0
          %v2598 = vadd.f32 %v2221, %v2597
          %2599 = vmatprep.mubr.bf16.mxu0 0
          %2600 = vmatmul.mubr.bf16.gmra.mxu0 %v2260
          %v2601 = vpop.f32.mrf.mxu0
          %v2602 = vadd.f32 %v2217, %v2601
          %v2603 = vpop.f32.mrf.mxu0
          %v2604 = vadd.f32 %v2221, %v2603
          %v2605 = vpop.f32.mrf.mxu0
          %v2606 = vadd.f32 %v2217, %v2605
          %v2607 = vpop.f32.mrf.mxu0
          %v2608 = vadd.f32 %v2221, %v2607
          %2609 = vmatprep.mubr.bf16.mxu0 0
          %2610 = vmatmul.mubr.bf16.gmra.mxu0 %v2261
          %v2611 = vpop.f32.mrf.mxu0
          %v2612 = vadd.f32 %v2217, %v2611
          %v2613 = vpop.f32.mrf.mxu0
          %v2614 = vadd.f32 %v2221, %v2613
          %v2615 = vpop.f32.mrf.mxu0
          %v2616 = vadd.f32 %v2217, %v2615
          %v2617 = vpop.f32.mrf.mxu0
          %v2618 = vadd.f32 %v2221, %v2617
          %2619 = vmatprep.mubr.bf16.mxu0 0
          %2620 = vmatmul.mubr.bf16.gmra.mxu0 %v2262
          %v2621 = vpop.f32.mrf.mxu0
          %v2622 = vadd.f32 %v2217, %v2621
          %v2623 = vpop.f32.mrf.mxu0
          %v2624 = vadd.f32 %v2221, %v2623
          %v2625 = vpop.f32.mrf.mxu0
          %v2626 = vadd.f32 %v2217, %v2625
          %v2627 = vpop.f32.mrf.mxu0
          %v2628 = vadd.f32 %v2221, %v2627
          %2629 = vmatprep.mubr.bf16.mxu0 0
          %2630 = vmatmul.mubr.bf16.gmra.mxu0 %v2263
          %v2631 = vpop.f32.mrf.mxu0
          %v2632 = vadd.f32 %v2217, %v2631
          %v2633 = vpop.f32.mrf.mxu0
          %v2634 = vadd.f32 %v2221, %v2633
          %v2635 = vpop.f32.mrf.mxu0
          %v2636 = vadd.f32 %v2217, %v2635
          %v2637 = vpop.f32.mrf.mxu0
          %v2638 = vadd.f32 %v2221, %v2637
          %2639 = vmatprep.mubr.bf16.mxu0 0
          %2640 = vmatmul.mubr.bf16.gmra.mxu0 %v2264
          %v2641 = vpop.f32.mrf.mxu0
          %v2642 = vadd.f32 %v2217, %v2641
          %v2643 = vpop.f32.mrf.mxu0
          %v2644 = vadd.f32 %v2221, %v2643
          %v2645 = vpop.f32.mrf.mxu0
          %v2646 = vadd.f32 %v2217, %v2645
          %v2647 = vpop.f32.mrf.mxu0
          %v2648 = vadd.f32 %v2221, %v2647
          %2649 = vmatprep.mubr.bf16.mxu0 0
          %2650 = vmatmul.mubr.bf16.gmra.mxu0 %v2265
          %v2651 = vpop.f32.mrf.mxu0
          %v2652 = vadd.f32 %v2217, %v2651
          %v2653 = vpop.f32.mrf.mxu0
          %v2654 = vadd.f32 %v2221, %v2653
          %v2655 = vpop.f32.mrf.mxu0
          %v2656 = vadd.f32 %v2217, %v2655
          %v2657 = vpop.f32.mrf.mxu0
          %v2658 = vadd.f32 %v2221, %v2657
          %2659 = vdwg.mxu0
          %v2660 = vmax.f32 %v2469, 0.0
          %v2661 = vmax.f32 %v2471, 0.0
          %v2662 = vmax.f32 %v2582, 0.0
          %v2663 = vmax.f32 %v2584, 0.0
          %v2664 = vmax.f32 %v2473, 0.0
          %v2665 = vmax.f32 %v2475, 0.0
          %v2666 = vmax.f32 %v2586, 0.0
          %v2667 = vmax.f32 %v2588, 0.0
          %v2668 = vmax.f32 %v2479, 0.0
          %v2669 = vmax.f32 %v2481, 0.0
          %v2670 = vmax.f32 %v2592, 0.0
          %v2671 = vmax.f32 %v2594, 0.0
          %v2672 = vmax.f32 %v2483, 0.0
          %v2673 = vmax.f32 %v2485, 0.0
          %v2674 = vmax.f32 %v2596, 0.0
          %v2675 = vmax.f32 %v2598, 0.0
          %v2676 = vmax.f32 %v2489, 0.0
          %v2677 = vmax.f32 %v2491, 0.0
          %v2678 = vmax.f32 %v2602, 0.0
          %v2679 = vmax.f32 %v2604, 0.0
          %v2680 = vmax.f32 %v2493, 0.0
          %v2681 = vmax.f32 %v2495, 0.0
          %v2682 = vmax.f32 %v2606, 0.0
          %v2683 = vmax.f32 %v2608, 0.0
          %v2684 = vmax.f32 %v2499, 0.0
          %v2685 = vmax.f32 %v2501, 0.0
          %v2686 = vmax.f32 %v2612, 0.0
          %v2687 = vmax.f32 %v2614, 0.0
          %v2688 = vmax.f32 %v2503, 0.0
          %v2689 = vmax.f32 %v2505, 0.0
          %v2690 = vmax.f32 %v2616, 0.0
          %v2691 = vmax.f32 %v2618, 0.0
          %v2692 = vmax.f32 %v2509, 0.0
          %v2693 = vmax.f32 %v2511, 0.0
          %v2694 = vmax.f32 %v2622, 0.0
          %v2695 = vmax.f32 %v2624, 0.0
          %v2696 = vmax.f32 %v2513, 0.0
          %v2697 = vmax.f32 %v2515, 0.0
          %v2698 = vmax.f32 %v2626, 0.0
          %v2699 = vmax.f32 %v2628, 0.0
          %v2700 = vmax.f32 %v2519, 0.0
          %v2701 = vmax.f32 %v2521, 0.0
          %v2702 = vmax.f32 %v2632, 0.0
          %v2703 = vmax.f32 %v2634, 0.0
          %v2704 = vmax.f32 %v2523, 0.0
          %v2705 = vmax.f32 %v2525, 0.0
          %v2706 = vmax.f32 %v2636, 0.0
          %v2707 = vmax.f32 %v2638, 0.0
          %v2708 = vmax.f32 %v2529, 0.0
          %v2709 = vmax.f32 %v2531, 0.0
          %v2710 = vmax.f32 %v2642, 0.0
          %v2711 = vmax.f32 %v2644, 0.0
          %v2712 = vmax.f32 %v2533, 0.0
          %v2713 = vmax.f32 %v2535, 0.0
          %v2714 = vmax.f32 %v2646, 0.0
          %v2715 = vmax.f32 %v2648, 0.0
          %v2716 = vmax.f32 %v2539, 0.0
          %v2717 = vmax.f32 %v2541, 0.0
          %v2718 = vmax.f32 %v2652, 0.0
          %v2719 = vmax.f32 %v2654, 0.0
          %v2720 = vmax.f32 %v2543, 0.0
          %v2721 = vmax.f32 %v2545, 0.0
          %v2722 = vmax.f32 %v2656, 0.0
          %v2723 = vmax.f32 %v2658, 0.0
          %p2724 = scmp.eq.s32.totalorder %s35, 1
          // Predicated region
          $region69: #{tpu_custom_call.1} parent=67 // pred_check
            %p2725 = pneg %p2724
          $region70: #{tpu_custom_call.1} parent=67 // pred_check_branch
            %2727 = sbr.rel (%p2725) target = $region72
          $region71: #{tpu_custom_call.1} parent=67 // pred_region
            %s2728 = sshra.s32 %s485, 3
            %s2729 = sand.u32 %s485, 7
            %s2730 = smul.u32 %s2728, 4
            %s2731 = smul.addr %s2730, 8
            %s2732 = scalar_lea.vmem [#allocation2], %s2731
            %2733 = vst [vmem:[%s2732] sm:$0xff] %v2660
            %2734 = vst [vmem:[%s2732 + $0x8] sm:$0xff] %v2661
            %2735 = vst [vmem:[%s2732 + $0x10] sm:$0xff] %v2662
            %2736 = vst [vmem:[%s2732 + $0x18] sm:$0xff] %v2663
            %2737 = vst [vmem:[%s2732 + $0x20] sm:$0xff] %v2664
            %2738 = vst [vmem:[%s2732 + $0x28] sm:$0xff] %v2665
            %2739 = vst [vmem:[%s2732 + $0x30] sm:$0xff] %v2666
            %2740 = vst [vmem:[%s2732 + $0x38] sm:$0xff] %v2667
            %2741 = vst [vmem:[%s2732 + $0x40] sm:$0xff] %v2668
            %2742 = vst [vmem:[%s2732 + $0x48] sm:$0xff] %v2669
            %2743 = vst [vmem:[%s2732 + $0x50] sm:$0xff] %v2670
            %2744 = vst [vmem:[%s2732 + $0x58] sm:$0xff] %v2671
            %2745 = vst [vmem:[%s2732 + $0x60] sm:$0xff] %v2672
            %2746 = vst [vmem:[%s2732 + $0x68] sm:$0xff] %v2673
            %2747 = vst [vmem:[%s2732 + $0x70] sm:$0xff] %v2674
            %2748 = vst [vmem:[%s2732 + $0x78] sm:$0xff] %v2675
            %2749 = vst [vmem:[%s2732 + $0x80] sm:$0xff] %v2676
            %2750 = vst [vmem:[%s2732 + $0x88] sm:$0xff] %v2677
            %2751 = vst [vmem:[%s2732 + $0x90] sm:$0xff] %v2678
            %2752 = vst [vmem:[%s2732 + $0x98] sm:$0xff] %v2679
            %2753 = vst [vmem:[%s2732 + $0xa0] sm:$0xff] %v2680
            %2754 = vst [vmem:[%s2732 + $0xa8] sm:$0xff] %v2681
            %2755 = vst [vmem:[%s2732 + $0xb0] sm:$0xff] %v2682
            %2756 = vst [vmem:[%s2732 + $0xb8] sm:$0xff] %v2683
            %2757 = vst [vmem:[%s2732 + $0xc0] sm:$0xff] %v2684
            %2758 = vst [vmem:[%s2732 + $0xc8] sm:$0xff] %v2685
            %2759 = vst [vmem:[%s2732 + $0xd0] sm:$0xff] %v2686
            %2760 = vst [vmem:[%s2732 + $0xd8] sm:$0xff] %v2687
            %2761 = vst [vmem:[%s2732 + $0xe0] sm:$0xff] %v2688
            %2762 = vst [vmem:[%s2732 + $0xe8] sm:$0xff] %v2689
            %2763 = vst [vmem:[%s2732 + $0xf0] sm:$0xff] %v2690
            %2764 = vst [vmem:[%s2732 + $0xf8] sm:$0xff] %v2691
            %2765 = vst [vmem:[%s2732 + $0x100] sm:$0xff] %v2692
            %2766 = vst [vmem:[%s2732 + $0x108] sm:$0xff] %v2693
            %2767 = vst [vmem:[%s2732 + $0x110] sm:$0xff] %v2694
            %2768 = vst [vmem:[%s2732 + $0x118] sm:$0xff] %v2695
            %2769 = vst [vmem:[%s2732 + $0x120] sm:$0xff] %v2696
            %2770 = vst [vmem:[%s2732 + $0x128] sm:$0xff] %v2697
            %2771 = vst [vmem:[%s2732 + $0x130] sm:$0xff] %v2698
            %2772 = vst [vmem:[%s2732 + $0x138] sm:$0xff] %v2699
            %2773 = vst [vmem:[%s2732 + $0x140] sm:$0xff] %v2700
            %2774 = vst [vmem:[%s2732 + $0x148] sm:$0xff] %v2701
            %2775 = vst [vmem:[%s2732 + $0x150] sm:$0xff] %v2702
            %2776 = vst [vmem:[%s2732 + $0x158] sm:$0xff] %v2703
            %2777 = vst [vmem:[%s2732 + $0x160] sm:$0xff] %v2704
            %2778 = vst [vmem:[%s2732 + $0x168] sm:$0xff] %v2705
            %2779 = vst [vmem:[%s2732 + $0x170] sm:$0xff] %v2706
            %2780 = vst [vmem:[%s2732 + $0x178] sm:$0xff] %v2707
            %2781 = vst [vmem:[%s2732 + $0x180] sm:$0xff] %v2708
            %2782 = vst [vmem:[%s2732 + $0x188] sm:$0xff] %v2709
            %2783 = vst [vmem:[%s2732 + $0x190] sm:$0xff] %v2710
            %2784 = vst [vmem:[%s2732 + $0x198] sm:$0xff] %v2711
            %2785 = vst [vmem:[%s2732 + $0x1a0] sm:$0xff] %v2712
            %2786 = vst [vmem:[%s2732 + $0x1a8] sm:$0xff] %v2713
            %2787 = vst [vmem:[%s2732 + $0x1b0] sm:$0xff] %v2714
            %2788 = vst [vmem:[%s2732 + $0x1b8] sm:$0xff] %v2715
            %2789 = vst [vmem:[%s2732 + $0x1c0] sm:$0xff] %v2716
            %2790 = vst [vmem:[%s2732 + $0x1c8] sm:$0xff] %v2717
            %2791 = vst [vmem:[%s2732 + $0x1d0] sm:$0xff] %v2718
            %2792 = vst [vmem:[%s2732 + $0x1d8] sm:$0xff] %v2719
            %2793 = vst [vmem:[%s2732 + $0x1e0] sm:$0xff] %v2720
            %2794 = vst [vmem:[%s2732 + $0x1e8] sm:$0xff] %v2721
            %2795 = vst [vmem:[%s2732 + $0x1f0] sm:$0xff] %v2722
            %2796 = vst [vmem:[%s2732 + $0x1f8] sm:$0xff] %v2723
          $region72: #{tpu_custom_call.1} parent=67 // pred_fallthru
            _
          %p2797 = scmp.gt.s32.totalorder %s35, 1
          // Predicated region
          $region73: #{tpu_custom_call.1} parent=67 // pred_check
            %p2798 = pneg %p2797
          $region74: #{tpu_custom_call.1} parent=67 // pred_check_branch
            %2800 = sbr.rel (%p2798) target = $region76
          $region75: #{tpu_custom_call.1} parent=67 // pred_region
            %s2801 = sshra.s32 %s485, 3
            %s2802 = sand.u32 %s485, 7
            %s2803 = smul.u32 %s2801, 4
            %s2804 = smul.addr %s2803, 8
            %s2805 = scalar_lea.vmem [#allocation2], %s2804
            %v2806 = vld [vmem:[%s2805] sm:$0xff]
            %v2807 = vld [vmem:[%s2805 + $0x8] sm:$0xff]
            %v2808 = vld [vmem:[%s2805 + $0x10] sm:$0xff]
            %v2809 = vld [vmem:[%s2805 + $0x18] sm:$0xff]
            %v2810 = vld [vmem:[%s2805 + $0x20] sm:$0xff]
            %v2811 = vld [vmem:[%s2805 + $0x28] sm:$0xff]
            %v2812 = vld [vmem:[%s2805 + $0x30] sm:$0xff]
            %v2813 = vld [vmem:[%s2805 + $0x38] sm:$0xff]
            %v2814 = vld [vmem:[%s2805 + $0x40] sm:$0xff]
            %v2815 = vld [vmem:[%s2805 + $0x48] sm:$0xff]
            %v2816 = vld [vmem:[%s2805 + $0x50] sm:$0xff]
            %v2817 = vld [vmem:[%s2805 + $0x58] sm:$0xff]
            %v2818 = vld [vmem:[%s2805 + $0x60] sm:$0xff]
            %v2819 = vld [vmem:[%s2805 + $0x68] sm:$0xff]
            %v2820 = vld [vmem:[%s2805 + $0x70] sm:$0xff]
            %v2821 = vld [vmem:[%s2805 + $0x78] sm:$0xff]
            %v2822 = vld [vmem:[%s2805 + $0x80] sm:$0xff]
            %v2823 = vld [vmem:[%s2805 + $0x88] sm:$0xff]
            %v2824 = vld [vmem:[%s2805 + $0x90] sm:$0xff]
            %v2825 = vld [vmem:[%s2805 + $0x98] sm:$0xff]
            %v2826 = vld [vmem:[%s2805 + $0xa0] sm:$0xff]
            %v2827 = vld [vmem:[%s2805 + $0xa8] sm:$0xff]
            %v2828 = vld [vmem:[%s2805 + $0xb0] sm:$0xff]
            %v2829 = vld [vmem:[%s2805 + $0xb8] sm:$0xff]
            %v2830 = vld [vmem:[%s2805 + $0xc0] sm:$0xff]
            %v2831 = vld [vmem:[%s2805 + $0xc8] sm:$0xff]
            %v2832 = vld [vmem:[%s2805 + $0xd0] sm:$0xff]
            %v2833 = vld [vmem:[%s2805 + $0xd8] sm:$0xff]
            %v2834 = vld [vmem:[%s2805 + $0xe0] sm:$0xff]
            %v2835 = vld [vmem:[%s2805 + $0xe8] sm:$0xff]
            %v2836 = vld [vmem:[%s2805 + $0xf0] sm:$0xff]
            %v2837 = vld [vmem:[%s2805 + $0xf8] sm:$0xff]
            %v2838 = vld [vmem:[%s2805 + $0x100] sm:$0xff]
            %v2839 = vld [vmem:[%s2805 + $0x108] sm:$0xff]
            %v2840 = vld [vmem:[%s2805 + $0x110] sm:$0xff]
            %v2841 = vld [vmem:[%s2805 + $0x118] sm:$0xff]
            %v2842 = vld [vmem:[%s2805 + $0x120] sm:$0xff]
            %v2843 = vld [vmem:[%s2805 + $0x128] sm:$0xff]
            %v2844 = vld [vmem:[%s2805 + $0x130] sm:$0xff]
            %v2845 = vld [vmem:[%s2805 + $0x138] sm:$0xff]
            %v2846 = vld [vmem:[%s2805 + $0x140] sm:$0xff]
            %v2847 = vld [vmem:[%s2805 + $0x148] sm:$0xff]
            %v2848 = vld [vmem:[%s2805 + $0x150] sm:$0xff]
            %v2849 = vld [vmem:[%s2805 + $0x158] sm:$0xff]
            %v2850 = vld [vmem:[%s2805 + $0x160] sm:$0xff]
            %v2851 = vld [vmem:[%s2805 + $0x168] sm:$0xff]
            %v2852 = vld [vmem:[%s2805 + $0x170] sm:$0xff]
            %v2853 = vld [vmem:[%s2805 + $0x178] sm:$0xff]
            %v2854 = vld [vmem:[%s2805 + $0x180] sm:$0xff]
            %v2855 = vld [vmem:[%s2805 + $0x188] sm:$0xff]
            %v2856 = vld [vmem:[%s2805 + $0x190] sm:$0xff]
            %v2857 = vld [vmem:[%s2805 + $0x198] sm:$0xff]
            %v2858 = vld [vmem:[%s2805 + $0x1a0] sm:$0xff]
            %v2859 = vld [vmem:[%s2805 + $0x1a8] sm:$0xff]
            %v2860 = vld [vmem:[%s2805 + $0x1b0] sm:$0xff]
            %v2861 = vld [vmem:[%s2805 + $0x1b8] sm:$0xff]
            %v2862 = vld [vmem:[%s2805 + $0x1c0] sm:$0xff]
            %v2863 = vld [vmem:[%s2805 + $0x1c8] sm:$0xff]
            %v2864 = vld [vmem:[%s2805 + $0x1d0] sm:$0xff]
            %v2865 = vld [vmem:[%s2805 + $0x1d8] sm:$0xff]
            %v2866 = vld [vmem:[%s2805 + $0x1e0] sm:$0xff]
            %v2867 = vld [vmem:[%s2805 + $0x1e8] sm:$0xff]
            %v2868 = vld [vmem:[%s2805 + $0x1f0] sm:$0xff]
            %v2869 = vld [vmem:[%s2805 + $0x1f8] sm:$0xff]
            %v2870 = vadd.f32 %v2806, %v2660
            %v2871 = vadd.f32 %v2807, %v2661
            %v2872 = vadd.f32 %v2808, %v2662
            %v2873 = vadd.f32 %v2809, %v2663
            %v2874 = vadd.f32 %v2810, %v2664
            %v2875 = vadd.f32 %v2811, %v2665
            %v2876 = vadd.f32 %v2812, %v2666
            %v2877 = vadd.f32 %v2813, %v2667
            %v2878 = vadd.f32 %v2814, %v2668
            %v2879 = vadd.f32 %v2815, %v2669
            %v2880 = vadd.f32 %v2816, %v2670
            %v2881 = vadd.f32 %v2817, %v2671
            %v2882 = vadd.f32 %v2818, %v2672
            %v2883 = vadd.f32 %v2819, %v2673
            %v2884 = vadd.f32 %v2820, %v2674
            %v2885 = vadd.f32 %v2821, %v2675
            %v2886 = vadd.f32 %v2822, %v2676
            %v2887 = vadd.f32 %v2823, %v2677
            %v2888 = vadd.f32 %v2824, %v2678
            %v2889 = vadd.f32 %v2825, %v2679
            %v2890 = vadd.f32 %v2826, %v2680
            %v2891 = vadd.f32 %v2827, %v2681
            %v2892 = vadd.f32 %v2828, %v2682
            %v2893 = vadd.f32 %v2829, %v2683
            %v2894 = vadd.f32 %v2830, %v2684
            %v2895 = vadd.f32 %v2831, %v2685
            %v2896 = vadd.f32 %v2832, %v2686
            %v2897 = vadd.f32 %v2833, %v2687
            %v2898 = vadd.f32 %v2834, %v2688
            %v2899 = vadd.f32 %v2835, %v2689
            %v2900 = vadd.f32 %v2836, %v2690
            %v2901 = vadd.f32 %v2837, %v2691
            %v2902 = vadd.f32 %v2838, %v2692
            %v2903 = vadd.f32 %v2839, %v2693
            %v2904 = vadd.f32 %v2840, %v2694
            %v2905 = vadd.f32 %v2841, %v2695
            %v2906 = vadd.f32 %v2842, %v2696
            %v2907 = vadd.f32 %v2843, %v2697
            %v2908 = vadd.f32 %v2844, %v2698
            %v2909 = vadd.f32 %v2845, %v2699
            %v2910 = vadd.f32 %v2846, %v2700
            %v2911 = vadd.f32 %v2847, %v2701
            %v2912 = vadd.f32 %v2848, %v2702
            %v2913 = vadd.f32 %v2849, %v2703
            %v2914 = vadd.f32 %v2850, %v2704
            %v2915 = vadd.f32 %v2851, %v2705
            %v2916 = vadd.f32 %v2852, %v2706
            %v2917 = vadd.f32 %v2853, %v2707
            %v2918 = vadd.f32 %v2854, %v2708
            %v2919 = vadd.f32 %v2855, %v2709
            %v2920 = vadd.f32 %v2856, %v2710
            %v2921 = vadd.f32 %v2857, %v2711
            %v2922 = vadd.f32 %v2858, %v2712
            %v2923 = vadd.f32 %v2859, %v2713
            %v2924 = vadd.f32 %v2860, %v2714
            %v2925 = vadd.f32 %v2861, %v2715
            %v2926 = vadd.f32 %v2862, %v2716
            %v2927 = vadd.f32 %v2863, %v2717
            %v2928 = vadd.f32 %v2864, %v2718
            %v2929 = vadd.f32 %v2865, %v2719
            %v2930 = vadd.f32 %v2866, %v2720
            %v2931 = vadd.f32 %v2867, %v2721
            %v2932 = vadd.f32 %v2868, %v2722
            %v2933 = vadd.f32 %v2869, %v2723
            %2934 = vst [vmem:[%s2805] sm:$0xff] %v2870
            %2935 = vst [vmem:[%s2805 + $0x8] sm:$0xff] %v2871
            %2936 = vst [vmem:[%s2805 + $0x10] sm:$0xff] %v2872
            %2937 = vst [vmem:[%s2805 + $0x18] sm:$0xff] %v2873
            %2938 = vst [vmem:[%s2805 + $0x20] sm:$0xff] %v2874
            %2939 = vst [vmem:[%s2805 + $0x28] sm:$0xff] %v2875
            %2940 = vst [vmem:[%s2805 + $0x30] sm:$0xff] %v2876
            %2941 = vst [vmem:[%s2805 + $0x38] sm:$0xff] %v2877
            %2942 = vst [vmem:[%s2805 + $0x40] sm:$0xff] %v2878
            %2943 = vst [vmem:[%s2805 + $0x48] sm:$0xff] %v2879
            %2944 = vst [vmem:[%s2805 + $0x50] sm:$0xff] %v2880
            %2945 = vst [vmem:[%s2805 + $0x58] sm:$0xff] %v2881
            %2946 = vst [vmem:[%s2805 + $0x60] sm:$0xff] %v2882
            %2947 = vst [vmem:[%s2805 + $0x68] sm:$0xff] %v2883
            %2948 = vst [vmem:[%s2805 + $0x70] sm:$0xff] %v2884
            %2949 = vst [vmem:[%s2805 + $0x78] sm:$0xff] %v2885
            %2950 = vst [vmem:[%s2805 + $0x80] sm:$0xff] %v2886
            %2951 = vst [vmem:[%s2805 + $0x88] sm:$0xff] %v2887
            %2952 = vst [vmem:[%s2805 + $0x90] sm:$0xff] %v2888
            %2953 = vst [vmem:[%s2805 + $0x98] sm:$0xff] %v2889
            %2954 = vst [vmem:[%s2805 + $0xa0] sm:$0xff] %v2890
            %2955 = vst [vmem:[%s2805 + $0xa8] sm:$0xff] %v2891
            %2956 = vst [vmem:[%s2805 + $0xb0] sm:$0xff] %v2892
            %2957 = vst [vmem:[%s2805 + $0xb8] sm:$0xff] %v2893
            %2958 = vst [vmem:[%s2805 + $0xc0] sm:$0xff] %v2894
            %2959 = vst [vmem:[%s2805 + $0xc8] sm:$0xff] %v2895
            %2960 = vst [vmem:[%s2805 + $0xd0] sm:$0xff] %v2896
            %2961 = vst [vmem:[%s2805 + $0xd8] sm:$0xff] %v2897
            %2962 = vst [vmem:[%s2805 + $0xe0] sm:$0xff] %v2898
            %2963 = vst [vmem:[%s2805 + $0xe8] sm:$0xff] %v2899
            %2964 = vst [vmem:[%s2805 + $0xf0] sm:$0xff] %v2900
            %2965 = vst [vmem:[%s2805 + $0xf8] sm:$0xff] %v2901
            %2966 = vst [vmem:[%s2805 + $0x100] sm:$0xff] %v2902
            %2967 = vst [vmem:[%s2805 + $0x108] sm:$0xff] %v2903
            %2968 = vst [vmem:[%s2805 + $0x110] sm:$0xff] %v2904
            %2969 = vst [vmem:[%s2805 + $0x118] sm:$0xff] %v2905
            %2970 = vst [vmem:[%s2805 + $0x120] sm:$0xff] %v2906
            %2971 = vst [vmem:[%s2805 + $0x128] sm:$0xff] %v2907
            %2972 = vst [vmem:[%s2805 + $0x130] sm:$0xff] %v2908
            %2973 = vst [vmem:[%s2805 + $0x138] sm:$0xff] %v2909
            %2974 = vst [vmem:[%s2805 + $0x140] sm:$0xff] %v2910
            %2975 = vst [vmem:[%s2805 + $0x148] sm:$0xff] %v2911
            %2976 = vst [vmem:[%s2805 + $0x150] sm:$0xff] %v2912
            %2977 = vst [vmem:[%s2805 + $0x158] sm:$0xff] %v2913
            %2978 = vst [vmem:[%s2805 + $0x160] sm:$0xff] %v2914
            %2979 = vst [vmem:[%s2805 + $0x168] sm:$0xff] %v2915
            %2980 = vst [vmem:[%s2805 + $0x170] sm:$0xff] %v2916
            %2981 = vst [vmem:[%s2805 + $0x178] sm:$0xff] %v2917
            %2982 = vst [vmem:[%s2805 + $0x180] sm:$0xff] %v2918
            %2983 = vst [vmem:[%s2805 + $0x188] sm:$0xff] %v2919
            %2984 = vst [vmem:[%s2805 + $0x190] sm:$0xff] %v2920
            %2985 = vst [vmem:[%s2805 + $0x198] sm:$0xff] %v2921
            %2986 = vst [vmem:[%s2805 + $0x1a0] sm:$0xff] %v2922
            %2987 = vst [vmem:[%s2805 + $0x1a8] sm:$0xff] %v2923
            %2988 = vst [vmem:[%s2805 + $0x1b0] sm:$0xff] %v2924
            %2989 = vst [vmem:[%s2805 + $0x1b8] sm:$0xff] %v2925
            %2990 = vst [vmem:[%s2805 + $0x1c0] sm:$0xff] %v2926
            %2991 = vst [vmem:[%s2805 + $0x1c8] sm:$0xff] %v2927
            %2992 = vst [vmem:[%s2805 + $0x1d0] sm:$0xff] %v2928
            %2993 = vst [vmem:[%s2805 + $0x1d8] sm:$0xff] %v2929
            %2994 = vst [vmem:[%s2805 + $0x1e0] sm:$0xff] %v2930
            %2995 = vst [vmem:[%s2805 + $0x1e8] sm:$0xff] %v2931
            %2996 = vst [vmem:[%s2805 + $0x1f0] sm:$0xff] %v2932
            %2997 = vst [vmem:[%s2805 + $0x1f8] sm:$0xff] %v2933
          $region76: #{tpu_custom_call.1} parent=67 // pred_fallthru
            _
          %s2998 = sshra.s32 %s485, 3
          %s2999 = sand.u32 %s485, 7
          %s3000 = smul.u32 %s2998, 4
          %s3001 = smul.addr %s3000, 8
          %s3002 = scalar_lea.vmem [#allocation2], %s3001
          %v3003 = vld [vmem:[%s3002] sm:$0xff]
          %v3004 = vld [vmem:[%s3002 + $0x8] sm:$0xff]
          %v3005 = vld [vmem:[%s3002 + $0x10] sm:$0xff]
          %v3006 = vld [vmem:[%s3002 + $0x18] sm:$0xff]
          %v3007 = vld [vmem:[%s3002 + $0x20] sm:$0xff]
          %v3008 = vld [vmem:[%s3002 + $0x28] sm:$0xff]
          %v3009 = vld [vmem:[%s3002 + $0x30] sm:$0xff]
          %v3010 = vld [vmem:[%s3002 + $0x38] sm:$0xff]
          %v3011 = vld [vmem:[%s3002 + $0x40] sm:$0xff]
          %v3012 = vld [vmem:[%s3002 + $0x48] sm:$0xff]
          %v3013 = vld [vmem:[%s3002 + $0x50] sm:$0xff]
          %v3014 = vld [vmem:[%s3002 + $0x58] sm:$0xff]
          %v3015 = vld [vmem:[%s3002 + $0x60] sm:$0xff]
          %v3016 = vld [vmem:[%s3002 + $0x68] sm:$0xff]
          %v3017 = vld [vmem:[%s3002 + $0x70] sm:$0xff]
          %v3018 = vld [vmem:[%s3002 + $0x78] sm:$0xff]
          %v3019 = vld [vmem:[%s3002 + $0x80] sm:$0xff]
          %v3020 = vld [vmem:[%s3002 + $0x88] sm:$0xff]
          %v3021 = vld [vmem:[%s3002 + $0x90] sm:$0xff]
          %v3022 = vld [vmem:[%s3002 + $0x98] sm:$0xff]
          %v3023 = vld [vmem:[%s3002 + $0xa0] sm:$0xff]
          %v3024 = vld [vmem:[%s3002 + $0xa8] sm:$0xff]
          %v3025 = vld [vmem:[%s3002 + $0xb0] sm:$0xff]
          %v3026 = vld [vmem:[%s3002 + $0xb8] sm:$0xff]
          %v3027 = vld [vmem:[%s3002 + $0xc0] sm:$0xff]
          %v3028 = vld [vmem:[%s3002 + $0xc8] sm:$0xff]
          %v3029 = vld [vmem:[%s3002 + $0xd0] sm:$0xff]
          %v3030 = vld [vmem:[%s3002 + $0xd8] sm:$0xff]
          %v3031 = vld [vmem:[%s3002 + $0xe0] sm:$0xff]
          %v3032 = vld [vmem:[%s3002 + $0xe8] sm:$0xff]
          %v3033 = vld [vmem:[%s3002 + $0xf0] sm:$0xff]
          %v3034 = vld [vmem:[%s3002 + $0xf8] sm:$0xff]
          %v3035 = vld [vmem:[%s3002 + $0x100] sm:$0xff]
          %v3036 = vld [vmem:[%s3002 + $0x108] sm:$0xff]
          %v3037 = vld [vmem:[%s3002 + $0x110] sm:$0xff]
          %v3038 = vld [vmem:[%s3002 + $0x118] sm:$0xff]
          %v3039 = vld [vmem:[%s3002 + $0x120] sm:$0xff]
          %v3040 = vld [vmem:[%s3002 + $0x128] sm:$0xff]
          %v3041 = vld [vmem:[%s3002 + $0x130] sm:$0xff]
          %v3042 = vld [vmem:[%s3002 + $0x138] sm:$0xff]
          %v3043 = vld [vmem:[%s3002 + $0x140] sm:$0xff]
          %v3044 = vld [vmem:[%s3002 + $0x148] sm:$0xff]
          %v3045 = vld [vmem:[%s3002 + $0x150] sm:$0xff]
          %v3046 = vld [vmem:[%s3002 + $0x158] sm:$0xff]
          %v3047 = vld [vmem:[%s3002 + $0x160] sm:$0xff]
          %v3048 = vld [vmem:[%s3002 + $0x168] sm:$0xff]
          %v3049 = vld [vmem:[%s3002 + $0x170] sm:$0xff]
          %v3050 = vld [vmem:[%s3002 + $0x178] sm:$0xff]
          %v3051 = vld [vmem:[%s3002 + $0x180] sm:$0xff]
          %v3052 = vld [vmem:[%s3002 + $0x188] sm:$0xff]
          %v3053 = vld [vmem:[%s3002 + $0x190] sm:$0xff]
          %v3054 = vld [vmem:[%s3002 + $0x198] sm:$0xff]
          %v3055 = vld [vmem:[%s3002 + $0x1a0] sm:$0xff]
          %v3056 = vld [vmem:[%s3002 + $0x1a8] sm:$0xff]
          %v3057 = vld [vmem:[%s3002 + $0x1b0] sm:$0xff]
          %v3058 = vld [vmem:[%s3002 + $0x1b8] sm:$0xff]
          %v3059 = vld [vmem:[%s3002 + $0x1c0] sm:$0xff]
          %v3060 = vld [vmem:[%s3002 + $0x1c8] sm:$0xff]
          %v3061 = vld [vmem:[%s3002 + $0x1d0] sm:$0xff]
          %v3062 = vld [vmem:[%s3002 + $0x1d8] sm:$0xff]
          %v3063 = vld [vmem:[%s3002 + $0x1e0] sm:$0xff]
          %v3064 = vld [vmem:[%s3002 + $0x1e8] sm:$0xff]
          %v3065 = vld [vmem:[%s3002 + $0x1f0] sm:$0xff]
          %v3066 = vld [vmem:[%s3002 + $0x1f8] sm:$0xff]
          %p3067 = scmp.lt.s32.totalorder %s35, 3
          // Predicated region
          $region77: #{tpu_custom_call.1} parent=67 // pred_check
            %p3068 = pneg %p3067
          $region78: #{tpu_custom_call.1} parent=67 // pred_check_branch
            %3070 = sbr.rel (%p3068) target = $region80
          $region79: #{tpu_custom_call.1} parent=67 // pred_region
            %v3071 = vpack.c.bf16 %v3007, %v3003
            %v3072 = vpack.c.bf16 %v3008, %v3004
            %v3073 = vpack.c.bf16 %v3009, %v3005
            %v3074 = vpack.c.bf16 %v3010, %v3006
            %v3075 = vpack.c.bf16 %v3015, %v3011
            %v3076 = vpack.c.bf16 %v3016, %v3012
            %v3077 = vpack.c.bf16 %v3017, %v3013
            %v3078 = vpack.c.bf16 %v3018, %v3014
            %v3079 = vpack.c.bf16 %v3023, %v3019
            %v3080 = vpack.c.bf16 %v3024, %v3020
            %v3081 = vpack.c.bf16 %v3025, %v3021
            %v3082 = vpack.c.bf16 %v3026, %v3022
            %v3083 = vpack.c.bf16 %v3031, %v3027
            %v3084 = vpack.c.bf16 %v3032, %v3028
            %v3085 = vpack.c.bf16 %v3033, %v3029
            %v3086 = vpack.c.bf16 %v3034, %v3030
            %v3087 = vpack.c.bf16 %v3039, %v3035
            %v3088 = vpack.c.bf16 %v3040, %v3036
            %v3089 = vpack.c.bf16 %v3041, %v3037
            %v3090 = vpack.c.bf16 %v3042, %v3038
            %v3091 = vpack.c.bf16 %v3047, %v3043
            %v3092 = vpack.c.bf16 %v3048, %v3044
            %v3093 = vpack.c.bf16 %v3049, %v3045
            %v3094 = vpack.c.bf16 %v3050, %v3046
            %v3095 = vpack.c.bf16 %v3055, %v3051
            %v3096 = vpack.c.bf16 %v3056, %v3052
            %v3097 = vpack.c.bf16 %v3057, %v3053
            %v3098 = vpack.c.bf16 %v3058, %v3054
            %v3099 = vpack.c.bf16 %v3063, %v3059
            %v3100 = vpack.c.bf16 %v3064, %v3060
            %v3101 = vpack.c.bf16 %v3065, %v3061
            %v3102 = vpack.c.bf16 %v3066, %v3062
            %v3103 = vld [vmem:[%s401] sm:$0xff]
            %v3104 = vld [vmem:[%s401 + $0x8] sm:$0xff]
            %v3105 = vld [vmem:[%s401 + $0x10] sm:$0xff]
            %v3106 = vld [vmem:[%s401 + $0x18] sm:$0xff]
            %v3107 = vld [vmem:[%s401 + $0x20] sm:$0xff]
            %v3108 = vld [vmem:[%s401 + $0x28] sm:$0xff]
            %v3109 = vld [vmem:[%s401 + $0x30] sm:$0xff]
            %v3110 = vld [vmem:[%s401 + $0x38] sm:$0xff]
            %v3111 = vld [vmem:[%s401 + $0x40] sm:$0xff]
            %v3112 = vld [vmem:[%s401 + $0x48] sm:$0xff]
            %v3113 = vld [vmem:[%s401 + $0x50] sm:$0xff]
            %v3114 = vld [vmem:[%s401 + $0x58] sm:$0xff]
            %v3115 = vld [vmem:[%s401 + $0x60] sm:$0xff]
            %v3116 = vld [vmem:[%s401 + $0x68] sm:$0xff]
            %v3117 = vld [vmem:[%s401 + $0x70] sm:$0xff]
            %v3118 = vld [vmem:[%s401 + $0x78] sm:$0xff]
            %v3119 = vld [vmem:[%s401 + $0x80] sm:$0xff]
            %v3120 = vld [vmem:[%s401 + $0x88] sm:$0xff]
            %v3121 = vld [vmem:[%s401 + $0x90] sm:$0xff]
            %v3122 = vld [vmem:[%s401 + $0x98] sm:$0xff]
            %v3123 = vld [vmem:[%s401 + $0xa0] sm:$0xff]
            %v3124 = vld [vmem:[%s401 + $0xa8] sm:$0xff]
            %v3125 = vld [vmem:[%s401 + $0xb0] sm:$0xff]
            %v3126 = vld [vmem:[%s401 + $0xb8] sm:$0xff]
            %v3127 = vld [vmem:[%s401 + $0xc0] sm:$0xff]
            %v3128 = vld [vmem:[%s401 + $0xc8] sm:$0xff]
            %v3129 = vld [vmem:[%s401 + $0xd0] sm:$0xff]
            %v3130 = vld [vmem:[%s401 + $0xd8] sm:$0xff]
            %v3131 = vld [vmem:[%s401 + $0xe0] sm:$0xff]
            %v3132 = vld [vmem:[%s401 + $0xe8] sm:$0xff]
            %v3133 = vld [vmem:[%s401 + $0xf0] sm:$0xff]
            %v3134 = vld [vmem:[%s401 + $0xf8] sm:$0xff]
            %v3135 = vld [vmem:[%s401 + $0x100] sm:$0xff]
            %v3136 = vld [vmem:[%s401 + $0x108] sm:$0xff]
            %v3137 = vld [vmem:[%s401 + $0x110] sm:$0xff]
            %v3138 = vld [vmem:[%s401 + $0x118] sm:$0xff]
            %v3139 = vld [vmem:[%s401 + $0x120] sm:$0xff]
            %v3140 = vld [vmem:[%s401 + $0x128] sm:$0xff]
            %v3141 = vld [vmem:[%s401 + $0x130] sm:$0xff]
            %v3142 = vld [vmem:[%s401 + $0x138] sm:$0xff]
            %v3143 = vld [vmem:[%s401 + $0x140] sm:$0xff]
            %v3144 = vld [vmem:[%s401 + $0x148] sm:$0xff]
            %v3145 = vld [vmem:[%s401 + $0x150] sm:$0xff]
            %v3146 = vld [vmem:[%s401 + $0x158] sm:$0xff]
            %v3147 = vld [vmem:[%s401 + $0x160] sm:$0xff]
            %v3148 = vld [vmem:[%s401 + $0x168] sm:$0xff]
            %v3149 = vld [vmem:[%s401 + $0x170] sm:$0xff]
            %v3150 = vld [vmem:[%s401 + $0x178] sm:$0xff]
            %v3151 = vld [vmem:[%s401 + $0x180] sm:$0xff]
            %v3152 = vld [vmem:[%s401 + $0x188] sm:$0xff]
            %v3153 = vld [vmem:[%s401 + $0x190] sm:$0xff]
            %v3154 = vld [vmem:[%s401 + $0x198] sm:$0xff]
            %v3155 = vld [vmem:[%s401 + $0x1a0] sm:$0xff]
            %v3156 = vld [vmem:[%s401 + $0x1a8] sm:$0xff]
            %v3157 = vld [vmem:[%s401 + $0x1b0] sm:$0xff]
            %v3158 = vld [vmem:[%s401 + $0x1b8] sm:$0xff]
            %v3159 = vld [vmem:[%s401 + $0x1c0] sm:$0xff]
            %v3160 = vld [vmem:[%s401 + $0x1c8] sm:$0xff]
            %v3161 = vld [vmem:[%s401 + $0x1d0] sm:$0xff]
            %v3162 = vld [vmem:[%s401 + $0x1d8] sm:$0xff]
            %v3163 = vld [vmem:[%s401 + $0x1e0] sm:$0xff]
            %v3164 = vld [vmem:[%s401 + $0x1e8] sm:$0xff]
            %v3165 = vld [vmem:[%s401 + $0x1f0] sm:$0xff]
            %v3166 = vld [vmem:[%s401 + $0x1f8] sm:$0xff]
            %v3167 = vld [vmem:[%s401 + $0x200] sm:$0xff]
            %v3168 = vld [vmem:[%s401 + $0x208] sm:$0xff]
            %v3169 = vld [vmem:[%s401 + $0x210] sm:$0xff]
            %v3170 = vld [vmem:[%s401 + $0x218] sm:$0xff]
            %v3171 = vld [vmem:[%s401 + $0x220] sm:$0xff]
            %v3172 = vld [vmem:[%s401 + $0x228] sm:$0xff]
            %v3173 = vld [vmem:[%s401 + $0x230] sm:$0xff]
            %v3174 = vld [vmem:[%s401 + $0x238] sm:$0xff]
            %v3175 = vld [vmem:[%s401 + $0x240] sm:$0xff]
            %v3176 = vld [vmem:[%s401 + $0x248] sm:$0xff]
            %v3177 = vld [vmem:[%s401 + $0x250] sm:$0xff]
            %v3178 = vld [vmem:[%s401 + $0x258] sm:$0xff]
            %v3179 = vld [vmem:[%s401 + $0x260] sm:$0xff]
            %v3180 = vld [vmem:[%s401 + $0x268] sm:$0xff]
            %v3181 = vld [vmem:[%s401 + $0x270] sm:$0xff]
            %v3182 = vld [vmem:[%s401 + $0x278] sm:$0xff]
            %v3183 = vld [vmem:[%s401 + $0x280] sm:$0xff]
            %v3184 = vld [vmem:[%s401 + $0x288] sm:$0xff]
            %v3185 = vld [vmem:[%s401 + $0x290] sm:$0xff]
            %v3186 = vld [vmem:[%s401 + $0x298] sm:$0xff]
            %v3187 = vld [vmem:[%s401 + $0x2a0] sm:$0xff]
            %v3188 = vld [vmem:[%s401 + $0x2a8] sm:$0xff]
            %v3189 = vld [vmem:[%s401 + $0x2b0] sm:$0xff]
            %v3190 = vld [vmem:[%s401 + $0x2b8] sm:$0xff]
            %v3191 = vld [vmem:[%s401 + $0x2c0] sm:$0xff]
            %v3192 = vld [vmem:[%s401 + $0x2c8] sm:$0xff]
            %v3193 = vld [vmem:[%s401 + $0x2d0] sm:$0xff]
            %v3194 = vld [vmem:[%s401 + $0x2d8] sm:$0xff]
            %v3195 = vld [vmem:[%s401 + $0x2e0] sm:$0xff]
            %v3196 = vld [vmem:[%s401 + $0x2e8] sm:$0xff]
            %v3197 = vld [vmem:[%s401 + $0x2f0] sm:$0xff]
            %v3198 = vld [vmem:[%s401 + $0x2f8] sm:$0xff]
            %v3199 = vld [vmem:[%s401 + $0x300] sm:$0xff]
            %v3200 = vld [vmem:[%s401 + $0x308] sm:$0xff]
            %v3201 = vld [vmem:[%s401 + $0x310] sm:$0xff]
            %v3202 = vld [vmem:[%s401 + $0x318] sm:$0xff]
            %v3203 = vld [vmem:[%s401 + $0x320] sm:$0xff]
            %v3204 = vld [vmem:[%s401 + $0x328] sm:$0xff]
            %v3205 = vld [vmem:[%s401 + $0x330] sm:$0xff]
            %v3206 = vld [vmem:[%s401 + $0x338] sm:$0xff]
            %v3207 = vld [vmem:[%s401 + $0x340] sm:$0xff]
            %v3208 = vld [vmem:[%s401 + $0x348] sm:$0xff]
            %v3209 = vld [vmem:[%s401 + $0x350] sm:$0xff]
            %v3210 = vld [vmem:[%s401 + $0x358] sm:$0xff]
            %v3211 = vld [vmem:[%s401 + $0x360] sm:$0xff]
            %v3212 = vld [vmem:[%s401 + $0x368] sm:$0xff]
            %v3213 = vld [vmem:[%s401 + $0x370] sm:$0xff]
            %v3214 = vld [vmem:[%s401 + $0x378] sm:$0xff]
            %v3215 = vld [vmem:[%s401 + $0x380] sm:$0xff]
            %v3216 = vld [vmem:[%s401 + $0x388] sm:$0xff]
            %v3217 = vld [vmem:[%s401 + $0x390] sm:$0xff]
            %v3218 = vld [vmem:[%s401 + $0x398] sm:$0xff]
            %v3219 = vld [vmem:[%s401 + $0x3a0] sm:$0xff]
            %v3220 = vld [vmem:[%s401 + $0x3a8] sm:$0xff]
            %v3221 = vld [vmem:[%s401 + $0x3b0] sm:$0xff]
            %v3222 = vld [vmem:[%s401 + $0x3b8] sm:$0xff]
            %v3223 = vld [vmem:[%s401 + $0x3c0] sm:$0xff]
            %v3224 = vld [vmem:[%s401 + $0x3c8] sm:$0xff]
            %v3225 = vld [vmem:[%s401 + $0x3d0] sm:$0xff]
            %v3226 = vld [vmem:[%s401 + $0x3d8] sm:$0xff]
            %v3227 = vld [vmem:[%s401 + $0x3e0] sm:$0xff]
            %v3228 = vld [vmem:[%s401 + $0x3e8] sm:$0xff]
            %v3229 = vld [vmem:[%s401 + $0x3f0] sm:$0xff]
            %v3230 = vld [vmem:[%s401 + $0x3f8] sm:$0xff]
            %v3359 = vunpack.c.l.b16 %v3103
            %v3360 = vunpack.c.h.b16 %v3103
            %v3361 = vunpack.c.l.b16 %v3104
            %v3362 = vunpack.c.h.b16 %v3104
            %v3363 = vunpack.c.l.b16 %v3105
            %v3364 = vunpack.c.h.b16 %v3105
            %v3365 = vunpack.c.l.b16 %v3106
            %v3366 = vunpack.c.h.b16 %v3106
            %v3367 = vunpack.c.l.b16 %v3107
            %v3368 = vunpack.c.h.b16 %v3107
            %v3369 = vunpack.c.l.b16 %v3108
            %v3370 = vunpack.c.h.b16 %v3108
            %v3371 = vunpack.c.l.b16 %v3109
            %v3372 = vunpack.c.h.b16 %v3109
            %v3373 = vunpack.c.l.b16 %v3110
            %v3374 = vunpack.c.h.b16 %v3110
            %v3375 = vunpack.c.l.b16 %v3111
            %v3376 = vunpack.c.h.b16 %v3111
            %v3377 = vunpack.c.l.b16 %v3112
            %v3378 = vunpack.c.h.b16 %v3112
            %v3379 = vunpack.c.l.b16 %v3113
            %v3380 = vunpack.c.h.b16 %v3113
            %v3381 = vunpack.c.l.b16 %v3114
            %v3382 = vunpack.c.h.b16 %v3114
            %v3383 = vunpack.c.l.b16 %v3115
            %v3384 = vunpack.c.h.b16 %v3115
            %v3385 = vunpack.c.l.b16 %v3116
            %v3386 = vunpack.c.h.b16 %v3116
            %v3387 = vunpack.c.l.b16 %v3117
            %v3388 = vunpack.c.h.b16 %v3117
            %v3389 = vunpack.c.l.b16 %v3118
            %v3390 = vunpack.c.h.b16 %v3118
            %v3391 = vunpack.c.l.b16 %v3119
            %v3392 = vunpack.c.h.b16 %v3119
            %v3393 = vunpack.c.l.b16 %v3120
            %v3394 = vunpack.c.h.b16 %v3120
            %v3395 = vunpack.c.l.b16 %v3121
            %v3396 = vunpack.c.h.b16 %v3121
            %v3397 = vunpack.c.l.b16 %v3122
            %v3398 = vunpack.c.h.b16 %v3122
            %v3399 = vunpack.c.l.b16 %v3123
            %v3400 = vunpack.c.h.b16 %v3123
            %v3401 = vunpack.c.l.b16 %v3124
            %v3402 = vunpack.c.h.b16 %v3124
            %v3403 = vunpack.c.l.b16 %v3125
            %v3404 = vunpack.c.h.b16 %v3125
            %v3405 = vunpack.c.l.b16 %v3126
            %v3406 = vunpack.c.h.b16 %v3126
            %v3407 = vunpack.c.l.b16 %v3127
            %v3408 = vunpack.c.h.b16 %v3127
            %v3409 = vunpack.c.l.b16 %v3128
            %v3410 = vunpack.c.h.b16 %v3128
            %v3411 = vunpack.c.l.b16 %v3129
            %v3412 = vunpack.c.h.b16 %v3129
            %v3413 = vunpack.c.l.b16 %v3130
            %v3414 = vunpack.c.h.b16 %v3130
            %v3415 = vunpack.c.l.b16 %v3131
            %v3416 = vunpack.c.h.b16 %v3131
            %v3417 = vunpack.c.l.b16 %v3132
            %v3418 = vunpack.c.h.b16 %v3132
            %v3419 = vunpack.c.l.b16 %v3133
            %v3420 = vunpack.c.h.b16 %v3133
            %v3421 = vunpack.c.l.b16 %v3134
            %v3422 = vunpack.c.h.b16 %v3134
            %v3423 = vunpack.c.l.b16 %v3135
            %v3424 = vunpack.c.h.b16 %v3135
            %v3425 = vunpack.c.l.b16 %v3136
            %v3426 = vunpack.c.h.b16 %v3136
            %v3427 = vunpack.c.l.b16 %v3137
            %v3428 = vunpack.c.h.b16 %v3137
            %v3429 = vunpack.c.l.b16 %v3138
            %v3430 = vunpack.c.h.b16 %v3138
            %v3431 = vunpack.c.l.b16 %v3139
            %v3432 = vunpack.c.h.b16 %v3139
            %v3433 = vunpack.c.l.b16 %v3140
            %v3434 = vunpack.c.h.b16 %v3140
            %v3435 = vunpack.c.l.b16 %v3141
            %v3436 = vunpack.c.h.b16 %v3141
            %v3437 = vunpack.c.l.b16 %v3142
            %v3438 = vunpack.c.h.b16 %v3142
            %v3439 = vunpack.c.l.b16 %v3143
            %v3440 = vunpack.c.h.b16 %v3143
            %v3441 = vunpack.c.l.b16 %v3144
            %v3442 = vunpack.c.h.b16 %v3144
            %v3443 = vunpack.c.l.b16 %v3145
            %v3444 = vunpack.c.h.b16 %v3145
            %v3445 = vunpack.c.l.b16 %v3146
            %v3446 = vunpack.c.h.b16 %v3146
            %v3447 = vunpack.c.l.b16 %v3147
            %v3448 = vunpack.c.h.b16 %v3147
            %v3449 = vunpack.c.l.b16 %v3148
            %v3450 = vunpack.c.h.b16 %v3148
            %v3451 = vunpack.c.l.b16 %v3149
            %v3452 = vunpack.c.h.b16 %v3149
            %v3453 = vunpack.c.l.b16 %v3150
            %v3454 = vunpack.c.h.b16 %v3150
            %v3455 = vunpack.c.l.b16 %v3151
            %v3456 = vunpack.c.h.b16 %v3151
            %v3457 = vunpack.c.l.b16 %v3152
            %v3458 = vunpack.c.h.b16 %v3152
            %v3459 = vunpack.c.l.b16 %v3153
            %v3460 = vunpack.c.h.b16 %v3153
            %v3461 = vunpack.c.l.b16 %v3154
            %v3462 = vunpack.c.h.b16 %v3154
            %v3463 = vunpack.c.l.b16 %v3155
            %v3464 = vunpack.c.h.b16 %v3155
            %v3465 = vunpack.c.l.b16 %v3156
            %v3466 = vunpack.c.h.b16 %v3156
            %v3467 = vunpack.c.l.b16 %v3157
            %v3468 = vunpack.c.h.b16 %v3157
            %v3469 = vunpack.c.l.b16 %v3158
            %v3470 = vunpack.c.h.b16 %v3158
            %v3471 = vunpack.c.l.b16 %v3159
            %v3472 = vunpack.c.h.b16 %v3159
            %v3473 = vunpack.c.l.b16 %v3160
            %v3474 = vunpack.c.h.b16 %v3160
            %v3475 = vunpack.c.l.b16 %v3161
            %v3476 = vunpack.c.h.b16 %v3161
            %v3477 = vunpack.c.l.b16 %v3162
            %v3478 = vunpack.c.h.b16 %v3162
            %v3479 = vunpack.c.l.b16 %v3163
            %v3480 = vunpack.c.h.b16 %v3163
            %v3481 = vunpack.c.l.b16 %v3164
            %v3482 = vunpack.c.h.b16 %v3164
            %v3483 = vunpack.c.l.b16 %v3165
            %v3484 = vunpack.c.h.b16 %v3165
            %v3485 = vunpack.c.l.b16 %v3166
            %v3486 = vunpack.c.h.b16 %v3166
            %v3487 = vunpack.c.l.b16 %v3167
            %v3488 = vunpack.c.h.b16 %v3167
            %v3489 = vunpack.c.l.b16 %v3168
            %v3490 = vunpack.c.h.b16 %v3168
            %v3491 = vunpack.c.l.b16 %v3169
            %v3492 = vunpack.c.h.b16 %v3169
            %v3493 = vunpack.c.l.b16 %v3170
            %v3494 = vunpack.c.h.b16 %v3170
            %v3495 = vunpack.c.l.b16 %v3171
            %v3496 = vunpack.c.h.b16 %v3171
            %v3497 = vunpack.c.l.b16 %v3172
            %v3498 = vunpack.c.h.b16 %v3172
            %v3499 = vunpack.c.l.b16 %v3173
            %v3500 = vunpack.c.h.b16 %v3173
            %v3501 = vunpack.c.l.b16 %v3174
            %v3502 = vunpack.c.h.b16 %v3174
            %v3503 = vunpack.c.l.b16 %v3175
            %v3504 = vunpack.c.h.b16 %v3175
            %v3505 = vunpack.c.l.b16 %v3176
            %v3506 = vunpack.c.h.b16 %v3176
            %v3507 = vunpack.c.l.b16 %v3177
            %v3508 = vunpack.c.h.b16 %v3177
            %v3509 = vunpack.c.l.b16 %v3178
            %v3510 = vunpack.c.h.b16 %v3178
            %v3511 = vunpack.c.l.b16 %v3179
            %v3512 = vunpack.c.h.b16 %v3179
            %v3513 = vunpack.c.l.b16 %v3180
            %v3514 = vunpack.c.h.b16 %v3180
            %v3515 = vunpack.c.l.b16 %v3181
            %v3516 = vunpack.c.h.b16 %v3181
            %v3517 = vunpack.c.l.b16 %v3182
            %v3518 = vunpack.c.h.b16 %v3182
            %v3519 = vunpack.c.l.b16 %v3183
            %v3520 = vunpack.c.h.b16 %v3183
            %v3521 = vunpack.c.l.b16 %v3184
            %v3522 = vunpack.c.h.b16 %v3184
            %v3523 = vunpack.c.l.b16 %v3185
            %v3524 = vunpack.c.h.b16 %v3185
            %v3525 = vunpack.c.l.b16 %v3186
            %v3526 = vunpack.c.h.b16 %v3186
            %v3527 = vunpack.c.l.b16 %v3187
            %v3528 = vunpack.c.h.b16 %v3187
            %v3529 = vunpack.c.l.b16 %v3188
            %v3530 = vunpack.c.h.b16 %v3188
            %v3531 = vunpack.c.l.b16 %v3189
            %v3532 = vunpack.c.h.b16 %v3189
            %v3533 = vunpack.c.l.b16 %v3190
            %v3534 = vunpack.c.h.b16 %v3190
            %v3535 = vunpack.c.l.b16 %v3191
            %v3536 = vunpack.c.h.b16 %v3191
            %v3537 = vunpack.c.l.b16 %v3192
            %v3538 = vunpack.c.h.b16 %v3192
            %v3539 = vunpack.c.l.b16 %v3193
            %v3540 = vunpack.c.h.b16 %v3193
            %v3541 = vunpack.c.l.b16 %v3194
            %v3542 = vunpack.c.h.b16 %v3194
            %v3543 = vunpack.c.l.b16 %v3195
            %v3544 = vunpack.c.h.b16 %v3195
            %v3545 = vunpack.c.l.b16 %v3196
            %v3546 = vunpack.c.h.b16 %v3196
            %v3547 = vunpack.c.l.b16 %v3197
            %v3548 = vunpack.c.h.b16 %v3197
            %v3549 = vunpack.c.l.b16 %v3198
            %v3550 = vunpack.c.h.b16 %v3198
            %v3551 = vunpack.c.l.b16 %v3199
            %v3552 = vunpack.c.h.b16 %v3199
            %v3553 = vunpack.c.l.b16 %v3200
            %v3554 = vunpack.c.h.b16 %v3200
            %v3555 = vunpack.c.l.b16 %v3201
            %v3556 = vunpack.c.h.b16 %v3201
            %v3557 = vunpack.c.l.b16 %v3202
            %v3558 = vunpack.c.h.b16 %v3202
            %v3559 = vunpack.c.l.b16 %v3203
            %v3560 = vunpack.c.h.b16 %v3203
            %v3561 = vunpack.c.l.b16 %v3204
            %v3562 = vunpack.c.h.b16 %v3204
            %v3563 = vunpack.c.l.b16 %v3205
            %v3564 = vunpack.c.h.b16 %v3205
            %v3565 = vunpack.c.l.b16 %v3206
            %v3566 = vunpack.c.h.b16 %v3206
            %v3567 = vunpack.c.l.b16 %v3207
            %v3568 = vunpack.c.h.b16 %v3207
            %v3569 = vunpack.c.l.b16 %v3208
            %v3570 = vunpack.c.h.b16 %v3208
            %v3571 = vunpack.c.l.b16 %v3209
            %v3572 = vunpack.c.h.b16 %v3209
            %v3573 = vunpack.c.l.b16 %v3210
            %v3574 = vunpack.c.h.b16 %v3210
            %v3575 = vunpack.c.l.b16 %v3211
            %v3576 = vunpack.c.h.b16 %v3211
            %v3577 = vunpack.c.l.b16 %v3212
            %v3578 = vunpack.c.h.b16 %v3212
            %v3579 = vunpack.c.l.b16 %v3213
            %v3580 = vunpack.c.h.b16 %v3213
            %v3581 = vunpack.c.l.b16 %v3214
            %v3582 = vunpack.c.h.b16 %v3214
            %v3583 = vunpack.c.l.b16 %v3215
            %v3584 = vunpack.c.h.b16 %v3215
            %v3585 = vunpack.c.l.b16 %v3216
            %v3586 = vunpack.c.h.b16 %v3216
            %v3587 = vunpack.c.l.b16 %v3217
            %v3588 = vunpack.c.h.b16 %v3217
            %v3589 = vunpack.c.l.b16 %v3218
            %v3590 = vunpack.c.h.b16 %v3218
            %v3591 = vunpack.c.l.b16 %v3219
            %v3592 = vunpack.c.h.b16 %v3219
            %v3593 = vunpack.c.l.b16 %v3220
            %v3594 = vunpack.c.h.b16 %v3220
            %v3595 = vunpack.c.l.b16 %v3221
            %v3596 = vunpack.c.h.b16 %v3221
            %v3597 = vunpack.c.l.b16 %v3222
            %v3598 = vunpack.c.h.b16 %v3222
            %v3599 = vunpack.c.l.b16 %v3223
            %v3600 = vunpack.c.h.b16 %v3223
            %v3601 = vunpack.c.l.b16 %v3224
            %v3602 = vunpack.c.h.b16 %v3224
            %v3603 = vunpack.c.l.b16 %v3225
            %v3604 = vunpack.c.h.b16 %v3225
            %v3605 = vunpack.c.l.b16 %v3226
            %v3606 = vunpack.c.h.b16 %v3226
            %v3607 = vunpack.c.l.b16 %v3227
            %v3608 = vunpack.c.h.b16 %v3227
            %v3609 = vunpack.c.l.b16 %v3228
            %v3610 = vunpack.c.h.b16 %v3228
            %v3611 = vunpack.c.l.b16 %v3229
            %v3612 = vunpack.c.h.b16 %v3229
            %v3613 = vunpack.c.l.b16 %v3230
            %v3614 = vunpack.c.h.b16 %v3230
            %v3615 = vpack.c.b16 %v3363, %v3359
            %v3616 = vpack.c.b16 %v3364, %v3360
            %v3617 = vpack.c.b16 %v3365, %v3361
            %v3618 = vpack.c.b16 %v3366, %v3362
            %v3619 = vpack.c.b16 %v3371, %v3367
            %v3620 = vpack.c.b16 %v3372, %v3368
            %v3621 = vpack.c.b16 %v3373, %v3369
            %v3622 = vpack.c.b16 %v3374, %v3370
            %v3623 = vpack.c.b16 %v3379, %v3375
            %v3624 = vpack.c.b16 %v3380, %v3376
            %v3625 = vpack.c.b16 %v3381, %v3377
            %v3626 = vpack.c.b16 %v3382, %v3378
            %v3627 = vpack.c.b16 %v3387, %v3383
            %v3628 = vpack.c.b16 %v3388, %v3384
            %v3629 = vpack.c.b16 %v3389, %v3385
            %v3630 = vpack.c.b16 %v3390, %v3386
            %v3631 = vpack.c.b16 %v3395, %v3391
            %v3632 = vpack.c.b16 %v3396, %v3392
            %v3633 = vpack.c.b16 %v3397, %v3393
            %v3634 = vpack.c.b16 %v3398, %v3394
            %v3635 = vpack.c.b16 %v3403, %v3399
            %v3636 = vpack.c.b16 %v3404, %v3400
            %v3637 = vpack.c.b16 %v3405, %v3401
            %v3638 = vpack.c.b16 %v3406, %v3402
            %v3639 = vpack.c.b16 %v3411, %v3407
            %v3640 = vpack.c.b16 %v3412, %v3408
            %v3641 = vpack.c.b16 %v3413, %v3409
            %v3642 = vpack.c.b16 %v3414, %v3410
            %v3643 = vpack.c.b16 %v3419, %v3415
            %v3644 = vpack.c.b16 %v3420, %v3416
            %v3645 = vpack.c.b16 %v3421, %v3417
            %v3646 = vpack.c.b16 %v3422, %v3418
            %v3647 = vpack.c.b16 %v3427, %v3423
            %v3648 = vpack.c.b16 %v3428, %v3424
            %v3649 = vpack.c.b16 %v3429, %v3425
            %v3650 = vpack.c.b16 %v3430, %v3426
            %v3651 = vpack.c.b16 %v3435, %v3431
            %v3652 = vpack.c.b16 %v3436, %v3432
            %v3653 = vpack.c.b16 %v3437, %v3433
            %v3654 = vpack.c.b16 %v3438, %v3434
            %v3655 = vpack.c.b16 %v3443, %v3439
            %v3656 = vpack.c.b16 %v3444, %v3440
            %v3657 = vpack.c.b16 %v3445, %v3441
            %v3658 = vpack.c.b16 %v3446, %v3442
            %v3659 = vpack.c.b16 %v3451, %v3447
            %v3660 = vpack.c.b16 %v3452, %v3448
            %v3661 = vpack.c.b16 %v3453, %v3449
            %v3662 = vpack.c.b16 %v3454, %v3450
            %v3663 = vpack.c.b16 %v3459, %v3455
            %v3664 = vpack.c.b16 %v3460, %v3456
            %v3665 = vpack.c.b16 %v3461, %v3457
            %v3666 = vpack.c.b16 %v3462, %v3458
            %v3667 = vpack.c.b16 %v3467, %v3463
            %v3668 = vpack.c.b16 %v3468, %v3464
            %v3669 = vpack.c.b16 %v3469, %v3465
            %v3670 = vpack.c.b16 %v3470, %v3466
            %v3671 = vpack.c.b16 %v3475, %v3471
            %v3672 = vpack.c.b16 %v3476, %v3472
            %v3673 = vpack.c.b16 %v3477, %v3473
            %v3674 = vpack.c.b16 %v3478, %v3474
            %v3675 = vpack.c.b16 %v3483, %v3479
            %v3676 = vpack.c.b16 %v3484, %v3480
            %v3677 = vpack.c.b16 %v3485, %v3481
            %v3678 = vpack.c.b16 %v3486, %v3482
            %v3679 = vpack.c.b16 %v3491, %v3487
            %v3680 = vpack.c.b16 %v3492, %v3488
            %v3681 = vpack.c.b16 %v3493, %v3489
            %v3682 = vpack.c.b16 %v3494, %v3490
            %v3683 = vpack.c.b16 %v3499, %v3495
            %v3684 = vpack.c.b16 %v3500, %v3496
            %v3685 = vpack.c.b16 %v3501, %v3497
            %v3686 = vpack.c.b16 %v3502, %v3498
            %v3687 = vpack.c.b16 %v3507, %v3503
            %v3688 = vpack.c.b16 %v3508, %v3504
            %v3689 = vpack.c.b16 %v3509, %v3505
            %v3690 = vpack.c.b16 %v3510, %v3506
            %v3691 = vpack.c.b16 %v3515, %v3511
            %v3692 = vpack.c.b16 %v3516, %v3512
            %v3693 = vpack.c.b16 %v3517, %v3513
            %v3694 = vpack.c.b16 %v3518, %v3514
            %v3695 = vpack.c.b16 %v3523, %v3519
            %v3696 = vpack.c.b16 %v3524, %v3520
            %v3697 = vpack.c.b16 %v3525, %v3521
            %v3698 = vpack.c.b16 %v3526, %v3522
            %v3699 = vpack.c.b16 %v3531, %v3527
            %v3700 = vpack.c.b16 %v3532, %v3528
            %v3701 = vpack.c.b16 %v3533, %v3529
            %v3702 = vpack.c.b16 %v3534, %v3530
            %v3703 = vpack.c.b16 %v3539, %v3535
            %v3704 = vpack.c.b16 %v3540, %v3536
            %v3705 = vpack.c.b16 %v3541, %v3537
            %v3706 = vpack.c.b16 %v3542, %v3538
            %v3707 = vpack.c.b16 %v3547, %v3543
            %v3708 = vpack.c.b16 %v3548, %v3544
            %v3709 = vpack.c.b16 %v3549, %v3545
            %v3710 = vpack.c.b16 %v3550, %v3546
            %v3711 = vpack.c.b16 %v3555, %v3551
            %v3712 = vpack.c.b16 %v3556, %v3552
            %v3713 = vpack.c.b16 %v3557, %v3553
            %v3714 = vpack.c.b16 %v3558, %v3554
            %v3715 = vpack.c.b16 %v3563, %v3559
            %v3716 = vpack.c.b16 %v3564, %v3560
            %v3717 = vpack.c.b16 %v3565, %v3561
            %v3718 = vpack.c.b16 %v3566, %v3562
            %v3719 = vpack.c.b16 %v3571, %v3567
            %v3720 = vpack.c.b16 %v3572, %v3568
            %v3721 = vpack.c.b16 %v3573, %v3569
            %v3722 = vpack.c.b16 %v3574, %v3570
            %v3723 = vpack.c.b16 %v3579, %v3575
            %v3724 = vpack.c.b16 %v3580, %v3576
            %v3725 = vpack.c.b16 %v3581, %v3577
            %v3726 = vpack.c.b16 %v3582, %v3578
            %v3727 = vpack.c.b16 %v3587, %v3583
            %v3728 = vpack.c.b16 %v3588, %v3584
            %v3729 = vpack.c.b16 %v3589, %v3585
            %v3730 = vpack.c.b16 %v3590, %v3586
            %v3731 = vpack.c.b16 %v3595, %v3591
            %v3732 = vpack.c.b16 %v3596, %v3592
            %v3733 = vpack.c.b16 %v3597, %v3593
            %v3734 = vpack.c.b16 %v3598, %v3594
            %v3735 = vpack.c.b16 %v3603, %v3599
            %v3736 = vpack.c.b16 %v3604, %v3600
            %v3737 = vpack.c.b16 %v3605, %v3601
            %v3738 = vpack.c.b16 %v3606, %v3602
            %v3739 = vpack.c.b16 %v3611, %v3607
            %v3740 = vpack.c.b16 %v3612, %v3608
            %v3741 = vpack.c.b16 %v3613, %v3609
            %v3742 = vpack.c.b16 %v3614, %v3610
            %3871 = vmatprep.subr.bf16.mxu0 %v3644
            %3872 = vmatpush1.bf16.msra.mxu0 %v3643
            %3873 = vmatprep.subr.bf16.mxu0 %v3640
            %3874 = vmatpush1.bf16.msra.mxu0 %v3639
            %3875 = vmatprep.subr.bf16.mxu0 %v3636
            %3876 = vmatpush1.bf16.msra.mxu0 %v3635
            %3877 = vmatprep.subr.bf16.mxu0 %v3632
            %3878 = vmatpush1.bf16.msra.mxu0 %v3631
            %3879 = vmatprep.subr.bf16.mxu0 %v3628
            %3880 = vmatpush1.bf16.msra.mxu0 %v3627
            %3881 = vmatprep.subr.bf16.mxu0 %v3624
            %3882 = vmatpush1.bf16.msra.mxu0 %v3623
            %3883 = vmatprep.subr.bf16.mxu0 %v3620
            %3884 = vmatpush1.bf16.msra.mxu0 %v3619
            %3885 = vmatprep.subr.bf16.mxu0 %v3616
            %3886 = vmatpush1.bf16.msra.mxu0 %v3615
            %3887 = vmatprep.subr.bf16.mxu0 %v3676
            %3888 = vmatpush2.bf16.msra.mxu0 %v3675
            %3889 = vmatprep.subr.bf16.mxu0 %v3672
            %3890 = vmatpush2.bf16.msra.mxu0 %v3671
            %3891 = vmatprep.subr.bf16.mxu0 %v3668
            %3892 = vmatpush2.bf16.msra.mxu0 %v3667
            %3893 = vmatprep.subr.bf16.mxu0 %v3664
            %3894 = vmatpush2.bf16.msra.mxu0 %v3663
            %3895 = vmatprep.subr.bf16.mxu0 %v3660
            %3896 = vmatpush2.bf16.msra.mxu0 %v3659
            %3897 = vmatprep.subr.bf16.mxu0 %v3656
            %3898 = vmatpush2.bf16.msra.mxu0 %v3655
            %3899 = vmatprep.subr.bf16.mxu0 %v3652
            %3900 = vmatpush2.bf16.msra.mxu0 %v3651
            %3901 = vmatprep.subr.bf16.mxu0 %v3648
            %3902 = vmatpush2.bf16.msra.mxu0 %v3647
            %3903 = vmatprep.mubr.bf16.mxu0 %v3072
            %3904 = vmatmul.mubr.bf16.gmra.mxu0 %v3071
            %v3905 = vpop.f32.mrf.mxu0
            %v3906 = vadd.f32 0.0, %v3905
            %v3907 = vpop.f32.mrf.mxu0
            %v3908 = vadd.f32 0.0, %v3907
            %v3909 = vpop.f32.mrf.mxu0
            %v3910 = vadd.f32 0.0, %v3909
            %v3911 = vpop.f32.mrf.mxu0
            %v3912 = vadd.f32 0.0, %v3911
            %3913 = vmatprep.mubr.bf16.mxu0 %v3076
            %3914 = vmatmul.mubr.bf16.gmra.mxu0 %v3075
            %v3915 = vpop.f32.mrf.mxu0
            %v3916 = vadd.f32 0.0, %v3915
            %v3917 = vpop.f32.mrf.mxu0
            %v3918 = vadd.f32 0.0, %v3917
            %v3919 = vpop.f32.mrf.mxu0
            %v3920 = vadd.f32 0.0, %v3919
            %v3921 = vpop.f32.mrf.mxu0
            %v3922 = vadd.f32 0.0, %v3921
            %3923 = vmatprep.mubr.bf16.mxu0 %v3080
            %3924 = vmatmul.mubr.bf16.gmra.mxu0 %v3079
            %v3925 = vpop.f32.mrf.mxu0
            %v3926 = vadd.f32 0.0, %v3925
            %v3927 = vpop.f32.mrf.mxu0
            %v3928 = vadd.f32 0.0, %v3927
            %v3929 = vpop.f32.mrf.mxu0
            %v3930 = vadd.f32 0.0, %v3929
            %v3931 = vpop.f32.mrf.mxu0
            %v3932 = vadd.f32 0.0, %v3931
            %3933 = vmatprep.mubr.bf16.mxu0 %v3084
            %3934 = vmatmul.mubr.bf16.gmra.mxu0 %v3083
            %v3935 = vpop.f32.mrf.mxu0
            %v3936 = vadd.f32 0.0, %v3935
            %v3937 = vpop.f32.mrf.mxu0
            %v3938 = vadd.f32 0.0, %v3937
            %v3939 = vpop.f32.mrf.mxu0
            %v3940 = vadd.f32 0.0, %v3939
            %v3941 = vpop.f32.mrf.mxu0
            %v3942 = vadd.f32 0.0, %v3941
            %3943 = vmatprep.mubr.bf16.mxu0 %v3088
            %3944 = vmatmul.mubr.bf16.gmra.mxu0 %v3087
            %v3945 = vpop.f32.mrf.mxu0
            %v3946 = vadd.f32 0.0, %v3945
            %v3947 = vpop.f32.mrf.mxu0
            %v3948 = vadd.f32 0.0, %v3947
            %v3949 = vpop.f32.mrf.mxu0
            %v3950 = vadd.f32 0.0, %v3949
            %v3951 = vpop.f32.mrf.mxu0
            %v3952 = vadd.f32 0.0, %v3951
            %3953 = vmatprep.mubr.bf16.mxu0 %v3092
            %3954 = vmatmul.mubr.bf16.gmra.mxu0 %v3091
            %v3955 = vpop.f32.mrf.mxu0
            %v3956 = vadd.f32 0.0, %v3955
            %v3957 = vpop.f32.mrf.mxu0
            %v3958 = vadd.f32 0.0, %v3957
            %v3959 = vpop.f32.mrf.mxu0
            %v3960 = vadd.f32 0.0, %v3959
            %v3961 = vpop.f32.mrf.mxu0
            %v3962 = vadd.f32 0.0, %v3961
            %3963 = vmatprep.mubr.bf16.mxu0 %v3096
            %3964 = vmatmul.mubr.bf16.gmra.mxu0 %v3095
            %v3965 = vpop.f32.mrf.mxu0
            %v3966 = vadd.f32 0.0, %v3965
            %v3967 = vpop.f32.mrf.mxu0
            %v3968 = vadd.f32 0.0, %v3967
            %v3969 = vpop.f32.mrf.mxu0
            %v3970 = vadd.f32 0.0, %v3969
            %v3971 = vpop.f32.mrf.mxu0
            %v3972 = vadd.f32 0.0, %v3971
            %3973 = vmatprep.mubr.bf16.mxu0 %v3100
            %3974 = vmatmul.mubr.bf16.gmra.mxu0 %v3099
            %v3975 = vpop.f32.mrf.mxu0
            %v3976 = vadd.f32 0.0, %v3975
            %v3977 = vpop.f32.mrf.mxu0
            %v3978 = vadd.f32 0.0, %v3977
            %v3979 = vpop.f32.mrf.mxu0
            %v3980 = vadd.f32 0.0, %v3979
            %v3981 = vpop.f32.mrf.mxu0
            %v3982 = vadd.f32 0.0, %v3981
            %3983 = vdwg.mxu0
            %3984 = vmatprep.subr.bf16.mxu0 %v3708
            %3985 = vmatpush1.bf16.msra.mxu0 %v3707
            %3986 = vmatprep.subr.bf16.mxu0 %v3704
            %3987 = vmatpush1.bf16.msra.mxu0 %v3703
            %3988 = vmatprep.subr.bf16.mxu0 %v3700
            %3989 = vmatpush1.bf16.msra.mxu0 %v3699
            %3990 = vmatprep.subr.bf16.mxu0 %v3696
            %3991 = vmatpush1.bf16.msra.mxu0 %v3695
            %3992 = vmatprep.subr.bf16.mxu0 %v3692
            %3993 = vmatpush1.bf16.msra.mxu0 %v3691
            %3994 = vmatprep.subr.bf16.mxu0 %v3688
            %3995 = vmatpush1.bf16.msra.mxu0 %v3687
            %3996 = vmatprep.subr.bf16.mxu0 %v3684
            %3997 = vmatpush1.bf16.msra.mxu0 %v3683
            %3998 = vmatprep.subr.bf16.mxu0 %v3680
            %3999 = vmatpush1.bf16.msra.mxu0 %v3679
            %4000 = vmatprep.subr.bf16.mxu0 %v3740
            %4001 = vmatpush2.bf16.msra.mxu0 %v3739
            %4002 = vmatprep.subr.bf16.mxu0 %v3736
            %4003 = vmatpush2.bf16.msra.mxu0 %v3735
            %4004 = vmatprep.subr.bf16.mxu0 %v3732
            %4005 = vmatpush2.bf16.msra.mxu0 %v3731
            %4006 = vmatprep.subr.bf16.mxu0 %v3728
            %4007 = vmatpush2.bf16.msra.mxu0 %v3727
            %4008 = vmatprep.subr.bf16.mxu0 %v3724
            %4009 = vmatpush2.bf16.msra.mxu0 %v3723
            %4010 = vmatprep.subr.bf16.mxu0 %v3720
            %4011 = vmatpush2.bf16.msra.mxu0 %v3719
            %4012 = vmatprep.subr.bf16.mxu0 %v3716
            %4013 = vmatpush2.bf16.msra.mxu0 %v3715
            %4014 = vmatprep.subr.bf16.mxu0 %v3712
            %4015 = vmatpush2.bf16.msra.mxu0 %v3711
            %4016 = vmatprep.mubr.bf16.mxu0 %v3074
            %4017 = vmatmul.mubr.bf16.gmra.mxu0 %v3073
            %v4018 = vpop.f32.mrf.mxu0
            %v4019 = vadd.f32 %v3906, %v4018
            %v4020 = vpop.f32.mrf.mxu0
            %v4021 = vadd.f32 %v3908, %v4020
            %v4022 = vpop.f32.mrf.mxu0
            %v4023 = vadd.f32 %v3910, %v4022
            %v4024 = vpop.f32.mrf.mxu0
            %v4025 = vadd.f32 %v3912, %v4024
            %4026 = vmatprep.mubr.bf16.mxu0 %v3078
            %4027 = vmatmul.mubr.bf16.gmra.mxu0 %v3077
            %v4028 = vpop.f32.mrf.mxu0
            %v4029 = vadd.f32 %v3916, %v4028
            %v4030 = vpop.f32.mrf.mxu0
            %v4031 = vadd.f32 %v3918, %v4030
            %v4032 = vpop.f32.mrf.mxu0
            %v4033 = vadd.f32 %v3920, %v4032
            %v4034 = vpop.f32.mrf.mxu0
            %v4035 = vadd.f32 %v3922, %v4034
            %4036 = vmatprep.mubr.bf16.mxu0 %v3082
            %4037 = vmatmul.mubr.bf16.gmra.mxu0 %v3081
            %v4038 = vpop.f32.mrf.mxu0
            %v4039 = vadd.f32 %v3926, %v4038
            %v4040 = vpop.f32.mrf.mxu0
            %v4041 = vadd.f32 %v3928, %v4040
            %v4042 = vpop.f32.mrf.mxu0
            %v4043 = vadd.f32 %v3930, %v4042
            %v4044 = vpop.f32.mrf.mxu0
            %v4045 = vadd.f32 %v3932, %v4044
            %4046 = vmatprep.mubr.bf16.mxu0 %v3086
            %4047 = vmatmul.mubr.bf16.gmra.mxu0 %v3085
            %v4048 = vpop.f32.mrf.mxu0
            %v4049 = vadd.f32 %v3936, %v4048
            %v4050 = vpop.f32.mrf.mxu0
            %v4051 = vadd.f32 %v3938, %v4050
            %v4052 = vpop.f32.mrf.mxu0
            %v4053 = vadd.f32 %v3940, %v4052
            %v4054 = vpop.f32.mrf.mxu0
            %v4055 = vadd.f32 %v3942, %v4054
            %4056 = vmatprep.mubr.bf16.mxu0 %v3090
            %4057 = vmatmul.mubr.bf16.gmra.mxu0 %v3089
            %v4058 = vpop.f32.mrf.mxu0
            %v4059 = vadd.f32 %v3946, %v4058
            %v4060 = vpop.f32.mrf.mxu0
            %v4061 = vadd.f32 %v3948, %v4060
            %v4062 = vpop.f32.mrf.mxu0
            %v4063 = vadd.f32 %v3950, %v4062
            %v4064 = vpop.f32.mrf.mxu0
            %v4065 = vadd.f32 %v3952, %v4064
            %4066 = vmatprep.mubr.bf16.mxu0 %v3094
            %4067 = vmatmul.mubr.bf16.gmra.mxu0 %v3093
            %v4068 = vpop.f32.mrf.mxu0
            %v4069 = vadd.f32 %v3956, %v4068
            %v4070 = vpop.f32.mrf.mxu0
            %v4071 = vadd.f32 %v3958, %v4070
            %v4072 = vpop.f32.mrf.mxu0
            %v4073 = vadd.f32 %v3960, %v4072
            %v4074 = vpop.f32.mrf.mxu0
            %v4075 = vadd.f32 %v3962, %v4074
            %4076 = vmatprep.mubr.bf16.mxu0 %v3098
            %4077 = vmatmul.mubr.bf16.gmra.mxu0 %v3097
            %v4078 = vpop.f32.mrf.mxu0
            %v4079 = vadd.f32 %v3966, %v4078
            %v4080 = vpop.f32.mrf.mxu0
            %v4081 = vadd.f32 %v3968, %v4080
            %v4082 = vpop.f32.mrf.mxu0
            %v4083 = vadd.f32 %v3970, %v4082
            %v4084 = vpop.f32.mrf.mxu0
            %v4085 = vadd.f32 %v3972, %v4084
            %4086 = vmatprep.mubr.bf16.mxu0 %v3102
            %4087 = vmatmul.mubr.bf16.gmra.mxu0 %v3101
            %v4088 = vpop.f32.mrf.mxu0
            %v4089 = vadd.f32 %v3976, %v4088
            %v4090 = vpop.f32.mrf.mxu0
            %v4091 = vadd.f32 %v3978, %v4090
            %v4092 = vpop.f32.mrf.mxu0
            %v4093 = vadd.f32 %v3980, %v4092
            %v4094 = vpop.f32.mrf.mxu0
            %v4095 = vadd.f32 %v3982, %v4094
            %4096 = vdwg.mxu0
            %4097 = vmatprep.subr.bf16.mxu0 %v3646
            %4098 = vmatpush1.bf16.msra.mxu0 %v3645
            %4099 = vmatprep.subr.bf16.mxu0 %v3642
            %4100 = vmatpush1.bf16.msra.mxu0 %v3641
            %4101 = vmatprep.subr.bf16.mxu0 %v3638
            %4102 = vmatpush1.bf16.msra.mxu0 %v3637
            %4103 = vmatprep.subr.bf16.mxu0 %v3634
            %4104 = vmatpush1.bf16.msra.mxu0 %v3633
            %4105 = vmatprep.subr.bf16.mxu0 %v3630
            %4106 = vmatpush1.bf16.msra.mxu0 %v3629
            %4107 = vmatprep.subr.bf16.mxu0 %v3626
            %4108 = vmatpush1.bf16.msra.mxu0 %v3625
            %4109 = vmatprep.subr.bf16.mxu0 %v3622
            %4110 = vmatpush1.bf16.msra.mxu0 %v3621
            %4111 = vmatprep.subr.bf16.mxu0 %v3618
            %4112 = vmatpush1.bf16.msra.mxu0 %v3617
            %4113 = vmatprep.subr.bf16.mxu0 %v3678
            %4114 = vmatpush2.bf16.msra.mxu0 %v3677
            %4115 = vmatprep.subr.bf16.mxu0 %v3674
            %4116 = vmatpush2.bf16.msra.mxu0 %v3673
            %4117 = vmatprep.subr.bf16.mxu0 %v3670
            %4118 = vmatpush2.bf16.msra.mxu0 %v3669
            %4119 = vmatprep.subr.bf16.mxu0 %v3666
            %4120 = vmatpush2.bf16.msra.mxu0 %v3665
            %4121 = vmatprep.subr.bf16.mxu0 %v3662
            %4122 = vmatpush2.bf16.msra.mxu0 %v3661
            %4123 = vmatprep.subr.bf16.mxu0 %v3658
            %4124 = vmatpush2.bf16.msra.mxu0 %v3657
            %4125 = vmatprep.subr.bf16.mxu0 %v3654
            %4126 = vmatpush2.bf16.msra.mxu0 %v3653
            %4127 = vmatprep.subr.bf16.mxu0 %v3650
            %4128 = vmatpush2.bf16.msra.mxu0 %v3649
            %4129 = vmatprep.mubr.bf16.mxu0 %v3072
            %4130 = vmatmul.mubr.bf16.gmra.mxu0 %v3071
            %v4131 = vpop.f32.mrf.mxu0
            %v4132 = vadd.f32 0.0, %v4131
            %v4133 = vpop.f32.mrf.mxu0
            %v4134 = vadd.f32 0.0, %v4133
            %v4135 = vpop.f32.mrf.mxu0
            %v4136 = vadd.f32 0.0, %v4135
            %v4137 = vpop.f32.mrf.mxu0
            %v4138 = vadd.f32 0.0, %v4137
            %4139 = vmatprep.mubr.bf16.mxu0 %v3076
            %4140 = vmatmul.mubr.bf16.gmra.mxu0 %v3075
            %v4141 = vpop.f32.mrf.mxu0
            %v4142 = vadd.f32 0.0, %v4141
            %v4143 = vpop.f32.mrf.mxu0
            %v4144 = vadd.f32 0.0, %v4143
            %v4145 = vpop.f32.mrf.mxu0
            %v4146 = vadd.f32 0.0, %v4145
            %v4147 = vpop.f32.mrf.mxu0
            %v4148 = vadd.f32 0.0, %v4147
            %4149 = vmatprep.mubr.bf16.mxu0 %v3080
            %4150 = vmatmul.mubr.bf16.gmra.mxu0 %v3079
            %v4151 = vpop.f32.mrf.mxu0
            %v4152 = vadd.f32 0.0, %v4151
            %v4153 = vpop.f32.mrf.mxu0
            %v4154 = vadd.f32 0.0, %v4153
            %v4155 = vpop.f32.mrf.mxu0
            %v4156 = vadd.f32 0.0, %v4155
            %v4157 = vpop.f32.mrf.mxu0
            %v4158 = vadd.f32 0.0, %v4157
            %4159 = vmatprep.mubr.bf16.mxu0 %v3084
            %4160 = vmatmul.mubr.bf16.gmra.mxu0 %v3083
            %v4161 = vpop.f32.mrf.mxu0
            %v4162 = vadd.f32 0.0, %v4161
            %v4163 = vpop.f32.mrf.mxu0
            %v4164 = vadd.f32 0.0, %v4163
            %v4165 = vpop.f32.mrf.mxu0
            %v4166 = vadd.f32 0.0, %v4165
            %v4167 = vpop.f32.mrf.mxu0
            %v4168 = vadd.f32 0.0, %v4167
            %4169 = vmatprep.mubr.bf16.mxu0 %v3088
            %4170 = vmatmul.mubr.bf16.gmra.mxu0 %v3087
            %v4171 = vpop.f32.mrf.mxu0
            %v4172 = vadd.f32 0.0, %v4171
            %v4173 = vpop.f32.mrf.mxu0
            %v4174 = vadd.f32 0.0, %v4173
            %v4175 = vpop.f32.mrf.mxu0
            %v4176 = vadd.f32 0.0, %v4175
            %v4177 = vpop.f32.mrf.mxu0
            %v4178 = vadd.f32 0.0, %v4177
            %4179 = vmatprep.mubr.bf16.mxu0 %v3092
            %4180 = vmatmul.mubr.bf16.gmra.mxu0 %v3091
            %v4181 = vpop.f32.mrf.mxu0
            %v4182 = vadd.f32 0.0, %v4181
            %v4183 = vpop.f32.mrf.mxu0
            %v4184 = vadd.f32 0.0, %v4183
            %v4185 = vpop.f32.mrf.mxu0
            %v4186 = vadd.f32 0.0, %v4185
            %v4187 = vpop.f32.mrf.mxu0
            %v4188 = vadd.f32 0.0, %v4187
            %4189 = vmatprep.mubr.bf16.mxu0 %v3096
            %4190 = vmatmul.mubr.bf16.gmra.mxu0 %v3095
            %v4191 = vpop.f32.mrf.mxu0
            %v4192 = vadd.f32 0.0, %v4191
            %v4193 = vpop.f32.mrf.mxu0
            %v4194 = vadd.f32 0.0, %v4193
            %v4195 = vpop.f32.mrf.mxu0
            %v4196 = vadd.f32 0.0, %v4195
            %v4197 = vpop.f32.mrf.mxu0
            %v4198 = vadd.f32 0.0, %v4197
            %4199 = vmatprep.mubr.bf16.mxu0 %v3100
            %4200 = vmatmul.mubr.bf16.gmra.mxu0 %v3099
            %v4201 = vpop.f32.mrf.mxu0
            %v4202 = vadd.f32 0.0, %v4201
            %v4203 = vpop.f32.mrf.mxu0
            %v4204 = vadd.f32 0.0, %v4203
            %v4205 = vpop.f32.mrf.mxu0
            %v4206 = vadd.f32 0.0, %v4205
            %v4207 = vpop.f32.mrf.mxu0
            %v4208 = vadd.f32 0.0, %v4207
            %4209 = vdwg.mxu0
            %4210 = vmatprep.subr.bf16.mxu0 %v3710
            %4211 = vmatpush1.bf16.msra.mxu0 %v3709
            %4212 = vmatprep.subr.bf16.mxu0 %v3706
            %4213 = vmatpush1.bf16.msra.mxu0 %v3705
            %4214 = vmatprep.subr.bf16.mxu0 %v3702
            %4215 = vmatpush1.bf16.msra.mxu0 %v3701
            %4216 = vmatprep.subr.bf16.mxu0 %v3698
            %4217 = vmatpush1.bf16.msra.mxu0 %v3697
            %4218 = vmatprep.subr.bf16.mxu0 %v3694
            %4219 = vmatpush1.bf16.msra.mxu0 %v3693
            %4220 = vmatprep.subr.bf16.mxu0 %v3690
            %4221 = vmatpush1.bf16.msra.mxu0 %v3689
            %4222 = vmatprep.subr.bf16.mxu0 %v3686
            %4223 = vmatpush1.bf16.msra.mxu0 %v3685
            %4224 = vmatprep.subr.bf16.mxu0 %v3682
            %4225 = vmatpush1.bf16.msra.mxu0 %v3681
            %4226 = vmatprep.subr.bf16.mxu0 %v3742
            %4227 = vmatpush2.bf16.msra.mxu0 %v3741
            %4228 = vmatprep.subr.bf16.mxu0 %v3738
            %4229 = vmatpush2.bf16.msra.mxu0 %v3737
            %4230 = vmatprep.subr.bf16.mxu0 %v3734
            %4231 = vmatpush2.bf16.msra.mxu0 %v3733
            %4232 = vmatprep.subr.bf16.mxu0 %v3730
            %4233 = vmatpush2.bf16.msra.mxu0 %v3729
            %4234 = vmatprep.subr.bf16.mxu0 %v3726
            %4235 = vmatpush2.bf16.msra.mxu0 %v3725
            %4236 = vmatprep.subr.bf16.mxu0 %v3722
            %4237 = vmatpush2.bf16.msra.mxu0 %v3721
            %4238 = vmatprep.subr.bf16.mxu0 %v3718
            %4239 = vmatpush2.bf16.msra.mxu0 %v3717
            %4240 = vmatprep.subr.bf16.mxu0 %v3714
            %4241 = vmatpush2.bf16.msra.mxu0 %v3713
            %4242 = vmatprep.mubr.bf16.mxu0 %v3074
            %4243 = vmatmul.mubr.bf16.gmra.mxu0 %v3073
            %v4244 = vpop.f32.mrf.mxu0
            %v4245 = vadd.f32 %v4132, %v4244
            %v4246 = vpop.f32.mrf.mxu0
            %v4247 = vadd.f32 %v4134, %v4246
            %v4248 = vpop.f32.mrf.mxu0
            %v4249 = vadd.f32 %v4136, %v4248
            %v4250 = vpop.f32.mrf.mxu0
            %v4251 = vadd.f32 %v4138, %v4250
            %4252 = vmatprep.mubr.bf16.mxu0 %v3078
            %4253 = vmatmul.mubr.bf16.gmra.mxu0 %v3077
            %v4254 = vpop.f32.mrf.mxu0
            %v4255 = vadd.f32 %v4142, %v4254
            %v4256 = vpop.f32.mrf.mxu0
            %v4257 = vadd.f32 %v4144, %v4256
            %v4258 = vpop.f32.mrf.mxu0
            %v4259 = vadd.f32 %v4146, %v4258
            %v4260 = vpop.f32.mrf.mxu0
            %v4261 = vadd.f32 %v4148, %v4260
            %4262 = vmatprep.mubr.bf16.mxu0 %v3082
            %4263 = vmatmul.mubr.bf16.gmra.mxu0 %v3081
            %v4264 = vpop.f32.mrf.mxu0
            %v4265 = vadd.f32 %v4152, %v4264
            %v4266 = vpop.f32.mrf.mxu0
            %v4267 = vadd.f32 %v4154, %v4266
            %v4268 = vpop.f32.mrf.mxu0
            %v4269 = vadd.f32 %v4156, %v4268
            %v4270 = vpop.f32.mrf.mxu0
            %v4271 = vadd.f32 %v4158, %v4270
            %4272 = vmatprep.mubr.bf16.mxu0 %v3086
            %4273 = vmatmul.mubr.bf16.gmra.mxu0 %v3085
            %v4274 = vpop.f32.mrf.mxu0
            %v4275 = vadd.f32 %v4162, %v4274
            %v4276 = vpop.f32.mrf.mxu0
            %v4277 = vadd.f32 %v4164, %v4276
            %v4278 = vpop.f32.mrf.mxu0
            %v4279 = vadd.f32 %v4166, %v4278
            %v4280 = vpop.f32.mrf.mxu0
            %v4281 = vadd.f32 %v4168, %v4280
            %4282 = vmatprep.mubr.bf16.mxu0 %v3090
            %4283 = vmatmul.mubr.bf16.gmra.mxu0 %v3089
            %v4284 = vpop.f32.mrf.mxu0
            %v4285 = vadd.f32 %v4172, %v4284
            %v4286 = vpop.f32.mrf.mxu0
            %v4287 = vadd.f32 %v4174, %v4286
            %v4288 = vpop.f32.mrf.mxu0
            %v4289 = vadd.f32 %v4176, %v4288
            %v4290 = vpop.f32.mrf.mxu0
            %v4291 = vadd.f32 %v4178, %v4290
            %4292 = vmatprep.mubr.bf16.mxu0 %v3094
            %4293 = vmatmul.mubr.bf16.gmra.mxu0 %v3093
            %v4294 = vpop.f32.mrf.mxu0
            %v4295 = vadd.f32 %v4182, %v4294
            %v4296 = vpop.f32.mrf.mxu0
            %v4297 = vadd.f32 %v4184, %v4296
            %v4298 = vpop.f32.mrf.mxu0
            %v4299 = vadd.f32 %v4186, %v4298
            %v4300 = vpop.f32.mrf.mxu0
            %v4301 = vadd.f32 %v4188, %v4300
            %4302 = vmatprep.mubr.bf16.mxu0 %v3098
            %4303 = vmatmul.mubr.bf16.gmra.mxu0 %v3097
            %v4304 = vpop.f32.mrf.mxu0
            %v4305 = vadd.f32 %v4192, %v4304
            %v4306 = vpop.f32.mrf.mxu0
            %v4307 = vadd.f32 %v4194, %v4306
            %v4308 = vpop.f32.mrf.mxu0
            %v4309 = vadd.f32 %v4196, %v4308
            %v4310 = vpop.f32.mrf.mxu0
            %v4311 = vadd.f32 %v4198, %v4310
            %4312 = vmatprep.mubr.bf16.mxu0 %v3102
            %4313 = vmatmul.mubr.bf16.gmra.mxu0 %v3101
            %v4314 = vpop.f32.mrf.mxu0
            %v4315 = vadd.f32 %v4202, %v4314
            %v4316 = vpop.f32.mrf.mxu0
            %v4317 = vadd.f32 %v4204, %v4316
            %v4318 = vpop.f32.mrf.mxu0
            %v4319 = vadd.f32 %v4206, %v4318
            %v4320 = vpop.f32.mrf.mxu0
            %v4321 = vadd.f32 %v4208, %v4320
            %4322 = vdwg.mxu0
            %v4323 = vpack.c.bf16 %v4023, %v4019
            %v4324 = vpack.c.bf16 %v4025, %v4021
            %v4325 = vpack.c.bf16 %v4249, %v4245
            %v4326 = vpack.c.bf16 %v4251, %v4247
            %v4327 = vpack.c.bf16 %v4033, %v4029
            %v4328 = vpack.c.bf16 %v4035, %v4031
            %v4329 = vpack.c.bf16 %v4259, %v4255
            %v4330 = vpack.c.bf16 %v4261, %v4257
            %v4331 = vpack.c.bf16 %v4043, %v4039
            %v4332 = vpack.c.bf16 %v4045, %v4041
            %v4333 = vpack.c.bf16 %v4269, %v4265
            %v4334 = vpack.c.bf16 %v4271, %v4267
            %v4335 = vpack.c.bf16 %v4053, %v4049
            %v4336 = vpack.c.bf16 %v4055, %v4051
            %v4337 = vpack.c.bf16 %v4279, %v4275
            %v4338 = vpack.c.bf16 %v4281, %v4277
            %v4339 = vpack.c.bf16 %v4063, %v4059
            %v4340 = vpack.c.bf16 %v4065, %v4061
            %v4341 = vpack.c.bf16 %v4289, %v4285
            %v4342 = vpack.c.bf16 %v4291, %v4287
            %v4343 = vpack.c.bf16 %v4073, %v4069
            %v4344 = vpack.c.bf16 %v4075, %v4071
            %v4345 = vpack.c.bf16 %v4299, %v4295
            %v4346 = vpack.c.bf16 %v4301, %v4297
            %v4347 = vpack.c.bf16 %v4083, %v4079
            %v4348 = vpack.c.bf16 %v4085, %v4081
            %v4349 = vpack.c.bf16 %v4309, %v4305
            %v4350 = vpack.c.bf16 %v4311, %v4307
            %v4351 = vpack.c.bf16 %v4093, %v4089
            %v4352 = vpack.c.bf16 %v4095, %v4091
            %v4353 = vpack.c.bf16 %v4319, %v4315
            %v4354 = vpack.c.bf16 %v4321, %v4317
            %v4387 = vunpack.c.l.b16 %v4323
            %v4388 = vunpack.c.l.b16 %v4324
            %v4389 = vunpack.c.l.b16 %v4325
            %v4390 = vunpack.c.l.b16 %v4326
            %v4391 = vunpack.c.h.b16 %v4323
            %v4392 = vunpack.c.h.b16 %v4324
            %v4393 = vunpack.c.h.b16 %v4325
            %v4394 = vunpack.c.h.b16 %v4326
            %v4395 = vunpack.c.l.b16 %v4327
            %v4396 = vunpack.c.l.b16 %v4328
            %v4397 = vunpack.c.l.b16 %v4329
            %v4398 = vunpack.c.l.b16 %v4330
            %v4399 = vunpack.c.h.b16 %v4327
            %v4400 = vunpack.c.h.b16 %v4328
            %v4401 = vunpack.c.h.b16 %v4329
            %v4402 = vunpack.c.h.b16 %v4330
            %v4403 = vunpack.c.l.b16 %v4331
            %v4404 = vunpack.c.l.b16 %v4332
            %v4405 = vunpack.c.l.b16 %v4333
            %v4406 = vunpack.c.l.b16 %v4334
            %v4407 = vunpack.c.h.b16 %v4331
            %v4408 = vunpack.c.h.b16 %v4332
            %v4409 = vunpack.c.h.b16 %v4333
            %v4410 = vunpack.c.h.b16 %v4334
            %v4411 = vunpack.c.l.b16 %v4335
            %v4412 = vunpack.c.l.b16 %v4336
            %v4413 = vunpack.c.l.b16 %v4337
            %v4414 = vunpack.c.l.b16 %v4338
            %v4415 = vunpack.c.h.b16 %v4335
            %v4416 = vunpack.c.h.b16 %v4336
            %v4417 = vunpack.c.h.b16 %v4337
            %v4418 = vunpack.c.h.b16 %v4338
            %v4419 = vunpack.c.l.b16 %v4339
            %v4420 = vunpack.c.l.b16 %v4340
            %v4421 = vunpack.c.l.b16 %v4341
            %v4422 = vunpack.c.l.b16 %v4342
            %v4423 = vunpack.c.h.b16 %v4339
            %v4424 = vunpack.c.h.b16 %v4340
            %v4425 = vunpack.c.h.b16 %v4341
            %v4426 = vunpack.c.h.b16 %v4342
            %v4427 = vunpack.c.l.b16 %v4343
            %v4428 = vunpack.c.l.b16 %v4344
            %v4429 = vunpack.c.l.b16 %v4345
            %v4430 = vunpack.c.l.b16 %v4346
            %v4431 = vunpack.c.h.b16 %v4343
            %v4432 = vunpack.c.h.b16 %v4344
            %v4433 = vunpack.c.h.b16 %v4345
            %v4434 = vunpack.c.h.b16 %v4346
            %v4435 = vunpack.c.l.b16 %v4347
            %v4436 = vunpack.c.l.b16 %v4348
            %v4437 = vunpack.c.l.b16 %v4349
            %v4438 = vunpack.c.l.b16 %v4350
            %v4439 = vunpack.c.h.b16 %v4347
            %v4440 = vunpack.c.h.b16 %v4348
            %v4441 = vunpack.c.h.b16 %v4349
            %v4442 = vunpack.c.h.b16 %v4350
            %v4443 = vunpack.c.l.b16 %v4351
            %v4444 = vunpack.c.l.b16 %v4352
            %v4445 = vunpack.c.l.b16 %v4353
            %v4446 = vunpack.c.l.b16 %v4354
            %v4447 = vunpack.c.h.b16 %v4351
            %v4448 = vunpack.c.h.b16 %v4352
            %v4449 = vunpack.c.h.b16 %v4353
            %v4450 = vunpack.c.h.b16 %v4354
            %v4451 = vpack.c.b16 %v4388, %v4387
            %v4452 = vpack.c.b16 %v4390, %v4389
            %v4453 = vpack.c.b16 %v4392, %v4391
            %v4454 = vpack.c.b16 %v4394, %v4393
            %v4455 = vpack.c.b16 %v4396, %v4395
            %v4456 = vpack.c.b16 %v4398, %v4397
            %v4457 = vpack.c.b16 %v4400, %v4399
            %v4458 = vpack.c.b16 %v4402, %v4401
            %v4459 = vpack.c.b16 %v4404, %v4403
            %v4460 = vpack.c.b16 %v4406, %v4405
            %v4461 = vpack.c.b16 %v4408, %v4407
            %v4462 = vpack.c.b16 %v4410, %v4409
            %v4463 = vpack.c.b16 %v4412, %v4411
            %v4464 = vpack.c.b16 %v4414, %v4413
            %v4465 = vpack.c.b16 %v4416, %v4415
            %v4466 = vpack.c.b16 %v4418, %v4417
            %v4467 = vpack.c.b16 %v4420, %v4419
            %v4468 = vpack.c.b16 %v4422, %v4421
            %v4469 = vpack.c.b16 %v4424, %v4423
            %v4470 = vpack.c.b16 %v4426, %v4425
            %v4471 = vpack.c.b16 %v4428, %v4427
            %v4472 = vpack.c.b16 %v4430, %v4429
            %v4473 = vpack.c.b16 %v4432, %v4431
            %v4474 = vpack.c.b16 %v4434, %v4433
            %v4475 = vpack.c.b16 %v4436, %v4435
            %v4476 = vpack.c.b16 %v4438, %v4437
            %v4477 = vpack.c.b16 %v4440, %v4439
            %v4478 = vpack.c.b16 %v4442, %v4441
            %v4479 = vpack.c.b16 %v4444, %v4443
            %v4480 = vpack.c.b16 %v4446, %v4445
            %v4481 = vpack.c.b16 %v4448, %v4447
            %v4482 = vpack.c.b16 %v4450, %v4449
            %s4515 = sshra.s32 %s501, 3
            %s4516 = sand.u32 %s501, 7
            %s4517 = smul.u32 %s4515, 4
            %s4518 = smul.addr %s4517, 4
            %s4519 = scalar_lea.vmem [#allocation3], %s4518
            %4520 = vst [vmem:[%s4519] sm:$0xff] %v4451
            %4521 = vst [vmem:[%s4519 + $0x8] sm:$0xff] %v4452
            %4522 = vst [vmem:[%s4519 + $0x10] sm:$0xff] %v4453
            %4523 = vst [vmem:[%s4519 + $0x18] sm:$0xff] %v4454
            %4524 = vst [vmem:[%s4519 + $0x20] sm:$0xff] %v4455
            %4525 = vst [vmem:[%s4519 + $0x28] sm:$0xff] %v4456
            %4526 = vst [vmem:[%s4519 + $0x30] sm:$0xff] %v4457
            %4527 = vst [vmem:[%s4519 + $0x38] sm:$0xff] %v4458
            %4528 = vst [vmem:[%s4519 + $0x40] sm:$0xff] %v4459
            %4529 = vst [vmem:[%s4519 + $0x48] sm:$0xff] %v4460
            %4530 = vst [vmem:[%s4519 + $0x50] sm:$0xff] %v4461
            %4531 = vst [vmem:[%s4519 + $0x58] sm:$0xff] %v4462
            %4532 = vst [vmem:[%s4519 + $0x60] sm:$0xff] %v4463
            %4533 = vst [vmem:[%s4519 + $0x68] sm:$0xff] %v4464
            %4534 = vst [vmem:[%s4519 + $0x70] sm:$0xff] %v4465
            %4535 = vst [vmem:[%s4519 + $0x78] sm:$0xff] %v4466
            %4536 = vst [vmem:[%s4519 + $0x80] sm:$0xff] %v4467
            %4537 = vst [vmem:[%s4519 + $0x88] sm:$0xff] %v4468
            %4538 = vst [vmem:[%s4519 + $0x90] sm:$0xff] %v4469
            %4539 = vst [vmem:[%s4519 + $0x98] sm:$0xff] %v4470
            %4540 = vst [vmem:[%s4519 + $0xa0] sm:$0xff] %v4471
            %4541 = vst [vmem:[%s4519 + $0xa8] sm:$0xff] %v4472
            %4542 = vst [vmem:[%s4519 + $0xb0] sm:$0xff] %v4473
            %4543 = vst [vmem:[%s4519 + $0xb8] sm:$0xff] %v4474
            %4544 = vst [vmem:[%s4519 + $0xc0] sm:$0xff] %v4475
            %4545 = vst [vmem:[%s4519 + $0xc8] sm:$0xff] %v4476
            %4546 = vst [vmem:[%s4519 + $0xd0] sm:$0xff] %v4477
            %4547 = vst [vmem:[%s4519 + $0xd8] sm:$0xff] %v4478
            %4548 = vst [vmem:[%s4519 + $0xe0] sm:$0xff] %v4479
            %4549 = vst [vmem:[%s4519 + $0xe8] sm:$0xff] %v4480
            %4550 = vst [vmem:[%s4519 + $0xf0] sm:$0xff] %v4481
            %4551 = vst [vmem:[%s4519 + $0xf8] sm:$0xff] %v4482
          $region80: #{tpu_custom_call.1} parent=67 // pred_fallthru
            _
          %p4552 = scmp.eq.s32.totalorder %s35, 3
          // Predicated region
          $region81: #{tpu_custom_call.1} parent=67 // pred_check
            %p4553 = pneg %p4552
          $region82: #{tpu_custom_call.1} parent=67 // pred_check_branch
            %4555 = sbr.rel (%p4553) target = $region84
          $region83: #{tpu_custom_call.1} parent=67 // pred_region
            %4556 = vst [vmem:[%s465] sm:$0xff] %v3003
            %4557 = vst [vmem:[%s465 + $0x8] sm:$0xff] %v3004
            %4558 = vst [vmem:[%s465 + $0x10] sm:$0xff] %v3005
            %4559 = vst [vmem:[%s465 + $0x18] sm:$0xff] %v3006
            %4560 = vst [vmem:[%s465 + $0x20] sm:$0xff] %v3007
            %4561 = vst [vmem:[%s465 + $0x28] sm:$0xff] %v3008
            %4562 = vst [vmem:[%s465 + $0x30] sm:$0xff] %v3009
            %4563 = vst [vmem:[%s465 + $0x38] sm:$0xff] %v3010
            %4564 = vst [vmem:[%s465 + $0x40] sm:$0xff] %v3011
            %4565 = vst [vmem:[%s465 + $0x48] sm:$0xff] %v3012
            %4566 = vst [vmem:[%s465 + $0x50] sm:$0xff] %v3013
            %4567 = vst [vmem:[%s465 + $0x58] sm:$0xff] %v3014
            %4568 = vst [vmem:[%s465 + $0x60] sm:$0xff] %v3015
            %4569 = vst [vmem:[%s465 + $0x68] sm:$0xff] %v3016
            %4570 = vst [vmem:[%s465 + $0x70] sm:$0xff] %v3017
            %4571 = vst [vmem:[%s465 + $0x78] sm:$0xff] %v3018
            %4572 = vst [vmem:[%s465 + $0x80] sm:$0xff] %v3019
            %4573 = vst [vmem:[%s465 + $0x88] sm:$0xff] %v3020
            %4574 = vst [vmem:[%s465 + $0x90] sm:$0xff] %v3021
            %4575 = vst [vmem:[%s465 + $0x98] sm:$0xff] %v3022
            %4576 = vst [vmem:[%s465 + $0xa0] sm:$0xff] %v3023
            %4577 = vst [vmem:[%s465 + $0xa8] sm:$0xff] %v3024
            %4578 = vst [vmem:[%s465 + $0xb0] sm:$0xff] %v3025
            %4579 = vst [vmem:[%s465 + $0xb8] sm:$0xff] %v3026
            %4580 = vst [vmem:[%s465 + $0xc0] sm:$0xff] %v3027
            %4581 = vst [vmem:[%s465 + $0xc8] sm:$0xff] %v3028
            %4582 = vst [vmem:[%s465 + $0xd0] sm:$0xff] %v3029
            %4583 = vst [vmem:[%s465 + $0xd8] sm:$0xff] %v3030
            %4584 = vst [vmem:[%s465 + $0xe0] sm:$0xff] %v3031
            %4585 = vst [vmem:[%s465 + $0xe8] sm:$0xff] %v3032
            %4586 = vst [vmem:[%s465 + $0xf0] sm:$0xff] %v3033
            %4587 = vst [vmem:[%s465 + $0xf8] sm:$0xff] %v3034
            %4588 = vst [vmem:[%s465 + $0x100] sm:$0xff] %v3035
            %4589 = vst [vmem:[%s465 + $0x108] sm:$0xff] %v3036
            %4590 = vst [vmem:[%s465 + $0x110] sm:$0xff] %v3037
            %4591 = vst [vmem:[%s465 + $0x118] sm:$0xff] %v3038
            %4592 = vst [vmem:[%s465 + $0x120] sm:$0xff] %v3039
            %4593 = vst [vmem:[%s465 + $0x128] sm:$0xff] %v3040
            %4594 = vst [vmem:[%s465 + $0x130] sm:$0xff] %v3041
            %4595 = vst [vmem:[%s465 + $0x138] sm:$0xff] %v3042
            %4596 = vst [vmem:[%s465 + $0x140] sm:$0xff] %v3043
            %4597 = vst [vmem:[%s465 + $0x148] sm:$0xff] %v3044
            %4598 = vst [vmem:[%s465 + $0x150] sm:$0xff] %v3045
            %4599 = vst [vmem:[%s465 + $0x158] sm:$0xff] %v3046
            %4600 = vst [vmem:[%s465 + $0x160] sm:$0xff] %v3047
            %4601 = vst [vmem:[%s465 + $0x168] sm:$0xff] %v3048
            %4602 = vst [vmem:[%s465 + $0x170] sm:$0xff] %v3049
            %4603 = vst [vmem:[%s465 + $0x178] sm:$0xff] %v3050
            %4604 = vst [vmem:[%s465 + $0x180] sm:$0xff] %v3051
            %4605 = vst [vmem:[%s465 + $0x188] sm:$0xff] %v3052
            %4606 = vst [vmem:[%s465 + $0x190] sm:$0xff] %v3053
            %4607 = vst [vmem:[%s465 + $0x198] sm:$0xff] %v3054
            %4608 = vst [vmem:[%s465 + $0x1a0] sm:$0xff] %v3055
            %4609 = vst [vmem:[%s465 + $0x1a8] sm:$0xff] %v3056
            %4610 = vst [vmem:[%s465 + $0x1b0] sm:$0xff] %v3057
            %4611 = vst [vmem:[%s465 + $0x1b8] sm:$0xff] %v3058
            %4612 = vst [vmem:[%s465 + $0x1c0] sm:$0xff] %v3059
            %4613 = vst [vmem:[%s465 + $0x1c8] sm:$0xff] %v3060
            %4614 = vst [vmem:[%s465 + $0x1d0] sm:$0xff] %v3061
            %4615 = vst [vmem:[%s465 + $0x1d8] sm:$0xff] %v3062
            %4616 = vst [vmem:[%s465 + $0x1e0] sm:$0xff] %v3063
            %4617 = vst [vmem:[%s465 + $0x1e8] sm:$0xff] %v3064
            %4618 = vst [vmem:[%s465 + $0x1f0] sm:$0xff] %v3065
            %4619 = vst [vmem:[%s465 + $0x1f8] sm:$0xff] %v3066
            %p4620 = scmp.eq.s32.totalorder %s36, 0
            // Predicated region
            $region85: #{tpu_custom_call.1} parent=83 // pred_check
              %p4621 = pneg %p4620
            $region86: #{tpu_custom_call.1} parent=83 // pred_check_branch
              %4623 = sbr.rel (%p4621) target = $region88
            $region87: #{tpu_custom_call.1} parent=83 // pred_region
              %4624 = vst [vmem:[#allocation4] sm:$0xff] -3e+38
              %4625 = vst [vmem:[#allocation4 + $0x8] sm:$0xff] -3e+38
              %4626 = vst [vmem:[#allocation4 + $0x10] sm:$0xff] -3e+38
              %4627 = vst [vmem:[#allocation4 + $0x18] sm:$0xff] -3e+38
            $region88: #{tpu_custom_call.1} parent=83 // pred_fallthru
              _
            %v4628 = vld [vmem:[%s419] sm:$0xff]
            %v4629 = vlaneseq
            %v4630 = vshrl.u32 %v4629, 7
            %v4631 = vsub.s32 0, %v4630
            %v4632 = vrot.slane %v4628, %v4631
            %4634 = vbcast.lane.b32.xlu0 %v4632, 256
            %v4635 = vpop.permute.xlu0 %4634
            %s4637 = sor.u32 256, 8
            %4638 = vbcast.lane.b32.xlu0 %v4632, %s4637
            %v4639 = vpop.permute.xlu0 %4638
            %s4641 = sor.u32 256, 16
            %4642 = vbcast.lane.b32.xlu0 %v4632, %s4641
            %v4643 = vpop.permute.xlu0 %4642
            %s4645 = sor.u32 256, 24
            %4646 = vbcast.lane.b32.xlu0 %v4632, %s4645
            %v4647 = vpop.permute.xlu0 %4646
            %s4649 = sor.u32 256, 32
            %4650 = vbcast.lane.b32.xlu0 %v4632, %s4649
            %v4651 = vpop.permute.xlu0 %4650
            %s4653 = sor.u32 256, 40
            %4654 = vbcast.lane.b32.xlu0 %v4632, %s4653
            %v4655 = vpop.permute.xlu0 %4654
            %s4657 = sor.u32 256, 48
            %4658 = vbcast.lane.b32.xlu0 %v4632, %s4657
            %v4659 = vpop.permute.xlu0 %4658
            %s4661 = sor.u32 256, 56
            %4662 = vbcast.lane.b32.xlu0 %v4632, %s4661
            %v4663 = vpop.permute.xlu0 %4662
            %s4665 = sor.u32 256, 64
            %4666 = vbcast.lane.b32.xlu0 %v4632, %s4665
            %v4667 = vpop.permute.xlu0 %4666
            %s4669 = sor.u32 256, 72
            %4670 = vbcast.lane.b32.xlu0 %v4632, %s4669
            %v4671 = vpop.permute.xlu0 %4670
            %s4673 = sor.u32 256, 80
            %4674 = vbcast.lane.b32.xlu0 %v4632, %s4673
            %v4675 = vpop.permute.xlu0 %4674
            %s4677 = sor.u32 256, 88
            %4678 = vbcast.lane.b32.xlu0 %v4632, %s4677
            %v4679 = vpop.permute.xlu0 %4678
            %s4681 = sor.u32 256, 96
            %4682 = vbcast.lane.b32.xlu0 %v4632, %s4681
            %v4683 = vpop.permute.xlu0 %4682
            %s4685 = sor.u32 256, 104
            %4686 = vbcast.lane.b32.xlu0 %v4632, %s4685
            %v4687 = vpop.permute.xlu0 %4686
            %s4689 = sor.u32 256, 112
            %4690 = vbcast.lane.b32.xlu0 %v4632, %s4689
            %v4691 = vpop.permute.xlu0 %4690
            %s4693 = sor.u32 256, 120
            %4694 = vbcast.lane.b32.xlu0 %v4632, %s4693
            %v4695 = vpop.permute.xlu0 %4694
            %vm4696 = vcmp.gt.f32.partialorder %v4635, 0.0
            %vm4697 = vcmp.gt.f32.partialorder %v4639, 0.0
            %vm4698 = vcmp.gt.f32.partialorder %v4643, 0.0
            %vm4699 = vcmp.gt.f32.partialorder %v4647, 0.0
            %vm4700 = vcmp.gt.f32.partialorder %v4651, 0.0
            %vm4701 = vcmp.gt.f32.partialorder %v4655, 0.0
            %vm4702 = vcmp.gt.f32.partialorder %v4659, 0.0
            %vm4703 = vcmp.gt.f32.partialorder %v4663, 0.0
            %vm4704 = vcmp.gt.f32.partialorder %v4667, 0.0
            %vm4705 = vcmp.gt.f32.partialorder %v4671, 0.0
            %vm4706 = vcmp.gt.f32.partialorder %v4675, 0.0
            %vm4707 = vcmp.gt.f32.partialorder %v4679, 0.0
            %vm4708 = vcmp.gt.f32.partialorder %v4683, 0.0
            %vm4709 = vcmp.gt.f32.partialorder %v4687, 0.0
            %vm4710 = vcmp.gt.f32.partialorder %v4691, 0.0
            %vm4711 = vcmp.gt.f32.partialorder %v4695, 0.0
            %v4712 = vsel %vm4696, 1, 0
            %v4713 = vsel %vm4697, 1, 0
            %v4714 = vsel %vm4698, 1, 0
            %v4715 = vsel %vm4699, 1, 0
            %v4716 = vsel %vm4700, 1, 0
            %v4717 = vsel %vm4701, 1, 0
            %v4718 = vsel %vm4702, 1, 0
            %v4719 = vsel %vm4703, 1, 0
            %v4720 = vsel %vm4704, 1, 0
            %v4721 = vsel %vm4705, 1, 0
            %v4722 = vsel %vm4706, 1, 0
            %v4723 = vsel %vm4707, 1, 0
            %v4724 = vsel %vm4708, 1, 0
            %v4725 = vsel %vm4709, 1, 0
            %v4726 = vsel %vm4710, 1, 0
            %v4727 = vsel %vm4711, 1, 0
            %vm4728 = vcmp.eq.s32.totalorder %v4712, 1
            %vm4729 = vcmp.eq.s32.totalorder %v4713, 1
            %vm4730 = vcmp.eq.s32.totalorder %v4714, 1
            %vm4731 = vcmp.eq.s32.totalorder %v4715, 1
            %vm4732 = vcmp.eq.s32.totalorder %v4716, 1
            %vm4733 = vcmp.eq.s32.totalorder %v4717, 1
            %vm4734 = vcmp.eq.s32.totalorder %v4718, 1
            %vm4735 = vcmp.eq.s32.totalorder %v4719, 1
            %vm4736 = vcmp.eq.s32.totalorder %v4720, 1
            %vm4737 = vcmp.eq.s32.totalorder %v4721, 1
            %vm4738 = vcmp.eq.s32.totalorder %v4722, 1
            %vm4739 = vcmp.eq.s32.totalorder %v4723, 1
            %vm4740 = vcmp.eq.s32.totalorder %v4724, 1
            %vm4741 = vcmp.eq.s32.totalorder %v4725, 1
            %vm4742 = vcmp.eq.s32.totalorder %v4726, 1
            %vm4743 = vcmp.eq.s32.totalorder %v4727, 1
            %v4744 = vsel %vm4728, %v3003, -3e+38
            %v4745 = vsel %vm4728, %v3004, -3e+38
            %v4746 = vsel %vm4728, %v3005, -3e+38
            %v4747 = vsel %vm4728, %v3006, -3e+38
            %v4748 = vsel %vm4729, %v3007, -3e+38
            %v4749 = vsel %vm4729, %v3008, -3e+38
            %v4750 = vsel %vm4729, %v3009, -3e+38
            %v4751 = vsel %vm4729, %v3010, -3e+38
            %v4752 = vsel %vm4730, %v3011, -3e+38
            %v4753 = vsel %vm4730, %v3012, -3e+38
            %v4754 = vsel %vm4730, %v3013, -3e+38
            %v4755 = vsel %vm4730, %v3014, -3e+38
            %v4756 = vsel %vm4731, %v3015, -3e+38
            %v4757 = vsel %vm4731, %v3016, -3e+38
            %v4758 = vsel %vm4731, %v3017, -3e+38
            %v4759 = vsel %vm4731, %v3018, -3e+38
            %v4760 = vsel %vm4732, %v3019, -3e+38
            %v4761 = vsel %vm4732, %v3020, -3e+38
            %v4762 = vsel %vm4732, %v3021, -3e+38
            %v4763 = vsel %vm4732, %v3022, -3e+38
            %v4764 = vsel %vm4733, %v3023, -3e+38
            %v4765 = vsel %vm4733, %v3024, -3e+38
            %v4766 = vsel %vm4733, %v3025, -3e+38
            %v4767 = vsel %vm4733, %v3026, -3e+38
            %v4768 = vsel %vm4734, %v3027, -3e+38
            %v4769 = vsel %vm4734, %v3028, -3e+38
            %v4770 = vsel %vm4734, %v3029, -3e+38
            %v4771 = vsel %vm4734, %v3030, -3e+38
            %v4772 = vsel %vm4735, %v3031, -3e+38
            %v4773 = vsel %vm4735, %v3032, -3e+38
            %v4774 = vsel %vm4735, %v3033, -3e+38
            %v4775 = vsel %vm4735, %v3034, -3e+38
            %v4776 = vsel %vm4736, %v3035, -3e+38
            %v4777 = vsel %vm4736, %v3036, -3e+38
            %v4778 = vsel %vm4736, %v3037, -3e+38
            %v4779 = vsel %vm4736, %v3038, -3e+38
            %v4780 = vsel %vm4737, %v3039, -3e+38
            %v4781 = vsel %vm4737, %v3040, -3e+38
            %v4782 = vsel %vm4737, %v3041, -3e+38
            %v4783 = vsel %vm4737, %v3042, -3e+38
            %v4784 = vsel %vm4738, %v3043, -3e+38
            %v4785 = vsel %vm4738, %v3044, -3e+38
            %v4786 = vsel %vm4738, %v3045, -3e+38
            %v4787 = vsel %vm4738, %v3046, -3e+38
            %v4788 = vsel %vm4739, %v3047, -3e+38
            %v4789 = vsel %vm4739, %v3048, -3e+38
            %v4790 = vsel %vm4739, %v3049, -3e+38
            %v4791 = vsel %vm4739, %v3050, -3e+38
            %v4792 = vsel %vm4740, %v3051, -3e+38
            %v4793 = vsel %vm4740, %v3052, -3e+38
            %v4794 = vsel %vm4740, %v3053, -3e+38
            %v4795 = vsel %vm4740, %v3054, -3e+38
            %v4796 = vsel %vm4741, %v3055, -3e+38
            %v4797 = vsel %vm4741, %v3056, -3e+38
            %v4798 = vsel %vm4741, %v3057, -3e+38
            %v4799 = vsel %vm4741, %v3058, -3e+38
            %v4800 = vsel %vm4742, %v3059, -3e+38
            %v4801 = vsel %vm4742, %v3060, -3e+38
            %v4802 = vsel %vm4742, %v3061, -3e+38
            %v4803 = vsel %vm4742, %v3062, -3e+38
            %v4804 = vsel %vm4743, %v3063, -3e+38
            %v4805 = vsel %vm4743, %v3064, -3e+38
            %v4806 = vsel %vm4743, %v3065, -3e+38
            %v4807 = vsel %vm4743, %v3066, -3e+38
            %v4808 = vmax.f32 %v4744, %v4748
            %v4809 = vmax.f32 %v4808, %v4752
            %v4810 = vmax.f32 %v4809, %v4756
            %v4811 = vmax.f32 %v4810, %v4760
            %v4812 = vmax.f32 %v4811, %v4764
            %v4813 = vmax.f32 %v4812, %v4768
            %v4814 = vmax.f32 %v4813, %v4772
            %v4815 = vmax.f32 %v4814, %v4776
            %v4816 = vmax.f32 %v4815, %v4780
            %v4817 = vmax.f32 %v4816, %v4784
            %v4818 = vmax.f32 %v4817, %v4788
            %v4819 = vmax.f32 %v4818, %v4792
            %v4820 = vmax.f32 %v4819, %v4796
            %v4821 = vmax.f32 %v4820, %v4800
            %v4822 = vmax.f32 %v4821, %v4804
            %v4823 = vrot.slane %v4822, 4
            %v4824 = vmax.f32 %v4822, %v4823
            %v4825 = vrot.slane %v4824, 2
            %v4826 = vmax.f32 %v4824, %v4825
            %v4827 = vrot.slane %v4826, 1
            %v4828 = vmax.f32 %v4826, %v4827
            %v4829 = vmax.f32 %v4745, %v4749
            %v4830 = vmax.f32 %v4829, %v4753
            %v4831 = vmax.f32 %v4830, %v4757
            %v4832 = vmax.f32 %v4831, %v4761
            %v4833 = vmax.f32 %v4832, %v4765
            %v4834 = vmax.f32 %v4833, %v4769
            %v4835 = vmax.f32 %v4834, %v4773
            %v4836 = vmax.f32 %v4835, %v4777
            %v4837 = vmax.f32 %v4836, %v4781
            %v4838 = vmax.f32 %v4837, %v4785
            %v4839 = vmax.f32 %v4838, %v4789
            %v4840 = vmax.f32 %v4839, %v4793
            %v4841 = vmax.f32 %v4840, %v4797
            %v4842 = vmax.f32 %v4841, %v4801
            %v4843 = vmax.f32 %v4842, %v4805
            %v4844 = vrot.slane %v4843, 4
            %v4845 = vmax.f32 %v4843, %v4844
            %v4846 = vrot.slane %v4845, 2
            %v4847 = vmax.f32 %v4845, %v4846
            %v4848 = vrot.slane %v4847, 1
            %v4849 = vmax.f32 %v4847, %v4848
            %v4850 = vmax.f32 %v4746, %v4750
            %v4851 = vmax.f32 %v4850, %v4754
            %v4852 = vmax.f32 %v4851, %v4758
            %v4853 = vmax.f32 %v4852, %v4762
            %v4854 = vmax.f32 %v4853, %v4766
            %v4855 = vmax.f32 %v4854, %v4770
            %v4856 = vmax.f32 %v4855, %v4774
            %v4857 = vmax.f32 %v4856, %v4778
            %v4858 = vmax.f32 %v4857, %v4782
            %v4859 = vmax.f32 %v4858, %v4786
            %v4860 = vmax.f32 %v4859, %v4790
            %v4861 = vmax.f32 %v4860, %v4794
            %v4862 = vmax.f32 %v4861, %v4798
            %v4863 = vmax.f32 %v4862, %v4802
            %v4864 = vmax.f32 %v4863, %v4806
            %v4865 = vrot.slane %v4864, 4
            %v4866 = vmax.f32 %v4864, %v4865
            %v4867 = vrot.slane %v4866, 2
            %v4868 = vmax.f32 %v4866, %v4867
            %v4869 = vrot.slane %v4868, 1
            %v4870 = vmax.f32 %v4868, %v4869
            %v4871 = vmax.f32 %v4747, %v4751
            %v4872 = vmax.f32 %v4871, %v4755
            %v4873 = vmax.f32 %v4872, %v4759
            %v4874 = vmax.f32 %v4873, %v4763
            %v4875 = vmax.f32 %v4874, %v4767
            %v4876 = vmax.f32 %v4875, %v4771
            %v4877 = vmax.f32 %v4876, %v4775
            %v4878 = vmax.f32 %v4877, %v4779
            %v4879 = vmax.f32 %v4878, %v4783
            %v4880 = vmax.f32 %v4879, %v4787
            %v4881 = vmax.f32 %v4880, %v4791
            %v4882 = vmax.f32 %v4881, %v4795
            %v4883 = vmax.f32 %v4882, %v4799
            %v4884 = vmax.f32 %v4883, %v4803
            %v4885 = vmax.f32 %v4884, %v4807
            %v4886 = vrot.slane %v4885, 4
            %v4887 = vmax.f32 %v4885, %v4886
            %v4888 = vrot.slane %v4887, 2
            %v4889 = vmax.f32 %v4887, %v4888
            %v4890 = vrot.slane %v4889, 1
            %v4891 = vmax.f32 %v4889, %v4890
            %v4892 = vlaneseq
            %v4893 = vshrl.u32 %v4892, 7
            %v4894 = vsub.s32 1, %v4893
            %v4895 = vrot.slane %v4628, %v4894
            %4897 = vbcast.lane.b32.xlu0 %v4895, 256
            %v4898 = vpop.permute.xlu0 %4897
            %s4900 = sor.u32 256, 8
            %4901 = vbcast.lane.b32.xlu0 %v4895, %s4900
            %v4902 = vpop.permute.xlu0 %4901
            %s4904 = sor.u32 256, 16
            %4905 = vbcast.lane.b32.xlu0 %v4895, %s4904
            %v4906 = vpop.permute.xlu0 %4905
            %s4908 = sor.u32 256, 24
            %4909 = vbcast.lane.b32.xlu0 %v4895, %s4908
            %v4910 = vpop.permute.xlu0 %4909
            %s4912 = sor.u32 256, 32
            %4913 = vbcast.lane.b32.xlu0 %v4895, %s4912
            %v4914 = vpop.permute.xlu0 %4913
            %s4916 = sor.u32 256, 40
            %4917 = vbcast.lane.b32.xlu0 %v4895, %s4916
            %v4918 = vpop.permute.xlu0 %4917
            %s4920 = sor.u32 256, 48
            %4921 = vbcast.lane.b32.xlu0 %v4895, %s4920
            %v4922 = vpop.permute.xlu0 %4921
            %s4924 = sor.u32 256, 56
            %4925 = vbcast.lane.b32.xlu0 %v4895, %s4924
            %v4926 = vpop.permute.xlu0 %4925
            %s4928 = sor.u32 256, 64
            %4929 = vbcast.lane.b32.xlu0 %v4895, %s4928
            %v4930 = vpop.permute.xlu0 %4929
            %s4932 = sor.u32 256, 72
            %4933 = vbcast.lane.b32.xlu0 %v4895, %s4932
            %v4934 = vpop.permute.xlu0 %4933
            %s4936 = sor.u32 256, 80
            %4937 = vbcast.lane.b32.xlu0 %v4895, %s4936
            %v4938 = vpop.permute.xlu0 %4937
            %s4940 = sor.u32 256, 88
            %4941 = vbcast.lane.b32.xlu0 %v4895, %s4940
            %v4942 = vpop.permute.xlu0 %4941
            %s4944 = sor.u32 256, 96
            %4945 = vbcast.lane.b32.xlu0 %v4895, %s4944
            %v4946 = vpop.permute.xlu0 %4945
            %s4948 = sor.u32 256, 104
            %4949 = vbcast.lane.b32.xlu0 %v4895, %s4948
            %v4950 = vpop.permute.xlu0 %4949
            %s4952 = sor.u32 256, 112
            %4953 = vbcast.lane.b32.xlu0 %v4895, %s4952
            %v4954 = vpop.permute.xlu0 %4953
            %s4956 = sor.u32 256, 120
            %4957 = vbcast.lane.b32.xlu0 %v4895, %s4956
            %v4958 = vpop.permute.xlu0 %4957
            %vm4959 = vcmp.gt.f32.partialorder %v4898, 0.0
            %vm4960 = vcmp.gt.f32.partialorder %v4902, 0.0
            %vm4961 = vcmp.gt.f32.partialorder %v4906, 0.0
            %vm4962 = vcmp.gt.f32.partialorder %v4910, 0.0
            %vm4963 = vcmp.gt.f32.partialorder %v4914, 0.0
            %vm4964 = vcmp.gt.f32.partialorder %v4918, 0.0
            %vm4965 = vcmp.gt.f32.partialorder %v4922, 0.0
            %vm4966 = vcmp.gt.f32.partialorder %v4926, 0.0
            %vm4967 = vcmp.gt.f32.partialorder %v4930, 0.0
            %vm4968 = vcmp.gt.f32.partialorder %v4934, 0.0
            %vm4969 = vcmp.gt.f32.partialorder %v4938, 0.0
            %vm4970 = vcmp.gt.f32.partialorder %v4942, 0.0
            %vm4971 = vcmp.gt.f32.partialorder %v4946, 0.0
            %vm4972 = vcmp.gt.f32.partialorder %v4950, 0.0
            %vm4973 = vcmp.gt.f32.partialorder %v4954, 0.0
            %vm4974 = vcmp.gt.f32.partialorder %v4958, 0.0
            %v4975 = vsel %vm4959, 1, 0
            %v4976 = vsel %vm4960, 1, 0
            %v4977 = vsel %vm4961, 1, 0
            %v4978 = vsel %vm4962, 1, 0
            %v4979 = vsel %vm4963, 1, 0
            %v4980 = vsel %vm4964, 1, 0
            %v4981 = vsel %vm4965, 1, 0
            %v4982 = vsel %vm4966, 1, 0
            %v4983 = vsel %vm4967, 1, 0
            %v4984 = vsel %vm4968, 1, 0
            %v4985 = vsel %vm4969, 1, 0
            %v4986 = vsel %vm4970, 1, 0
            %v4987 = vsel %vm4971, 1, 0
            %v4988 = vsel %vm4972, 1, 0
            %v4989 = vsel %vm4973, 1, 0
            %v4990 = vsel %vm4974, 1, 0
            %vm4991 = vcmp.eq.s32.totalorder %v4975, 1
            %vm4992 = vcmp.eq.s32.totalorder %v4976, 1
            %vm4993 = vcmp.eq.s32.totalorder %v4977, 1
            %vm4994 = vcmp.eq.s32.totalorder %v4978, 1
            %vm4995 = vcmp.eq.s32.totalorder %v4979, 1
            %vm4996 = vcmp.eq.s32.totalorder %v4980, 1
            %vm4997 = vcmp.eq.s32.totalorder %v4981, 1
            %vm4998 = vcmp.eq.s32.totalorder %v4982, 1
            %vm4999 = vcmp.eq.s32.totalorder %v4983, 1
            %vm5000 = vcmp.eq.s32.totalorder %v4984, 1
            %vm5001 = vcmp.eq.s32.totalorder %v4985, 1
            %vm5002 = vcmp.eq.s32.totalorder %v4986, 1
            %vm5003 = vcmp.eq.s32.totalorder %v4987, 1
            %vm5004 = vcmp.eq.s32.totalorder %v4988, 1
            %vm5005 = vcmp.eq.s32.totalorder %v4989, 1
            %vm5006 = vcmp.eq.s32.totalorder %v4990, 1
            %v5007 = vsel %vm4991, %v3003, -3e+38
            %v5008 = vsel %vm4991, %v3004, -3e+38
            %v5009 = vsel %vm4991, %v3005, -3e+38
            %v5010 = vsel %vm4991, %v3006, -3e+38
            %v5011 = vsel %vm4992, %v3007, -3e+38
            %v5012 = vsel %vm4992, %v3008, -3e+38
            %v5013 = vsel %vm4992, %v3009, -3e+38
            %v5014 = vsel %vm4992, %v3010, -3e+38
            %v5015 = vsel %vm4993, %v3011, -3e+38
            %v5016 = vsel %vm4993, %v3012, -3e+38
            %v5017 = vsel %vm4993, %v3013, -3e+38
            %v5018 = vsel %vm4993, %v3014, -3e+38
            %v5019 = vsel %vm4994, %v3015, -3e+38
            %v5020 = vsel %vm4994, %v3016, -3e+38
            %v5021 = vsel %vm4994, %v3017, -3e+38
            %v5022 = vsel %vm4994, %v3018, -3e+38
            %v5023 = vsel %vm4995, %v3019, -3e+38
            %v5024 = vsel %vm4995, %v3020, -3e+38
            %v5025 = vsel %vm4995, %v3021, -3e+38
            %v5026 = vsel %vm4995, %v3022, -3e+38
            %v5027 = vsel %vm4996, %v3023, -3e+38
            %v5028 = vsel %vm4996, %v3024, -3e+38
            %v5029 = vsel %vm4996, %v3025, -3e+38
            %v5030 = vsel %vm4996, %v3026, -3e+38
            %v5031 = vsel %vm4997, %v3027, -3e+38
            %v5032 = vsel %vm4997, %v3028, -3e+38
            %v5033 = vsel %vm4997, %v3029, -3e+38
            %v5034 = vsel %vm4997, %v3030, -3e+38
            %v5035 = vsel %vm4998, %v3031, -3e+38
            %v5036 = vsel %vm4998, %v3032, -3e+38
            %v5037 = vsel %vm4998, %v3033, -3e+38
            %v5038 = vsel %vm4998, %v3034, -3e+38
            %v5039 = vsel %vm4999, %v3035, -3e+38
            %v5040 = vsel %vm4999, %v3036, -3e+38
            %v5041 = vsel %vm4999, %v3037, -3e+38
            %v5042 = vsel %vm4999, %v3038, -3e+38
            %v5043 = vsel %vm5000, %v3039, -3e+38
            %v5044 = vsel %vm5000, %v3040, -3e+38
            %v5045 = vsel %vm5000, %v3041, -3e+38
            %v5046 = vsel %vm5000, %v3042, -3e+38
            %v5047 = vsel %vm5001, %v3043, -3e+38
            %v5048 = vsel %vm5001, %v3044, -3e+38
            %v5049 = vsel %vm5001, %v3045, -3e+38
            %v5050 = vsel %vm5001, %v3046, -3e+38
            %v5051 = vsel %vm5002, %v3047, -3e+38
            %v5052 = vsel %vm5002, %v3048, -3e+38
            %v5053 = vsel %vm5002, %v3049, -3e+38
            %v5054 = vsel %vm5002, %v3050, -3e+38
            %v5055 = vsel %vm5003, %v3051, -3e+38
            %v5056 = vsel %vm5003, %v3052, -3e+38
            %v5057 = vsel %vm5003, %v3053, -3e+38
            %v5058 = vsel %vm5003, %v3054, -3e+38
            %v5059 = vsel %vm5004, %v3055, -3e+38
            %v5060 = vsel %vm5004, %v3056, -3e+38
            %v5061 = vsel %vm5004, %v3057, -3e+38
            %v5062 = vsel %vm5004, %v3058, -3e+38
            %v5063 = vsel %vm5005, %v3059, -3e+38
            %v5064 = vsel %vm5005, %v3060, -3e+38
            %v5065 = vsel %vm5005, %v3061, -3e+38
            %v5066 = vsel %vm5005, %v3062, -3e+38
            %v5067 = vsel %vm5006, %v3063, -3e+38
            %v5068 = vsel %vm5006, %v3064, -3e+38
            %v5069 = vsel %vm5006, %v3065, -3e+38
            %v5070 = vsel %vm5006, %v3066, -3e+38
            %v5071 = vmax.f32 %v5007, %v5011
            %v5072 = vmax.f32 %v5071, %v5015
            %v5073 = vmax.f32 %v5072, %v5019
            %v5074 = vmax.f32 %v5073, %v5023
            %v5075 = vmax.f32 %v5074, %v5027
            %v5076 = vmax.f32 %v5075, %v5031
            %v5077 = vmax.f32 %v5076, %v5035
            %v5078 = vmax.f32 %v5077, %v5039
            %v5079 = vmax.f32 %v5078, %v5043
            %v5080 = vmax.f32 %v5079, %v5047
            %v5081 = vmax.f32 %v5080, %v5051
            %v5082 = vmax.f32 %v5081, %v5055
            %v5083 = vmax.f32 %v5082, %v5059
            %v5084 = vmax.f32 %v5083, %v5063
            %v5085 = vmax.f32 %v5084, %v5067
            %v5086 = vrot.slane %v5085, 4
            %v5087 = vmax.f32 %v5085, %v5086
            %v5088 = vrot.slane %v5087, 2
            %v5089 = vmax.f32 %v5087, %v5088
            %v5090 = vrot.slane %v5089, 1
            %v5091 = vmax.f32 %v5089, %v5090
            %v5092 = vmax.f32 %v5008, %v5012
            %v5093 = vmax.f32 %v5092, %v5016
            %v5094 = vmax.f32 %v5093, %v5020
            %v5095 = vmax.f32 %v5094, %v5024
            %v5096 = vmax.f32 %v5095, %v5028
            %v5097 = vmax.f32 %v5096, %v5032
            %v5098 = vmax.f32 %v5097, %v5036
            %v5099 = vmax.f32 %v5098, %v5040
            %v5100 = vmax.f32 %v5099, %v5044
            %v5101 = vmax.f32 %v5100, %v5048
            %v5102 = vmax.f32 %v5101, %v5052
            %v5103 = vmax.f32 %v5102, %v5056
            %v5104 = vmax.f32 %v5103, %v5060
            %v5105 = vmax.f32 %v5104, %v5064
            %v5106 = vmax.f32 %v5105, %v5068
            %v5107 = vrot.slane %v5106, 4
            %v5108 = vmax.f32 %v5106, %v5107
            %v5109 = vrot.slane %v5108, 2
            %v5110 = vmax.f32 %v5108, %v5109
            %v5111 = vrot.slane %v5110, 1
            %v5112 = vmax.f32 %v5110, %v5111
            %v5113 = vmax.f32 %v5009, %v5013
            %v5114 = vmax.f32 %v5113, %v5017
            %v5115 = vmax.f32 %v5114, %v5021
            %v5116 = vmax.f32 %v5115, %v5025
            %v5117 = vmax.f32 %v5116, %v5029
            %v5118 = vmax.f32 %v5117, %v5033
            %v5119 = vmax.f32 %v5118, %v5037
            %v5120 = vmax.f32 %v5119, %v5041
            %v5121 = vmax.f32 %v5120, %v5045
            %v5122 = vmax.f32 %v5121, %v5049
            %v5123 = vmax.f32 %v5122, %v5053
            %v5124 = vmax.f32 %v5123, %v5057
            %v5125 = vmax.f32 %v5124, %v5061
            %v5126 = vmax.f32 %v5125, %v5065
            %v5127 = vmax.f32 %v5126, %v5069
            %v5128 = vrot.slane %v5127, 4
            %v5129 = vmax.f32 %v5127, %v5128
            %v5130 = vrot.slane %v5129, 2
            %v5131 = vmax.f32 %v5129, %v5130
            %v5132 = vrot.slane %v5131, 1
            %v5133 = vmax.f32 %v5131, %v5132
            %v5134 = vmax.f32 %v5010, %v5014
            %v5135 = vmax.f32 %v5134, %v5018
            %v5136 = vmax.f32 %v5135, %v5022
            %v5137 = vmax.f32 %v5136, %v5026
            %v5138 = vmax.f32 %v5137, %v5030
            %v5139 = vmax.f32 %v5138, %v5034
            %v5140 = vmax.f32 %v5139, %v5038
            %v5141 = vmax.f32 %v5140, %v5042
            %v5142 = vmax.f32 %v5141, %v5046
            %v5143 = vmax.f32 %v5142, %v5050
            %v5144 = vmax.f32 %v5143, %v5054
            %v5145 = vmax.f32 %v5144, %v5058
            %v5146 = vmax.f32 %v5145, %v5062
            %v5147 = vmax.f32 %v5146, %v5066
            %v5148 = vmax.f32 %v5147, %v5070
            %v5149 = vrot.slane %v5148, 4
            %v5150 = vmax.f32 %v5148, %v5149
            %v5151 = vrot.slane %v5150, 2
            %v5152 = vmax.f32 %v5150, %v5151
            %v5153 = vrot.slane %v5152, 1
            %v5154 = vmax.f32 %v5152, %v5153
            %v5155 = vlaneseq
            %v5156 = vshrl.u32 %v5155, 7
            %v5157 = vsub.s32 2, %v5156
            %v5158 = vrot.slane %v4628, %v5157
            %5160 = vbcast.lane.b32.xlu0 %v5158, 256
            %v5161 = vpop.permute.xlu0 %5160
            %s5163 = sor.u32 256, 8
            %5164 = vbcast.lane.b32.xlu0 %v5158, %s5163
            %v5165 = vpop.permute.xlu0 %5164
            %s5167 = sor.u32 256, 16
            %5168 = vbcast.lane.b32.xlu0 %v5158, %s5167
            %v5169 = vpop.permute.xlu0 %5168
            %s5171 = sor.u32 256, 24
            %5172 = vbcast.lane.b32.xlu0 %v5158, %s5171
            %v5173 = vpop.permute.xlu0 %5172
            %s5175 = sor.u32 256, 32
            %5176 = vbcast.lane.b32.xlu0 %v5158, %s5175
            %v5177 = vpop.permute.xlu0 %5176
            %s5179 = sor.u32 256, 40
            %5180 = vbcast.lane.b32.xlu0 %v5158, %s5179
            %v5181 = vpop.permute.xlu0 %5180
            %s5183 = sor.u32 256, 48
            %5184 = vbcast.lane.b32.xlu0 %v5158, %s5183
            %v5185 = vpop.permute.xlu0 %5184
            %s5187 = sor.u32 256, 56
            %5188 = vbcast.lane.b32.xlu0 %v5158, %s5187
            %v5189 = vpop.permute.xlu0 %5188
            %s5191 = sor.u32 256, 64
            %5192 = vbcast.lane.b32.xlu0 %v5158, %s5191
            %v5193 = vpop.permute.xlu0 %5192
            %s5195 = sor.u32 256, 72
            %5196 = vbcast.lane.b32.xlu0 %v5158, %s5195
            %v5197 = vpop.permute.xlu0 %5196
            %s5199 = sor.u32 256, 80
            %5200 = vbcast.lane.b32.xlu0 %v5158, %s5199
            %v5201 = vpop.permute.xlu0 %5200
            %s5203 = sor.u32 256, 88
            %5204 = vbcast.lane.b32.xlu0 %v5158, %s5203
            %v5205 = vpop.permute.xlu0 %5204
            %s5207 = sor.u32 256, 96
            %5208 = vbcast.lane.b32.xlu0 %v5158, %s5207
            %v5209 = vpop.permute.xlu0 %5208
            %s5211 = sor.u32 256, 104
            %5212 = vbcast.lane.b32.xlu0 %v5158, %s5211
            %v5213 = vpop.permute.xlu0 %5212
            %s5215 = sor.u32 256, 112
            %5216 = vbcast.lane.b32.xlu0 %v5158, %s5215
            %v5217 = vpop.permute.xlu0 %5216
            %s5219 = sor.u32 256, 120
            %5220 = vbcast.lane.b32.xlu0 %v5158, %s5219
            %v5221 = vpop.permute.xlu0 %5220
            %vm5222 = vcmp.gt.f32.partialorder %v5161, 0.0
            %vm5223 = vcmp.gt.f32.partialorder %v5165, 0.0
            %vm5224 = vcmp.gt.f32.partialorder %v5169, 0.0
            %vm5225 = vcmp.gt.f32.partialorder %v5173, 0.0
            %vm5226 = vcmp.gt.f32.partialorder %v5177, 0.0
            %vm5227 = vcmp.gt.f32.partialorder %v5181, 0.0
            %vm5228 = vcmp.gt.f32.partialorder %v5185, 0.0
            %vm5229 = vcmp.gt.f32.partialorder %v5189, 0.0
            %vm5230 = vcmp.gt.f32.partialorder %v5193, 0.0
            %vm5231 = vcmp.gt.f32.partialorder %v5197, 0.0
            %vm5232 = vcmp.gt.f32.partialorder %v5201, 0.0
            %vm5233 = vcmp.gt.f32.partialorder %v5205, 0.0
            %vm5234 = vcmp.gt.f32.partialorder %v5209, 0.0
            %vm5235 = vcmp.gt.f32.partialorder %v5213, 0.0
            %vm5236 = vcmp.gt.f32.partialorder %v5217, 0.0
            %vm5237 = vcmp.gt.f32.partialorder %v5221, 0.0
            %v5238 = vsel %vm5222, 1, 0
            %v5239 = vsel %vm5223, 1, 0
            %v5240 = vsel %vm5224, 1, 0
            %v5241 = vsel %vm5225, 1, 0
            %v5242 = vsel %vm5226, 1, 0
            %v5243 = vsel %vm5227, 1, 0
            %v5244 = vsel %vm5228, 1, 0
            %v5245 = vsel %vm5229, 1, 0
            %v5246 = vsel %vm5230, 1, 0
            %v5247 = vsel %vm5231, 1, 0
            %v5248 = vsel %vm5232, 1, 0
            %v5249 = vsel %vm5233, 1, 0
            %v5250 = vsel %vm5234, 1, 0
            %v5251 = vsel %vm5235, 1, 0
            %v5252 = vsel %vm5236, 1, 0
            %v5253 = vsel %vm5237, 1, 0
            %vm5254 = vcmp.eq.s32.totalorder %v5238, 1
            %vm5255 = vcmp.eq.s32.totalorder %v5239, 1
            %vm5256 = vcmp.eq.s32.totalorder %v5240, 1
            %vm5257 = vcmp.eq.s32.totalorder %v5241, 1
            %vm5258 = vcmp.eq.s32.totalorder %v5242, 1
            %vm5259 = vcmp.eq.s32.totalorder %v5243, 1
            %vm5260 = vcmp.eq.s32.totalorder %v5244, 1
            %vm5261 = vcmp.eq.s32.totalorder %v5245, 1
            %vm5262 = vcmp.eq.s32.totalorder %v5246, 1
            %vm5263 = vcmp.eq.s32.totalorder %v5247, 1
            %vm5264 = vcmp.eq.s32.totalorder %v5248, 1
            %vm5265 = vcmp.eq.s32.totalorder %v5249, 1
            %vm5266 = vcmp.eq.s32.totalorder %v5250, 1
            %vm5267 = vcmp.eq.s32.totalorder %v5251, 1
            %vm5268 = vcmp.eq.s32.totalorder %v5252, 1
            %vm5269 = vcmp.eq.s32.totalorder %v5253, 1
            %v5270 = vsel %vm5254, %v3003, -3e+38
            %v5271 = vsel %vm5254, %v3004, -3e+38
            %v5272 = vsel %vm5254, %v3005, -3e+38
            %v5273 = vsel %vm5254, %v3006, -3e+38
            %v5274 = vsel %vm5255, %v3007, -3e+38
            %v5275 = vsel %vm5255, %v3008, -3e+38
            %v5276 = vsel %vm5255, %v3009, -3e+38
            %v5277 = vsel %vm5255, %v3010, -3e+38
            %v5278 = vsel %vm5256, %v3011, -3e+38
            %v5279 = vsel %vm5256, %v3012, -3e+38
            %v5280 = vsel %vm5256, %v3013, -3e+38
            %v5281 = vsel %vm5256, %v3014, -3e+38
            %v5282 = vsel %vm5257, %v3015, -3e+38
            %v5283 = vsel %vm5257, %v3016, -3e+38
            %v5284 = vsel %vm5257, %v3017, -3e+38
            %v5285 = vsel %vm5257, %v3018, -3e+38
            %v5286 = vsel %vm5258, %v3019, -3e+38
            %v5287 = vsel %vm5258, %v3020, -3e+38
            %v5288 = vsel %vm5258, %v3021, -3e+38
            %v5289 = vsel %vm5258, %v3022, -3e+38
            %v5290 = vsel %vm5259, %v3023, -3e+38
            %v5291 = vsel %vm5259, %v3024, -3e+38
            %v5292 = vsel %vm5259, %v3025, -3e+38
            %v5293 = vsel %vm5259, %v3026, -3e+38
            %v5294 = vsel %vm5260, %v3027, -3e+38
            %v5295 = vsel %vm5260, %v3028, -3e+38
            %v5296 = vsel %vm5260, %v3029, -3e+38
            %v5297 = vsel %vm5260, %v3030, -3e+38
            %v5298 = vsel %vm5261, %v3031, -3e+38
            %v5299 = vsel %vm5261, %v3032, -3e+38
            %v5300 = vsel %vm5261, %v3033, -3e+38
            %v5301 = vsel %vm5261, %v3034, -3e+38
            %v5302 = vsel %vm5262, %v3035, -3e+38
            %v5303 = vsel %vm5262, %v3036, -3e+38
            %v5304 = vsel %vm5262, %v3037, -3e+38
            %v5305 = vsel %vm5262, %v3038, -3e+38
            %v5306 = vsel %vm5263, %v3039, -3e+38
            %v5307 = vsel %vm5263, %v3040, -3e+38
            %v5308 = vsel %vm5263, %v3041, -3e+38
            %v5309 = vsel %vm5263, %v3042, -3e+38
            %v5310 = vsel %vm5264, %v3043, -3e+38
            %v5311 = vsel %vm5264, %v3044, -3e+38
            %v5312 = vsel %vm5264, %v3045, -3e+38
            %v5313 = vsel %vm5264, %v3046, -3e+38
            %v5314 = vsel %vm5265, %v3047, -3e+38
            %v5315 = vsel %vm5265, %v3048, -3e+38
            %v5316 = vsel %vm5265, %v3049, -3e+38
            %v5317 = vsel %vm5265, %v3050, -3e+38
            %v5318 = vsel %vm5266, %v3051, -3e+38
            %v5319 = vsel %vm5266, %v3052, -3e+38
            %v5320 = vsel %vm5266, %v3053, -3e+38
            %v5321 = vsel %vm5266, %v3054, -3e+38
            %v5322 = vsel %vm5267, %v3055, -3e+38
            %v5323 = vsel %vm5267, %v3056, -3e+38
            %v5324 = vsel %vm5267, %v3057, -3e+38
            %v5325 = vsel %vm5267, %v3058, -3e+38
            %v5326 = vsel %vm5268, %v3059, -3e+38
            %v5327 = vsel %vm5268, %v3060, -3e+38
            %v5328 = vsel %vm5268, %v3061, -3e+38
            %v5329 = vsel %vm5268, %v3062, -3e+38
            %v5330 = vsel %vm5269, %v3063, -3e+38
            %v5331 = vsel %vm5269, %v3064, -3e+38
            %v5332 = vsel %vm5269, %v3065, -3e+38
            %v5333 = vsel %vm5269, %v3066, -3e+38
            %v5334 = vmax.f32 %v5270, %v5274
            %v5335 = vmax.f32 %v5334, %v5278
            %v5336 = vmax.f32 %v5335, %v5282
            %v5337 = vmax.f32 %v5336, %v5286
            %v5338 = vmax.f32 %v5337, %v5290
            %v5339 = vmax.f32 %v5338, %v5294
            %v5340 = vmax.f32 %v5339, %v5298
            %v5341 = vmax.f32 %v5340, %v5302
            %v5342 = vmax.f32 %v5341, %v5306
            %v5343 = vmax.f32 %v5342, %v5310
            %v5344 = vmax.f32 %v5343, %v5314
            %v5345 = vmax.f32 %v5344, %v5318
            %v5346 = vmax.f32 %v5345, %v5322
            %v5347 = vmax.f32 %v5346, %v5326
            %v5348 = vmax.f32 %v5347, %v5330
            %v5349 = vrot.slane %v5348, 4
            %v5350 = vmax.f32 %v5348, %v5349
            %v5351 = vrot.slane %v5350, 2
            %v5352 = vmax.f32 %v5350, %v5351
            %v5353 = vrot.slane %v5352, 1
            %v5354 = vmax.f32 %v5352, %v5353
            %v5355 = vmax.f32 %v5271, %v5275
            %v5356 = vmax.f32 %v5355, %v5279
            %v5357 = vmax.f32 %v5356, %v5283
            %v5358 = vmax.f32 %v5357, %v5287
            %v5359 = vmax.f32 %v5358, %v5291
            %v5360 = vmax.f32 %v5359, %v5295
            %v5361 = vmax.f32 %v5360, %v5299
            %v5362 = vmax.f32 %v5361, %v5303
            %v5363 = vmax.f32 %v5362, %v5307
            %v5364 = vmax.f32 %v5363, %v5311
            %v5365 = vmax.f32 %v5364, %v5315
            %v5366 = vmax.f32 %v5365, %v5319
            %v5367 = vmax.f32 %v5366, %v5323
            %v5368 = vmax.f32 %v5367, %v5327
            %v5369 = vmax.f32 %v5368, %v5331
            %v5370 = vrot.slane %v5369, 4
            %v5371 = vmax.f32 %v5369, %v5370
            %v5372 = vrot.slane %v5371, 2
            %v5373 = vmax.f32 %v5371, %v5372
            %v5374 = vrot.slane %v5373, 1
            %v5375 = vmax.f32 %v5373, %v5374
            %v5376 = vmax.f32 %v5272, %v5276
            %v5377 = vmax.f32 %v5376, %v5280
            %v5378 = vmax.f32 %v5377, %v5284
            %v5379 = vmax.f32 %v5378, %v5288
            %v5380 = vmax.f32 %v5379, %v5292
            %v5381 = vmax.f32 %v5380, %v5296
            %v5382 = vmax.f32 %v5381, %v5300
            %v5383 = vmax.f32 %v5382, %v5304
            %v5384 = vmax.f32 %v5383, %v5308
            %v5385 = vmax.f32 %v5384, %v5312
            %v5386 = vmax.f32 %v5385, %v5316
            %v5387 = vmax.f32 %v5386, %v5320
            %v5388 = vmax.f32 %v5387, %v5324
            %v5389 = vmax.f32 %v5388, %v5328
            %v5390 = vmax.f32 %v5389, %v5332
            %v5391 = vrot.slane %v5390, 4
            %v5392 = vmax.f32 %v5390, %v5391
            %v5393 = vrot.slane %v5392, 2
            %v5394 = vmax.f32 %v5392, %v5393
            %v5395 = vrot.slane %v5394, 1
            %v5396 = vmax.f32 %v5394, %v5395
            %v5397 = vmax.f32 %v5273, %v5277
            %v5398 = vmax.f32 %v5397, %v5281
            %v5399 = vmax.f32 %v5398, %v5285
            %v5400 = vmax.f32 %v5399, %v5289
            %v5401 = vmax.f32 %v5400, %v5293
            %v5402 = vmax.f32 %v5401, %v5297
            %v5403 = vmax.f32 %v5402, %v5301
            %v5404 = vmax.f32 %v5403, %v5305
            %v5405 = vmax.f32 %v5404, %v5309
            %v5406 = vmax.f32 %v5405, %v5313
            %v5407 = vmax.f32 %v5406, %v5317
            %v5408 = vmax.f32 %v5407, %v5321
            %v5409 = vmax.f32 %v5408, %v5325
            %v5410 = vmax.f32 %v5409, %v5329
            %v5411 = vmax.f32 %v5410, %v5333
            %v5412 = vrot.slane %v5411, 4
            %v5413 = vmax.f32 %v5411, %v5412
            %v5414 = vrot.slane %v5413, 2
            %v5415 = vmax.f32 %v5413, %v5414
            %v5416 = vrot.slane %v5415, 1
            %v5417 = vmax.f32 %v5415, %v5416
            %v5418 = vlaneseq
            %v5419 = vshrl.u32 %v5418, 7
            %v5420 = vsub.s32 3, %v5419
            %v5421 = vrot.slane %v4628, %v5420
            %5423 = vbcast.lane.b32.xlu0 %v5421, 256
            %v5424 = vpop.permute.xlu0 %5423
            %s5426 = sor.u32 256, 8
            %5427 = vbcast.lane.b32.xlu0 %v5421, %s5426
            %v5428 = vpop.permute.xlu0 %5427
            %s5430 = sor.u32 256, 16
            %5431 = vbcast.lane.b32.xlu0 %v5421, %s5430
            %v5432 = vpop.permute.xlu0 %5431
            %s5434 = sor.u32 256, 24
            %5435 = vbcast.lane.b32.xlu0 %v5421, %s5434
            %v5436 = vpop.permute.xlu0 %5435
            %s5438 = sor.u32 256, 32
            %5439 = vbcast.lane.b32.xlu0 %v5421, %s5438
            %v5440 = vpop.permute.xlu0 %5439
            %s5442 = sor.u32 256, 40
            %5443 = vbcast.lane.b32.xlu0 %v5421, %s5442
            %v5444 = vpop.permute.xlu0 %5443
            %s5446 = sor.u32 256, 48
            %5447 = vbcast.lane.b32.xlu0 %v5421, %s5446
            %v5448 = vpop.permute.xlu0 %5447
            %s5450 = sor.u32 256, 56
            %5451 = vbcast.lane.b32.xlu0 %v5421, %s5450
            %v5452 = vpop.permute.xlu0 %5451
            %s5454 = sor.u32 256, 64
            %5455 = vbcast.lane.b32.xlu0 %v5421, %s5454
            %v5456 = vpop.permute.xlu0 %5455
            %s5458 = sor.u32 256, 72
            %5459 = vbcast.lane.b32.xlu0 %v5421, %s5458
            %v5460 = vpop.permute.xlu0 %5459
            %s5462 = sor.u32 256, 80
            %5463 = vbcast.lane.b32.xlu0 %v5421, %s5462
            %v5464 = vpop.permute.xlu0 %5463
            %s5466 = sor.u32 256, 88
            %5467 = vbcast.lane.b32.xlu0 %v5421, %s5466
            %v5468 = vpop.permute.xlu0 %5467
            %s5470 = sor.u32 256, 96
            %5471 = vbcast.lane.b32.xlu0 %v5421, %s5470
            %v5472 = vpop.permute.xlu0 %5471
            %s5474 = sor.u32 256, 104
            %5475 = vbcast.lane.b32.xlu0 %v5421, %s5474
            %v5476 = vpop.permute.xlu0 %5475
            %s5478 = sor.u32 256, 112
            %5479 = vbcast.lane.b32.xlu0 %v5421, %s5478
            %v5480 = vpop.permute.xlu0 %5479
            %s5482 = sor.u32 256, 120
            %5483 = vbcast.lane.b32.xlu0 %v5421, %s5482
            %v5484 = vpop.permute.xlu0 %5483
            %vm5485 = vcmp.gt.f32.partialorder %v5424, 0.0
            %vm5486 = vcmp.gt.f32.partialorder %v5428, 0.0
            %vm5487 = vcmp.gt.f32.partialorder %v5432, 0.0
            %vm5488 = vcmp.gt.f32.partialorder %v5436, 0.0
            %vm5489 = vcmp.gt.f32.partialorder %v5440, 0.0
            %vm5490 = vcmp.gt.f32.partialorder %v5444, 0.0
            %vm5491 = vcmp.gt.f32.partialorder %v5448, 0.0
            %vm5492 = vcmp.gt.f32.partialorder %v5452, 0.0
            %vm5493 = vcmp.gt.f32.partialorder %v5456, 0.0
            %vm5494 = vcmp.gt.f32.partialorder %v5460, 0.0
            %vm5495 = vcmp.gt.f32.partialorder %v5464, 0.0
            %vm5496 = vcmp.gt.f32.partialorder %v5468, 0.0
            %vm5497 = vcmp.gt.f32.partialorder %v5472, 0.0
            %vm5498 = vcmp.gt.f32.partialorder %v5476, 0.0
            %vm5499 = vcmp.gt.f32.partialorder %v5480, 0.0
            %vm5500 = vcmp.gt.f32.partialorder %v5484, 0.0
            %v5501 = vsel %vm5485, 1, 0
            %v5502 = vsel %vm5486, 1, 0
            %v5503 = vsel %vm5487, 1, 0
            %v5504 = vsel %vm5488, 1, 0
            %v5505 = vsel %vm5489, 1, 0
            %v5506 = vsel %vm5490, 1, 0
            %v5507 = vsel %vm5491, 1, 0
            %v5508 = vsel %vm5492, 1, 0
            %v5509 = vsel %vm5493, 1, 0
            %v5510 = vsel %vm5494, 1, 0
            %v5511 = vsel %vm5495, 1, 0
            %v5512 = vsel %vm5496, 1, 0
            %v5513 = vsel %vm5497, 1, 0
            %v5514 = vsel %vm5498, 1, 0
            %v5515 = vsel %vm5499, 1, 0
            %v5516 = vsel %vm5500, 1, 0
            %vm5517 = vcmp.eq.s32.totalorder %v5501, 1
            %vm5518 = vcmp.eq.s32.totalorder %v5502, 1
            %vm5519 = vcmp.eq.s32.totalorder %v5503, 1
            %vm5520 = vcmp.eq.s32.totalorder %v5504, 1
            %vm5521 = vcmp.eq.s32.totalorder %v5505, 1
            %vm5522 = vcmp.eq.s32.totalorder %v5506, 1
            %vm5523 = vcmp.eq.s32.totalorder %v5507, 1
            %vm5524 = vcmp.eq.s32.totalorder %v5508, 1
            %vm5525 = vcmp.eq.s32.totalorder %v5509, 1
            %vm5526 = vcmp.eq.s32.totalorder %v5510, 1
            %vm5527 = vcmp.eq.s32.totalorder %v5511, 1
            %vm5528 = vcmp.eq.s32.totalorder %v5512, 1
            %vm5529 = vcmp.eq.s32.totalorder %v5513, 1
            %vm5530 = vcmp.eq.s32.totalorder %v5514, 1
            %vm5531 = vcmp.eq.s32.totalorder %v5515, 1
            %vm5532 = vcmp.eq.s32.totalorder %v5516, 1
            %v5533 = vsel %vm5517, %v3003, -3e+38
            %v5534 = vsel %vm5517, %v3004, -3e+38
            %v5535 = vsel %vm5517, %v3005, -3e+38
            %v5536 = vsel %vm5517, %v3006, -3e+38
            %v5537 = vsel %vm5518, %v3007, -3e+38
            %v5538 = vsel %vm5518, %v3008, -3e+38
            %v5539 = vsel %vm5518, %v3009, -3e+38
            %v5540 = vsel %vm5518, %v3010, -3e+38
            %v5541 = vsel %vm5519, %v3011, -3e+38
            %v5542 = vsel %vm5519, %v3012, -3e+38
            %v5543 = vsel %vm5519, %v3013, -3e+38
            %v5544 = vsel %vm5519, %v3014, -3e+38
            %v5545 = vsel %vm5520, %v3015, -3e+38
            %v5546 = vsel %vm5520, %v3016, -3e+38
            %v5547 = vsel %vm5520, %v3017, -3e+38
            %v5548 = vsel %vm5520, %v3018, -3e+38
            %v5549 = vsel %vm5521, %v3019, -3e+38
            %v5550 = vsel %vm5521, %v3020, -3e+38
            %v5551 = vsel %vm5521, %v3021, -3e+38
            %v5552 = vsel %vm5521, %v3022, -3e+38
            %v5553 = vsel %vm5522, %v3023, -3e+38
            %v5554 = vsel %vm5522, %v3024, -3e+38
            %v5555 = vsel %vm5522, %v3025, -3e+38
            %v5556 = vsel %vm5522, %v3026, -3e+38
            %v5557 = vsel %vm5523, %v3027, -3e+38
            %v5558 = vsel %vm5523, %v3028, -3e+38
            %v5559 = vsel %vm5523, %v3029, -3e+38
            %v5560 = vsel %vm5523, %v3030, -3e+38
            %v5561 = vsel %vm5524, %v3031, -3e+38
            %v5562 = vsel %vm5524, %v3032, -3e+38
            %v5563 = vsel %vm5524, %v3033, -3e+38
            %v5564 = vsel %vm5524, %v3034, -3e+38
            %v5565 = vsel %vm5525, %v3035, -3e+38
            %v5566 = vsel %vm5525, %v3036, -3e+38
            %v5567 = vsel %vm5525, %v3037, -3e+38
            %v5568 = vsel %vm5525, %v3038, -3e+38
            %v5569 = vsel %vm5526, %v3039, -3e+38
            %v5570 = vsel %vm5526, %v3040, -3e+38
            %v5571 = vsel %vm5526, %v3041, -3e+38
            %v5572 = vsel %vm5526, %v3042, -3e+38
            %v5573 = vsel %vm5527, %v3043, -3e+38
            %v5574 = vsel %vm5527, %v3044, -3e+38
            %v5575 = vsel %vm5527, %v3045, -3e+38
            %v5576 = vsel %vm5527, %v3046, -3e+38
            %v5577 = vsel %vm5528, %v3047, -3e+38
            %v5578 = vsel %vm5528, %v3048, -3e+38
            %v5579 = vsel %vm5528, %v3049, -3e+38
            %v5580 = vsel %vm5528, %v3050, -3e+38
            %v5581 = vsel %vm5529, %v3051, -3e+38
            %v5582 = vsel %vm5529, %v3052, -3e+38
            %v5583 = vsel %vm5529, %v3053, -3e+38
            %v5584 = vsel %vm5529, %v3054, -3e+38
            %v5585 = vsel %vm5530, %v3055, -3e+38
            %v5586 = vsel %vm5530, %v3056, -3e+38
            %v5587 = vsel %vm5530, %v3057, -3e+38
            %v5588 = vsel %vm5530, %v3058, -3e+38
            %v5589 = vsel %vm5531, %v3059, -3e+38
            %v5590 = vsel %vm5531, %v3060, -3e+38
            %v5591 = vsel %vm5531, %v3061, -3e+38
            %v5592 = vsel %vm5531, %v3062, -3e+38
            %v5593 = vsel %vm5532, %v3063, -3e+38
            %v5594 = vsel %vm5532, %v3064, -3e+38
            %v5595 = vsel %vm5532, %v3065, -3e+38
            %v5596 = vsel %vm5532, %v3066, -3e+38
            %v5597 = vmax.f32 %v5533, %v5537
            %v5598 = vmax.f32 %v5597, %v5541
            %v5599 = vmax.f32 %v5598, %v5545
            %v5600 = vmax.f32 %v5599, %v5549
            %v5601 = vmax.f32 %v5600, %v5553
            %v5602 = vmax.f32 %v5601, %v5557
            %v5603 = vmax.f32 %v5602, %v5561
            %v5604 = vmax.f32 %v5603, %v5565
            %v5605 = vmax.f32 %v5604, %v5569
            %v5606 = vmax.f32 %v5605, %v5573
            %v5607 = vmax.f32 %v5606, %v5577
            %v5608 = vmax.f32 %v5607, %v5581
            %v5609 = vmax.f32 %v5608, %v5585
            %v5610 = vmax.f32 %v5609, %v5589
            %v5611 = vmax.f32 %v5610, %v5593
            %v5612 = vrot.slane %v5611, 4
            %v5613 = vmax.f32 %v5611, %v5612
            %v5614 = vrot.slane %v5613, 2
            %v5615 = vmax.f32 %v5613, %v5614
            %v5616 = vrot.slane %v5615, 1
            %v5617 = vmax.f32 %v5615, %v5616
            %v5618 = vmax.f32 %v5534, %v5538
            %v5619 = vmax.f32 %v5618, %v5542
            %v5620 = vmax.f32 %v5619, %v5546
            %v5621 = vmax.f32 %v5620, %v5550
            %v5622 = vmax.f32 %v5621, %v5554
            %v5623 = vmax.f32 %v5622, %v5558
            %v5624 = vmax.f32 %v5623, %v5562
            %v5625 = vmax.f32 %v5624, %v5566
            %v5626 = vmax.f32 %v5625, %v5570
            %v5627 = vmax.f32 %v5626, %v5574
            %v5628 = vmax.f32 %v5627, %v5578
            %v5629 = vmax.f32 %v5628, %v5582
            %v5630 = vmax.f32 %v5629, %v5586
            %v5631 = vmax.f32 %v5630, %v5590
            %v5632 = vmax.f32 %v5631, %v5594
            %v5633 = vrot.slane %v5632, 4
            %v5634 = vmax.f32 %v5632, %v5633
            %v5635 = vrot.slane %v5634, 2
            %v5636 = vmax.f32 %v5634, %v5635
            %v5637 = vrot.slane %v5636, 1
            %v5638 = vmax.f32 %v5636, %v5637
            %v5639 = vmax.f32 %v5535, %v5539
            %v5640 = vmax.f32 %v5639, %v5543
            %v5641 = vmax.f32 %v5640, %v5547
            %v5642 = vmax.f32 %v5641, %v5551
            %v5643 = vmax.f32 %v5642, %v5555
            %v5644 = vmax.f32 %v5643, %v5559
            %v5645 = vmax.f32 %v5644, %v5563
            %v5646 = vmax.f32 %v5645, %v5567
            %v5647 = vmax.f32 %v5646, %v5571
            %v5648 = vmax.f32 %v5647, %v5575
            %v5649 = vmax.f32 %v5648, %v5579
            %v5650 = vmax.f32 %v5649, %v5583
            %v5651 = vmax.f32 %v5650, %v5587
            %v5652 = vmax.f32 %v5651, %v5591
            %v5653 = vmax.f32 %v5652, %v5595
            %v5654 = vrot.slane %v5653, 4
            %v5655 = vmax.f32 %v5653, %v5654
            %v5656 = vrot.slane %v5655, 2
            %v5657 = vmax.f32 %v5655, %v5656
            %v5658 = vrot.slane %v5657, 1
            %v5659 = vmax.f32 %v5657, %v5658
            %v5660 = vmax.f32 %v5536, %v5540
            %v5661 = vmax.f32 %v5660, %v5544
            %v5662 = vmax.f32 %v5661, %v5548
            %v5663 = vmax.f32 %v5662, %v5552
            %v5664 = vmax.f32 %v5663, %v5556
            %v5665 = vmax.f32 %v5664, %v5560
            %v5666 = vmax.f32 %v5665, %v5564
            %v5667 = vmax.f32 %v5666, %v5568
            %v5668 = vmax.f32 %v5667, %v5572
            %v5669 = vmax.f32 %v5668, %v5576
            %v5670 = vmax.f32 %v5669, %v5580
            %v5671 = vmax.f32 %v5670, %v5584
            %v5672 = vmax.f32 %v5671, %v5588
            %v5673 = vmax.f32 %v5672, %v5592
            %v5674 = vmax.f32 %v5673, %v5596
            %v5675 = vrot.slane %v5674, 4
            %v5676 = vmax.f32 %v5674, %v5675
            %v5677 = vrot.slane %v5676, 2
            %v5678 = vmax.f32 %v5676, %v5677
            %v5679 = vrot.slane %v5678, 1
            %v5680 = vmax.f32 %v5678, %v5679
            %v5681 = vlaneseq
            %v5682 = vshrl.u32 %v5681, 7
            %v5683 = vsub.s32 4, %v5682
            %v5684 = vrot.slane %v4628, %v5683
            %5686 = vbcast.lane.b32.xlu0 %v5684, 256
            %v5687 = vpop.permute.xlu0 %5686
            %s5689 = sor.u32 256, 8
            %5690 = vbcast.lane.b32.xlu0 %v5684, %s5689
            %v5691 = vpop.permute.xlu0 %5690
            %s5693 = sor.u32 256, 16
            %5694 = vbcast.lane.b32.xlu0 %v5684, %s5693
            %v5695 = vpop.permute.xlu0 %5694
            %s5697 = sor.u32 256, 24
            %5698 = vbcast.lane.b32.xlu0 %v5684, %s5697
            %v5699 = vpop.permute.xlu0 %5698
            %s5701 = sor.u32 256, 32
            %5702 = vbcast.lane.b32.xlu0 %v5684, %s5701
            %v5703 = vpop.permute.xlu0 %5702
            %s5705 = sor.u32 256, 40
            %5706 = vbcast.lane.b32.xlu0 %v5684, %s5705
            %v5707 = vpop.permute.xlu0 %5706
            %s5709 = sor.u32 256, 48
            %5710 = vbcast.lane.b32.xlu0 %v5684, %s5709
            %v5711 = vpop.permute.xlu0 %5710
            %s5713 = sor.u32 256, 56
            %5714 = vbcast.lane.b32.xlu0 %v5684, %s5713
            %v5715 = vpop.permute.xlu0 %5714
            %s5717 = sor.u32 256, 64
            %5718 = vbcast.lane.b32.xlu0 %v5684, %s5717
            %v5719 = vpop.permute.xlu0 %5718
            %s5721 = sor.u32 256, 72
            %5722 = vbcast.lane.b32.xlu0 %v5684, %s5721
            %v5723 = vpop.permute.xlu0 %5722
            %s5725 = sor.u32 256, 80
            %5726 = vbcast.lane.b32.xlu0 %v5684, %s5725
            %v5727 = vpop.permute.xlu0 %5726
            %s5729 = sor.u32 256, 88
            %5730 = vbcast.lane.b32.xlu0 %v5684, %s5729
            %v5731 = vpop.permute.xlu0 %5730
            %s5733 = sor.u32 256, 96
            %5734 = vbcast.lane.b32.xlu0 %v5684, %s5733
            %v5735 = vpop.permute.xlu0 %5734
            %s5737 = sor.u32 256, 104
            %5738 = vbcast.lane.b32.xlu0 %v5684, %s5737
            %v5739 = vpop.permute.xlu0 %5738
            %s5741 = sor.u32 256, 112
            %5742 = vbcast.lane.b32.xlu0 %v5684, %s5741
            %v5743 = vpop.permute.xlu0 %5742
            %s5745 = sor.u32 256, 120
            %5746 = vbcast.lane.b32.xlu0 %v5684, %s5745
            %v5747 = vpop.permute.xlu0 %5746
            %vm5748 = vcmp.gt.f32.partialorder %v5687, 0.0
            %vm5749 = vcmp.gt.f32.partialorder %v5691, 0.0
            %vm5750 = vcmp.gt.f32.partialorder %v5695, 0.0
            %vm5751 = vcmp.gt.f32.partialorder %v5699, 0.0
            %vm5752 = vcmp.gt.f32.partialorder %v5703, 0.0
            %vm5753 = vcmp.gt.f32.partialorder %v5707, 0.0
            %vm5754 = vcmp.gt.f32.partialorder %v5711, 0.0
            %vm5755 = vcmp.gt.f32.partialorder %v5715, 0.0
            %vm5756 = vcmp.gt.f32.partialorder %v5719, 0.0
            %vm5757 = vcmp.gt.f32.partialorder %v5723, 0.0
            %vm5758 = vcmp.gt.f32.partialorder %v5727, 0.0
            %vm5759 = vcmp.gt.f32.partialorder %v5731, 0.0
            %vm5760 = vcmp.gt.f32.partialorder %v5735, 0.0
            %vm5761 = vcmp.gt.f32.partialorder %v5739, 0.0
            %vm5762 = vcmp.gt.f32.partialorder %v5743, 0.0
            %vm5763 = vcmp.gt.f32.partialorder %v5747, 0.0
            %v5764 = vsel %vm5748, 1, 0
            %v5765 = vsel %vm5749, 1, 0
            %v5766 = vsel %vm5750, 1, 0
            %v5767 = vsel %vm5751, 1, 0
            %v5768 = vsel %vm5752, 1, 0
            %v5769 = vsel %vm5753, 1, 0
            %v5770 = vsel %vm5754, 1, 0
            %v5771 = vsel %vm5755, 1, 0
            %v5772 = vsel %vm5756, 1, 0
            %v5773 = vsel %vm5757, 1, 0
            %v5774 = vsel %vm5758, 1, 0
            %v5775 = vsel %vm5759, 1, 0
            %v5776 = vsel %vm5760, 1, 0
            %v5777 = vsel %vm5761, 1, 0
            %v5778 = vsel %vm5762, 1, 0
            %v5779 = vsel %vm5763, 1, 0
            %vm5780 = vcmp.eq.s32.totalorder %v5764, 1
            %vm5781 = vcmp.eq.s32.totalorder %v5765, 1
            %vm5782 = vcmp.eq.s32.totalorder %v5766, 1
            %vm5783 = vcmp.eq.s32.totalorder %v5767, 1
            %vm5784 = vcmp.eq.s32.totalorder %v5768, 1
            %vm5785 = vcmp.eq.s32.totalorder %v5769, 1
            %vm5786 = vcmp.eq.s32.totalorder %v5770, 1
            %vm5787 = vcmp.eq.s32.totalorder %v5771, 1
            %vm5788 = vcmp.eq.s32.totalorder %v5772, 1
            %vm5789 = vcmp.eq.s32.totalorder %v5773, 1
            %vm5790 = vcmp.eq.s32.totalorder %v5774, 1
            %vm5791 = vcmp.eq.s32.totalorder %v5775, 1
            %vm5792 = vcmp.eq.s32.totalorder %v5776, 1
            %vm5793 = vcmp.eq.s32.totalorder %v5777, 1
            %vm5794 = vcmp.eq.s32.totalorder %v5778, 1
            %vm5795 = vcmp.eq.s32.totalorder %v5779, 1
            %v5796 = vsel %vm5780, %v3003, -3e+38
            %v5797 = vsel %vm5780, %v3004, -3e+38
            %v5798 = vsel %vm5780, %v3005, -3e+38
            %v5799 = vsel %vm5780, %v3006, -3e+38
            %v5800 = vsel %vm5781, %v3007, -3e+38
            %v5801 = vsel %vm5781, %v3008, -3e+38
            %v5802 = vsel %vm5781, %v3009, -3e+38
            %v5803 = vsel %vm5781, %v3010, -3e+38
            %v5804 = vsel %vm5782, %v3011, -3e+38
            %v5805 = vsel %vm5782, %v3012, -3e+38
            %v5806 = vsel %vm5782, %v3013, -3e+38
            %v5807 = vsel %vm5782, %v3014, -3e+38
            %v5808 = vsel %vm5783, %v3015, -3e+38
            %v5809 = vsel %vm5783, %v3016, -3e+38
            %v5810 = vsel %vm5783, %v3017, -3e+38
            %v5811 = vsel %vm5783, %v3018, -3e+38
            %v5812 = vsel %vm5784, %v3019, -3e+38
            %v5813 = vsel %vm5784, %v3020, -3e+38
            %v5814 = vsel %vm5784, %v3021, -3e+38
            %v5815 = vsel %vm5784, %v3022, -3e+38
            %v5816 = vsel %vm5785, %v3023, -3e+38
            %v5817 = vsel %vm5785, %v3024, -3e+38
            %v5818 = vsel %vm5785, %v3025, -3e+38
            %v5819 = vsel %vm5785, %v3026, -3e+38
            %v5820 = vsel %vm5786, %v3027, -3e+38
            %v5821 = vsel %vm5786, %v3028, -3e+38
            %v5822 = vsel %vm5786, %v3029, -3e+38
            %v5823 = vsel %vm5786, %v3030, -3e+38
            %v5824 = vsel %vm5787, %v3031, -3e+38
            %v5825 = vsel %vm5787, %v3032, -3e+38
            %v5826 = vsel %vm5787, %v3033, -3e+38
            %v5827 = vsel %vm5787, %v3034, -3e+38
            %v5828 = vsel %vm5788, %v3035, -3e+38
            %v5829 = vsel %vm5788, %v3036, -3e+38
            %v5830 = vsel %vm5788, %v3037, -3e+38
            %v5831 = vsel %vm5788, %v3038, -3e+38
            %v5832 = vsel %vm5789, %v3039, -3e+38
            %v5833 = vsel %vm5789, %v3040, -3e+38
            %v5834 = vsel %vm5789, %v3041, -3e+38
            %v5835 = vsel %vm5789, %v3042, -3e+38
            %v5836 = vsel %vm5790, %v3043, -3e+38
            %v5837 = vsel %vm5790, %v3044, -3e+38
            %v5838 = vsel %vm5790, %v3045, -3e+38
            %v5839 = vsel %vm5790, %v3046, -3e+38
            %v5840 = vsel %vm5791, %v3047, -3e+38
            %v5841 = vsel %vm5791, %v3048, -3e+38
            %v5842 = vsel %vm5791, %v3049, -3e+38
            %v5843 = vsel %vm5791, %v3050, -3e+38
            %v5844 = vsel %vm5792, %v3051, -3e+38
            %v5845 = vsel %vm5792, %v3052, -3e+38
            %v5846 = vsel %vm5792, %v3053, -3e+38
            %v5847 = vsel %vm5792, %v3054, -3e+38
            %v5848 = vsel %vm5793, %v3055, -3e+38
            %v5849 = vsel %vm5793, %v3056, -3e+38
            %v5850 = vsel %vm5793, %v3057, -3e+38
            %v5851 = vsel %vm5793, %v3058, -3e+38
            %v5852 = vsel %vm5794, %v3059, -3e+38
            %v5853 = vsel %vm5794, %v3060, -3e+38
            %v5854 = vsel %vm5794, %v3061, -3e+38
            %v5855 = vsel %vm5794, %v3062, -3e+38
            %v5856 = vsel %vm5795, %v3063, -3e+38
            %v5857 = vsel %vm5795, %v3064, -3e+38
            %v5858 = vsel %vm5795, %v3065, -3e+38
            %v5859 = vsel %vm5795, %v3066, -3e+38
            %v5860 = vmax.f32 %v5796, %v5800
            %v5861 = vmax.f32 %v5860, %v5804
            %v5862 = vmax.f32 %v5861, %v5808
            %v5863 = vmax.f32 %v5862, %v5812
            %v5864 = vmax.f32 %v5863, %v5816
            %v5865 = vmax.f32 %v5864, %v5820
            %v5866 = vmax.f32 %v5865, %v5824
            %v5867 = vmax.f32 %v5866, %v5828
            %v5868 = vmax.f32 %v5867, %v5832
            %v5869 = vmax.f32 %v5868, %v5836
            %v5870 = vmax.f32 %v5869, %v5840
            %v5871 = vmax.f32 %v5870, %v5844
            %v5872 = vmax.f32 %v5871, %v5848
            %v5873 = vmax.f32 %v5872, %v5852
            %v5874 = vmax.f32 %v5873, %v5856
            %v5875 = vrot.slane %v5874, 4
            %v5876 = vmax.f32 %v5874, %v5875
            %v5877 = vrot.slane %v5876, 2
            %v5878 = vmax.f32 %v5876, %v5877
            %v5879 = vrot.slane %v5878, 1
            %v5880 = vmax.f32 %v5878, %v5879
            %v5881 = vmax.f32 %v5797, %v5801
            %v5882 = vmax.f32 %v5881, %v5805
            %v5883 = vmax.f32 %v5882, %v5809
            %v5884 = vmax.f32 %v5883, %v5813
            %v5885 = vmax.f32 %v5884, %v5817
            %v5886 = vmax.f32 %v5885, %v5821
            %v5887 = vmax.f32 %v5886, %v5825
            %v5888 = vmax.f32 %v5887, %v5829
            %v5889 = vmax.f32 %v5888, %v5833
            %v5890 = vmax.f32 %v5889, %v5837
            %v5891 = vmax.f32 %v5890, %v5841
            %v5892 = vmax.f32 %v5891, %v5845
            %v5893 = vmax.f32 %v5892, %v5849
            %v5894 = vmax.f32 %v5893, %v5853
            %v5895 = vmax.f32 %v5894, %v5857
            %v5896 = vrot.slane %v5895, 4
            %v5897 = vmax.f32 %v5895, %v5896
            %v5898 = vrot.slane %v5897, 2
            %v5899 = vmax.f32 %v5897, %v5898
            %v5900 = vrot.slane %v5899, 1
            %v5901 = vmax.f32 %v5899, %v5900
            %v5902 = vmax.f32 %v5798, %v5802
            %v5903 = vmax.f32 %v5902, %v5806
            %v5904 = vmax.f32 %v5903, %v5810
            %v5905 = vmax.f32 %v5904, %v5814
            %v5906 = vmax.f32 %v5905, %v5818
            %v5907 = vmax.f32 %v5906, %v5822
            %v5908 = vmax.f32 %v5907, %v5826
            %v5909 = vmax.f32 %v5908, %v5830
            %v5910 = vmax.f32 %v5909, %v5834
            %v5911 = vmax.f32 %v5910, %v5838
            %v5912 = vmax.f32 %v5911, %v5842
            %v5913 = vmax.f32 %v5912, %v5846
            %v5914 = vmax.f32 %v5913, %v5850
            %v5915 = vmax.f32 %v5914, %v5854
            %v5916 = vmax.f32 %v5915, %v5858
            %v5917 = vrot.slane %v5916, 4
            %v5918 = vmax.f32 %v5916, %v5917
            %v5919 = vrot.slane %v5918, 2
            %v5920 = vmax.f32 %v5918, %v5919
            %v5921 = vrot.slane %v5920, 1
            %v5922 = vmax.f32 %v5920, %v5921
            %v5923 = vmax.f32 %v5799, %v5803
            %v5924 = vmax.f32 %v5923, %v5807
            %v5925 = vmax.f32 %v5924, %v5811
            %v5926 = vmax.f32 %v5925, %v5815
            %v5927 = vmax.f32 %v5926, %v5819
            %v5928 = vmax.f32 %v5927, %v5823
            %v5929 = vmax.f32 %v5928, %v5827
            %v5930 = vmax.f32 %v5929, %v5831
            %v5931 = vmax.f32 %v5930, %v5835
            %v5932 = vmax.f32 %v5931, %v5839
            %v5933 = vmax.f32 %v5932, %v5843
            %v5934 = vmax.f32 %v5933, %v5847
            %v5935 = vmax.f32 %v5934, %v5851
            %v5936 = vmax.f32 %v5935, %v5855
            %v5937 = vmax.f32 %v5936, %v5859
            %v5938 = vrot.slane %v5937, 4
            %v5939 = vmax.f32 %v5937, %v5938
            %v5940 = vrot.slane %v5939, 2
            %v5941 = vmax.f32 %v5939, %v5940
            %v5942 = vrot.slane %v5941, 1
            %v5943 = vmax.f32 %v5941, %v5942
            %v5944 = vlaneseq
            %v5945 = vshrl.u32 %v5944, 7
            %v5946 = vsub.s32 5, %v5945
            %v5947 = vrot.slane %v4628, %v5946
            %5949 = vbcast.lane.b32.xlu0 %v5947, 256
            %v5950 = vpop.permute.xlu0 %5949
            %s5952 = sor.u32 256, 8
            %5953 = vbcast.lane.b32.xlu0 %v5947, %s5952
            %v5954 = vpop.permute.xlu0 %5953
            %s5956 = sor.u32 256, 16
            %5957 = vbcast.lane.b32.xlu0 %v5947, %s5956
            %v5958 = vpop.permute.xlu0 %5957
            %s5960 = sor.u32 256, 24
            %5961 = vbcast.lane.b32.xlu0 %v5947, %s5960
            %v5962 = vpop.permute.xlu0 %5961
            %s5964 = sor.u32 256, 32
            %5965 = vbcast.lane.b32.xlu0 %v5947, %s5964
            %v5966 = vpop.permute.xlu0 %5965
            %s5968 = sor.u32 256, 40
            %5969 = vbcast.lane.b32.xlu0 %v5947, %s5968
            %v5970 = vpop.permute.xlu0 %5969
            %s5972 = sor.u32 256, 48
            %5973 = vbcast.lane.b32.xlu0 %v5947, %s5972
            %v5974 = vpop.permute.xlu0 %5973
            %s5976 = sor.u32 256, 56
            %5977 = vbcast.lane.b32.xlu0 %v5947, %s5976
            %v5978 = vpop.permute.xlu0 %5977
            %s5980 = sor.u32 256, 64
            %5981 = vbcast.lane.b32.xlu0 %v5947, %s5980
            %v5982 = vpop.permute.xlu0 %5981
            %s5984 = sor.u32 256, 72
            %5985 = vbcast.lane.b32.xlu0 %v5947, %s5984
            %v5986 = vpop.permute.xlu0 %5985
            %s5988 = sor.u32 256, 80
            %5989 = vbcast.lane.b32.xlu0 %v5947, %s5988
            %v5990 = vpop.permute.xlu0 %5989
            %s5992 = sor.u32 256, 88
            %5993 = vbcast.lane.b32.xlu0 %v5947, %s5992
            %v5994 = vpop.permute.xlu0 %5993
            %s5996 = sor.u32 256, 96
            %5997 = vbcast.lane.b32.xlu0 %v5947, %s5996
            %v5998 = vpop.permute.xlu0 %5997
            %s6000 = sor.u32 256, 104
            %6001 = vbcast.lane.b32.xlu0 %v5947, %s6000
            %v6002 = vpop.permute.xlu0 %6001
            %s6004 = sor.u32 256, 112
            %6005 = vbcast.lane.b32.xlu0 %v5947, %s6004
            %v6006 = vpop.permute.xlu0 %6005
            %s6008 = sor.u32 256, 120
            %6009 = vbcast.lane.b32.xlu0 %v5947, %s6008
            %v6010 = vpop.permute.xlu0 %6009
            %vm6011 = vcmp.gt.f32.partialorder %v5950, 0.0
            %vm6012 = vcmp.gt.f32.partialorder %v5954, 0.0
            %vm6013 = vcmp.gt.f32.partialorder %v5958, 0.0
            %vm6014 = vcmp.gt.f32.partialorder %v5962, 0.0
            %vm6015 = vcmp.gt.f32.partialorder %v5966, 0.0
            %vm6016 = vcmp.gt.f32.partialorder %v5970, 0.0
            %vm6017 = vcmp.gt.f32.partialorder %v5974, 0.0
            %vm6018 = vcmp.gt.f32.partialorder %v5978, 0.0
            %vm6019 = vcmp.gt.f32.partialorder %v5982, 0.0
            %vm6020 = vcmp.gt.f32.partialorder %v5986, 0.0
            %vm6021 = vcmp.gt.f32.partialorder %v5990, 0.0
            %vm6022 = vcmp.gt.f32.partialorder %v5994, 0.0
            %vm6023 = vcmp.gt.f32.partialorder %v5998, 0.0
            %vm6024 = vcmp.gt.f32.partialorder %v6002, 0.0
            %vm6025 = vcmp.gt.f32.partialorder %v6006, 0.0
            %vm6026 = vcmp.gt.f32.partialorder %v6010, 0.0
            %v6027 = vsel %vm6011, 1, 0
            %v6028 = vsel %vm6012, 1, 0
            %v6029 = vsel %vm6013, 1, 0
            %v6030 = vsel %vm6014, 1, 0
            %v6031 = vsel %vm6015, 1, 0
            %v6032 = vsel %vm6016, 1, 0
            %v6033 = vsel %vm6017, 1, 0
            %v6034 = vsel %vm6018, 1, 0
            %v6035 = vsel %vm6019, 1, 0
            %v6036 = vsel %vm6020, 1, 0
            %v6037 = vsel %vm6021, 1, 0
            %v6038 = vsel %vm6022, 1, 0
            %v6039 = vsel %vm6023, 1, 0
            %v6040 = vsel %vm6024, 1, 0
            %v6041 = vsel %vm6025, 1, 0
            %v6042 = vsel %vm6026, 1, 0
            %vm6043 = vcmp.eq.s32.totalorder %v6027, 1
            %vm6044 = vcmp.eq.s32.totalorder %v6028, 1
            %vm6045 = vcmp.eq.s32.totalorder %v6029, 1
            %vm6046 = vcmp.eq.s32.totalorder %v6030, 1
            %vm6047 = vcmp.eq.s32.totalorder %v6031, 1
            %vm6048 = vcmp.eq.s32.totalorder %v6032, 1
            %vm6049 = vcmp.eq.s32.totalorder %v6033, 1
            %vm6050 = vcmp.eq.s32.totalorder %v6034, 1
            %vm6051 = vcmp.eq.s32.totalorder %v6035, 1
            %vm6052 = vcmp.eq.s32.totalorder %v6036, 1
            %vm6053 = vcmp.eq.s32.totalorder %v6037, 1
            %vm6054 = vcmp.eq.s32.totalorder %v6038, 1
            %vm6055 = vcmp.eq.s32.totalorder %v6039, 1
            %vm6056 = vcmp.eq.s32.totalorder %v6040, 1
            %vm6057 = vcmp.eq.s32.totalorder %v6041, 1
            %vm6058 = vcmp.eq.s32.totalorder %v6042, 1
            %v6059 = vsel %vm6043, %v3003, -3e+38
            %v6060 = vsel %vm6043, %v3004, -3e+38
            %v6061 = vsel %vm6043, %v3005, -3e+38
            %v6062 = vsel %vm6043, %v3006, -3e+38
            %v6063 = vsel %vm6044, %v3007, -3e+38
            %v6064 = vsel %vm6044, %v3008, -3e+38
            %v6065 = vsel %vm6044, %v3009, -3e+38
            %v6066 = vsel %vm6044, %v3010, -3e+38
            %v6067 = vsel %vm6045, %v3011, -3e+38
            %v6068 = vsel %vm6045, %v3012, -3e+38
            %v6069 = vsel %vm6045, %v3013, -3e+38
            %v6070 = vsel %vm6045, %v3014, -3e+38
            %v6071 = vsel %vm6046, %v3015, -3e+38
            %v6072 = vsel %vm6046, %v3016, -3e+38
            %v6073 = vsel %vm6046, %v3017, -3e+38
            %v6074 = vsel %vm6046, %v3018, -3e+38
            %v6075 = vsel %vm6047, %v3019, -3e+38
            %v6076 = vsel %vm6047, %v3020, -3e+38
            %v6077 = vsel %vm6047, %v3021, -3e+38
            %v6078 = vsel %vm6047, %v3022, -3e+38
            %v6079 = vsel %vm6048, %v3023, -3e+38
            %v6080 = vsel %vm6048, %v3024, -3e+38
            %v6081 = vsel %vm6048, %v3025, -3e+38
            %v6082 = vsel %vm6048, %v3026, -3e+38
            %v6083 = vsel %vm6049, %v3027, -3e+38
            %v6084 = vsel %vm6049, %v3028, -3e+38
            %v6085 = vsel %vm6049, %v3029, -3e+38
            %v6086 = vsel %vm6049, %v3030, -3e+38
            %v6087 = vsel %vm6050, %v3031, -3e+38
            %v6088 = vsel %vm6050, %v3032, -3e+38
            %v6089 = vsel %vm6050, %v3033, -3e+38
            %v6090 = vsel %vm6050, %v3034, -3e+38
            %v6091 = vsel %vm6051, %v3035, -3e+38
            %v6092 = vsel %vm6051, %v3036, -3e+38
            %v6093 = vsel %vm6051, %v3037, -3e+38
            %v6094 = vsel %vm6051, %v3038, -3e+38
            %v6095 = vsel %vm6052, %v3039, -3e+38
            %v6096 = vsel %vm6052, %v3040, -3e+38
            %v6097 = vsel %vm6052, %v3041, -3e+38
            %v6098 = vsel %vm6052, %v3042, -3e+38
            %v6099 = vsel %vm6053, %v3043, -3e+38
            %v6100 = vsel %vm6053, %v3044, -3e+38
            %v6101 = vsel %vm6053, %v3045, -3e+38
            %v6102 = vsel %vm6053, %v3046, -3e+38
            %v6103 = vsel %vm6054, %v3047, -3e+38
            %v6104 = vsel %vm6054, %v3048, -3e+38
            %v6105 = vsel %vm6054, %v3049, -3e+38
            %v6106 = vsel %vm6054, %v3050, -3e+38
            %v6107 = vsel %vm6055, %v3051, -3e+38
            %v6108 = vsel %vm6055, %v3052, -3e+38
            %v6109 = vsel %vm6055, %v3053, -3e+38
            %v6110 = vsel %vm6055, %v3054, -3e+38
            %v6111 = vsel %vm6056, %v3055, -3e+38
            %v6112 = vsel %vm6056, %v3056, -3e+38
            %v6113 = vsel %vm6056, %v3057, -3e+38
            %v6114 = vsel %vm6056, %v3058, -3e+38
            %v6115 = vsel %vm6057, %v3059, -3e+38
            %v6116 = vsel %vm6057, %v3060, -3e+38
            %v6117 = vsel %vm6057, %v3061, -3e+38
            %v6118 = vsel %vm6057, %v3062, -3e+38
            %v6119 = vsel %vm6058, %v3063, -3e+38
            %v6120 = vsel %vm6058, %v3064, -3e+38
            %v6121 = vsel %vm6058, %v3065, -3e+38
            %v6122 = vsel %vm6058, %v3066, -3e+38
            %v6123 = vmax.f32 %v6059, %v6063
            %v6124 = vmax.f32 %v6123, %v6067
            %v6125 = vmax.f32 %v6124, %v6071
            %v6126 = vmax.f32 %v6125, %v6075
            %v6127 = vmax.f32 %v6126, %v6079
            %v6128 = vmax.f32 %v6127, %v6083
            %v6129 = vmax.f32 %v6128, %v6087
            %v6130 = vmax.f32 %v6129, %v6091
            %v6131 = vmax.f32 %v6130, %v6095
            %v6132 = vmax.f32 %v6131, %v6099
            %v6133 = vmax.f32 %v6132, %v6103
            %v6134 = vmax.f32 %v6133, %v6107
            %v6135 = vmax.f32 %v6134, %v6111
            %v6136 = vmax.f32 %v6135, %v6115
            %v6137 = vmax.f32 %v6136, %v6119
            %v6138 = vrot.slane %v6137, 4
            %v6139 = vmax.f32 %v6137, %v6138
            %v6140 = vrot.slane %v6139, 2
            %v6141 = vmax.f32 %v6139, %v6140
            %v6142 = vrot.slane %v6141, 1
            %v6143 = vmax.f32 %v6141, %v6142
            %v6144 = vmax.f32 %v6060, %v6064
            %v6145 = vmax.f32 %v6144, %v6068
            %v6146 = vmax.f32 %v6145, %v6072
            %v6147 = vmax.f32 %v6146, %v6076
            %v6148 = vmax.f32 %v6147, %v6080
            %v6149 = vmax.f32 %v6148, %v6084
            %v6150 = vmax.f32 %v6149, %v6088
            %v6151 = vmax.f32 %v6150, %v6092
            %v6152 = vmax.f32 %v6151, %v6096
            %v6153 = vmax.f32 %v6152, %v6100
            %v6154 = vmax.f32 %v6153, %v6104
            %v6155 = vmax.f32 %v6154, %v6108
            %v6156 = vmax.f32 %v6155, %v6112
            %v6157 = vmax.f32 %v6156, %v6116
            %v6158 = vmax.f32 %v6157, %v6120
            %v6159 = vrot.slane %v6158, 4
            %v6160 = vmax.f32 %v6158, %v6159
            %v6161 = vrot.slane %v6160, 2
            %v6162 = vmax.f32 %v6160, %v6161
            %v6163 = vrot.slane %v6162, 1
            %v6164 = vmax.f32 %v6162, %v6163
            %v6165 = vmax.f32 %v6061, %v6065
            %v6166 = vmax.f32 %v6165, %v6069
            %v6167 = vmax.f32 %v6166, %v6073
            %v6168 = vmax.f32 %v6167, %v6077
            %v6169 = vmax.f32 %v6168, %v6081
            %v6170 = vmax.f32 %v6169, %v6085
            %v6171 = vmax.f32 %v6170, %v6089
            %v6172 = vmax.f32 %v6171, %v6093
            %v6173 = vmax.f32 %v6172, %v6097
            %v6174 = vmax.f32 %v6173, %v6101
            %v6175 = vmax.f32 %v6174, %v6105
            %v6176 = vmax.f32 %v6175, %v6109
            %v6177 = vmax.f32 %v6176, %v6113
            %v6178 = vmax.f32 %v6177, %v6117
            %v6179 = vmax.f32 %v6178, %v6121
            %v6180 = vrot.slane %v6179, 4
            %v6181 = vmax.f32 %v6179, %v6180
            %v6182 = vrot.slane %v6181, 2
            %v6183 = vmax.f32 %v6181, %v6182
            %v6184 = vrot.slane %v6183, 1
            %v6185 = vmax.f32 %v6183, %v6184
            %v6186 = vmax.f32 %v6062, %v6066
            %v6187 = vmax.f32 %v6186, %v6070
            %v6188 = vmax.f32 %v6187, %v6074
            %v6189 = vmax.f32 %v6188, %v6078
            %v6190 = vmax.f32 %v6189, %v6082
            %v6191 = vmax.f32 %v6190, %v6086
            %v6192 = vmax.f32 %v6191, %v6090
            %v6193 = vmax.f32 %v6192, %v6094
            %v6194 = vmax.f32 %v6193, %v6098
            %v6195 = vmax.f32 %v6194, %v6102
            %v6196 = vmax.f32 %v6195, %v6106
            %v6197 = vmax.f32 %v6196, %v6110
            %v6198 = vmax.f32 %v6197, %v6114
            %v6199 = vmax.f32 %v6198, %v6118
            %v6200 = vmax.f32 %v6199, %v6122
            %v6201 = vrot.slane %v6200, 4
            %v6202 = vmax.f32 %v6200, %v6201
            %v6203 = vrot.slane %v6202, 2
            %v6204 = vmax.f32 %v6202, %v6203
            %v6205 = vrot.slane %v6204, 1
            %v6206 = vmax.f32 %v6204, %v6205
            %v6207 = vlaneseq
            %v6208 = vshrl.u32 %v6207, 7
            %v6209 = vsub.s32 6, %v6208
            %v6210 = vrot.slane %v4628, %v6209
            %6212 = vbcast.lane.b32.xlu0 %v6210, 256
            %v6213 = vpop.permute.xlu0 %6212
            %s6215 = sor.u32 256, 8
            %6216 = vbcast.lane.b32.xlu0 %v6210, %s6215
            %v6217 = vpop.permute.xlu0 %6216
            %s6219 = sor.u32 256, 16
            %6220 = vbcast.lane.b32.xlu0 %v6210, %s6219
            %v6221 = vpop.permute.xlu0 %6220
            %s6223 = sor.u32 256, 24
            %6224 = vbcast.lane.b32.xlu0 %v6210, %s6223
            %v6225 = vpop.permute.xlu0 %6224
            %s6227 = sor.u32 256, 32
            %6228 = vbcast.lane.b32.xlu0 %v6210, %s6227
            %v6229 = vpop.permute.xlu0 %6228
            %s6231 = sor.u32 256, 40
            %6232 = vbcast.lane.b32.xlu0 %v6210, %s6231
            %v6233 = vpop.permute.xlu0 %6232
            %s6235 = sor.u32 256, 48
            %6236 = vbcast.lane.b32.xlu0 %v6210, %s6235
            %v6237 = vpop.permute.xlu0 %6236
            %s6239 = sor.u32 256, 56
            %6240 = vbcast.lane.b32.xlu0 %v6210, %s6239
            %v6241 = vpop.permute.xlu0 %6240
            %s6243 = sor.u32 256, 64
            %6244 = vbcast.lane.b32.xlu0 %v6210, %s6243
            %v6245 = vpop.permute.xlu0 %6244
            %s6247 = sor.u32 256, 72
            %6248 = vbcast.lane.b32.xlu0 %v6210, %s6247
            %v6249 = vpop.permute.xlu0 %6248
            %s6251 = sor.u32 256, 80
            %6252 = vbcast.lane.b32.xlu0 %v6210, %s6251
            %v6253 = vpop.permute.xlu0 %6252
            %s6255 = sor.u32 256, 88
            %6256 = vbcast.lane.b32.xlu0 %v6210, %s6255
            %v6257 = vpop.permute.xlu0 %6256
            %s6259 = sor.u32 256, 96
            %6260 = vbcast.lane.b32.xlu0 %v6210, %s6259
            %v6261 = vpop.permute.xlu0 %6260
            %s6263 = sor.u32 256, 104
            %6264 = vbcast.lane.b32.xlu0 %v6210, %s6263
            %v6265 = vpop.permute.xlu0 %6264
            %s6267 = sor.u32 256, 112
            %6268 = vbcast.lane.b32.xlu0 %v6210, %s6267
            %v6269 = vpop.permute.xlu0 %6268
            %s6271 = sor.u32 256, 120
            %6272 = vbcast.lane.b32.xlu0 %v6210, %s6271
            %v6273 = vpop.permute.xlu0 %6272
            %vm6274 = vcmp.gt.f32.partialorder %v6213, 0.0
            %vm6275 = vcmp.gt.f32.partialorder %v6217, 0.0
            %vm6276 = vcmp.gt.f32.partialorder %v6221, 0.0
            %vm6277 = vcmp.gt.f32.partialorder %v6225, 0.0
            %vm6278 = vcmp.gt.f32.partialorder %v6229, 0.0
            %vm6279 = vcmp.gt.f32.partialorder %v6233, 0.0
            %vm6280 = vcmp.gt.f32.partialorder %v6237, 0.0
            %vm6281 = vcmp.gt.f32.partialorder %v6241, 0.0
            %vm6282 = vcmp.gt.f32.partialorder %v6245, 0.0
            %vm6283 = vcmp.gt.f32.partialorder %v6249, 0.0
            %vm6284 = vcmp.gt.f32.partialorder %v6253, 0.0
            %vm6285 = vcmp.gt.f32.partialorder %v6257, 0.0
            %vm6286 = vcmp.gt.f32.partialorder %v6261, 0.0
            %vm6287 = vcmp.gt.f32.partialorder %v6265, 0.0
            %vm6288 = vcmp.gt.f32.partialorder %v6269, 0.0
            %vm6289 = vcmp.gt.f32.partialorder %v6273, 0.0
            %v6290 = vsel %vm6274, 1, 0
            %v6291 = vsel %vm6275, 1, 0
            %v6292 = vsel %vm6276, 1, 0
            %v6293 = vsel %vm6277, 1, 0
            %v6294 = vsel %vm6278, 1, 0
            %v6295 = vsel %vm6279, 1, 0
            %v6296 = vsel %vm6280, 1, 0
            %v6297 = vsel %vm6281, 1, 0
            %v6298 = vsel %vm6282, 1, 0
            %v6299 = vsel %vm6283, 1, 0
            %v6300 = vsel %vm6284, 1, 0
            %v6301 = vsel %vm6285, 1, 0
            %v6302 = vsel %vm6286, 1, 0
            %v6303 = vsel %vm6287, 1, 0
            %v6304 = vsel %vm6288, 1, 0
            %v6305 = vsel %vm6289, 1, 0
            %vm6306 = vcmp.eq.s32.totalorder %v6290, 1
            %vm6307 = vcmp.eq.s32.totalorder %v6291, 1
            %vm6308 = vcmp.eq.s32.totalorder %v6292, 1
            %vm6309 = vcmp.eq.s32.totalorder %v6293, 1
            %vm6310 = vcmp.eq.s32.totalorder %v6294, 1
            %vm6311 = vcmp.eq.s32.totalorder %v6295, 1
            %vm6312 = vcmp.eq.s32.totalorder %v6296, 1
            %vm6313 = vcmp.eq.s32.totalorder %v6297, 1
            %vm6314 = vcmp.eq.s32.totalorder %v6298, 1
            %vm6315 = vcmp.eq.s32.totalorder %v6299, 1
            %vm6316 = vcmp.eq.s32.totalorder %v6300, 1
            %vm6317 = vcmp.eq.s32.totalorder %v6301, 1
            %vm6318 = vcmp.eq.s32.totalorder %v6302, 1
            %vm6319 = vcmp.eq.s32.totalorder %v6303, 1
            %vm6320 = vcmp.eq.s32.totalorder %v6304, 1
            %vm6321 = vcmp.eq.s32.totalorder %v6305, 1
            %v6322 = vsel %vm6306, %v3003, -3e+38
            %v6323 = vsel %vm6306, %v3004, -3e+38
            %v6324 = vsel %vm6306, %v3005, -3e+38
            %v6325 = vsel %vm6306, %v3006, -3e+38
            %v6326 = vsel %vm6307, %v3007, -3e+38
            %v6327 = vsel %vm6307, %v3008, -3e+38
            %v6328 = vsel %vm6307, %v3009, -3e+38
            %v6329 = vsel %vm6307, %v3010, -3e+38
            %v6330 = vsel %vm6308, %v3011, -3e+38
            %v6331 = vsel %vm6308, %v3012, -3e+38
            %v6332 = vsel %vm6308, %v3013, -3e+38
            %v6333 = vsel %vm6308, %v3014, -3e+38
            %v6334 = vsel %vm6309, %v3015, -3e+38
            %v6335 = vsel %vm6309, %v3016, -3e+38
            %v6336 = vsel %vm6309, %v3017, -3e+38
            %v6337 = vsel %vm6309, %v3018, -3e+38
            %v6338 = vsel %vm6310, %v3019, -3e+38
            %v6339 = vsel %vm6310, %v3020, -3e+38
            %v6340 = vsel %vm6310, %v3021, -3e+38
            %v6341 = vsel %vm6310, %v3022, -3e+38
            %v6342 = vsel %vm6311, %v3023, -3e+38
            %v6343 = vsel %vm6311, %v3024, -3e+38
            %v6344 = vsel %vm6311, %v3025, -3e+38
            %v6345 = vsel %vm6311, %v3026, -3e+38
            %v6346 = vsel %vm6312, %v3027, -3e+38
            %v6347 = vsel %vm6312, %v3028, -3e+38
            %v6348 = vsel %vm6312, %v3029, -3e+38
            %v6349 = vsel %vm6312, %v3030, -3e+38
            %v6350 = vsel %vm6313, %v3031, -3e+38
            %v6351 = vsel %vm6313, %v3032, -3e+38
            %v6352 = vsel %vm6313, %v3033, -3e+38
            %v6353 = vsel %vm6313, %v3034, -3e+38
            %v6354 = vsel %vm6314, %v3035, -3e+38
            %v6355 = vsel %vm6314, %v3036, -3e+38
            %v6356 = vsel %vm6314, %v3037, -3e+38
            %v6357 = vsel %vm6314, %v3038, -3e+38
            %v6358 = vsel %vm6315, %v3039, -3e+38
            %v6359 = vsel %vm6315, %v3040, -3e+38
            %v6360 = vsel %vm6315, %v3041, -3e+38
            %v6361 = vsel %vm6315, %v3042, -3e+38
            %v6362 = vsel %vm6316, %v3043, -3e+38
            %v6363 = vsel %vm6316, %v3044, -3e+38
            %v6364 = vsel %vm6316, %v3045, -3e+38
            %v6365 = vsel %vm6316, %v3046, -3e+38
            %v6366 = vsel %vm6317, %v3047, -3e+38
            %v6367 = vsel %vm6317, %v3048, -3e+38
            %v6368 = vsel %vm6317, %v3049, -3e+38
            %v6369 = vsel %vm6317, %v3050, -3e+38
            %v6370 = vsel %vm6318, %v3051, -3e+38
            %v6371 = vsel %vm6318, %v3052, -3e+38
            %v6372 = vsel %vm6318, %v3053, -3e+38
            %v6373 = vsel %vm6318, %v3054, -3e+38
            %v6374 = vsel %vm6319, %v3055, -3e+38
            %v6375 = vsel %vm6319, %v3056, -3e+38
            %v6376 = vsel %vm6319, %v3057, -3e+38
            %v6377 = vsel %vm6319, %v3058, -3e+38
            %v6378 = vsel %vm6320, %v3059, -3e+38
            %v6379 = vsel %vm6320, %v3060, -3e+38
            %v6380 = vsel %vm6320, %v3061, -3e+38
            %v6381 = vsel %vm6320, %v3062, -3e+38
            %v6382 = vsel %vm6321, %v3063, -3e+38
            %v6383 = vsel %vm6321, %v3064, -3e+38
            %v6384 = vsel %vm6321, %v3065, -3e+38
            %v6385 = vsel %vm6321, %v3066, -3e+38
            %v6386 = vmax.f32 %v6322, %v6326
            %v6387 = vmax.f32 %v6386, %v6330
            %v6388 = vmax.f32 %v6387, %v6334
            %v6389 = vmax.f32 %v6388, %v6338
            %v6390 = vmax.f32 %v6389, %v6342
            %v6391 = vmax.f32 %v6390, %v6346
            %v6392 = vmax.f32 %v6391, %v6350
            %v6393 = vmax.f32 %v6392, %v6354
            %v6394 = vmax.f32 %v6393, %v6358
            %v6395 = vmax.f32 %v6394, %v6362
            %v6396 = vmax.f32 %v6395, %v6366
            %v6397 = vmax.f32 %v6396, %v6370
            %v6398 = vmax.f32 %v6397, %v6374
            %v6399 = vmax.f32 %v6398, %v6378
            %v6400 = vmax.f32 %v6399, %v6382
            %v6401 = vrot.slane %v6400, 4
            %v6402 = vmax.f32 %v6400, %v6401
            %v6403 = vrot.slane %v6402, 2
            %v6404 = vmax.f32 %v6402, %v6403
            %v6405 = vrot.slane %v6404, 1
            %v6406 = vmax.f32 %v6404, %v6405
            %v6407 = vmax.f32 %v6323, %v6327
            %v6408 = vmax.f32 %v6407, %v6331
            %v6409 = vmax.f32 %v6408, %v6335
            %v6410 = vmax.f32 %v6409, %v6339
            %v6411 = vmax.f32 %v6410, %v6343
            %v6412 = vmax.f32 %v6411, %v6347
            %v6413 = vmax.f32 %v6412, %v6351
            %v6414 = vmax.f32 %v6413, %v6355
            %v6415 = vmax.f32 %v6414, %v6359
            %v6416 = vmax.f32 %v6415, %v6363
            %v6417 = vmax.f32 %v6416, %v6367
            %v6418 = vmax.f32 %v6417, %v6371
            %v6419 = vmax.f32 %v6418, %v6375
            %v6420 = vmax.f32 %v6419, %v6379
            %v6421 = vmax.f32 %v6420, %v6383
            %v6422 = vrot.slane %v6421, 4
            %v6423 = vmax.f32 %v6421, %v6422
            %v6424 = vrot.slane %v6423, 2
            %v6425 = vmax.f32 %v6423, %v6424
            %v6426 = vrot.slane %v6425, 1
            %v6427 = vmax.f32 %v6425, %v6426
            %v6428 = vmax.f32 %v6324, %v6328
            %v6429 = vmax.f32 %v6428, %v6332
            %v6430 = vmax.f32 %v6429, %v6336
            %v6431 = vmax.f32 %v6430, %v6340
            %v6432 = vmax.f32 %v6431, %v6344
            %v6433 = vmax.f32 %v6432, %v6348
            %v6434 = vmax.f32 %v6433, %v6352
            %v6435 = vmax.f32 %v6434, %v6356
            %v6436 = vmax.f32 %v6435, %v6360
            %v6437 = vmax.f32 %v6436, %v6364
            %v6438 = vmax.f32 %v6437, %v6368
            %v6439 = vmax.f32 %v6438, %v6372
            %v6440 = vmax.f32 %v6439, %v6376
            %v6441 = vmax.f32 %v6440, %v6380
            %v6442 = vmax.f32 %v6441, %v6384
            %v6443 = vrot.slane %v6442, 4
            %v6444 = vmax.f32 %v6442, %v6443
            %v6445 = vrot.slane %v6444, 2
            %v6446 = vmax.f32 %v6444, %v6445
            %v6447 = vrot.slane %v6446, 1
            %v6448 = vmax.f32 %v6446, %v6447
            %v6449 = vmax.f32 %v6325, %v6329
            %v6450 = vmax.f32 %v6449, %v6333
            %v6451 = vmax.f32 %v6450, %v6337
            %v6452 = vmax.f32 %v6451, %v6341
            %v6453 = vmax.f32 %v6452, %v6345
            %v6454 = vmax.f32 %v6453, %v6349
            %v6455 = vmax.f32 %v6454, %v6353
            %v6456 = vmax.f32 %v6455, %v6357
            %v6457 = vmax.f32 %v6456, %v6361
            %v6458 = vmax.f32 %v6457, %v6365
            %v6459 = vmax.f32 %v6458, %v6369
            %v6460 = vmax.f32 %v6459, %v6373
            %v6461 = vmax.f32 %v6460, %v6377
            %v6462 = vmax.f32 %v6461, %v6381
            %v6463 = vmax.f32 %v6462, %v6385
            %v6464 = vrot.slane %v6463, 4
            %v6465 = vmax.f32 %v6463, %v6464
            %v6466 = vrot.slane %v6465, 2
            %v6467 = vmax.f32 %v6465, %v6466
            %v6468 = vrot.slane %v6467, 1
            %v6469 = vmax.f32 %v6467, %v6468
            %v6470 = vlaneseq
            %v6471 = vshrl.u32 %v6470, 7
            %v6472 = vsub.s32 7, %v6471
            %v6473 = vrot.slane %v4628, %v6472
            %6475 = vbcast.lane.b32.xlu0 %v6473, 256
            %v6476 = vpop.permute.xlu0 %6475
            %s6478 = sor.u32 256, 8
            %6479 = vbcast.lane.b32.xlu0 %v6473, %s6478
            %v6480 = vpop.permute.xlu0 %6479
            %s6482 = sor.u32 256, 16
            %6483 = vbcast.lane.b32.xlu0 %v6473, %s6482
            %v6484 = vpop.permute.xlu0 %6483
            %s6486 = sor.u32 256, 24
            %6487 = vbcast.lane.b32.xlu0 %v6473, %s6486
            %v6488 = vpop.permute.xlu0 %6487
            %s6490 = sor.u32 256, 32
            %6491 = vbcast.lane.b32.xlu0 %v6473, %s6490
            %v6492 = vpop.permute.xlu0 %6491
            %s6494 = sor.u32 256, 40
            %6495 = vbcast.lane.b32.xlu0 %v6473, %s6494
            %v6496 = vpop.permute.xlu0 %6495
            %s6498 = sor.u32 256, 48
            %6499 = vbcast.lane.b32.xlu0 %v6473, %s6498
            %v6500 = vpop.permute.xlu0 %6499
            %s6502 = sor.u32 256, 56
            %6503 = vbcast.lane.b32.xlu0 %v6473, %s6502
            %v6504 = vpop.permute.xlu0 %6503
            %s6506 = sor.u32 256, 64
            %6507 = vbcast.lane.b32.xlu0 %v6473, %s6506
            %v6508 = vpop.permute.xlu0 %6507
            %s6510 = sor.u32 256, 72
            %6511 = vbcast.lane.b32.xlu0 %v6473, %s6510
            %v6512 = vpop.permute.xlu0 %6511
            %s6514 = sor.u32 256, 80
            %6515 = vbcast.lane.b32.xlu0 %v6473, %s6514
            %v6516 = vpop.permute.xlu0 %6515
            %s6518 = sor.u32 256, 88
            %6519 = vbcast.lane.b32.xlu0 %v6473, %s6518
            %v6520 = vpop.permute.xlu0 %6519
            %s6522 = sor.u32 256, 96
            %6523 = vbcast.lane.b32.xlu0 %v6473, %s6522
            %v6524 = vpop.permute.xlu0 %6523
            %s6526 = sor.u32 256, 104
            %6527 = vbcast.lane.b32.xlu0 %v6473, %s6526
            %v6528 = vpop.permute.xlu0 %6527
            %s6530 = sor.u32 256, 112
            %6531 = vbcast.lane.b32.xlu0 %v6473, %s6530
            %v6532 = vpop.permute.xlu0 %6531
            %s6534 = sor.u32 256, 120
            %6535 = vbcast.lane.b32.xlu0 %v6473, %s6534
            %v6536 = vpop.permute.xlu0 %6535
            %vm6537 = vcmp.gt.f32.partialorder %v6476, 0.0
            %vm6538 = vcmp.gt.f32.partialorder %v6480, 0.0
            %vm6539 = vcmp.gt.f32.partialorder %v6484, 0.0
            %vm6540 = vcmp.gt.f32.partialorder %v6488, 0.0
            %vm6541 = vcmp.gt.f32.partialorder %v6492, 0.0
            %vm6542 = vcmp.gt.f32.partialorder %v6496, 0.0
            %vm6543 = vcmp.gt.f32.partialorder %v6500, 0.0
            %vm6544 = vcmp.gt.f32.partialorder %v6504, 0.0
            %vm6545 = vcmp.gt.f32.partialorder %v6508, 0.0
            %vm6546 = vcmp.gt.f32.partialorder %v6512, 0.0
            %vm6547 = vcmp.gt.f32.partialorder %v6516, 0.0
            %vm6548 = vcmp.gt.f32.partialorder %v6520, 0.0
            %vm6549 = vcmp.gt.f32.partialorder %v6524, 0.0
            %vm6550 = vcmp.gt.f32.partialorder %v6528, 0.0
            %vm6551 = vcmp.gt.f32.partialorder %v6532, 0.0
            %vm6552 = vcmp.gt.f32.partialorder %v6536, 0.0
            %v6553 = vsel %vm6537, 1, 0
            %v6554 = vsel %vm6538, 1, 0
            %v6555 = vsel %vm6539, 1, 0
            %v6556 = vsel %vm6540, 1, 0
            %v6557 = vsel %vm6541, 1, 0
            %v6558 = vsel %vm6542, 1, 0
            %v6559 = vsel %vm6543, 1, 0
            %v6560 = vsel %vm6544, 1, 0
            %v6561 = vsel %vm6545, 1, 0
            %v6562 = vsel %vm6546, 1, 0
            %v6563 = vsel %vm6547, 1, 0
            %v6564 = vsel %vm6548, 1, 0
            %v6565 = vsel %vm6549, 1, 0
            %v6566 = vsel %vm6550, 1, 0
            %v6567 = vsel %vm6551, 1, 0
            %v6568 = vsel %vm6552, 1, 0
            %vm6569 = vcmp.eq.s32.totalorder %v6553, 1
            %vm6570 = vcmp.eq.s32.totalorder %v6554, 1
            %vm6571 = vcmp.eq.s32.totalorder %v6555, 1
            %vm6572 = vcmp.eq.s32.totalorder %v6556, 1
            %vm6573 = vcmp.eq.s32.totalorder %v6557, 1
            %vm6574 = vcmp.eq.s32.totalorder %v6558, 1
            %vm6575 = vcmp.eq.s32.totalorder %v6559, 1
            %vm6576 = vcmp.eq.s32.totalorder %v6560, 1
            %vm6577 = vcmp.eq.s32.totalorder %v6561, 1
            %vm6578 = vcmp.eq.s32.totalorder %v6562, 1
            %vm6579 = vcmp.eq.s32.totalorder %v6563, 1
            %vm6580 = vcmp.eq.s32.totalorder %v6564, 1
            %vm6581 = vcmp.eq.s32.totalorder %v6565, 1
            %vm6582 = vcmp.eq.s32.totalorder %v6566, 1
            %vm6583 = vcmp.eq.s32.totalorder %v6567, 1
            %vm6584 = vcmp.eq.s32.totalorder %v6568, 1
            %v6585 = vsel %vm6569, %v3003, -3e+38
            %v6586 = vsel %vm6569, %v3004, -3e+38
            %v6587 = vsel %vm6569, %v3005, -3e+38
            %v6588 = vsel %vm6569, %v3006, -3e+38
            %v6589 = vsel %vm6570, %v3007, -3e+38
            %v6590 = vsel %vm6570, %v3008, -3e+38
            %v6591 = vsel %vm6570, %v3009, -3e+38
            %v6592 = vsel %vm6570, %v3010, -3e+38
            %v6593 = vsel %vm6571, %v3011, -3e+38
            %v6594 = vsel %vm6571, %v3012, -3e+38
            %v6595 = vsel %vm6571, %v3013, -3e+38
            %v6596 = vsel %vm6571, %v3014, -3e+38
            %v6597 = vsel %vm6572, %v3015, -3e+38
            %v6598 = vsel %vm6572, %v3016, -3e+38
            %v6599 = vsel %vm6572, %v3017, -3e+38
            %v6600 = vsel %vm6572, %v3018, -3e+38
            %v6601 = vsel %vm6573, %v3019, -3e+38
            %v6602 = vsel %vm6573, %v3020, -3e+38
            %v6603 = vsel %vm6573, %v3021, -3e+38
            %v6604 = vsel %vm6573, %v3022, -3e+38
            %v6605 = vsel %vm6574, %v3023, -3e+38
            %v6606 = vsel %vm6574, %v3024, -3e+38
            %v6607 = vsel %vm6574, %v3025, -3e+38
            %v6608 = vsel %vm6574, %v3026, -3e+38
            %v6609 = vsel %vm6575, %v3027, -3e+38
            %v6610 = vsel %vm6575, %v3028, -3e+38
            %v6611 = vsel %vm6575, %v3029, -3e+38
            %v6612 = vsel %vm6575, %v3030, -3e+38
            %v6613 = vsel %vm6576, %v3031, -3e+38
            %v6614 = vsel %vm6576, %v3032, -3e+38
            %v6615 = vsel %vm6576, %v3033, -3e+38
            %v6616 = vsel %vm6576, %v3034, -3e+38
            %v6617 = vsel %vm6577, %v3035, -3e+38
            %v6618 = vsel %vm6577, %v3036, -3e+38
            %v6619 = vsel %vm6577, %v3037, -3e+38
            %v6620 = vsel %vm6577, %v3038, -3e+38
            %v6621 = vsel %vm6578, %v3039, -3e+38
            %v6622 = vsel %vm6578, %v3040, -3e+38
            %v6623 = vsel %vm6578, %v3041, -3e+38
            %v6624 = vsel %vm6578, %v3042, -3e+38
            %v6625 = vsel %vm6579, %v3043, -3e+38
            %v6626 = vsel %vm6579, %v3044, -3e+38
            %v6627 = vsel %vm6579, %v3045, -3e+38
            %v6628 = vsel %vm6579, %v3046, -3e+38
            %v6629 = vsel %vm6580, %v3047, -3e+38
            %v6630 = vsel %vm6580, %v3048, -3e+38
            %v6631 = vsel %vm6580, %v3049, -3e+38
            %v6632 = vsel %vm6580, %v3050, -3e+38
            %v6633 = vsel %vm6581, %v3051, -3e+38
            %v6634 = vsel %vm6581, %v3052, -3e+38
            %v6635 = vsel %vm6581, %v3053, -3e+38
            %v6636 = vsel %vm6581, %v3054, -3e+38
            %v6637 = vsel %vm6582, %v3055, -3e+38
            %v6638 = vsel %vm6582, %v3056, -3e+38
            %v6639 = vsel %vm6582, %v3057, -3e+38
            %v6640 = vsel %vm6582, %v3058, -3e+38
            %v6641 = vsel %vm6583, %v3059, -3e+38
            %v6642 = vsel %vm6583, %v3060, -3e+38
            %v6643 = vsel %vm6583, %v3061, -3e+38
            %v6644 = vsel %vm6583, %v3062, -3e+38
            %v6645 = vsel %vm6584, %v3063, -3e+38
            %v6646 = vsel %vm6584, %v3064, -3e+38
            %v6647 = vsel %vm6584, %v3065, -3e+38
            %v6648 = vsel %vm6584, %v3066, -3e+38
            %v6649 = vmax.f32 %v6585, %v6589
            %v6650 = vmax.f32 %v6649, %v6593
            %v6651 = vmax.f32 %v6650, %v6597
            %v6652 = vmax.f32 %v6651, %v6601
            %v6653 = vmax.f32 %v6652, %v6605
            %v6654 = vmax.f32 %v6653, %v6609
            %v6655 = vmax.f32 %v6654, %v6613
            %v6656 = vmax.f32 %v6655, %v6617
            %v6657 = vmax.f32 %v6656, %v6621
            %v6658 = vmax.f32 %v6657, %v6625
            %v6659 = vmax.f32 %v6658, %v6629
            %v6660 = vmax.f32 %v6659, %v6633
            %v6661 = vmax.f32 %v6660, %v6637
            %v6662 = vmax.f32 %v6661, %v6641
            %v6663 = vmax.f32 %v6662, %v6645
            %v6664 = vrot.slane %v6663, 4
            %v6665 = vmax.f32 %v6663, %v6664
            %v6666 = vrot.slane %v6665, 2
            %v6667 = vmax.f32 %v6665, %v6666
            %v6668 = vrot.slane %v6667, 1
            %v6669 = vmax.f32 %v6667, %v6668
            %v6670 = vmax.f32 %v6586, %v6590
            %v6671 = vmax.f32 %v6670, %v6594
            %v6672 = vmax.f32 %v6671, %v6598
            %v6673 = vmax.f32 %v6672, %v6602
            %v6674 = vmax.f32 %v6673, %v6606
            %v6675 = vmax.f32 %v6674, %v6610
            %v6676 = vmax.f32 %v6675, %v6614
            %v6677 = vmax.f32 %v6676, %v6618
            %v6678 = vmax.f32 %v6677, %v6622
            %v6679 = vmax.f32 %v6678, %v6626
            %v6680 = vmax.f32 %v6679, %v6630
            %v6681 = vmax.f32 %v6680, %v6634
            %v6682 = vmax.f32 %v6681, %v6638
            %v6683 = vmax.f32 %v6682, %v6642
            %v6684 = vmax.f32 %v6683, %v6646
            %v6685 = vrot.slane %v6684, 4
            %v6686 = vmax.f32 %v6684, %v6685
            %v6687 = vrot.slane %v6686, 2
            %v6688 = vmax.f32 %v6686, %v6687
            %v6689 = vrot.slane %v6688, 1
            %v6690 = vmax.f32 %v6688, %v6689
            %v6691 = vmax.f32 %v6587, %v6591
            %v6692 = vmax.f32 %v6691, %v6595
            %v6693 = vmax.f32 %v6692, %v6599
            %v6694 = vmax.f32 %v6693, %v6603
            %v6695 = vmax.f32 %v6694, %v6607
            %v6696 = vmax.f32 %v6695, %v6611
            %v6697 = vmax.f32 %v6696, %v6615
            %v6698 = vmax.f32 %v6697, %v6619
            %v6699 = vmax.f32 %v6698, %v6623
            %v6700 = vmax.f32 %v6699, %v6627
            %v6701 = vmax.f32 %v6700, %v6631
            %v6702 = vmax.f32 %v6701, %v6635
            %v6703 = vmax.f32 %v6702, %v6639
            %v6704 = vmax.f32 %v6703, %v6643
            %v6705 = vmax.f32 %v6704, %v6647
            %v6706 = vrot.slane %v6705, 4
            %v6707 = vmax.f32 %v6705, %v6706
            %v6708 = vrot.slane %v6707, 2
            %v6709 = vmax.f32 %v6707, %v6708
            %v6710 = vrot.slane %v6709, 1
            %v6711 = vmax.f32 %v6709, %v6710
            %v6712 = vmax.f32 %v6588, %v6592
            %v6713 = vmax.f32 %v6712, %v6596
            %v6714 = vmax.f32 %v6713, %v6600
            %v6715 = vmax.f32 %v6714, %v6604
            %v6716 = vmax.f32 %v6715, %v6608
            %v6717 = vmax.f32 %v6716, %v6612
            %v6718 = vmax.f32 %v6717, %v6616
            %v6719 = vmax.f32 %v6718, %v6620
            %v6720 = vmax.f32 %v6719, %v6624
            %v6721 = vmax.f32 %v6720, %v6628
            %v6722 = vmax.f32 %v6721, %v6632
            %v6723 = vmax.f32 %v6722, %v6636
            %v6724 = vmax.f32 %v6723, %v6640
            %v6725 = vmax.f32 %v6724, %v6644
            %v6726 = vmax.f32 %v6725, %v6648
            %v6727 = vrot.slane %v6726, 4
            %v6728 = vmax.f32 %v6726, %v6727
            %v6729 = vrot.slane %v6728, 2
            %v6730 = vmax.f32 %v6728, %v6729
            %v6731 = vrot.slane %v6730, 1
            %v6732 = vmax.f32 %v6730, %v6731
            %v6733 = vld [vmem:[#allocation4] sm:$0xff]
            %v6734 = vld [vmem:[#allocation4 + $0x8] sm:$0xff]
            %v6735 = vld [vmem:[#allocation4 + $0x10] sm:$0xff]
            %v6736 = vld [vmem:[#allocation4 + $0x18] sm:$0xff]
            %vm6737 = vcmask 1040384
            %v6738 = vsel %vm6737, %v4828, %v5091
            %v6739 = vsel %vm6737, %v4849, %v5112
            %v6740 = vsel %vm6737, %v4870, %v5133
            %v6741 = vsel %vm6737, %v4891, %v5154
            %vm6742 = vcmask 1041408
            %v6743 = vsel %vm6742, %v6738, %v5354
            %v6744 = vsel %vm6742, %v6739, %v5375
            %v6745 = vsel %vm6742, %v6740, %v5396
            %v6746 = vsel %vm6742, %v6741, %v5417
            %vm6747 = vcmask 1042432
            %v6748 = vsel %vm6747, %v6743, %v5617
            %v6749 = vsel %vm6747, %v6744, %v5638
            %v6750 = vsel %vm6747, %v6745, %v5659
            %v6751 = vsel %vm6747, %v6746, %v5680
            %vm6752 = vcmask 1043456
            %v6753 = vsel %vm6752, %v6748, %v5880
            %v6754 = vsel %vm6752, %v6749, %v5901
            %v6755 = vsel %vm6752, %v6750, %v5922
            %v6756 = vsel %vm6752, %v6751, %v5943
            %vm6757 = vcmask 1044480
            %v6758 = vsel %vm6757, %v6753, %v6143
            %v6759 = vsel %vm6757, %v6754, %v6164
            %v6760 = vsel %vm6757, %v6755, %v6185
            %v6761 = vsel %vm6757, %v6756, %v6206
            %vm6762 = vcmask 1045504
            %v6763 = vsel %vm6762, %v6758, %v6406
            %v6764 = vsel %vm6762, %v6759, %v6427
            %v6765 = vsel %vm6762, %v6760, %v6448
            %v6766 = vsel %vm6762, %v6761, %v6469
            %vm6767 = vcmask 1046528
            %v6768 = vsel %vm6767, %v6763, %v6669
            %v6769 = vsel %vm6767, %v6764, %v6690
            %v6770 = vsel %vm6767, %v6765, %v6711
            %v6771 = vsel %vm6767, %v6766, %v6732
            %v6772 = vmax.f32 %v6733, %v6768
            %v6773 = vmax.f32 %v6734, %v6769
            %v6774 = vmax.f32 %v6735, %v6770
            %v6775 = vmax.f32 %v6736, %v6771
            %6776 = vst [vmem:[#allocation4] sm:$0xff] %v6772
            %6777 = vst [vmem:[#allocation4 + $0x8] sm:$0xff] %v6773
            %6778 = vst [vmem:[#allocation4 + $0x10] sm:$0xff] %v6774
            %6779 = vst [vmem:[#allocation4 + $0x18] sm:$0xff] %v6775
            // Predicated region
            $region89: #{tpu_custom_call.1} parent=83 // pred_check
              %p6780 = pneg %p4620
            $region90: #{tpu_custom_call.1} parent=83 // pred_check_branch
              %6782 = sbr.rel (%p6780) target = $region92
            $region91: #{tpu_custom_call.1} parent=83 // pred_region
              %v6783 = vld [vmem:[#allocation4] sm:$0xff]
              %v6784 = vld [vmem:[#allocation4 + $0x8] sm:$0xff]
              %v6785 = vld [vmem:[#allocation4 + $0x10] sm:$0xff]
              %v6786 = vld [vmem:[#allocation4 + $0x18] sm:$0xff]
              %6787 = vst [vmem:[#allocation15] sm:$0xff] %v6783
              %6788 = vst [vmem:[#allocation15 + $0x8] sm:$0xff] %v6784
              %6789 = vst [vmem:[#allocation15 + $0x10] sm:$0xff] %v6785
              %6790 = vst [vmem:[#allocation15 + $0x18] sm:$0xff] %v6786
            $region92: #{tpu_custom_call.1} parent=83 // pred_fallthru
              _
          $region84: #{tpu_custom_call.1} parent=67 // pred_fallthru
            _
        $region68: #{tpu_custom_call.1} parent=39 // pred_fallthru
          _
        %s6791 = sand.u32 %s207, 1
        %s6792 = scalar_lea.sflag [#allocation7], %s6791
        %s6793 = sand.u32 %s207, 1
        %s6794 = smul.addr %s6793, 512
        %s6795 = scalar_lea.vmem [#allocation14], %s6794
        // Predicated region
        $region93: #{tpu_custom_call.1} parent=39 // pred_check
          %p6796 = pneg %p217
        $region94: #{tpu_custom_call.1} parent=39 // pred_check_branch
          %6798 = sbr.rel (%p6796) target = $region96
        $region95: #{tpu_custom_call.1} parent=39 // pred_region
          %p6799 = scmp.eq.s32.totalorder %s35, 3
          %s6800 = scalar_select %p6799, %s36, 0
          %s6801 = smul.u32 16, %s6800
          %s6803 = ssub.s32 8192, 8192
          %6804 = vsyncadd %s6792, %s6803
          %s6805 = smul.addr %s6801, 4
          %s6806 = smul.addr %s6805, 128
          %s6807 = scalar_lea.hbm %s5, %s6806
          %s6808 = sshll.u32 %s6795, 4
          %s6809 = int_to_ptr.vmem [resolvable:$true] %s6808
          %6814 = dma.vmem_to_hbm [thread:$0]  %s6809, 8192, %s6807, %s6792, 512, 512, 32
        $region96: #{tpu_custom_call.1} parent=39 // pred_fallthru
          _
        // Predicated region
        $region97: #{tpu_custom_call.1} parent=39 // pred_check
          %p6815 = pneg %p238
        $region98: #{tpu_custom_call.1} parent=39 // pred_check_branch
          %6817 = sbr.rel (%p6815) target = $region100
        $region99: #{tpu_custom_call.1} parent=39 // pred_region
          %s6819 = ssub.s32 512, 512
          %6820 = vsyncadd [#allocation16], %s6819
          %s6822 = sshll.u32 [#allocation15], 4
          %s6823 = int_to_ptr.vmem [resolvable:$true] %s6822
          %6825 = dma.vmem_to_hbm [thread:$0]  %s6823, 512, %s6, [#allocation16]
        $region100: #{tpu_custom_call.1} parent=39 // pred_fallthru
          _
        // Predicated region
        $region101: #{tpu_custom_call.1} parent=39 // pred_check
          %p6826 = pneg %p238
        $region102: #{tpu_custom_call.1} parent=39 // pred_check_branch
          %6828 = sbr.rel (%p6826) target = $region104
        $region103: #{tpu_custom_call.1} parent=39 // pred_region
          %6829 = dma.done [#allocation16], 512
        $region104: #{tpu_custom_call.1} parent=39 // pred_fallthru
          _
      $region40: #{tpu_custom_call.1} parent=5 // pred_fallthru
        _
      %p6830 = scmp.le.s32.totalorder 2, %s26
      // Predicated region
      $region105: #{tpu_custom_call.1} parent=5 // pred_check
        %p6831 = pneg %p6830
      $region106: #{tpu_custom_call.1} parent=5 // pred_check_branch
        %6833 = sbr.rel (%p6831) target = $region108
      $region107: #{tpu_custom_call.1} parent=5 // pred_region
        %s6834 = ssub.s32 %s26, 2
        // Predicated region
        $region109: #{tpu_custom_call.1} parent=107 // pred_check
          %p6835 = pneg %p223
        $region110: #{tpu_custom_call.1} parent=107 // pred_check_branch
          %6837 = sbr.rel (%p6835) target = $region112
        $region111: #{tpu_custom_call.1} parent=107 // pred_region
          %s6838 = sand.u32 %s208, 1
          %s6839 = scalar_lea.sflag [#allocation7], %s6838
          %s6840 = sand.u32 %s208, 1
          %s6841 = smul.addr %s6840, 512
          %s6842 = scalar_lea.vmem [#allocation14], %s6841
          %6843 = dma.done %s6839, 8192
        $region112: #{tpu_custom_call.1} parent=107 // pred_fallthru
          _
      $region108: #{tpu_custom_call.1} parent=5 // pred_fallthru
        _
    $region6: #{tpu_custom_call.1} parent=1 // loop_footer
      %s30 = sadd.s32 1, %s26
    $region7: #{tpu_custom_call.1} parent=1 // loop_footer_branch
      %25 = sbr.rel target = $region3
    $region8: #{tpu_custom_call.1} parent=1 // loop_exit
      _
    %6844 = vsyncpa [#allocation6], 1
    %s6845 = scalar_lea.sflag [#allocation6], 1
    %6846 = vsyncpa %s6845, 1
    %6847 = vsyncpa [#allocation9], 1
    %s6848 = scalar_lea.sflag [#allocation9], 1
    %6849 = vsyncpa %s6848, 1
    %6850 = vsyncpa [#allocation12], 1
    %s6851 = scalar_lea.sflag [#allocation12], 1
    %6852 = vsyncpa %s6851, 1
    %6853 = vsyncpa [#allocation7], 1
    %s6854 = scalar_lea.sflag [#allocation7], 1
    %6855 = vsyncpa %s6854, 1
    %6856 = vsyncpa [#allocation16], 1

</llo_original>
